<compile_context>
chip_gen: v7x
topology: tpu7x:2x2x1
jax: 0.10.0
libtpu: 0.0.40
codegen_flags: <defaults>
</compile_context>

<pallas_src>
import functools

import jax
import jax.numpy as jnp
from jax.experimental import pallas as pl
from jax.experimental.pallas import tpu as pltpu

EPS = 1e-5
NEG_SLOPE = 0.01

_FUSED_VMEM_BUDGET = 6 * 1024 * 1024    # bytes; fused single-block path (safe on v5e/v6e/v7x)
_TILED_VMEM_BUDGET = 12 * 1024 * 1024   # bytes; per-step budget for the tiled two-pass path


def _round_up(x, m):
    return (x + m - 1) // m * m


# ----------------------------------------------------------------------------
# Pallas kernels
# ----------------------------------------------------------------------------
def _fused_conv_bn_lrelu_kernel(x_ref, w_ref, o_ref, *, inv_m):
    """conv-as-matmul + training-mode BatchNorm (gamma=1, beta=0) + LeakyReLU(0.01).

    No bias (it cancels under BN).  Padded rows of x are exactly zero, so they
    contribute nothing to the channel sums; inv_m = 1/#real_rows is a baked-in
    Python constant (no runtime divide).
    """
    y = jnp.dot(x_ref[...], w_ref[...], preferred_element_type=jnp.float32)
    s = jnp.sum(y, axis=0, keepdims=True)
    ssq = jnp.sum(y * y, axis=0, keepdims=True)
    mean = s * inv_m
    var = jnp.maximum(ssq * inv_m - mean * mean, 0.0)   # guard against negative cancellation
    yn = (y - mean) * jax.lax.rsqrt(var + EPS)
    o_ref[...] = jnp.where(yn > 0, yn, NEG_SLOPE * yn).astype(o_ref.dtype)


def _conv_stats_kernel(x_ref, w_ref, y_ref, sum_ref, ssq_ref):
    """Tiled conv matmul that also accumulates per-channel sum / sum-of-squares.

    sum_ref/ssq_ref map to the same block for every grid step (resident
    accumulators across the 'arbitrary' M axis, P3 pattern).
    """
    @pl.when(pl.program_id(0) == 0)
    def _():
        sum_ref[...] = jnp.zeros_like(sum_ref)
        ssq_ref[...] = jnp.zeros_like(ssq_ref)

    y = jnp.dot(x_ref[...], w_ref[...], preferred_element_type=jnp.float32)
    y_ref[...] = y.astype(y_ref.dtype)
    sum_ref[...] += jnp.sum(y, axis=0, keepdims=True)
    ssq_ref[...] += jnp.sum(y * y, axis=0, keepdims=True)


def _bn_lrelu_apply_kernel(y_ref, mean_ref, rstd_ref, o_ref):
    yn = (y_ref[...].astype(jnp.float32) - mean_ref[...]) * rstd_ref[...]
    o_ref[...] = jnp.where(yn > 0, yn, NEG_SLOPE * yn).astype(o_ref.dtype)


def _matmul_bias_kernel(x_ref, w_ref, b_ref, o_ref):
    # Only used for the final 1x1 conv (no BN, so bias is kept).
    o_ref[...] = (
        jnp.dot(x_ref[...], w_ref[...], preferred_element_type=jnp.float32)
        + b_ref[...]
    ).astype(o_ref.dtype)


# ----------------------------------------------------------------------------
# Pallas wrappers
# ----------------------------------------------------------------------------
def _conv_bn_lrelu_matmul(x_cols, w_pad, m_real, out_dtype=jnp.bfloat16,
                          force_two_pass=False):
    """x_cols: [M, K] bf16 (unpadded), w_pad: [K_pad, C_pad] bf16 (pre-padded at init).

    Returns [M, C_pad] of out_dtype (normalized + LeakyReLU'd).
    """
    M, K = x_cols.shape
    Kp, Cp = w_pad.shape
    inv_m = 1.0 / float(m_real)

    # --- fused single-block path (matmul + BN + LeakyReLU in one pallas_call) ---
    Mp8 = _round_up(M, 8)
    fused_bytes = (2 * Mp8 * Kp * 2          # double-buffered bf16 x tile
                   + Kp * Cp * 2             # resident bf16 weights
                   + 2 * Mp8 * Cp * 2        # double-buffered output tile
                   + Mp8 * Cp * 4)           # f32 intermediate y
    if not force_two_pass and fused_bytes <= _FUSED_VMEM_BUDGET:
        Mp = Mp8
        x_p = jnp.pad(x_cols, ((0, Mp - M), (0, Kp - K)))
        out = pl.pallas_call(
            functools.partial(_fused_conv_bn_lrelu_kernel, inv_m=inv_m),
            out_shape=jax.ShapeDtypeStruct((Mp, Cp), out_dtype),
            grid=(1,),
            in_specs=[pl.BlockSpec((Mp, Kp), lambda i: (0, 0)),
                      pl.BlockSpec((Kp, Cp), lambda i: (0, 0))],
            out_specs=pl.BlockSpec((Mp, Cp), lambda i: (0, 0)),
        )(x_p, w_pad)
        return out[:M]

    # --- two-pass tiled path for large M ---
    TM = 512
    while TM > 8 and (2 * TM * Kp * 2 + Kp * Cp * 2 + 2 * TM * Cp * 2
                      + 4 * Cp * 4) > _TILED_VMEM_BUDGET:
        TM //= 2
    Mp = _round_up(M, TM)
    x_p = jnp.pad(x_cols, ((0, Mp - M), (0, Kp - K)))
    nm = Mp // TM

    y, ssum, ssq = pl.pallas_call(
        _conv_stats_kernel,
        out_shape=(jax.ShapeDtypeStruct((Mp, Cp), jnp.bfloat16),
                   jax.ShapeDtypeStruct((1, Cp), jnp.float32),
                   jax.ShapeDtypeStruct((1, Cp), jnp.float32)),
        grid=(nm,),
        in_specs=[pl.BlockSpec((TM, Kp), lambda i: (i, 0)),
                  pl.BlockSpec((Kp, Cp), lambda i: (0, 0))],
        out_specs=(pl.BlockSpec((TM, Cp), lambda i: (i, 0)),
                   pl.BlockSpec((1, Cp), lambda i: (0, 0)),
                   pl.BlockSpec((1, Cp), lambda i: (0, 0))),
        compiler_params=pltpu.CompilerParams(dimension_semantics=("arbitrary",)),
    )(x_p, w_pad)

    mean = ssum * inv_m                                   # tiny [1, Cp] math in JAX
    var = jnp.maximum(ssq * inv_m - mean * mean, 0.0)
    rstd = jax.lax.rsqrt(var + EPS)

    out = pl.pallas_call(
        _bn_lrelu_apply_kernel,
        out_shape=jax.ShapeDtypeStruct((Mp, Cp), out_dtype),
        grid=(nm,),
        in_specs=[pl.BlockSpec((TM, Cp), lambda i: (i, 0)),
                  pl.BlockSpec((1, Cp), lambda i: (0, 0)),
                  pl.BlockSpec((1, Cp), lambda i: (0, 0))],
        out_specs=pl.BlockSpec((TM, Cp), lambda i: (i, 0)),
        compiler_params=pltpu.CompilerParams(dimension_semantics=("parallel",)),
    )(y, mean, rstd)
    return out[:M]


def _matmul_bias(x2d, w_pad, b_pad, out_dtype=jnp.float32):
    """x2d: [M, K]; w_pad: [K_pad, C_pad] bf16; b_pad: [1, C_pad] f32."""
    M, K = x2d.shape
    Kp, Cp = w_pad.shape
    TM = 512
    if M <= TM:
        TM = _round_up(M, 8)
    Mp = _round_up(M, TM)
    x_p = jnp.pad(x2d.astype(jnp.bfloat16), ((0, Mp - M), (0, Kp - K)))
    out = pl.pallas_call(
        _matmul_bias_kernel,
        out_shape=jax.ShapeDtypeStruct((Mp, Cp), out_dtype),
        grid=(Mp // TM,),
        in_specs=[pl.BlockSpec((TM, Kp), lambda i: (i, 0)),
                  pl.BlockSpec((Kp, Cp), lambda i: (0, 0)),
                  pl.BlockSpec((1, Cp), lambda i: (0, 0))],
        out_specs=pl.BlockSpec((TM, Cp), lambda i: (i, 0)),
        compiler_params=pltpu.CompilerParams(dimension_semantics=("parallel",)),
    )(x_p, w_pad, b_pad)
    return out[:M]


# ----------------------------------------------------------------------------
# Layer helpers (NHWC)
# ----------------------------------------------------------------------------
def _im2col_3x3(x):
    # x: [N, H, W, Cin] -> [N*H*W, 9*Cin]   (SAME padding, stride 1)
    N, H, W, C = x.shape
    xp = jnp.pad(x, ((0, 0), (1, 1), (1, 1), (0, 0)))
    cols = [xp[:, dy:dy + H, dx:dx + W, :] for dy in range(3) for dx in range(3)]
    return jnp.concatenate(cols, axis=-1).reshape(N * H * W, 9 * C)


def conv3x3_bn_lrelu(x, p, out_dtype=jnp.bfloat16, force_two_pass=False):
    # x: [N,H,W,Cin] -> [N,H,W,Cout]   (Conv3x3 (no bias) + BN(train) + LeakyReLU)
    N, H, W, _ = x.shape
    cols = _im2col_3x3(x.astype(jnp.bfloat16))
    out = _conv_bn_lrelu_matmul(cols, p["w"], N * H * W,
                                out_dtype=out_dtype, force_two_pass=force_two_pass)
    return out[:, :p["cout"]].reshape(N, H, W, p["cout"])


def conv1x1(x, p):
    N, H, W, Cin = x.shape
    out = _matmul_bias(x.reshape(N * H * W, Cin), p["w"], p["b"],
                       out_dtype=jnp.float32)
    return out[:, :p["cout"]].reshape(N, H, W, p["cout"])


def maxpool2x2(x):
    N, H, W, C = x.shape
    return x.reshape(N, H // 2, 2, W // 2, 2, C).max(axis=(2, 4))


def upsample2x(x):
    # nn.Upsample(scale_factor=2) default mode is 'nearest'
    return jnp.repeat(jnp.repeat(x, 2, axis=1), 2, axis=2)


# ----------------------------------------------------------------------------
# Parameters (deterministic synthetic init; padded / bf16-cast ONCE here)
# ----------------------------------------------------------------------------
def _init_conv3x3(key, cin, cout, scale=0.05):
    # Conv bias omitted on purpose: it feeds training-mode BatchNorm (gamma=1,
    # beta=0), which subtracts the per-channel batch mean, so it cancels exactly.
    w = scale * jax.random.normal(key, (3, 3, cin, cout), jnp.float32)
    kp = _round_up(9 * cin, 128)
    cp = _round_up(cout, 128)
    w_mat = jnp.pad(w.reshape(9 * cin, cout), ((0, kp - 9 * cin), (0, cp - cout)))
    return {"w": w_mat.astype(jnp.bfloat16), "cin": cin, "cout": cout}


def _init_conv1x1(key, cin, cout, scale=0.05):
    kw, kb = jax.random.split(key)
    w = scale * jax.random.normal(kw, (cin, cout), jnp.float32)
    b = scale * jax.random.normal(kb, (cout,), jnp.float32)
    kp = _round_up(cin, 128)
    cp = _round_up(cout, 128)
    w_mat = jnp.pad(w, ((0, kp - cin), (0, cp - cout))).astype(jnp.bfloat16)
    b_mat = jnp.pad(b, (0, cp - cout)).reshape(1, cp).astype(jnp.float32)
    return {"w": w_mat, "b": b_mat, "cin": cin, "cout": cout}


def _conv_block_params(key, cin, cout):
    k1, k2 = jax.random.split(key)
    return {"c1": _init_conv3x3(k1, cin, cout), "c2": _init_conv3x3(k2, cout, cout)}


def init_reg_net_params(key, img_ch=2, output_ch=2, initial_num_ch=8):
    nc = initial_num_ch
    ks = jax.random.split(key, 14)
    p = {}
    p["Conv1"] = _conv_block_params(ks[0], img_ch, nc)
    p["Conv2"] = _conv_block_params(ks[1], nc, 2 * nc)
    p["Conv3"] = _conv_block_params(ks[2], 2 * nc, 4 * nc)
    p["Conv4"] = _conv_block_params(ks[3], 4 * nc, 8 * nc)
    p["Conv5"] = _conv_block_params(ks[4], 8 * nc, 16 * nc)
    p["Up5"] = {"c": _init_conv3x3(ks[5], 16 * nc, 8 * nc)}
    p["Up_conv5"] = _conv_block_params(ks[6], 16 * nc, 8 * nc)
    p["Up4"] = {"c": _init_conv3x3(ks[7], 8 * nc, 4 * nc)}
    p["Up_conv4"] = _conv_block_params(ks[8], 8 * nc, 4 * nc)
    p["Up3"] = {"c": _init_conv3x3(ks[9], 4 * nc, 2 * nc)}
    p["Up_conv3"] = _conv_block_params(ks[10], 4 * nc, 2 * nc)
    p["Up2"] = {"c": _init_conv3x3(ks[11], 2 * nc, nc)}
    p["Up_conv2"] = _conv_block_params(ks[12], 2 * nc, nc)
    p["Conv_1x1"] = _init_conv1x1(ks[13], nc, output_ch)
    return p


# ----------------------------------------------------------------------------
# Forward pass (mirrors Reg_Net.forward)
# ----------------------------------------------------------------------------
def conv_block_fwd(p, x):
    x = conv3x3_bn_lrelu(x, p["c1"])
    x = conv3x3_bn_lrelu(x, p["c2"])
    return x


def up_conv_fwd(p, x):
    # TODO(synk): fuse the nearest 2x upsample into the conv input indexing.
    return conv3x3_bn_lrelu(upsample2x(x), p["c"])


def reg_net_forward(params, x_nchw):
    # NCHW (PyTorch convention) -> NHWC for the kernels
    x = jnp.transpose(x_nchw, (0, 2, 3, 1)).astype(jnp.bfloat16)

    x1 = conv_block_fwd(params["Conv1"], x)
    # (PyTorch forward does `print(x1.shape)` here; omitted to keep stdout clean)
    x2 = conv_block_fwd(params["Conv2"], maxpool2x2(x1))
    x3 = conv_block_fwd(params["Conv3"], maxpool2x2(x2))
    x4 = conv_block_fwd(params["Conv4"], maxpool2x2(x3))
    x5 = conv_block_fwd(params["Conv5"], maxpool2x2(x4))

    d5 = up_conv_fwd(params["Up5"], x5)
    d5 = conv_block_fwd(params["Up_conv5"], jnp.concatenate([x4, d5], axis=-1))
    d4 = up_conv_fwd(params["Up4"], d5)
    d4 = conv_block_fwd(params["Up_conv4"], jnp.concatenate([x3, d4], axis=-1))
    d3 = up_conv_fwd(params["Up3"], d4)
    d3 = conv_block_fwd(params["Up_conv3"], jnp.concatenate([x2, d3], axis=-1))
    d2 = up_conv_fwd(params["Up2"], d3)
    d2 = conv_block_fwd(params["Up_conv2"], jnp.concatenate([x1, d2], axis=-1))

    d1 = conv1x1(d2, params["Conv_1x1"])
    return jnp.transpose(d1, (0, 3, 1, 2)).astype(jnp.float32)  # back to NCHW

# TODO(synk): SpatialTransformNearest_unit / tanh / sigmoid are constructed in
# __init__ but never used in Reg_Net.forward, so they are not implemented here.


if __name__ == "__main__":
    key = jax.random.PRNGKey(0)
    pkey, xkey, tkey = jax.random.split(key, 3)

    IMG_CH, OUT_CH, NC = 2, 2, 8          # small instance of the module
    params = init_reg_net_params(pkey, img_ch=IMG_CH, output_ch=OUT_CH,
                                 initial_num_ch=NC)

    x = jax.random.normal(xkey, (2, IMG_CH, 16, 16), jnp.float32)  # NCHW input

    fwd = jax.jit(lambda inp: reg_net_forward(params, inp))
    out = jax.block_until_ready(fwd(x))

    assert out.shape == (2, OUT_CH, 16, 16)
    assert bool(jnp.all(jnp.isfinite(out)))

    # Exercise the tiled two-pass (large-M) path once so it is compiled & checked.
    pk1, pk2 = jax.random.split(tkey)
    p_big = _init_conv3x3(pk1, 8, 16)
    xt = jax.random.normal(pk2, (1, 32, 32, 8), jnp.float32)   # NHWC, M=1024 -> 2 M-tiles
    yt = conv3x3_bn_lrelu(xt, p_big, force_two_pass=True)
    yt = jax.block_until_ready(yt)
    assert yt.shape == (1, 32, 32, 16)
    assert bool(jnp.all(jnp.isfinite(yt.astype(jnp.float32))))

    print("KERNEL_OK")
</pallas_src>

<mosaic_0001>
module attributes {stable_mosaic.version = 11 : i64} {
  func.func @_fused_conv_bn_lrelu_kernel(%arg0: i32, %arg1: memref<512x128xbf16, #tpu.memory_space<vmem>>, %arg2: memref<128x128xbf16, #tpu.memory_space<vmem>>, %arg3: memref<512x128xbf16, #tpu.memory_space<vmem>>) attributes {dimension_semantics = [#tpu.dimension_semantics<arbitrary>], iteration_bounds = array<i64: 1>, scalar_prefetch = 0 : i64, scratch_operands = 0 : i64, tpu.core_type = #tpu.core_type<tc>, window_params = [{pipeline_mode = #tpu.pipeline_mode<synchronous>, transform_indices = @transform_0, window_bounds = array<i64: 512, 128>}, {pipeline_mode = #tpu.pipeline_mode<synchronous>, transform_indices = @transform_1, window_bounds = array<i64: 128, 128>}, {pipeline_mode = #tpu.pipeline_mode<synchronous>, transform_indices = @transform_2, window_bounds = array<i64: 512, 128>}]} {
    %c0 = arith.constant 0 : index
    %c0_0 = arith.constant 0 : index
    %0 = vector.load %arg1[%c0, %c0_0] : memref<512x128xbf16, #tpu.memory_space<vmem>>, vector<512x128xbf16>
    %c0_1 = arith.constant 0 : index
    %c0_2 = arith.constant 0 : index
    %1 = vector.load %arg2[%c0_1, %c0_2] : memref<128x128xbf16, #tpu.memory_space<vmem>>, vector<128x128xbf16>
    %cst = arith.constant dense<0.000000e+00> : vector<512x128xf32>
    %2 = tpu.matmul %0, %1, %cst {dimension_numbers = #tpu.dot_dimension_numbers<[1], [0], [0], [1], [0, 0, 1, 1], [], []>} : vector<512x128xbf16>, vector<128x128xbf16>, vector<512x128xf32> -> vector<512x128xf32>
    %cst_3 = arith.constant dense<0.000000e+00> : vector<128xf32>
    %3 = vector.multi_reduction <add>, %2, %cst_3 [0] : vector<512x128xf32> to vector<128xf32>
    %4 = vector.shape_cast %3 : vector<128xf32> to vector<1x128xf32>
    %5 = arith.mulf %2, %2 : vector<512x128xf32>
    %cst_4 = arith.constant dense<0.000000e+00> : vector<128xf32>
    %6 = vector.multi_reduction <add>, %5, %cst_4 [0] : vector<512x128xf32> to vector<128xf32>
    %7 = vector.shape_cast %6 : vector<128xf32> to vector<1x128xf32>
    %cst_5 = arith.constant 0.001953125 : f32
    %8 = vector.broadcast %cst_5 : f32 to vector<1x128xf32>
    %9 = arith.mulf %4, %8 : vector<1x128xf32>
    %cst_6 = arith.constant 0.001953125 : f32
    %10 = vector.broadcast %cst_6 : f32 to vector<1x128xf32>
    %11 = arith.mulf %7, %10 : vector<1x128xf32>
    %12 = arith.mulf %9, %9 : vector<1x128xf32>
    %13 = arith.subf %11, %12 : vector<1x128xf32>
    %cst_7 = arith.constant 0.000000e+00 : f32
    %14 = vector.broadcast %cst_7 : f32 to vector<1x128xf32>
    %15 = arith.maximumf %13, %14 : vector<1x128xf32>
    %16 = vector.broadcast %9 : vector<1x128xf32> to vector<512x128xf32>
    %17 = arith.subf %2, %16 : vector<512x128xf32>
    %cst_8 = arith.constant 9.99999974E-6 : f32
    %18 = vector.broadcast %cst_8 : f32 to vector<1x128xf32>
    %19 = arith.addf %15, %18 : vector<1x128xf32>
    %20 = math.rsqrt %19 : vector<1x128xf32>
    %21 = vector.broadcast %20 : vector<1x128xf32> to vector<512x128xf32>
    %22 = arith.mulf %17, %21 : vector<512x128xf32>
    %cst_9 = arith.constant 0.000000e+00 : f32
    %23 = vector.broadcast %cst_9 : f32 to vector<512x128xf32>
    %24 = arith.cmpf ogt, %22, %23 : vector<512x128xf32>
    %cst_10 = arith.constant 0.00999999977 : f32
    %25 = vector.broadcast %cst_10 : f32 to vector<512x128xf32>
    %26 = arith.mulf %25, %22 : vector<512x128xf32>
    %27 = arith.select %24, %22, %26 : vector<512x128xi1>, vector<512x128xf32>
    %28 = arith.truncf %27 : vector<512x128xf32> to vector<512x128xbf16>
    %c0_11 = arith.constant 0 : index
    %c0_12 = arith.constant 0 : index
    %29 = vector.load %arg3[%c0_11, %c0_12] : memref<512x128xbf16, #tpu.memory_space<vmem>>, vector<512x128xbf16>
    tpu.vector_store %arg3[%c0_11, %c0_12], %28 {strides = array<i32>} : memref<512x128xbf16, #tpu.memory_space<vmem>>, vector<512x128xbf16>,
    return
  }
  func.func @transform_0(%arg0: i32) -> (i32, i32) {
    %c0_i32 = arith.constant 0 : i32
    %c0_i32_0 = arith.constant 0 : i32
    %c0_i32_1 = arith.constant 0 : i32
    return %c0_i32, %c0_i32_0 : i32, i32
  }
  func.func @transform_1(%arg0: i32) -> (i32, i32) {
    %c0_i32 = arith.constant 0 : i32
    %c0_i32_0 = arith.constant 0 : i32
    %c0_i32_1 = arith.constant 0 : i32
    return %c0_i32, %c0_i32_0 : i32, i32
  }
  func.func @transform_2(%arg0: i32) -> (i32, i32) {
    %c0_i32 = arith.constant 0 : i32
    %c0_i32_0 = arith.constant 0 : i32
    %c0_i32_1 = arith.constant 0 : i32
    return %c0_i32, %c0_i32_0 : i32, i32
  }
}

module attributes {stable_mosaic.version = 11 : i64} {
  func.func @_fused_conv_bn_lrelu_kernel(%arg0: i32, %arg1: memref<128x128xbf16, #tpu.memory_space<vmem>>, %arg2: memref<128x128xbf16, #tpu.memory_space<vmem>>, %arg3: memref<128x128xbf16, #tpu.memory_space<vmem>>) attributes {dimension_semantics = [#tpu.dimension_semantics<arbitrary>], iteration_bounds = array<i64: 1>, scalar_prefetch = 0 : i64, scratch_operands = 0 : i64, tpu.core_type = #tpu.core_type<tc>, window_params = [{pipeline_mode = #tpu.pipeline_mode<synchronous>, transform_indices = @transform_0, window_bounds = array<i64: 128, 128>}, {pipeline_mode = #tpu.pipeline_mode<synchronous>, transform_indices = @transform_1, window_bounds = array<i64: 128, 128>}, {pipeline_mode = #tpu.pipeline_mode<synchronous>, transform_indices = @transform_2, window_bounds = array<i64: 128, 128>}]} {
    %c0 = arith.constant 0 : index
    %c0_0 = arith.constant 0 : index
    %0 = vector.load %arg1[%c0, %c0_0] : memref<128x128xbf16, #tpu.memory_space<vmem>>, vector<128x128xbf16>
    %c0_1 = arith.constant 0 : index
    %c0_2 = arith.constant 0 : index
    %1 = vector.load %arg2[%c0_1, %c0_2] : memref<128x128xbf16, #tpu.memory_space<vmem>>, vector<128x128xbf16>
    %cst = arith.constant dense<0.000000e+00> : vector<128x128xf32>
    %2 = tpu.matmul %0, %1, %cst {dimension_numbers = #tpu.dot_dimension_numbers<[1], [0], [0], [1], [0, 0, 1, 1], [], []>} : vector<128x128xbf16>, vector<128x128xbf16>, vector<128x128xf32> -> vector<128x128xf32>
    %cst_3 = arith.constant dense<0.000000e+00> : vector<128xf32>
    %3 = vector.multi_reduction <add>, %2, %cst_3 [0] : vector<128x128xf32> to vector<128xf32>
    %4 = vector.shape_cast %3 : vector<128xf32> to vector<1x128xf32>
    %5 = arith.mulf %2, %2 : vector<128x128xf32>
    %cst_4 = arith.constant dense<0.000000e+00> : vector<128xf32>
    %6 = vector.multi_reduction <add>, %5, %cst_4 [0] : vector<128x128xf32> to vector<128xf32>
    %7 = vector.shape_cast %6 : vector<128xf32> to vector<1x128xf32>
    %cst_5 = arith.constant 7.812500e-03 : f32
    %8 = vector.broadcast %cst_5 : f32 to vector<1x128xf32>
    %9 = arith.mulf %4, %8 : vector<1x128xf32>
    %cst_6 = arith.constant 7.812500e-03 : f32
    %10 = vector.broadcast %cst_6 : f32 to vector<1x128xf32>
    %11 = arith.mulf %7, %10 : vector<1x128xf32>
    %12 = arith.mulf %9, %9 : vector<1x128xf32>
    %13 = arith.subf %11, %12 : vector<1x128xf32>
    %cst_7 = arith.constant 0.000000e+00 : f32
    %14 = vector.broadcast %cst_7 : f32 to vector<1x128xf32>
    %15 = arith.maximumf %13, %14 : vector<1x128xf32>
    %16 = vector.broadcast %9 : vector<1x128xf32> to vector<128x128xf32>
    %17 = arith.subf %2, %16 : vector<128x128xf32>
    %cst_8 = arith.constant 9.99999974E-6 : f32
    %18 = vector.broadcast %cst_8 : f32 to vector<1x128xf32>
    %19 = arith.addf %15, %18 : vector<1x128xf32>
    %20 = math.rsqrt %19 : vector<1x128xf32>
    %21 = vector.broadcast %20 : vector<1x128xf32> to vector<128x128xf32>
    %22 = arith.mulf %17, %21 : vector<128x128xf32>
    %cst_9 = arith.constant 0.000000e+00 : f32
    %23 = vector.broadcast %cst_9 : f32 to vector<128x128xf32>
    %24 = arith.cmpf ogt, %22, %23 : vector<128x128xf32>
    %cst_10 = arith.constant 0.00999999977 : f32
    %25 = vector.broadcast %cst_10 : f32 to vector<128x128xf32>
    %26 = arith.mulf %25, %22 : vector<128x128xf32>
    %27 = arith.select %24, %22, %26 : vector<128x128xi1>, vector<128x128xf32>
    %28 = arith.truncf %27 : vector<128x128xf32> to vector<128x128xbf16>
    %c0_11 = arith.constant 0 : index
    %c0_12 = arith.constant 0 : index
    %29 = vector.load %arg3[%c0_11, %c0_12] : memref<128x128xbf16, #tpu.memory_space<vmem>>, vector<128x128xbf16>
    tpu.vector_store %arg3[%c0_11, %c0_12], %28 {strides = array<i32>} : memref<128x128xbf16, #tpu.memory_space<vmem>>, vector<128x128xbf16>,
    return
  }
  func.func @transform_0(%arg0: i32) -> (i32, i32) {
    %c0_i32 = arith.constant 0 : i32
    %c0_i32_0 = arith.constant 0 : i32
    %c0_i32_1 = arith.constant 0 : i32
    return %c0_i32, %c0_i32_0 : i32, i32
  }
  func.func @transform_1(%arg0: i32) -> (i32, i32) {
    %c0_i32 = arith.constant 0 : i32
    %c0_i32_0 = arith.constant 0 : i32
    %c0_i32_1 = arith.constant 0 : i32
    return %c0_i32, %c0_i32_0 : i32, i32
  }
  func.func @transform_2(%arg0: i32) -> (i32, i32) {
    %c0_i32 = arith.constant 0 : i32
    %c0_i32_0 = arith.constant 0 : i32
    %c0_i32_1 = arith.constant 0 : i32
    return %c0_i32, %c0_i32_0 : i32, i32
  }
}

module attributes {stable_mosaic.version = 11 : i64} {
  func.func @_fused_conv_bn_lrelu_kernel(%arg0: i32, %arg1: memref<128x256xbf16, #tpu.memory_space<vmem>>, %arg2: memref<256x128xbf16, #tpu.memory_space<vmem>>, %arg3: memref<128x128xbf16, #tpu.memory_space<vmem>>) attributes {dimension_semantics = [#tpu.dimension_semantics<arbitrary>], iteration_bounds = array<i64: 1>, scalar_prefetch = 0 : i64, scratch_operands = 0 : i64, tpu.core_type = #tpu.core_type<tc>, window_params = [{pipeline_mode = #tpu.pipeline_mode<synchronous>, transform_indices = @transform_0, window_bounds = array<i64: 128, 256>}, {pipeline_mode = #tpu.pipeline_mode<synchronous>, transform_indices = @transform_1, window_bounds = array<i64: 256, 128>}, {pipeline_mode = #tpu.pipeline_mode<synchronous>, transform_indices = @transform_2, window_bounds = array<i64: 128, 128>}]} {
    %c0 = arith.constant 0 : index
    %c0_0 = arith.constant 0 : index
    %0 = vector.load %arg1[%c0, %c0_0] : memref<128x256xbf16, #tpu.memory_space<vmem>>, vector<128x256xbf16>
    %c0_1 = arith.constant 0 : index
    %c0_2 = arith.constant 0 : index
    %1 = vector.load %arg2[%c0_1, %c0_2] : memref<256x128xbf16, #tpu.memory_space<vmem>>, vector<256x128xbf16>
    %cst = arith.constant dense<0.000000e+00> : vector<128x128xf32>
    %2 = tpu.matmul %0, %1, %cst {dimension_numbers = #tpu.dot_dimension_numbers<[1], [0], [0], [1], [0, 0, 1, 1], [], []>} : vector<128x256xbf16>, vector<256x128xbf16>, vector<128x128xf32> -> vector<128x128xf32>
    %cst_3 = arith.constant dense<0.000000e+00> : vector<128xf32>
    %3 = vector.multi_reduction <add>, %2, %cst_3 [0] : vector<128x128xf32> to vector<128xf32>
    %4 = vector.shape_cast %3 : vector<128xf32> to vector<1x128xf32>
    %5 = arith.mulf %2, %2 : vector<128x128xf32>
    %cst_4 = arith.constant dense<0.000000e+00> : vector<128xf32>
    %6 = vector.multi_reduction <add>, %5, %cst_4 [0] : vector<128x128xf32> to vector<128xf32>
    %7 = vector.shape_cast %6 : vector<128xf32> to vector<1x128xf32>
    %cst_5 = arith.constant 7.812500e-03 : f32
    %8 = vector.broadcast %cst_5 : f32 to vector<1x128xf32>
    %9 = arith.mulf %4, %8 : vector<1x128xf32>
    %cst_6 = arith.constant 7.812500e-03 : f32
    %10 = vector.broadcast %cst_6 : f32 to vector<1x128xf32>
    %11 = arith.mulf %7, %10 : vector<1x128xf32>
    %12 = arith.mulf %9, %9 : vector<1x128xf32>
    %13 = arith.subf %11, %12 : vector<1x128xf32>
    %cst_7 = arith.constant 0.000000e+00 : f32
    %14 = vector.broadcast %cst_7 : f32 to vector<1x128xf32>
    %15 = arith.maximumf %13, %14 : vector<1x128xf32>
    %16 = vector.broadcast %9 : vector<1x128xf32> to vector<128x128xf32>
    %17 = arith.subf %2, %16 : vector<128x128xf32>
    %cst_8 = arith.constant 9.99999974E-6 : f32
    %18 = vector.broadcast %cst_8 : f32 to vector<1x128xf32>
    %19 = arith.addf %15, %18 : vector<1x128xf32>
    %20 = math.rsqrt %19 : vector<1x128xf32>
    %21 = vector.broadcast %20 : vector<1x128xf32> to vector<128x128xf32>
    %22 = arith.mulf %17, %21 : vector<128x128xf32>
    %cst_9 = arith.constant 0.000000e+00 : f32
    %23 = vector.broadcast %cst_9 : f32 to vector<128x128xf32>
    %24 = arith.cmpf ogt, %22, %23 : vector<128x128xf32>
    %cst_10 = arith.constant 0.00999999977 : f32
    %25 = vector.broadcast %cst_10 : f32 to vector<128x128xf32>
    %26 = arith.mulf %25, %22 : vector<128x128xf32>
    %27 = arith.select %24, %22, %26 : vector<128x128xi1>, vector<128x128xf32>
    %28 = arith.truncf %27 : vector<128x128xf32> to vector<128x128xbf16>
    %c0_11 = arith.constant 0 : index
    %c0_12 = arith.constant 0 : index
    %29 = vector.load %arg3[%c0_11, %c0_12] : memref<128x128xbf16, #tpu.memory_space<vmem>>, vector<128x128xbf16>
    tpu.vector_store %arg3[%c0_11, %c0_12], %28 {strides = array<i32>} : memref<128x128xbf16, #tpu.memory_space<vmem>>, vector<128x128xbf16>,
    return
  }
  func.func @transform_0(%arg0: i32) -> (i32, i32) {
    %c0_i32 = arith.constant 0 : i32
    %c0_i32_0 = arith.constant 0 : i32
    %c0_i32_1 = arith.constant 0 : i32
    return %c0_i32, %c0_i32_0 : i32, i32
  }
  func.func @transform_1(%arg0: i32) -> (i32, i32) {
    %c0_i32 = arith.constant 0 : i32
    %c0_i32_0 = arith.constant 0 : i32
    %c0_i32_1 = arith.constant 0 : i32
    return %c0_i32, %c0_i32_0 : i32, i32
  }
  func.func @transform_2(%arg0: i32) -> (i32, i32) {
    %c0_i32 = arith.constant 0 : i32
    %c0_i32_0 = arith.constant 0 : i32
    %c0_i32_1 = arith.constant 0 : i32
    return %c0_i32, %c0_i32_0 : i32, i32
  }
}

module attributes {stable_mosaic.version = 11 : i64} {
  func.func @_fused_conv_bn_lrelu_kernel(%arg0: i32, %arg1: memref<32x256xbf16, #tpu.memory_space<vmem>>, %arg2: memref<256x128xbf16, #tpu.memory_space<vmem>>, %arg3: memref<32x128xbf16, #tpu.memory_space<vmem>>) attributes {dimension_semantics = [#tpu.dimension_semantics<arbitrary>], iteration_bounds = array<i64: 1>, scalar_prefetch = 0 : i64, scratch_operands = 0 : i64, tpu.core_type = #tpu.core_type<tc>, window_params = [{pipeline_mode = #tpu.pipeline_mode<synchronous>, transform_indices = @transform_0, window_bounds = array<i64: 32, 256>}, {pipeline_mode = #tpu.pipeline_mode<synchronous>, transform_indices = @transform_1, window_bounds = array<i64: 256, 128>}, {pipeline_mode = #tpu.pipeline_mode<synchronous>, transform_indices = @transform_2, window_bounds = array<i64: 32, 128>}]} {
    %c0 = arith.constant 0 : index
    %c0_0 = arith.constant 0 : index
    %0 = vector.load %arg1[%c0, %c0_0] : memref<32x256xbf16, #tpu.memory_space<vmem>>, vector<32x256xbf16>
    %c0_1 = arith.constant 0 : index
    %c0_2 = arith.constant 0 : index
    %1 = vector.load %arg2[%c0_1, %c0_2] : memref<256x128xbf16, #tpu.memory_space<vmem>>, vector<256x128xbf16>
    %cst = arith.constant dense<0.000000e+00> : vector<32x128xf32>
    %2 = tpu.matmul %0, %1, %cst {dimension_numbers = #tpu.dot_dimension_numbers<[1], [0], [0], [1], [0, 0, 1, 1], [], []>} : vector<32x256xbf16>, vector<256x128xbf16>, vector<32x128xf32> -> vector<32x128xf32>
    %cst_3 = arith.constant dense<0.000000e+00> : vector<128xf32>
    %3 = vector.multi_reduction <add>, %2, %cst_3 [0] : vector<32x128xf32> to vector<128xf32>
    %4 = vector.shape_cast %3 : vector<128xf32> to vector<1x128xf32>
    %5 = arith.mulf %2, %2 : vector<32x128xf32>
    %cst_4 = arith.constant dense<0.000000e+00> : vector<128xf32>
    %6 = vector.multi_reduction <add>, %5, %cst_4 [0] : vector<32x128xf32> to vector<128xf32>
    %7 = vector.shape_cast %6 : vector<128xf32> to vector<1x128xf32>
    %cst_5 = arith.constant 3.125000e-02 : f32
    %8 = vector.broadcast %cst_5 : f32 to vector<1x128xf32>
    %9 = arith.mulf %4, %8 : vector<1x128xf32>
    %cst_6 = arith.constant 3.125000e-02 : f32
    %10 = vector.broadcast %cst_6 : f32 to vector<1x128xf32>
    %11 = arith.mulf %7, %10 : vector<1x128xf32>
    %12 = arith.mulf %9, %9 : vector<1x128xf32>
    %13 = arith.subf %11, %12 : vector<1x128xf32>
    %cst_7 = arith.constant 0.000000e+00 : f32
    %14 = vector.broadcast %cst_7 : f32 to vector<1x128xf32>
    %15 = arith.maximumf %13, %14 : vector<1x128xf32>
    %16 = vector.broadcast %9 : vector<1x128xf32> to vector<32x128xf32>
    %17 = arith.subf %2, %16 : vector<32x128xf32>
    %cst_8 = arith.constant 9.99999974E-6 : f32
    %18 = vector.broadcast %cst_8 : f32 to vector<1x128xf32>
    %19 = arith.addf %15, %18 : vector<1x128xf32>
    %20 = math.rsqrt %19 : vector<1x128xf32>
    %21 = vector.broadcast %20 : vector<1x128xf32> to vector<32x128xf32>
    %22 = arith.mulf %17, %21 : vector<32x128xf32>
    %cst_9 = arith.constant 0.000000e+00 : f32
    %23 = vector.broadcast %cst_9 : f32 to vector<32x128xf32>
    %24 = arith.cmpf ogt, %22, %23 : vector<32x128xf32>
    %cst_10 = arith.constant 0.00999999977 : f32
    %25 = vector.broadcast %cst_10 : f32 to vector<32x128xf32>
    %26 = arith.mulf %25, %22 : vector<32x128xf32>
    %27 = arith.select %24, %22, %26 : vector<32x128xi1>, vector<32x128xf32>
    %28 = arith.truncf %27 : vector<32x128xf32> to vector<32x128xbf16>
    %c0_11 = arith.constant 0 : index
    %c0_12 = arith.constant 0 : index
    %29 = vector.load %arg3[%c0_11, %c0_12] : memref<32x128xbf16, #tpu.memory_space<vmem>>, vector<32x128xbf16>
    tpu.vector_store %arg3[%c0_11, %c0_12], %28 {strides = array<i32>} : memref<32x128xbf16, #tpu.memory_space<vmem>>, vector<32x128xbf16>,
    return
  }
  func.func @transform_0(%arg0: i32) -> (i32, i32) {
    %c0_i32 = arith.constant 0 : i32
    %c0_i32_0 = arith.constant 0 : i32
    %c0_i32_1 = arith.constant 0 : i32
    return %c0_i32, %c0_i32_0 : i32, i32
  }
  func.func @transform_1(%arg0: i32) -> (i32, i32) {
    %c0_i32 = arith.constant 0 : i32
    %c0_i32_0 = arith.constant 0 : i32
    %c0_i32_1 = arith.constant 0 : i32
    return %c0_i32, %c0_i32_0 : i32, i32
  }
  func.func @transform_2(%arg0: i32) -> (i32, i32) {
    %c0_i32 = arith.constant 0 : i32
    %c0_i32_0 = arith.constant 0 : i32
    %c0_i32_1 = arith.constant 0 : i32
    return %c0_i32, %c0_i32_0 : i32, i32
  }
}

module attributes {stable_mosaic.version = 11 : i64} {
  func.func @_fused_conv_bn_lrelu_kernel(%arg0: i32, %arg1: memref<32x384xbf16, #tpu.memory_space<vmem>>, %arg2: memref<384x128xbf16, #tpu.memory_space<vmem>>, %arg3: memref<32x128xbf16, #tpu.memory_space<vmem>>) attributes {dimension_semantics = [#tpu.dimension_semantics<arbitrary>], iteration_bounds = array<i64: 1>, scalar_prefetch = 0 : i64, scratch_operands = 0 : i64, tpu.core_type = #tpu.core_type<tc>, window_params = [{pipeline_mode = #tpu.pipeline_mode<synchronous>, transform_indices = @transform_0, window_bounds = array<i64: 32, 384>}, {pipeline_mode = #tpu.pipeline_mode<synchronous>, transform_indices = @transform_1, window_bounds = array<i64: 384, 128>}, {pipeline_mode = #tpu.pipeline_mode<synchronous>, transform_indices = @transform_2, window_bounds = array<i64: 32, 128>}]} {
    %c0 = arith.constant 0 : index
    %c0_0 = arith.constant 0 : index
    %0 = vector.load %arg1[%c0, %c0_0] : memref<32x384xbf16, #tpu.memory_space<vmem>>, vector<32x384xbf16>
    %c0_1 = arith.constant 0 : index
    %c0_2 = arith.constant 0 : index
    %1 = vector.load %arg2[%c0_1, %c0_2] : memref<384x128xbf16, #tpu.memory_space<vmem>>, vector<384x128xbf16>
    %cst = arith.constant dense<0.000000e+00> : vector<32x128xf32>
    %2 = tpu.matmul %0, %1, %cst {dimension_numbers = #tpu.dot_dimension_numbers<[1], [0], [0], [1], [0, 0, 1, 1], [], []>} : vector<32x384xbf16>, vector<384x128xbf16>, vector<32x128xf32> -> vector<32x128xf32>
    %cst_3 = arith.constant dense<0.000000e+00> : vector<128xf32>
    %3 = vector.multi_reduction <add>, %2, %cst_3 [0] : vector<32x128xf32> to vector<128xf32>
    %4 = vector.shape_cast %3 : vector<128xf32> to vector<1x128xf32>
    %5 = arith.mulf %2, %2 : vector<32x128xf32>
    %cst_4 = arith.constant dense<0.000000e+00> : vector<128xf32>
    %6 = vector.multi_reduction <add>, %5, %cst_4 [0] : vector<32x128xf32> to vector<128xf32>
    %7 = vector.shape_cast %6 : vector<128xf32> to vector<1x128xf32>
    %cst_5 = arith.constant 3.125000e-02 : f32
    %8 = vector.broadcast %cst_5 : f32 to vector<1x128xf32>
    %9 = arith.mulf %4, %8 : vector<1x128xf32>
    %cst_6 = arith.constant 3.125000e-02 : f32
    %10 = vector.broadcast %cst_6 : f32 to vector<1x128xf32>
    %11 = arith.mulf %7, %10 : vector<1x128xf32>
    %12 = arith.mulf %9, %9 : vector<1x128xf32>
    %13 = arith.subf %11, %12 : vector<1x128xf32>
    %cst_7 = arith.constant 0.000000e+00 : f32
    %14 = vector.broadcast %cst_7 : f32 to vector<1x128xf32>
    %15 = arith.maximumf %13, %14 : vector<1x128xf32>
    %16 = vector.broadcast %9 : vector<1x128xf32> to vector<32x128xf32>
    %17 = arith.subf %2, %16 : vector<32x128xf32>
    %cst_8 = arith.constant 9.99999974E-6 : f32
    %18 = vector.broadcast %cst_8 : f32 to vector<1x128xf32>
    %19 = arith.addf %15, %18 : vector<1x128xf32>
    %20 = math.rsqrt %19 : vector<1x128xf32>
    %21 = vector.broadcast %20 : vector<1x128xf32> to vector<32x128xf32>
    %22 = arith.mulf %17, %21 : vector<32x128xf32>
    %cst_9 = arith.constant 0.000000e+00 : f32
    %23 = vector.broadcast %cst_9 : f32 to vector<32x128xf32>
    %24 = arith.cmpf ogt, %22, %23 : vector<32x128xf32>
    %cst_10 = arith.constant 0.00999999977 : f32
    %25 = vector.broadcast %cst_10 : f32 to vector<32x128xf32>
    %26 = arith.mulf %25, %22 : vector<32x128xf32>
    %27 = arith.select %24, %22, %26 : vector<32x128xi1>, vector<32x128xf32>
    %28 = arith.truncf %27 : vector<32x128xf32> to vector<32x128xbf16>
    %c0_11 = arith.constant 0 : index
    %c0_12 = arith.constant 0 : index
    %29 = vector.load %arg3[%c0_11, %c0_12] : memref<32x128xbf16, #tpu.memory_space<vmem>>, vector<32x128xbf16>
    tpu.vector_store %arg3[%c0_11, %c0_12], %28 {strides = array<i32>} : memref<32x128xbf16, #tpu.memory_space<vmem>>, vector<32x128xbf16>,
    return
  }
  func.func @transform_0(%arg0: i32) -> (i32, i32) {
    %c0_i32 = arith.constant 0 : i32
    %c0_i32_0 = arith.constant 0 : i32
    %c0_i32_1 = arith.constant 0 : i32
    return %c0_i32, %c0_i32_0 : i32, i32
  }
  func.func @transform_1(%arg0: i32) -> (i32, i32) {
    %c0_i32 = arith.constant 0 : i32
    %c0_i32_0 = arith.constant 0 : i32
    %c0_i32_1 = arith.constant 0 : i32
    return %c0_i32, %c0_i32_0 : i32, i32
  }
  func.func @transform_2(%arg0: i32) -> (i32, i32) {
    %c0_i32 = arith.constant 0 : i32
    %c0_i32_0 = arith.constant 0 : i32
    %c0_i32_1 = arith.constant 0 : i32
    return %c0_i32, %c0_i32_0 : i32, i32
  }
}

module attributes {stable_mosaic.version = 11 : i64} {
  func.func @_fused_conv_bn_lrelu_kernel(%arg0: i32, %arg1: memref<8x384xbf16, #tpu.memory_space<vmem>>, %arg2: memref<384x128xbf16, #tpu.memory_space<vmem>>, %arg3: memref<8x128xbf16, #tpu.memory_space<vmem>>) attributes {dimension_semantics = [#tpu.dimension_semantics<arbitrary>], iteration_bounds = array<i64: 1>, scalar_prefetch = 0 : i64, scratch_operands = 0 : i64, tpu.core_type = #tpu.core_type<tc>, window_params = [{pipeline_mode = #tpu.pipeline_mode<synchronous>, transform_indices = @transform_0, window_bounds = array<i64: 8, 384>}, {pipeline_mode = #tpu.pipeline_mode<synchronous>, transform_indices = @transform_1, window_bounds = array<i64: 384, 128>}, {pipeline_mode = #tpu.pipeline_mode<synchronous>, transform_indices = @transform_2, window_bounds = array<i64: 8, 128>}]} {
    %c0 = arith.constant 0 : index
    %c0_0 = arith.constant 0 : index
    %0 = vector.load %arg1[%c0, %c0_0] : memref<8x384xbf16, #tpu.memory_space<vmem>>, vector<8x384xbf16>
    %c0_1 = arith.constant 0 : index
    %c0_2 = arith.constant 0 : index
    %1 = vector.load %arg2[%c0_1, %c0_2] : memref<384x128xbf16, #tpu.memory_space<vmem>>, vector<384x128xbf16>
    %cst = arith.constant dense<0.000000e+00> : vector<8x128xf32>
    %2 = tpu.matmul %0, %1, %cst {dimension_numbers = #tpu.dot_dimension_numbers<[1], [0], [0], [1], [0, 0, 1, 1], [], []>} : vector<8x384xbf16>, vector<384x128xbf16>, vector<8x128xf32> -> vector<8x128xf32>
    %cst_3 = arith.constant dense<0.000000e+00> : vector<128xf32>
    %3 = vector.multi_reduction <add>, %2, %cst_3 [0] : vector<8x128xf32> to vector<128xf32>
    %4 = vector.shape_cast %3 : vector<128xf32> to vector<1x128xf32>
    %5 = arith.mulf %2, %2 : vector<8x128xf32>
    %cst_4 = arith.constant dense<0.000000e+00> : vector<128xf32>
    %6 = vector.multi_reduction <add>, %5, %cst_4 [0] : vector<8x128xf32> to vector<128xf32>
    %7 = vector.shape_cast %6 : vector<128xf32> to vector<1x128xf32>
    %cst_5 = arith.constant 1.250000e-01 : f32
    %8 = vector.broadcast %cst_5 : f32 to vector<1x128xf32>
    %9 = arith.mulf %4, %8 : vector<1x128xf32>
    %cst_6 = arith.constant 1.250000e-01 : f32
    %10 = vector.broadcast %cst_6 : f32 to vector<1x128xf32>
    %11 = arith.mulf %7, %10 : vector<1x128xf32>
    %12 = arith.mulf %9, %9 : vector<1x128xf32>
    %13 = arith.subf %11, %12 : vector<1x128xf32>
    %cst_7 = arith.constant 0.000000e+00 : f32
    %14 = vector.broadcast %cst_7 : f32 to vector<1x128xf32>
    %15 = arith.maximumf %13, %14 : vector<1x128xf32>
    %16 = vector.broadcast %9 : vector<1x128xf32> to vector<8x128xf32>
    %17 = arith.subf %2, %16 : vector<8x128xf32>
    %cst_8 = arith.constant 9.99999974E-6 : f32
    %18 = vector.broadcast %cst_8 : f32 to vector<1x128xf32>
    %19 = arith.addf %15, %18 : vector<1x128xf32>
    %20 = math.rsqrt %19 : vector<1x128xf32>
    %21 = vector.broadcast %20 : vector<1x128xf32> to vector<8x128xf32>
    %22 = arith.mulf %17, %21 : vector<8x128xf32>
    %cst_9 = arith.constant 0.000000e+00 : f32
    %23 = vector.broadcast %cst_9 : f32 to vector<8x128xf32>
    %24 = arith.cmpf ogt, %22, %23 : vector<8x128xf32>
    %cst_10 = arith.constant 0.00999999977 : f32
    %25 = vector.broadcast %cst_10 : f32 to vector<8x128xf32>
    %26 = arith.mulf %25, %22 : vector<8x128xf32>
    %27 = arith.select %24, %22, %26 : vector<8x128xi1>, vector<8x128xf32>
    %28 = arith.truncf %27 : vector<8x128xf32> to vector<8x128xbf16>
    %c0_11 = arith.constant 0 : index
    %c0_12 = arith.constant 0 : index
    %29 = vector.load %arg3[%c0_11, %c0_12] : memref<8x128xbf16, #tpu.memory_space<vmem>>, vector<8x128xbf16>
    tpu.vector_store %arg3[%c0_11, %c0_12], %28 {strides = array<i32>} : memref<8x128xbf16, #tpu.memory_space<vmem>>, vector<8x128xbf16>,
    return
  }
  func.func @transform_0(%arg0: i32) -> (i32, i32) {
    %c0_i32 = arith.constant 0 : i32
    %c0_i32_0 = arith.constant 0 : i32
    %c0_i32_1 = arith.constant 0 : i32
    return %c0_i32, %c0_i32_0 : i32, i32
  }
  func.func @transform_1(%arg0: i32) -> (i32, i32) {
    %c0_i32 = arith.constant 0 : i32
    %c0_i32_0 = arith.constant 0 : i32
    %c0_i32_1 = arith.constant 0 : i32
    return %c0_i32, %c0_i32_0 : i32, i32
  }
  func.func @transform_2(%arg0: i32) -> (i32, i32) {
    %c0_i32 = arith.constant 0 : i32
    %c0_i32_0 = arith.constant 0 : i32
    %c0_i32_1 = arith.constant 0 : i32
    return %c0_i32, %c0_i32_0 : i32, i32
  }
}

module attributes {stable_mosaic.version = 11 : i64} {
  func.func @_fused_conv_bn_lrelu_kernel(%arg0: i32, %arg1: memref<8x640xbf16, #tpu.memory_space<vmem>>, %arg2: memref<640x128xbf16, #tpu.memory_space<vmem>>, %arg3: memref<8x128xbf16, #tpu.memory_space<vmem>>) attributes {dimension_semantics = [#tpu.dimension_semantics<arbitrary>], iteration_bounds = array<i64: 1>, scalar_prefetch = 0 : i64, scratch_operands = 0 : i64, tpu.core_type = #tpu.core_type<tc>, window_params = [{pipeline_mode = #tpu.pipeline_mode<synchronous>, transform_indices = @transform_0, window_bounds = array<i64: 8, 640>}, {pipeline_mode = #tpu.pipeline_mode<synchronous>, transform_indices = @transform_1, window_bounds = array<i64: 640, 128>}, {pipeline_mode = #tpu.pipeline_mode<synchronous>, transform_indices = @transform_2, window_bounds = array<i64: 8, 128>}]} {
    %c0 = arith.constant 0 : index
    %c0_0 = arith.constant 0 : index
    %0 = vector.load %arg1[%c0, %c0_0] : memref<8x640xbf16, #tpu.memory_space<vmem>>, vector<8x640xbf16>
    %c0_1 = arith.constant 0 : index
    %c0_2 = arith.constant 0 : index
    %1 = vector.load %arg2[%c0_1, %c0_2] : memref<640x128xbf16, #tpu.memory_space<vmem>>, vector<640x128xbf16>
    %cst = arith.constant dense<0.000000e+00> : vector<8x128xf32>
    %2 = tpu.matmul %0, %1, %cst {dimension_numbers = #tpu.dot_dimension_numbers<[1], [0], [0], [1], [0, 0, 1, 1], [], []>} : vector<8x640xbf16>, vector<640x128xbf16>, vector<8x128xf32> -> vector<8x128xf32>
    %cst_3 = arith.constant dense<0.000000e+00> : vector<128xf32>
    %3 = vector.multi_reduction <add>, %2, %cst_3 [0] : vector<8x128xf32> to vector<128xf32>
    %4 = vector.shape_cast %3 : vector<128xf32> to vector<1x128xf32>
    %5 = arith.mulf %2, %2 : vector<8x128xf32>
    %cst_4 = arith.constant dense<0.000000e+00> : vector<128xf32>
    %6 = vector.multi_reduction <add>, %5, %cst_4 [0] : vector<8x128xf32> to vector<128xf32>
    %7 = vector.shape_cast %6 : vector<128xf32> to vector<1x128xf32>
    %cst_5 = arith.constant 1.250000e-01 : f32
    %8 = vector.broadcast %cst_5 : f32 to vector<1x128xf32>
    %9 = arith.mulf %4, %8 : vector<1x128xf32>
    %cst_6 = arith.constant 1.250000e-01 : f32
    %10 = vector.broadcast %cst_6 : f32 to vector<1x128xf32>
    %11 = arith.mulf %7, %10 : vector<1x128xf32>
    %12 = arith.mulf %9, %9 : vector<1x128xf32>
    %13 = arith.subf %11, %12 : vector<1x128xf32>
    %cst_7 = arith.constant 0.000000e+00 : f32
    %14 = vector.broadcast %cst_7 : f32 to vector<1x128xf32>
    %15 = arith.maximumf %13, %14 : vector<1x128xf32>
    %16 = vector.broadcast %9 : vector<1x128xf32> to vector<8x128xf32>
    %17 = arith.subf %2, %16 : vector<8x128xf32>
    %cst_8 = arith.constant 9.99999974E-6 : f32
    %18 = vector.broadcast %cst_8 : f32 to vector<1x128xf32>
    %19 = arith.addf %15, %18 : vector<1x128xf32>
    %20 = math.rsqrt %19 : vector<1x128xf32>
    %21 = vector.broadcast %20 : vector<1x128xf32> to vector<8x128xf32>
    %22 = arith.mulf %17, %21 : vector<8x128xf32>
    %cst_9 = arith.constant 0.000000e+00 : f32
    %23 = vector.broadcast %cst_9 : f32 to vector<8x128xf32>
    %24 = arith.cmpf ogt, %22, %23 : vector<8x128xf32>
    %cst_10 = arith.constant 0.00999999977 : f32
    %25 = vector.broadcast %cst_10 : f32 to vector<8x128xf32>
    %26 = arith.mulf %25, %22 : vector<8x128xf32>
    %27 = arith.select %24, %22, %26 : vector<8x128xi1>, vector<8x128xf32>
    %28 = arith.truncf %27 : vector<8x128xf32> to vector<8x128xbf16>
    %c0_11 = arith.constant 0 : index
    %c0_12 = arith.constant 0 : index
    %29 = vector.load %arg3[%c0_11, %c0_12] : memref<8x128xbf16, #tpu.memory_space<vmem>>, vector<8x128xbf16>
    tpu.vector_store %arg3[%c0_11, %c0_12], %28 {strides = array<i32>} : memref<8x128xbf16, #tpu.memory_space<vmem>>, vector<8x128xbf16>,
    return
  }
  func.func @transform_0(%arg0: i32) -> (i32, i32) {
    %c0_i32 = arith.constant 0 : i32
    %c0_i32_0 = arith.constant 0 : i32
    %c0_i32_1 = arith.constant 0 : i32
    return %c0_i32, %c0_i32_0 : i32, i32
  }
  func.func @transform_1(%arg0: i32) -> (i32, i32) {
    %c0_i32 = arith.constant 0 : i32
    %c0_i32_0 = arith.constant 0 : i32
    %c0_i32_1 = arith.constant 0 : i32
    return %c0_i32, %c0_i32_0 : i32, i32
  }
  func.func @transform_2(%arg0: i32) -> (i32, i32) {
    %c0_i32 = arith.constant 0 : i32
    %c0_i32_0 = arith.constant 0 : i32
    %c0_i32_1 = arith.constant 0 : i32
    return %c0_i32, %c0_i32_0 : i32, i32
  }
}

module attributes {stable_mosaic.version = 11 : i64} {
  func.func @_fused_conv_bn_lrelu_kernel(%arg0: i32, %arg1: memref<8x640xbf16, #tpu.memory_space<vmem>>, %arg2: memref<640x128xbf16, #tpu.memory_space<vmem>>, %arg3: memref<8x128xbf16, #tpu.memory_space<vmem>>) attributes {dimension_semantics = [#tpu.dimension_semantics<arbitrary>], iteration_bounds = array<i64: 1>, scalar_prefetch = 0 : i64, scratch_operands = 0 : i64, tpu.core_type = #tpu.core_type<tc>, window_params = [{pipeline_mode = #tpu.pipeline_mode<synchronous>, transform_indices = @transform_0, window_bounds = array<i64: 8, 640>}, {pipeline_mode = #tpu.pipeline_mode<synchronous>, transform_indices = @transform_1, window_bounds = array<i64: 640, 128>}, {pipeline_mode = #tpu.pipeline_mode<synchronous>, transform_indices = @transform_2, window_bounds = array<i64: 8, 128>}]} {
    %c0 = arith.constant 0 : index
    %c0_0 = arith.constant 0 : index
    %0 = vector.load %arg1[%c0, %c0_0] : memref<8x640xbf16, #tpu.memory_space<vmem>>, vector<8x640xbf16>
    %c0_1 = arith.constant 0 : index
    %c0_2 = arith.constant 0 : index
    %1 = vector.load %arg2[%c0_1, %c0_2] : memref<640x128xbf16, #tpu.memory_space<vmem>>, vector<640x128xbf16>
    %cst = arith.constant dense<0.000000e+00> : vector<8x128xf32>
    %2 = tpu.matmul %0, %1, %cst {dimension_numbers = #tpu.dot_dimension_numbers<[1], [0], [0], [1], [0, 0, 1, 1], [], []>} : vector<8x640xbf16>, vector<640x128xbf16>, vector<8x128xf32> -> vector<8x128xf32>
    %cst_3 = arith.constant dense<0.000000e+00> : vector<128xf32>
    %3 = vector.multi_reduction <add>, %2, %cst_3 [0] : vector<8x128xf32> to vector<128xf32>
    %4 = vector.shape_cast %3 : vector<128xf32> to vector<1x128xf32>
    %5 = arith.mulf %2, %2 : vector<8x128xf32>
    %cst_4 = arith.constant dense<0.000000e+00> : vector<128xf32>
    %6 = vector.multi_reduction <add>, %5, %cst_4 [0] : vector<8x128xf32> to vector<128xf32>
    %7 = vector.shape_cast %6 : vector<128xf32> to vector<1x128xf32>
    %cst_5 = arith.constant 5.000000e-01 : f32
    %8 = vector.broadcast %cst_5 : f32 to vector<1x128xf32>
    %9 = arith.mulf %4, %8 : vector<1x128xf32>
    %cst_6 = arith.constant 5.000000e-01 : f32
    %10 = vector.broadcast %cst_6 : f32 to vector<1x128xf32>
    %11 = arith.mulf %7, %10 : vector<1x128xf32>
    %12 = arith.mulf %9, %9 : vector<1x128xf32>
    %13 = arith.subf %11, %12 : vector<1x128xf32>
    %cst_7 = arith.constant 0.000000e+00 : f32
    %14 = vector.broadcast %cst_7 : f32 to vector<1x128xf32>
    %15 = arith.maximumf %13, %14 : vector<1x128xf32>
    %16 = vector.broadcast %9 : vector<1x128xf32> to vector<8x128xf32>
    %17 = arith.subf %2, %16 : vector<8x128xf32>
    %cst_8 = arith.constant 9.99999974E-6 : f32
    %18 = vector.broadcast %cst_8 : f32 to vector<1x128xf32>
    %19 = arith.addf %15, %18 : vector<1x128xf32>
    %20 = math.rsqrt %19 : vector<1x128xf32>
    %21 = vector.broadcast %20 : vector<1x128xf32> to vector<8x128xf32>
    %22 = arith.mulf %17, %21 : vector<8x128xf32>
    %cst_9 = arith.constant 0.000000e+00 : f32
    %23 = vector.broadcast %cst_9 : f32 to vector<8x128xf32>
    %24 = arith.cmpf ogt, %22, %23 : vector<8x128xf32>
    %cst_10 = arith.constant 0.00999999977 : f32
    %25 = vector.broadcast %cst_10 : f32 to vector<8x128xf32>
    %26 = arith.mulf %25, %22 : vector<8x128xf32>
    %27 = arith.select %24, %22, %26 : vector<8x128xi1>, vector<8x128xf32>
    %28 = arith.truncf %27 : vector<8x128xf32> to vector<8x128xbf16>
    %c0_11 = arith.constant 0 : index
    %c0_12 = arith.constant 0 : index
    %29 = vector.load %arg3[%c0_11, %c0_12] : memref<8x128xbf16, #tpu.memory_space<vmem>>, vector<8x128xbf16>
    tpu.vector_store %arg3[%c0_11, %c0_12], %28 {strides = array<i32>} : memref<8x128xbf16, #tpu.memory_space<vmem>>, vector<8x128xbf16>,
    return
  }
  func.func @transform_0(%arg0: i32) -> (i32, i32) {
    %c0_i32 = arith.constant 0 : i32
    %c0_i32_0 = arith.constant 0 : i32
    %c0_i32_1 = arith.constant 0 : i32
    return %c0_i32, %c0_i32_0 : i32, i32
  }
  func.func @transform_1(%arg0: i32) -> (i32, i32) {
    %c0_i32 = arith.constant 0 : i32
    %c0_i32_0 = arith.constant 0 : i32
    %c0_i32_1 = arith.constant 0 : i32
    return %c0_i32, %c0_i32_0 : i32, i32
  }
  func.func @transform_2(%arg0: i32) -> (i32, i32) {
    %c0_i32 = arith.constant 0 : i32
    %c0_i32_0 = arith.constant 0 : i32
    %c0_i32_1 = arith.constant 0 : i32
    return %c0_i32, %c0_i32_0 : i32, i32
  }
}

module attributes {stable_mosaic.version = 11 : i64} {
  func.func @_fused_conv_bn_lrelu_kernel(%arg0: i32, %arg1: memref<8x1152xbf16, #tpu.memory_space<vmem>>, %arg2: memref<1152x128xbf16, #tpu.memory_space<vmem>>, %arg3: memref<8x128xbf16, #tpu.memory_space<vmem>>) attributes {dimension_semantics = [#tpu.dimension_semantics<arbitrary>], iteration_bounds = array<i64: 1>, scalar_prefetch = 0 : i64, scratch_operands = 0 : i64, tpu.core_type = #tpu.core_type<tc>, window_params = [{pipeline_mode = #tpu.pipeline_mode<synchronous>, transform_indices = @transform_0, window_bounds = array<i64: 8, 1152>}, {pipeline_mode = #tpu.pipeline_mode<synchronous>, transform_indices = @transform_1, window_bounds = array<i64: 1152, 128>}, {pipeline_mode = #tpu.pipeline_mode<synchronous>, transform_indices = @transform_2, window_bounds = array<i64: 8, 128>}]} {
    %c0 = arith.constant 0 : index
    %c0_0 = arith.constant 0 : index
    %0 = vector.load %arg1[%c0, %c0_0] : memref<8x1152xbf16, #tpu.memory_space<vmem>>, vector<8x1152xbf16>
    %c0_1 = arith.constant 0 : index
    %c0_2 = arith.constant 0 : index
    %1 = vector.load %arg2[%c0_1, %c0_2] : memref<1152x128xbf16, #tpu.memory_space<vmem>>, vector<1152x128xbf16>
    %cst = arith.constant dense<0.000000e+00> : vector<8x128xf32>
    %2 = tpu.matmul %0, %1, %cst {dimension_numbers = #tpu.dot_dimension_numbers<[1], [0], [0], [1], [0, 0, 1, 1], [], []>} : vector<8x1152xbf16>, vector<1152x128xbf16>, vector<8x128xf32> -> vector<8x128xf32>
    %cst_3 = arith.constant dense<0.000000e+00> : vector<128xf32>
    %3 = vector.multi_reduction <add>, %2, %cst_3 [0] : vector<8x128xf32> to vector<128xf32>
    %4 = vector.shape_cast %3 : vector<128xf32> to vector<1x128xf32>
    %5 = arith.mulf %2, %2 : vector<8x128xf32>
    %cst_4 = arith.constant dense<0.000000e+00> : vector<128xf32>
    %6 = vector.multi_reduction <add>, %5, %cst_4 [0] : vector<8x128xf32> to vector<128xf32>
    %7 = vector.shape_cast %6 : vector<128xf32> to vector<1x128xf32>
    %cst_5 = arith.constant 5.000000e-01 : f32
    %8 = vector.broadcast %cst_5 : f32 to vector<1x128xf32>
    %9 = arith.mulf %4, %8 : vector<1x128xf32>
    %cst_6 = arith.constant 5.000000e-01 : f32
    %10 = vector.broadcast %cst_6 : f32 to vector<1x128xf32>
    %11 = arith.mulf %7, %10 : vector<1x128xf32>
    %12 = arith.mulf %9, %9 : vector<1x128xf32>
    %13 = arith.subf %11, %12 : vector<1x128xf32>
    %cst_7 = arith.constant 0.000000e+00 : f32
    %14 = vector.broadcast %cst_7 : f32 to vector<1x128xf32>
    %15 = arith.maximumf %13, %14 : vector<1x128xf32>
    %16 = vector.broadcast %9 : vector<1x128xf32> to vector<8x128xf32>
    %17 = arith.subf %2, %16 : vector<8x128xf32>
    %cst_8 = arith.constant 9.99999974E-6 : f32
    %18 = vector.broadcast %cst_8 : f32 to vector<1x128xf32>
    %19 = arith.addf %15, %18 : vector<1x128xf32>
    %20 = math.rsqrt %19 : vector<1x128xf32>
    %21 = vector.broadcast %20 : vector<1x128xf32> to vector<8x128xf32>
    %22 = arith.mulf %17, %21 : vector<8x128xf32>
    %cst_9 = arith.constant 0.000000e+00 : f32
    %23 = vector.broadcast %cst_9 : f32 to vector<8x128xf32>
    %24 = arith.cmpf ogt, %22, %23 : vector<8x128xf32>
    %cst_10 = arith.constant 0.00999999977 : f32
    %25 = vector.broadcast %cst_10 : f32 to vector<8x128xf32>
    %26 = arith.mulf %25, %22 : vector<8x128xf32>
    %27 = arith.select %24, %22, %26 : vector<8x128xi1>, vector<8x128xf32>
    %28 = arith.truncf %27 : vector<8x128xf32> to vector<8x128xbf16>
    %c0_11 = arith.constant 0 : index
    %c0_12 = arith.constant 0 : index
    %29 = vector.load %arg3[%c0_11, %c0_12] : memref<8x128xbf16, #tpu.memory_space<vmem>>, vector<8x128xbf16>
    tpu.vector_store %arg3[%c0_11, %c0_12], %28 {strides = array<i32>} : memref<8x128xbf16, #tpu.memory_space<vmem>>, vector<8x128xbf16>,
    return
  }
  func.func @transform_0(%arg0: i32) -> (i32, i32) {
    %c0_i32 = arith.constant 0 : i32
    %c0_i32_0 = arith.constant 0 : i32
    %c0_i32_1 = arith.constant 0 : i32
    return %c0_i32, %c0_i32_0 : i32, i32
  }
  func.func @transform_1(%arg0: i32) -> (i32, i32) {
    %c0_i32 = arith.constant 0 : i32
    %c0_i32_0 = arith.constant 0 : i32
    %c0_i32_1 = arith.constant 0 : i32
    return %c0_i32, %c0_i32_0 : i32, i32
  }
  func.func @transform_2(%arg0: i32) -> (i32, i32) {
    %c0_i32 = arith.constant 0 : i32
    %c0_i32_0 = arith.constant 0 : i32
    %c0_i32_1 = arith.constant 0 : i32
    return %c0_i32, %c0_i32_0 : i32, i32
  }
}

module attributes {stable_mosaic.version = 11 : i64} {
  func.func @_fused_conv_bn_lrelu_kernel(%arg0: i32, %arg1: memref<8x1152xbf16, #tpu.memory_space<vmem>>, %arg2: memref<1152x128xbf16, #tpu.memory_space<vmem>>, %arg3: memref<8x128xbf16, #tpu.memory_space<vmem>>) attributes {dimension_semantics = [#tpu.dimension_semantics<arbitrary>], iteration_bounds = array<i64: 1>, scalar_prefetch = 0 : i64, scratch_operands = 0 : i64, tpu.core_type = #tpu.core_type<tc>, window_params = [{pipeline_mode = #tpu.pipeline_mode<synchronous>, transform_indices = @transform_0, window_bounds = array<i64: 8, 1152>}, {pipeline_mode = #tpu.pipeline_mode<synchronous>, transform_indices = @transform_1, window_bounds = array<i64: 1152, 128>}, {pipeline_mode = #tpu.pipeline_mode<synchronous>, transform_indices = @transform_2, window_bounds = array<i64: 8, 128>}]} {
    %c0 = arith.constant 0 : index
    %c0_0 = arith.constant 0 : index
    %0 = vector.load %arg1[%c0, %c0_0] : memref<8x1152xbf16, #tpu.memory_space<vmem>>, vector<8x1152xbf16>
    %c0_1 = arith.constant 0 : index
    %c0_2 = arith.constant 0 : index
    %1 = vector.load %arg2[%c0_1, %c0_2] : memref<1152x128xbf16, #tpu.memory_space<vmem>>, vector<1152x128xbf16>
    %cst = arith.constant dense<0.000000e+00> : vector<8x128xf32>
    %2 = tpu.matmul %0, %1, %cst {dimension_numbers = #tpu.dot_dimension_numbers<[1], [0], [0], [1], [0, 0, 1, 1], [], []>} : vector<8x1152xbf16>, vector<1152x128xbf16>, vector<8x128xf32> -> vector<8x128xf32>
    %cst_3 = arith.constant dense<0.000000e+00> : vector<128xf32>
    %3 = vector.multi_reduction <add>, %2, %cst_3 [0] : vector<8x128xf32> to vector<128xf32>
    %4 = vector.shape_cast %3 : vector<128xf32> to vector<1x128xf32>
    %5 = arith.mulf %2, %2 : vector<8x128xf32>
    %cst_4 = arith.constant dense<0.000000e+00> : vector<128xf32>
    %6 = vector.multi_reduction <add>, %5, %cst_4 [0] : vector<8x128xf32> to vector<128xf32>
    %7 = vector.shape_cast %6 : vector<128xf32> to vector<1x128xf32>
    %cst_5 = arith.constant 1.250000e-01 : f32
    %8 = vector.broadcast %cst_5 : f32 to vector<1x128xf32>
    %9 = arith.mulf %4, %8 : vector<1x128xf32>
    %cst_6 = arith.constant 1.250000e-01 : f32
    %10 = vector.broadcast %cst_6 : f32 to vector<1x128xf32>
    %11 = arith.mulf %7, %10 : vector<1x128xf32>
    %12 = arith.mulf %9, %9 : vector<1x128xf32>
    %13 = arith.subf %11, %12 : vector<1x128xf32>
    %cst_7 = arith.constant 0.000000e+00 : f32
    %14 = vector.broadcast %cst_7 : f32 to vector<1x128xf32>
    %15 = arith.maximumf %13, %14 : vector<1x128xf32>
    %16 = vector.broadcast %9 : vector<1x128xf32> to vector<8x128xf32>
    %17 = arith.subf %2, %16 : vector<8x128xf32>
    %cst_8 = arith.constant 9.99999974E-6 : f32
    %18 = vector.broadcast %cst_8 : f32 to vector<1x128xf32>
    %19 = arith.addf %15, %18 : vector<1x128xf32>
    %20 = math.rsqrt %19 : vector<1x128xf32>
    %21 = vector.broadcast %20 : vector<1x128xf32> to vector<8x128xf32>
    %22 = arith.mulf %17, %21 : vector<8x128xf32>
    %cst_9 = arith.constant 0.000000e+00 : f32
    %23 = vector.broadcast %cst_9 : f32 to vector<8x128xf32>
    %24 = arith.cmpf ogt, %22, %23 : vector<8x128xf32>
    %cst_10 = arith.constant 0.00999999977 : f32
    %25 = vector.broadcast %cst_10 : f32 to vector<8x128xf32>
    %26 = arith.mulf %25, %22 : vector<8x128xf32>
    %27 = arith.select %24, %22, %26 : vector<8x128xi1>, vector<8x128xf32>
    %28 = arith.truncf %27 : vector<8x128xf32> to vector<8x128xbf16>
    %c0_11 = arith.constant 0 : index
    %c0_12 = arith.constant 0 : index
    %29 = vector.load %arg3[%c0_11, %c0_12] : memref<8x128xbf16, #tpu.memory_space<vmem>>, vector<8x128xbf16>
    tpu.vector_store %arg3[%c0_11, %c0_12], %28 {strides = array<i32>} : memref<8x128xbf16, #tpu.memory_space<vmem>>, vector<8x128xbf16>,
    return
  }
  func.func @transform_0(%arg0: i32) -> (i32, i32) {
    %c0_i32 = arith.constant 0 : i32
    %c0_i32_0 = arith.constant 0 : i32
    %c0_i32_1 = arith.constant 0 : i32
    return %c0_i32, %c0_i32_0 : i32, i32
  }
  func.func @transform_1(%arg0: i32) -> (i32, i32) {
    %c0_i32 = arith.constant 0 : i32
    %c0_i32_0 = arith.constant 0 : i32
    %c0_i32_1 = arith.constant 0 : i32
    return %c0_i32, %c0_i32_0 : i32, i32
  }
  func.func @transform_2(%arg0: i32) -> (i32, i32) {
    %c0_i32 = arith.constant 0 : i32
    %c0_i32_0 = arith.constant 0 : i32
    %c0_i32_1 = arith.constant 0 : i32
    return %c0_i32, %c0_i32_0 : i32, i32
  }
}

module attributes {stable_mosaic.version = 11 : i64} {
  func.func @_fused_conv_bn_lrelu_kernel(%arg0: i32, %arg1: memref<32x640xbf16, #tpu.memory_space<vmem>>, %arg2: memref<640x128xbf16, #tpu.memory_space<vmem>>, %arg3: memref<32x128xbf16, #tpu.memory_space<vmem>>) attributes {dimension_semantics = [#tpu.dimension_semantics<arbitrary>], iteration_bounds = array<i64: 1>, scalar_prefetch = 0 : i64, scratch_operands = 0 : i64, tpu.core_type = #tpu.core_type<tc>, window_params = [{pipeline_mode = #tpu.pipeline_mode<synchronous>, transform_indices = @transform_0, window_bounds = array<i64: 32, 640>}, {pipeline_mode = #tpu.pipeline_mode<synchronous>, transform_indices = @transform_1, window_bounds = array<i64: 640, 128>}, {pipeline_mode = #tpu.pipeline_mode<synchronous>, transform_indices = @transform_2, window_bounds = array<i64: 32, 128>}]} {
    %c0 = arith.constant 0 : index
    %c0_0 = arith.constant 0 : index
    %0 = vector.load %arg1[%c0, %c0_0] : memref<32x640xbf16, #tpu.memory_space<vmem>>, vector<32x640xbf16>
    %c0_1 = arith.constant 0 : index
    %c0_2 = arith.constant 0 : index
    %1 = vector.load %arg2[%c0_1, %c0_2] : memref<640x128xbf16, #tpu.memory_space<vmem>>, vector<640x128xbf16>
    %cst = arith.constant dense<0.000000e+00> : vector<32x128xf32>
    %2 = tpu.matmul %0, %1, %cst {dimension_numbers = #tpu.dot_dimension_numbers<[1], [0], [0], [1], [0, 0, 1, 1], [], []>} : vector<32x640xbf16>, vector<640x128xbf16>, vector<32x128xf32> -> vector<32x128xf32>
    %cst_3 = arith.constant dense<0.000000e+00> : vector<128xf32>
    %3 = vector.multi_reduction <add>, %2, %cst_3 [0] : vector<32x128xf32> to vector<128xf32>
    %4 = vector.shape_cast %3 : vector<128xf32> to vector<1x128xf32>
    %5 = arith.mulf %2, %2 : vector<32x128xf32>
    %cst_4 = arith.constant dense<0.000000e+00> : vector<128xf32>
    %6 = vector.multi_reduction <add>, %5, %cst_4 [0] : vector<32x128xf32> to vector<128xf32>
    %7 = vector.shape_cast %6 : vector<128xf32> to vector<1x128xf32>
    %cst_5 = arith.constant 3.125000e-02 : f32
    %8 = vector.broadcast %cst_5 : f32 to vector<1x128xf32>
    %9 = arith.mulf %4, %8 : vector<1x128xf32>
    %cst_6 = arith.constant 3.125000e-02 : f32
    %10 = vector.broadcast %cst_6 : f32 to vector<1x128xf32>
    %11 = arith.mulf %7, %10 : vector<1x128xf32>
    %12 = arith.mulf %9, %9 : vector<1x128xf32>
    %13 = arith.subf %11, %12 : vector<1x128xf32>
    %cst_7 = arith.constant 0.000000e+00 : f32
    %14 = vector.broadcast %cst_7 : f32 to vector<1x128xf32>
    %15 = arith.maximumf %13, %14 : vector<1x128xf32>
    %16 = vector.broadcast %9 : vector<1x128xf32> to vector<32x128xf32>
    %17 = arith.subf %2, %16 : vector<32x128xf32>
    %cst_8 = arith.constant 9.99999974E-6 : f32
    %18 = vector.broadcast %cst_8 : f32 to vector<1x128xf32>
    %19 = arith.addf %15, %18 : vector<1x128xf32>
    %20 = math.rsqrt %19 : vector<1x128xf32>
    %21 = vector.broadcast %20 : vector<1x128xf32> to vector<32x128xf32>
    %22 = arith.mulf %17, %21 : vector<32x128xf32>
    %cst_9 = arith.constant 0.000000e+00 : f32
    %23 = vector.broadcast %cst_9 : f32 to vector<32x128xf32>
    %24 = arith.cmpf ogt, %22, %23 : vector<32x128xf32>
    %cst_10 = arith.constant 0.00999999977 : f32
    %25 = vector.broadcast %cst_10 : f32 to vector<32x128xf32>
    %26 = arith.mulf %25, %22 : vector<32x128xf32>
    %27 = arith.select %24, %22, %26 : vector<32x128xi1>, vector<32x128xf32>
    %28 = arith.truncf %27 : vector<32x128xf32> to vector<32x128xbf16>
    %c0_11 = arith.constant 0 : index
    %c0_12 = arith.constant 0 : index
    %29 = vector.load %arg3[%c0_11, %c0_12] : memref<32x128xbf16, #tpu.memory_space<vmem>>, vector<32x128xbf16>
    tpu.vector_store %arg3[%c0_11, %c0_12], %28 {strides = array<i32>} : memref<32x128xbf16, #tpu.memory_space<vmem>>, vector<32x128xbf16>,
    return
  }
  func.func @transform_0(%arg0: i32) -> (i32, i32) {
    %c0_i32 = arith.constant 0 : i32
    %c0_i32_0 = arith.constant 0 : i32
    %c0_i32_1 = arith.constant 0 : i32
    return %c0_i32, %c0_i32_0 : i32, i32
  }
  func.func @transform_1(%arg0: i32) -> (i32, i32) {
    %c0_i32 = arith.constant 0 : i32
    %c0_i32_0 = arith.constant 0 : i32
    %c0_i32_1 = arith.constant 0 : i32
    return %c0_i32, %c0_i32_0 : i32, i32
  }
  func.func @transform_2(%arg0: i32) -> (i32, i32) {
    %c0_i32 = arith.constant 0 : i32
    %c0_i32_0 = arith.constant 0 : i32
    %c0_i32_1 = arith.constant 0 : i32
    return %c0_i32, %c0_i32_0 : i32, i32
  }
}

module attributes {stable_mosaic.version = 11 : i64} {
  func.func @_fused_conv_bn_lrelu_kernel(%arg0: i32, %arg1: memref<128x384xbf16, #tpu.memory_space<vmem>>, %arg2: memref<384x128xbf16, #tpu.memory_space<vmem>>, %arg3: memref<128x128xbf16, #tpu.memory_space<vmem>>) attributes {dimension_semantics = [#tpu.dimension_semantics<arbitrary>], iteration_bounds = array<i64: 1>, scalar_prefetch = 0 : i64, scratch_operands = 0 : i64, tpu.core_type = #tpu.core_type<tc>, window_params = [{pipeline_mode = #tpu.pipeline_mode<synchronous>, transform_indices = @transform_0, window_bounds = array<i64: 128, 384>}, {pipeline_mode = #tpu.pipeline_mode<synchronous>, transform_indices = @transform_1, window_bounds = array<i64: 384, 128>}, {pipeline_mode = #tpu.pipeline_mode<synchronous>, transform_indices = @transform_2, window_bounds = array<i64: 128, 128>}]} {
    %c0 = arith.constant 0 : index
    %c0_0 = arith.constant 0 : index
    %0 = vector.load %arg1[%c0, %c0_0] : memref<128x384xbf16, #tpu.memory_space<vmem>>, vector<128x384xbf16>
    %c0_1 = arith.constant 0 : index
    %c0_2 = arith.constant 0 : index
    %1 = vector.load %arg2[%c0_1, %c0_2] : memref<384x128xbf16, #tpu.memory_space<vmem>>, vector<384x128xbf16>
    %cst = arith.constant dense<0.000000e+00> : vector<128x128xf32>
    %2 = tpu.matmul %0, %1, %cst {dimension_numbers = #tpu.dot_dimension_numbers<[1], [0], [0], [1], [0, 0, 1, 1], [], []>} : vector<128x384xbf16>, vector<384x128xbf16>, vector<128x128xf32> -> vector<128x128xf32>
    %cst_3 = arith.constant dense<0.000000e+00> : vector<128xf32>
    %3 = vector.multi_reduction <add>, %2, %cst_3 [0] : vector<128x128xf32> to vector<128xf32>
    %4 = vector.shape_cast %3 : vector<128xf32> to vector<1x128xf32>
    %5 = arith.mulf %2, %2 : vector<128x128xf32>
    %cst_4 = arith.constant dense<0.000000e+00> : vector<128xf32>
    %6 = vector.multi_reduction <add>, %5, %cst_4 [0] : vector<128x128xf32> to vector<128xf32>
    %7 = vector.shape_cast %6 : vector<128xf32> to vector<1x128xf32>
    %cst_5 = arith.constant 7.812500e-03 : f32
    %8 = vector.broadcast %cst_5 : f32 to vector<1x128xf32>
    %9 = arith.mulf %4, %8 : vector<1x128xf32>
    %cst_6 = arith.constant 7.812500e-03 : f32
    %10 = vector.broadcast %cst_6 : f32 to vector<1x128xf32>
    %11 = arith.mulf %7, %10 : vector<1x128xf32>
    %12 = arith.mulf %9, %9 : vector<1x128xf32>
    %13 = arith.subf %11, %12 : vector<1x128xf32>
    %cst_7 = arith.constant 0.000000e+00 : f32
    %14 = vector.broadcast %cst_7 : f32 to vector<1x128xf32>
    %15 = arith.maximumf %13, %14 : vector<1x128xf32>
    %16 = vector.broadcast %9 : vector<1x128xf32> to vector<128x128xf32>
    %17 = arith.subf %2, %16 : vector<128x128xf32>
    %cst_8 = arith.constant 9.99999974E-6 : f32
    %18 = vector.broadcast %cst_8 : f32 to vector<1x128xf32>
    %19 = arith.addf %15, %18 : vector<1x128xf32>
    %20 = math.rsqrt %19 : vector<1x128xf32>
    %21 = vector.broadcast %20 : vector<1x128xf32> to vector<128x128xf32>
    %22 = arith.mulf %17, %21 : vector<128x128xf32>
    %cst_9 = arith.constant 0.000000e+00 : f32
    %23 = vector.broadcast %cst_9 : f32 to vector<128x128xf32>
    %24 = arith.cmpf ogt, %22, %23 : vector<128x128xf32>
    %cst_10 = arith.constant 0.00999999977 : f32
    %25 = vector.broadcast %cst_10 : f32 to vector<128x128xf32>
    %26 = arith.mulf %25, %22 : vector<128x128xf32>
    %27 = arith.select %24, %22, %26 : vector<128x128xi1>, vector<128x128xf32>
    %28 = arith.truncf %27 : vector<128x128xf32> to vector<128x128xbf16>
    %c0_11 = arith.constant 0 : index
    %c0_12 = arith.constant 0 : index
    %29 = vector.load %arg3[%c0_11, %c0_12] : memref<128x128xbf16, #tpu.memory_space<vmem>>, vector<128x128xbf16>
    tpu.vector_store %arg3[%c0_11, %c0_12], %28 {strides = array<i32>} : memref<128x128xbf16, #tpu.memory_space<vmem>>, vector<128x128xbf16>,
    return
  }
  func.func @transform_0(%arg0: i32) -> (i32, i32) {
    %c0_i32 = arith.constant 0 : i32
    %c0_i32_0 = arith.constant 0 : i32
    %c0_i32_1 = arith.constant 0 : i32
    return %c0_i32, %c0_i32_0 : i32, i32
  }
  func.func @transform_1(%arg0: i32) -> (i32, i32) {
    %c0_i32 = arith.constant 0 : i32
    %c0_i32_0 = arith.constant 0 : i32
    %c0_i32_1 = arith.constant 0 : i32
    return %c0_i32, %c0_i32_0 : i32, i32
  }
  func.func @transform_2(%arg0: i32) -> (i32, i32) {
    %c0_i32 = arith.constant 0 : i32
    %c0_i32_0 = arith.constant 0 : i32
    %c0_i32_1 = arith.constant 0 : i32
    return %c0_i32, %c0_i32_0 : i32, i32
  }
}

module attributes {stable_mosaic.version = 11 : i64} {
  func.func @_fused_conv_bn_lrelu_kernel(%arg0: i32, %arg1: memref<512x256xbf16, #tpu.memory_space<vmem>>, %arg2: memref<256x128xbf16, #tpu.memory_space<vmem>>, %arg3: memref<512x128xbf16, #tpu.memory_space<vmem>>) attributes {dimension_semantics = [#tpu.dimension_semantics<arbitrary>], iteration_bounds = array<i64: 1>, scalar_prefetch = 0 : i64, scratch_operands = 0 : i64, tpu.core_type = #tpu.core_type<tc>, window_params = [{pipeline_mode = #tpu.pipeline_mode<synchronous>, transform_indices = @transform_0, window_bounds = array<i64: 512, 256>}, {pipeline_mode = #tpu.pipeline_mode<synchronous>, transform_indices = @transform_1, window_bounds = array<i64: 256, 128>}, {pipeline_mode = #tpu.pipeline_mode<synchronous>, transform_indices = @transform_2, window_bounds = array<i64: 512, 128>}]} {
    %c0 = arith.constant 0 : index
    %c0_0 = arith.constant 0 : index
    %0 = vector.load %arg1[%c0, %c0_0] : memref<512x256xbf16, #tpu.memory_space<vmem>>, vector<512x256xbf16>
    %c0_1 = arith.constant 0 : index
    %c0_2 = arith.constant 0 : index
    %1 = vector.load %arg2[%c0_1, %c0_2] : memref<256x128xbf16, #tpu.memory_space<vmem>>, vector<256x128xbf16>
    %cst = arith.constant dense<0.000000e+00> : vector<512x128xf32>
    %2 = tpu.matmul %0, %1, %cst {dimension_numbers = #tpu.dot_dimension_numbers<[1], [0], [0], [1], [0, 0, 1, 1], [], []>} : vector<512x256xbf16>, vector<256x128xbf16>, vector<512x128xf32> -> vector<512x128xf32>
    %cst_3 = arith.constant dense<0.000000e+00> : vector<128xf32>
    %3 = vector.multi_reduction <add>, %2, %cst_3 [0] : vector<512x128xf32> to vector<128xf32>
    %4 = vector.shape_cast %3 : vector<128xf32> to vector<1x128xf32>
    %5 = arith.mulf %2, %2 : vector<512x128xf32>
    %cst_4 = arith.constant dense<0.000000e+00> : vector<128xf32>
    %6 = vector.multi_reduction <add>, %5, %cst_4 [0] : vector<512x128xf32> to vector<128xf32>
    %7 = vector.shape_cast %6 : vector<128xf32> to vector<1x128xf32>
    %cst_5 = arith.constant 0.001953125 : f32
    %8 = vector.broadcast %cst_5 : f32 to vector<1x128xf32>
    %9 = arith.mulf %4, %8 : vector<1x128xf32>
    %cst_6 = arith.constant 0.001953125 : f32
    %10 = vector.broadcast %cst_6 : f32 to vector<1x128xf32>
    %11 = arith.mulf %7, %10 : vector<1x128xf32>
    %12 = arith.mulf %9, %9 : vector<1x128xf32>
    %13 = arith.subf %11, %12 : vector<1x128xf32>
    %cst_7 = arith.constant 0.000000e+00 : f32
    %14 = vector.broadcast %cst_7 : f32 to vector<1x128xf32>
    %15 = arith.maximumf %13, %14 : vector<1x128xf32>
    %16 = vector.broadcast %9 : vector<1x128xf32> to vector<512x128xf32>
    %17 = arith.subf %2, %16 : vector<512x128xf32>
    %cst_8 = arith.constant 9.99999974E-6 : f32
    %18 = vector.broadcast %cst_8 : f32 to vector<1x128xf32>
    %19 = arith.addf %15, %18 : vector<1x128xf32>
    %20 = math.rsqrt %19 : vector<1x128xf32>
    %21 = vector.broadcast %20 : vector<1x128xf32> to vector<512x128xf32>
    %22 = arith.mulf %17, %21 : vector<512x128xf32>
    %cst_9 = arith.constant 0.000000e+00 : f32
    %23 = vector.broadcast %cst_9 : f32 to vector<512x128xf32>
    %24 = arith.cmpf ogt, %22, %23 : vector<512x128xf32>
    %cst_10 = arith.constant 0.00999999977 : f32
    %25 = vector.broadcast %cst_10 : f32 to vector<512x128xf32>
    %26 = arith.mulf %25, %22 : vector<512x128xf32>
    %27 = arith.select %24, %22, %26 : vector<512x128xi1>, vector<512x128xf32>
    %28 = arith.truncf %27 : vector<512x128xf32> to vector<512x128xbf16>
    %c0_11 = arith.constant 0 : index
    %c0_12 = arith.constant 0 : index
    %29 = vector.load %arg3[%c0_11, %c0_12] : memref<512x128xbf16, #tpu.memory_space<vmem>>, vector<512x128xbf16>
    tpu.vector_store %arg3[%c0_11, %c0_12], %28 {strides = array<i32>} : memref<512x128xbf16, #tpu.memory_space<vmem>>, vector<512x128xbf16>,
    return
  }
  func.func @transform_0(%arg0: i32) -> (i32, i32) {
    %c0_i32 = arith.constant 0 : i32
    %c0_i32_0 = arith.constant 0 : i32
    %c0_i32_1 = arith.constant 0 : i32
    return %c0_i32, %c0_i32_0 : i32, i32
  }
  func.func @transform_1(%arg0: i32) -> (i32, i32) {
    %c0_i32 = arith.constant 0 : i32
    %c0_i32_0 = arith.constant 0 : i32
    %c0_i32_1 = arith.constant 0 : i32
    return %c0_i32, %c0_i32_0 : i32, i32
  }
  func.func @transform_2(%arg0: i32) -> (i32, i32) {
    %c0_i32 = arith.constant 0 : i32
    %c0_i32_0 = arith.constant 0 : i32
    %c0_i32_1 = arith.constant 0 : i32
    return %c0_i32, %c0_i32_0 : i32, i32
  }
}

module attributes {stable_mosaic.version = 11 : i64} {
  func.func @_matmul_bias_kernel(%arg0: i32, %arg1: memref<512x128xbf16, #tpu.memory_space<vmem>>, %arg2: memref<128x128xbf16, #tpu.memory_space<vmem>>, %arg3: memref<1x128xf32, #tpu.memory_space<vmem>>, %arg4: memref<512x128xf32, #tpu.memory_space<vmem>>) attributes {dimension_semantics = [#tpu.dimension_semantics<parallel>], iteration_bounds = array<i64: 1>, scalar_prefetch = 0 : i64, scratch_operands = 0 : i64, tpu.core_type = #tpu.core_type<tc>, window_params = [{transform_indices = @transform_0, window_bounds = array<i64: 512, 128>}, {pipeline_mode = #tpu.pipeline_mode<synchronous>, transform_indices = @transform_1, window_bounds = array<i64: 128, 128>}, {pipeline_mode = #tpu.pipeline_mode<synchronous>, transform_indices = @transform_2, window_bounds = array<i64: 1, 128>}, {transform_indices = @transform_3, window_bounds = array<i64: 512, 128>}]} {
    %c0 = arith.constant 0 : index
    %c0_0 = arith.constant 0 : index
    %0 = vector.load %arg1[%c0, %c0_0] : memref<512x128xbf16, #tpu.memory_space<vmem>>, vector<512x128xbf16>
    %c0_1 = arith.constant 0 : index
    %c0_2 = arith.constant 0 : index
    %1 = vector.load %arg2[%c0_1, %c0_2] : memref<128x128xbf16, #tpu.memory_space<vmem>>, vector<128x128xbf16>
    %cst = arith.constant dense<0.000000e+00> : vector<512x128xf32>
    %2 = tpu.matmul %0, %1, %cst {dimension_numbers = #tpu.dot_dimension_numbers<[1], [0], [0], [1], [0, 0, 1, 1], [], []>} : vector<512x128xbf16>, vector<128x128xbf16>, vector<512x128xf32> -> vector<512x128xf32>
    %c0_3 = arith.constant 0 : index
    %c0_4 = arith.constant 0 : index
    %3 = vector.load %arg3[%c0_3, %c0_4] : memref<1x128xf32, #tpu.memory_space<vmem>>, vector<1x128xf32>
    %4 = vector.broadcast %3 : vector<1x128xf32> to vector<512x128xf32>
    %5 = arith.addf %2, %4 : vector<512x128xf32>
    %c0_5 = arith.constant 0 : index
    %c0_6 = arith.constant 0 : index
    %6 = vector.load %arg4[%c0_5, %c0_6] : memref<512x128xf32, #tpu.memory_space<vmem>>, vector<512x128xf32>
    tpu.vector_store %arg4[%c0_5, %c0_6], %5 {strides = array<i32>} : memref<512x128xf32, #tpu.memory_space<vmem>>, vector<512x128xf32>,
    return
  }
  func.func @transform_0(%arg0: i32) -> (i32, i32) {
    %c0_i32 = arith.constant 0 : i32
    %c0_i32_0 = arith.constant 0 : i32
    return %arg0, %c0_i32 : i32, i32
  }
  func.func @transform_1(%arg0: i32) -> (i32, i32) {
    %c0_i32 = arith.constant 0 : i32
    %c0_i32_0 = arith.constant 0 : i32
    %c0_i32_1 = arith.constant 0 : i32
    return %c0_i32, %c0_i32_0 : i32, i32
  }
  func.func @transform_2(%arg0: i32) -> (i32, i32) {
    %c0_i32 = arith.constant 0 : i32
    %c0_i32_0 = arith.constant 0 : i32
    %c0_i32_1 = arith.constant 0 : i32
    return %c0_i32, %c0_i32_0 : i32, i32
  }
  func.func @transform_3(%arg0: i32) -> (i32, i32) {
    %c0_i32 = arith.constant 0 : i32
    %c0_i32_0 = arith.constant 0 : i32
    return %arg0, %c0_i32 : i32, i32
  }
}

</mosaic_0001>

<llo_original>
// kernel: _lambda_.23
$region0: #{_lambda_.23}
  #allocation0 [shape = 'u32[]', space=smem, size = 0x4, offset = 0x4, fixed_abs, tag = 'smem constant byte address 0x4 - core index']
  #allocation1 [shape = 'u32[144,128]{1,0:T(1,128)}', space=vmem, size = 0x12000, scoped, tag = 'internal scratch']
  %s0 = inlined_call_operand.vmem [shape: bf16[512,128], index: 0, kind: input, shape index: {}]
  %s1 = inlined_call_operand.vmem [shape: bf16[128,128], index: 1, kind: input, shape index: {}]
  %s2 = inlined_call_operand.vmem [shape: bf16[512,128], index: 2, kind: output, shape index: {}]
  %s3 = sld [smem:[#allocation0]]
  $region18: #{_lambda_.23} parent=0
    _
  %s5 = ssub.s32 1, %s3
  %s6 = scalar_select 0, %s5, %s3
  // Predicated region
  $region2: #{_lambda_.23} parent=0 // pred_check
    _
  $region3: #{_lambda_.23} parent=0 // pred_check_branch
    %8 = sbr.rel (0) target = $region5
  $region4: #{_lambda_.23} parent=0 // pred_region
    _
  $region5: #{_lambda_.23} parent=0 // pred_fallthru
    _
  // Predicated region
  $region6: #{_lambda_.23} parent=0 // pred_check
    _
  $region7: #{_lambda_.23} parent=0 // pred_check_branch
    %10 = sbr.rel (0) target = $region9
  $region8: #{_lambda_.23} parent=0 // pred_region
    _
  $region9: #{_lambda_.23} parent=0 // pred_fallthru
    _
  %v12 = vld [vmem:[%s0] sm:$0xf]
  %v13 = vld [vmem:[%s0 + $0x4] sm:$0xf]
  %v14 = vld [vmem:[%s0 + $0x8] sm:$0xf]
  %v15 = vld [vmem:[%s0 + $0xc] sm:$0xf]
  %v16 = vld [vmem:[%s0 + $0x10] sm:$0xf]
  %v17 = vld [vmem:[%s0 + $0x14] sm:$0xf]
  %v18 = vld [vmem:[%s0 + $0x18] sm:$0xf]
  %v19 = vld [vmem:[%s0 + $0x1c] sm:$0xf]
  %v20 = vld [vmem:[%s0 + $0x20] sm:$0xf]
  %v21 = vld [vmem:[%s0 + $0x24] sm:$0xf]
  %v22 = vld [vmem:[%s0 + $0x28] sm:$0xf]
  %v23 = vld [vmem:[%s0 + $0x2c] sm:$0xf]
  %v24 = vld [vmem:[%s0 + $0x30] sm:$0xf]
  %v25 = vld [vmem:[%s0 + $0x34] sm:$0xf]
  %v26 = vld [vmem:[%s0 + $0x38] sm:$0xf]
  %v27 = vld [vmem:[%s0 + $0x3c] sm:$0xf]
  %v28 = vld [vmem:[%s0 + $0x40] sm:$0xf]
  %v29 = vld [vmem:[%s0 + $0x44] sm:$0xf]
  %v30 = vld [vmem:[%s0 + $0x48] sm:$0xf]
  %v31 = vld [vmem:[%s0 + $0x4c] sm:$0xf]
  %v32 = vld [vmem:[%s0 + $0x50] sm:$0xf]
  %v33 = vld [vmem:[%s0 + $0x54] sm:$0xf]
  %v34 = vld [vmem:[%s0 + $0x58] sm:$0xf]
  %v35 = vld [vmem:[%s0 + $0x5c] sm:$0xf]
  %v36 = vld [vmem:[%s0 + $0x60] sm:$0xf]
  %v37 = vld [vmem:[%s0 + $0x64] sm:$0xf]
  %v38 = vld [vmem:[%s0 + $0x68] sm:$0xf]
  %v39 = vld [vmem:[%s0 + $0x6c] sm:$0xf]
  %v40 = vld [vmem:[%s0 + $0x70] sm:$0xf]
  %v41 = vld [vmem:[%s0 + $0x74] sm:$0xf]
  %v42 = vld [vmem:[%s0 + $0x78] sm:$0xf]
  %v43 = vld [vmem:[%s0 + $0x7c] sm:$0xf]
  %v44 = vld [vmem:[%s0 + $0x80] sm:$0xf]
  %v45 = vld [vmem:[%s0 + $0x84] sm:$0xf]
  %v46 = vld [vmem:[%s0 + $0x88] sm:$0xf]
  %v47 = vld [vmem:[%s0 + $0x8c] sm:$0xf]
  %v48 = vld [vmem:[%s0 + $0x90] sm:$0xf]
  %v49 = vld [vmem:[%s0 + $0x94] sm:$0xf]
  %v50 = vld [vmem:[%s0 + $0x98] sm:$0xf]
  %v51 = vld [vmem:[%s0 + $0x9c] sm:$0xf]
  %v52 = vld [vmem:[%s0 + $0xa0] sm:$0xf]
  %v53 = vld [vmem:[%s0 + $0xa4] sm:$0xf]
  %v54 = vld [vmem:[%s0 + $0xa8] sm:$0xf]
  %v55 = vld [vmem:[%s0 + $0xac] sm:$0xf]
  %v56 = vld [vmem:[%s0 + $0xb0] sm:$0xf]
  %v57 = vld [vmem:[%s0 + $0xb4] sm:$0xf]
  %v58 = vld [vmem:[%s0 + $0xb8] sm:$0xf]
  %v59 = vld [vmem:[%s0 + $0xbc] sm:$0xf]
  %v60 = vld [vmem:[%s0 + $0xc0] sm:$0xf]
  %v61 = vld [vmem:[%s0 + $0xc4] sm:$0xf]
  %v62 = vld [vmem:[%s0 + $0xc8] sm:$0xf]
  %v63 = vld [vmem:[%s0 + $0xcc] sm:$0xf]
  %v64 = vld [vmem:[%s0 + $0xd0] sm:$0xf]
  %v65 = vld [vmem:[%s0 + $0xd4] sm:$0xf]
  %v66 = vld [vmem:[%s0 + $0xd8] sm:$0xf]
  %v67 = vld [vmem:[%s0 + $0xdc] sm:$0xf]
  %v68 = vld [vmem:[%s0 + $0xe0] sm:$0xf]
  %v69 = vld [vmem:[%s0 + $0xe4] sm:$0xf]
  %v70 = vld [vmem:[%s0 + $0xe8] sm:$0xf]
  %v71 = vld [vmem:[%s0 + $0xec] sm:$0xf]
  %v72 = vld [vmem:[%s0 + $0xf0] sm:$0xf]
  %v73 = vld [vmem:[%s0 + $0xf4] sm:$0xf]
  %v74 = vld [vmem:[%s0 + $0xf8] sm:$0xf]
  %v75 = vld [vmem:[%s0 + $0xfc] sm:$0xf]
  %v76 = vld [vmem:[%s1] sm:$0xf]
  %v77 = vld [vmem:[%s1 + $0x4] sm:$0xf]
  %v78 = vld [vmem:[%s1 + $0x8] sm:$0xf]
  %v79 = vld [vmem:[%s1 + $0xc] sm:$0xf]
  %v80 = vld [vmem:[%s1 + $0x10] sm:$0xf]
  %v81 = vld [vmem:[%s1 + $0x14] sm:$0xf]
  %v82 = vld [vmem:[%s1 + $0x18] sm:$0xf]
  %v83 = vld [vmem:[%s1 + $0x1c] sm:$0xf]
  %v84 = vld [vmem:[%s1 + $0x20] sm:$0xf]
  %v85 = vld [vmem:[%s1 + $0x24] sm:$0xf]
  %v86 = vld [vmem:[%s1 + $0x28] sm:$0xf]
  %v87 = vld [vmem:[%s1 + $0x2c] sm:$0xf]
  %v88 = vld [vmem:[%s1 + $0x30] sm:$0xf]
  %v89 = vld [vmem:[%s1 + $0x34] sm:$0xf]
  %v90 = vld [vmem:[%s1 + $0x38] sm:$0xf]
  %v91 = vld [vmem:[%s1 + $0x3c] sm:$0xf]
  %v156 = vunpack.c.l.b16 %v12
  %v157 = vunpack.c.l.b16 %v13
  %v158 = vunpack.c.l.b16 %v14
  %v159 = vunpack.c.l.b16 %v15
  %v160 = vunpack.c.l.b16 %v16
  %v161 = vunpack.c.l.b16 %v17
  %v162 = vunpack.c.l.b16 %v18
  %v163 = vunpack.c.l.b16 %v19
  %v164 = vunpack.c.l.b16 %v20
  %v165 = vunpack.c.l.b16 %v21
  %v166 = vunpack.c.l.b16 %v22
  %v167 = vunpack.c.l.b16 %v23
  %v168 = vunpack.c.l.b16 %v24
  %v169 = vunpack.c.l.b16 %v25
  %v170 = vunpack.c.l.b16 %v26
  %v171 = vunpack.c.l.b16 %v27
  %v172 = vunpack.c.l.b16 %v28
  %v173 = vunpack.c.l.b16 %v29
  %v174 = vunpack.c.l.b16 %v30
  %v175 = vunpack.c.l.b16 %v31
  %v176 = vunpack.c.l.b16 %v32
  %v177 = vunpack.c.l.b16 %v33
  %v178 = vunpack.c.l.b16 %v34
  %v179 = vunpack.c.l.b16 %v35
  %v180 = vunpack.c.l.b16 %v36
  %v181 = vunpack.c.l.b16 %v37
  %v182 = vunpack.c.l.b16 %v38
  %v183 = vunpack.c.l.b16 %v39
  %v184 = vunpack.c.l.b16 %v40
  %v185 = vunpack.c.l.b16 %v41
  %v186 = vunpack.c.l.b16 %v42
  %v187 = vunpack.c.l.b16 %v43
  %v188 = vunpack.c.l.b16 %v44
  %v189 = vunpack.c.l.b16 %v45
  %v190 = vunpack.c.l.b16 %v46
  %v191 = vunpack.c.l.b16 %v47
  %v192 = vunpack.c.l.b16 %v48
  %v193 = vunpack.c.l.b16 %v49
  %v194 = vunpack.c.l.b16 %v50
  %v195 = vunpack.c.l.b16 %v51
  %v196 = vunpack.c.l.b16 %v52
  %v197 = vunpack.c.l.b16 %v53
  %v198 = vunpack.c.l.b16 %v54
  %v199 = vunpack.c.l.b16 %v55
  %v200 = vunpack.c.l.b16 %v56
  %v201 = vunpack.c.l.b16 %v57
  %v202 = vunpack.c.l.b16 %v58
  %v203 = vunpack.c.l.b16 %v59
  %v204 = vunpack.c.l.b16 %v60
  %v205 = vunpack.c.l.b16 %v61
  %v206 = vunpack.c.l.b16 %v62
  %v207 = vunpack.c.l.b16 %v63
  %v208 = vunpack.c.l.b16 %v64
  %v209 = vunpack.c.l.b16 %v65
  %v210 = vunpack.c.l.b16 %v66
  %v211 = vunpack.c.l.b16 %v67
  %v212 = vunpack.c.l.b16 %v68
  %v213 = vunpack.c.l.b16 %v69
  %v214 = vunpack.c.l.b16 %v70
  %v215 = vunpack.c.l.b16 %v71
  %v216 = vunpack.c.l.b16 %v72
  %v217 = vunpack.c.l.b16 %v73
  %v218 = vunpack.c.l.b16 %v74
  %v219 = vunpack.c.l.b16 %v75
  %v220 = vpack.c.b16 %v157, %v156
  %v221 = vpack.c.b16 %v159, %v158
  %v222 = vpack.c.b16 %v161, %v160
  %v223 = vpack.c.b16 %v163, %v162
  %v224 = vpack.c.b16 %v165, %v164
  %v225 = vpack.c.b16 %v167, %v166
  %v226 = vpack.c.b16 %v169, %v168
  %v227 = vpack.c.b16 %v171, %v170
  %v228 = vpack.c.b16 %v173, %v172
  %v229 = vpack.c.b16 %v175, %v174
  %v230 = vpack.c.b16 %v177, %v176
  %v231 = vpack.c.b16 %v179, %v178
  %v232 = vpack.c.b16 %v181, %v180
  %v233 = vpack.c.b16 %v183, %v182
  %v234 = vpack.c.b16 %v185, %v184
  %v235 = vpack.c.b16 %v187, %v186
  %v236 = vpack.c.b16 %v189, %v188
  %v237 = vpack.c.b16 %v191, %v190
  %v238 = vpack.c.b16 %v193, %v192
  %v239 = vpack.c.b16 %v195, %v194
  %v240 = vpack.c.b16 %v197, %v196
  %v241 = vpack.c.b16 %v199, %v198
  %v242 = vpack.c.b16 %v201, %v200
  %v243 = vpack.c.b16 %v203, %v202
  %v244 = vpack.c.b16 %v205, %v204
  %v245 = vpack.c.b16 %v207, %v206
  %v246 = vpack.c.b16 %v209, %v208
  %v247 = vpack.c.b16 %v211, %v210
  %v248 = vpack.c.b16 %v213, %v212
  %v249 = vpack.c.b16 %v215, %v214
  %v250 = vpack.c.b16 %v217, %v216
  %v251 = vpack.c.b16 %v219, %v218
  %v300 = vunpack.c.l.b16 %v76
  %v301 = vunpack.c.l.b16 %v77
  %v302 = vunpack.c.l.b16 %v78
  %v303 = vunpack.c.l.b16 %v79
  %v304 = vunpack.c.l.b16 %v80
  %v305 = vunpack.c.l.b16 %v81
  %v306 = vunpack.c.l.b16 %v82
  %v307 = vunpack.c.l.b16 %v83
  %v308 = vunpack.c.l.b16 %v84
  %v309 = vunpack.c.l.b16 %v85
  %v310 = vunpack.c.l.b16 %v86
  %v311 = vunpack.c.l.b16 %v87
  %v312 = vunpack.c.l.b16 %v88
  %v313 = vunpack.c.l.b16 %v89
  %v314 = vunpack.c.l.b16 %v90
  %v315 = vunpack.c.l.b16 %v91
  %v316 = vpack.c.b16 %v301, %v300
  %v317 = vpack.c.b16 %v303, %v302
  %v318 = vpack.c.b16 %v305, %v304
  %v319 = vpack.c.b16 %v307, %v306
  %v320 = vpack.c.b16 %v309, %v308
  %v321 = vpack.c.b16 %v311, %v310
  %v322 = vpack.c.b16 %v313, %v312
  %v323 = vpack.c.b16 %v315, %v314
  %332 = vmatprep.subr.bf16.mxu0 0
  %333 = vmatpush1.bf16.msra.mxu0 %v316
  %334 = vmatprep.subr.bf16.mxu0 0
  %335 = vmatpush1.bf16.msra.mxu0 %v317
  %336 = vmatprep.subr.bf16.mxu0 0
  %337 = vmatpush1.bf16.msra.mxu0 %v318
  %338 = vmatprep.subr.bf16.mxu0 0
  %339 = vmatpush1.bf16.msra.mxu0 %v319
  %340 = vmatprep.subr.bf16.mxu0 0
  %341 = vmatpush1.bf16.msra.mxu0 %v320
  %342 = vmatprep.subr.bf16.mxu0 0
  %343 = vmatpush1.bf16.msra.mxu0 %v321
  %344 = vmatprep.subr.bf16.mxu0 0
  %345 = vmatpush1.bf16.msra.mxu0 %v322
  %346 = vmatprep.subr.bf16.mxu0 0
  %347 = vmatpush1.bf16.msra.mxu0 %v323
  %348 = vmatprep.subr.bf16.mxu0 0
  %349 = vmatpush1.bf16.msra.mxu0 0
  %350 = vmatprep.subr.bf16.mxu0 0
  %351 = vmatpush1.bf16.msra.mxu0 0
  %352 = vmatprep.subr.bf16.mxu0 0
  %353 = vmatpush1.bf16.msra.mxu0 0
  %354 = vmatprep.subr.bf16.mxu0 0
  %355 = vmatpush1.bf16.msra.mxu0 0
  %356 = vmatprep.subr.bf16.mxu0 0
  %357 = vmatpush1.bf16.msra.mxu0 0
  %358 = vmatprep.subr.bf16.mxu0 0
  %359 = vmatpush1.bf16.msra.mxu0 0
  %360 = vmatprep.subr.bf16.mxu0 0
  %361 = vmatpush1.bf16.msra.mxu0 0
  %362 = vmatprep.subr.bf16.mxu0 0
  %363 = vmatpush1.bf16.msra.mxu0 0
  %364 = vmatprep.mubr.bf16.mxu0 0
  %365 = vmatmul.mubr.bf16.gmra.mrb[0].mxu0 %v220
  %v366 = vpop.f32.mrb[0].mxu0
  %v367 = vadd.f32 0.0, %v366
  %v368 = vpop.f32.mrb[0].mxu0
  %v369 = vpop.f32.mrb[0].mxu0
  %v370 = vadd.f32 0.0, %v369
  %v371 = vpop.f32.mrb[0].mxu0
  %372 = vmatprep.mubr.bf16.mxu0 0
  %373 = vmatmul.mubr.bf16.gmra.mrb[0].mxu0 %v221
  %v374 = vpop.f32.mrb[0].mxu0
  %v375 = vadd.f32 0.0, %v374
  %v376 = vpop.f32.mrb[0].mxu0
  %v377 = vpop.f32.mrb[0].mxu0
  %v378 = vadd.f32 0.0, %v377
  %v379 = vpop.f32.mrb[0].mxu0
  %380 = vmatprep.mubr.bf16.mxu0 0
  %381 = vmatmul.mubr.bf16.gmra.mrb[0].mxu0 %v222
  %v382 = vpop.f32.mrb[0].mxu0
  %v383 = vadd.f32 0.0, %v382
  %v384 = vpop.f32.mrb[0].mxu0
  %v385 = vpop.f32.mrb[0].mxu0
  %v386 = vadd.f32 0.0, %v385
  %v387 = vpop.f32.mrb[0].mxu0
  %388 = vmatprep.mubr.bf16.mxu0 0
  %389 = vmatmul.mubr.bf16.gmra.mrb[0].mxu0 %v223
  %v390 = vpop.f32.mrb[0].mxu0
  %v391 = vadd.f32 0.0, %v390
  %v392 = vpop.f32.mrb[0].mxu0
  %v393 = vpop.f32.mrb[0].mxu0
  %v394 = vadd.f32 0.0, %v393
  %v395 = vpop.f32.mrb[0].mxu0
  %396 = vmatprep.mubr.bf16.mxu0 0
  %397 = vmatmul.mubr.bf16.gmra.mrb[0].mxu0 %v224
  %v398 = vpop.f32.mrb[0].mxu0
  %v399 = vadd.f32 0.0, %v398
  %v400 = vpop.f32.mrb[0].mxu0
  %v401 = vpop.f32.mrb[0].mxu0
  %v402 = vadd.f32 0.0, %v401
  %v403 = vpop.f32.mrb[0].mxu0
  %404 = vmatprep.mubr.bf16.mxu0 0
  %405 = vmatmul.mubr.bf16.gmra.mrb[0].mxu0 %v225
  %v406 = vpop.f32.mrb[0].mxu0
  %v407 = vadd.f32 0.0, %v406
  %v408 = vpop.f32.mrb[0].mxu0
  %v409 = vpop.f32.mrb[0].mxu0
  %v410 = vadd.f32 0.0, %v409
  %v411 = vpop.f32.mrb[0].mxu0
  %412 = vmatprep.mubr.bf16.mxu0 0
  %413 = vmatmul.mubr.bf16.gmra.mrb[0].mxu0 %v226
  %v414 = vpop.f32.mrb[0].mxu0
  %v415 = vadd.f32 0.0, %v414
  %v416 = vpop.f32.mrb[0].mxu0
  %v417 = vpop.f32.mrb[0].mxu0
  %v418 = vadd.f32 0.0, %v417
  %v419 = vpop.f32.mrb[0].mxu0
  %420 = vmatprep.mubr.bf16.mxu0 0
  %421 = vmatmul.mubr.bf16.gmra.mrb[0].mxu0 %v227
  %v422 = vpop.f32.mrb[0].mxu0
  %v423 = vadd.f32 0.0, %v422
  %v424 = vpop.f32.mrb[0].mxu0
  %v425 = vpop.f32.mrb[0].mxu0
  %v426 = vadd.f32 0.0, %v425
  %v427 = vpop.f32.mrb[0].mxu0
  %428 = vmatprep.mubr.bf16.mxu0 0
  %429 = vmatmul.mubr.bf16.gmra.mrb[0].mxu0 %v228
  %v430 = vpop.f32.mrb[0].mxu0
  %v431 = vadd.f32 0.0, %v430
  %v432 = vpop.f32.mrb[0].mxu0
  %v433 = vpop.f32.mrb[0].mxu0
  %v434 = vadd.f32 0.0, %v433
  %v435 = vpop.f32.mrb[0].mxu0
  %436 = vmatprep.mubr.bf16.mxu0 0
  %437 = vmatmul.mubr.bf16.gmra.mrb[0].mxu0 %v229
  %v438 = vpop.f32.mrb[0].mxu0
  %v439 = vadd.f32 0.0, %v438
  %v440 = vpop.f32.mrb[0].mxu0
  %v441 = vpop.f32.mrb[0].mxu0
  %v442 = vadd.f32 0.0, %v441
  %v443 = vpop.f32.mrb[0].mxu0
  %444 = vmatprep.mubr.bf16.mxu0 0
  %445 = vmatmul.mubr.bf16.gmra.mrb[0].mxu0 %v230
  %v446 = vpop.f32.mrb[0].mxu0
  %v447 = vadd.f32 0.0, %v446
  %v448 = vpop.f32.mrb[0].mxu0
  %v449 = vpop.f32.mrb[0].mxu0
  %v450 = vadd.f32 0.0, %v449
  %v451 = vpop.f32.mrb[0].mxu0
  %452 = vmatprep.mubr.bf16.mxu0 0
  %453 = vmatmul.mubr.bf16.gmra.mrb[0].mxu0 %v231
  %v454 = vpop.f32.mrb[0].mxu0
  %v455 = vadd.f32 0.0, %v454
  %v456 = vpop.f32.mrb[0].mxu0
  %v457 = vpop.f32.mrb[0].mxu0
  %v458 = vadd.f32 0.0, %v457
  %v459 = vpop.f32.mrb[0].mxu0
  %460 = vmatprep.mubr.bf16.mxu0 0
  %461 = vmatmul.mubr.bf16.gmra.mrb[0].mxu0 %v232
  %v462 = vpop.f32.mrb[0].mxu0
  %v463 = vadd.f32 0.0, %v462
  %v464 = vpop.f32.mrb[0].mxu0
  %v465 = vpop.f32.mrb[0].mxu0
  %v466 = vadd.f32 0.0, %v465
  %v467 = vpop.f32.mrb[0].mxu0
  %468 = vmatprep.mubr.bf16.mxu0 0
  %469 = vmatmul.mubr.bf16.gmra.mrb[0].mxu0 %v233
  %v470 = vpop.f32.mrb[0].mxu0
  %v471 = vadd.f32 0.0, %v470
  %v472 = vpop.f32.mrb[0].mxu0
  %v473 = vpop.f32.mrb[0].mxu0
  %v474 = vadd.f32 0.0, %v473
  %v475 = vpop.f32.mrb[0].mxu0
  %476 = vmatprep.mubr.bf16.mxu0 0
  %477 = vmatmul.mubr.bf16.gmra.mrb[0].mxu0 %v234
  %v478 = vpop.f32.mrb[0].mxu0
  %v479 = vadd.f32 0.0, %v478
  %v480 = vpop.f32.mrb[0].mxu0
  %v481 = vpop.f32.mrb[0].mxu0
  %v482 = vadd.f32 0.0, %v481
  %v483 = vpop.f32.mrb[0].mxu0
  %484 = vmatprep.mubr.bf16.mxu0 0
  %485 = vmatmul.mubr.bf16.gmra.mrb[0].mxu0 %v235
  %v486 = vpop.f32.mrb[0].mxu0
  %v487 = vadd.f32 0.0, %v486
  %v488 = vpop.f32.mrb[0].mxu0
  %v489 = vpop.f32.mrb[0].mxu0
  %v490 = vadd.f32 0.0, %v489
  %v491 = vpop.f32.mrb[0].mxu0
  %492 = vmatprep.mubr.bf16.mxu0 0
  %493 = vmatmul.mubr.bf16.gmra.mrb[0].mxu0 %v236
  %v494 = vpop.f32.mrb[0].mxu0
  %v495 = vadd.f32 0.0, %v494
  %v496 = vpop.f32.mrb[0].mxu0
  %v497 = vpop.f32.mrb[0].mxu0
  %v498 = vadd.f32 0.0, %v497
  %v499 = vpop.f32.mrb[0].mxu0
  %500 = vmatprep.mubr.bf16.mxu0 0
  %501 = vmatmul.mubr.bf16.gmra.mrb[0].mxu0 %v237
  %v502 = vpop.f32.mrb[0].mxu0
  %v503 = vadd.f32 0.0, %v502
  %v504 = vpop.f32.mrb[0].mxu0
  %v505 = vpop.f32.mrb[0].mxu0
  %v506 = vadd.f32 0.0, %v505
  %v507 = vpop.f32.mrb[0].mxu0
  %508 = vmatprep.mubr.bf16.mxu0 0
  %509 = vmatmul.mubr.bf16.gmra.mrb[0].mxu0 %v238
  %v510 = vpop.f32.mrb[0].mxu0
  %v511 = vadd.f32 0.0, %v510
  %v512 = vpop.f32.mrb[0].mxu0
  %v513 = vpop.f32.mrb[0].mxu0
  %v514 = vadd.f32 0.0, %v513
  %v515 = vpop.f32.mrb[0].mxu0
  %516 = vmatprep.mubr.bf16.mxu0 0
  %517 = vmatmul.mubr.bf16.gmra.mrb[0].mxu0 %v239
  %v518 = vpop.f32.mrb[0].mxu0
  %v519 = vadd.f32 0.0, %v518
  %v520 = vpop.f32.mrb[0].mxu0
  %v521 = vpop.f32.mrb[0].mxu0
  %v522 = vadd.f32 0.0, %v521
  %v523 = vpop.f32.mrb[0].mxu0
  %524 = vmatprep.mubr.bf16.mxu0 0
  %525 = vmatmul.mubr.bf16.gmra.mrb[0].mxu0 %v240
  %v526 = vpop.f32.mrb[0].mxu0
  %v527 = vadd.f32 0.0, %v526
  %v528 = vpop.f32.mrb[0].mxu0
  %v529 = vpop.f32.mrb[0].mxu0
  %v530 = vadd.f32 0.0, %v529
  %v531 = vpop.f32.mrb[0].mxu0
  %532 = vmatprep.mubr.bf16.mxu0 0
  %533 = vmatmul.mubr.bf16.gmra.mrb[0].mxu0 %v241
  %v534 = vpop.f32.mrb[0].mxu0
  %v535 = vadd.f32 0.0, %v534
  %v536 = vpop.f32.mrb[0].mxu0
  %v537 = vpop.f32.mrb[0].mxu0
  %v538 = vadd.f32 0.0, %v537
  %v539 = vpop.f32.mrb[0].mxu0
  %540 = vmatprep.mubr.bf16.mxu0 0
  %541 = vmatmul.mubr.bf16.gmra.mrb[0].mxu0 %v242
  %v542 = vpop.f32.mrb[0].mxu0
  %v543 = vadd.f32 0.0, %v542
  %v544 = vpop.f32.mrb[0].mxu0
  %v545 = vpop.f32.mrb[0].mxu0
  %v546 = vadd.f32 0.0, %v545
  %v547 = vpop.f32.mrb[0].mxu0
  %548 = vmatprep.mubr.bf16.mxu0 0
  %549 = vmatmul.mubr.bf16.gmra.mrb[0].mxu0 %v243
  %v550 = vpop.f32.mrb[0].mxu0
  %v551 = vadd.f32 0.0, %v550
  %v552 = vpop.f32.mrb[0].mxu0
  %v553 = vpop.f32.mrb[0].mxu0
  %v554 = vadd.f32 0.0, %v553
  %v555 = vpop.f32.mrb[0].mxu0
  %556 = vmatprep.mubr.bf16.mxu0 0
  %557 = vmatmul.mubr.bf16.gmra.mrb[0].mxu0 %v244
  %v558 = vpop.f32.mrb[0].mxu0
  %v559 = vadd.f32 0.0, %v558
  %v560 = vpop.f32.mrb[0].mxu0
  %v561 = vpop.f32.mrb[0].mxu0
  %v562 = vadd.f32 0.0, %v561
  %v563 = vpop.f32.mrb[0].mxu0
  %564 = vmatprep.mubr.bf16.mxu0 0
  %565 = vmatmul.mubr.bf16.gmra.mrb[0].mxu0 %v245
  %v566 = vpop.f32.mrb[0].mxu0
  %v567 = vadd.f32 0.0, %v566
  %v568 = vpop.f32.mrb[0].mxu0
  %v569 = vpop.f32.mrb[0].mxu0
  %v570 = vadd.f32 0.0, %v569
  %v571 = vpop.f32.mrb[0].mxu0
  %572 = vmatprep.mubr.bf16.mxu0 0
  %573 = vmatmul.mubr.bf16.gmra.mrb[0].mxu0 %v246
  %v574 = vpop.f32.mrb[0].mxu0
  %v575 = vadd.f32 0.0, %v574
  %v576 = vpop.f32.mrb[0].mxu0
  %v577 = vpop.f32.mrb[0].mxu0
  %v578 = vadd.f32 0.0, %v577
  %v579 = vpop.f32.mrb[0].mxu0
  %580 = vmatprep.mubr.bf16.mxu0 0
  %581 = vmatmul.mubr.bf16.gmra.mrb[0].mxu0 %v247
  %v582 = vpop.f32.mrb[0].mxu0
  %v583 = vadd.f32 0.0, %v582
  %v584 = vpop.f32.mrb[0].mxu0
  %v585 = vpop.f32.mrb[0].mxu0
  %v586 = vadd.f32 0.0, %v585
  %v587 = vpop.f32.mrb[0].mxu0
  %588 = vmatprep.mubr.bf16.mxu0 0
  %589 = vmatmul.mubr.bf16.gmra.mrb[0].mxu0 %v248
  %v590 = vpop.f32.mrb[0].mxu0
  %v591 = vadd.f32 0.0, %v590
  %v592 = vpop.f32.mrb[0].mxu0
  %v593 = vpop.f32.mrb[0].mxu0
  %v594 = vadd.f32 0.0, %v593
  %v595 = vpop.f32.mrb[0].mxu0
  %596 = vmatprep.mubr.bf16.mxu0 0
  %597 = vmatmul.mubr.bf16.gmra.mrb[0].mxu0 %v249
  %v598 = vpop.f32.mrb[0].mxu0
  %v599 = vadd.f32 0.0, %v598
  %v600 = vpop.f32.mrb[0].mxu0
  %v601 = vpop.f32.mrb[0].mxu0
  %v602 = vadd.f32 0.0, %v601
  %v603 = vpop.f32.mrb[0].mxu0
  %604 = vmatprep.mubr.bf16.mxu0 0
  %605 = vmatmul.mubr.bf16.gmra.mrb[0].mxu0 %v250
  %v606 = vpop.f32.mrb[0].mxu0
  %v607 = vadd.f32 0.0, %v606
  %v608 = vpop.f32.mrb[0].mxu0
  %v609 = vpop.f32.mrb[0].mxu0
  %v610 = vadd.f32 0.0, %v609
  %v611 = vpop.f32.mrb[0].mxu0
  %612 = vmatprep.mubr.bf16.mxu0 0
  %613 = vmatmul.mubr.bf16.gmra.mrb[0].mxu0 %v251
  %v614 = vpop.f32.mrb[0].mxu0
  %v615 = vadd.f32 0.0, %v614
  %v616 = vpop.f32.mrb[0].mxu0
  %v617 = vpop.f32.mrb[0].mxu0
  %v618 = vadd.f32 0.0, %v617
  %v619 = vpop.f32.mrb[0].mxu0
  %620 = vdwg.mxu0
  %v621 = vadd.f32 %v367, %v370
  %v622 = vadd.f32 %v621, %v375
  %v623 = vadd.f32 %v622, %v378
  %v624 = vadd.f32 %v623, %v383
  %v625 = vadd.f32 %v624, %v386
  %v626 = vadd.f32 %v625, %v391
  %v627 = vadd.f32 %v626, %v394
  %v628 = vadd.f32 %v627, %v399
  %v629 = vadd.f32 %v628, %v402
  %v630 = vadd.f32 %v629, %v407
  %v631 = vadd.f32 %v630, %v410
  %v632 = vadd.f32 %v631, %v415
  %v633 = vadd.f32 %v632, %v418
  %v634 = vadd.f32 %v633, %v423
  %v635 = vadd.f32 %v634, %v426
  %v636 = vadd.f32 %v635, %v431
  %v637 = vadd.f32 %v636, %v434
  %v638 = vadd.f32 %v637, %v439
  %v639 = vadd.f32 %v638, %v442
  %v640 = vadd.f32 %v639, %v447
  %v641 = vadd.f32 %v640, %v450
  %v642 = vadd.f32 %v641, %v455
  %v643 = vadd.f32 %v642, %v458
  %v644 = vadd.f32 %v643, %v463
  %v645 = vadd.f32 %v644, %v466
  %v646 = vadd.f32 %v645, %v471
  %v647 = vadd.f32 %v646, %v474
  %v648 = vadd.f32 %v647, %v479
  %v649 = vadd.f32 %v648, %v482
  %v650 = vadd.f32 %v649, %v487
  %v651 = vadd.f32 %v650, %v490
  %v652 = vadd.f32 %v651, %v495
  %v653 = vadd.f32 %v652, %v498
  %v654 = vadd.f32 %v653, %v503
  %v655 = vadd.f32 %v654, %v506
  %v656 = vadd.f32 %v655, %v511
  %v657 = vadd.f32 %v656, %v514
  %v658 = vadd.f32 %v657, %v519
  %v659 = vadd.f32 %v658, %v522
  %v660 = vadd.f32 %v659, %v527
  %v661 = vadd.f32 %v660, %v530
  %v662 = vadd.f32 %v661, %v535
  %v663 = vadd.f32 %v662, %v538
  %v664 = vadd.f32 %v663, %v543
  %v665 = vadd.f32 %v664, %v546
  %v666 = vadd.f32 %v665, %v551
  %v667 = vadd.f32 %v666, %v554
  %v668 = vadd.f32 %v667, %v559
  %v669 = vadd.f32 %v668, %v562
  %v670 = vadd.f32 %v669, %v567
  %v671 = vadd.f32 %v670, %v570
  %v672 = vadd.f32 %v671, %v575
  %v673 = vadd.f32 %v672, %v578
  %v674 = vadd.f32 %v673, %v583
  %v675 = vadd.f32 %v674, %v586
  %v676 = vadd.f32 %v675, %v591
  %v677 = vadd.f32 %v676, %v594
  %v678 = vadd.f32 %v677, %v599
  %v679 = vadd.f32 %v678, %v602
  %v680 = vadd.f32 %v679, %v607
  %v681 = vadd.f32 %v680, %v610
  %v682 = vadd.f32 %v681, %v615
  %v683 = vadd.f32 %v682, %v618
  %v684 = vrot.slane %v683, 4
  %v685 = vadd.f32 %v683, %v684
  %v686 = vrot.slane %v685, 2
  %v687 = vadd.f32 %v685, %v686
  %v688 = vrot.slane %v687, 1
  %v689 = vadd.f32 %v687, %v688
  %v690 = vmul.f32 %v367, %v367
  %v691 = vmul.f32 %v370, %v370
  %v692 = vmul.f32 %v375, %v375
  %v693 = vmul.f32 %v378, %v378
  %v694 = vmul.f32 %v383, %v383
  %v695 = vmul.f32 %v386, %v386
  %v696 = vmul.f32 %v391, %v391
  %v697 = vmul.f32 %v394, %v394
  %v698 = vmul.f32 %v399, %v399
  %v699 = vmul.f32 %v402, %v402
  %v700 = vmul.f32 %v407, %v407
  %v701 = vmul.f32 %v410, %v410
  %v702 = vmul.f32 %v415, %v415
  %v703 = vmul.f32 %v418, %v418
  %v704 = vmul.f32 %v423, %v423
  %v705 = vmul.f32 %v426, %v426
  %v706 = vmul.f32 %v431, %v431
  %v707 = vmul.f32 %v434, %v434
  %v708 = vmul.f32 %v439, %v439
  %v709 = vmul.f32 %v442, %v442
  %v710 = vmul.f32 %v447, %v447
  %v711 = vmul.f32 %v450, %v450
  %v712 = vmul.f32 %v455, %v455
  %v713 = vmul.f32 %v458, %v458
  %v714 = vmul.f32 %v463, %v463
  %v715 = vmul.f32 %v466, %v466
  %v716 = vmul.f32 %v471, %v471
  %v717 = vmul.f32 %v474, %v474
  %v718 = vmul.f32 %v479, %v479
  %v719 = vmul.f32 %v482, %v482
  %v720 = vmul.f32 %v487, %v487
  %v721 = vmul.f32 %v490, %v490
  %v722 = vmul.f32 %v495, %v495
  %v723 = vmul.f32 %v498, %v498
  %v724 = vmul.f32 %v503, %v503
  %v725 = vmul.f32 %v506, %v506
  %v726 = vmul.f32 %v511, %v511
  %v727 = vmul.f32 %v514, %v514
  %v728 = vmul.f32 %v519, %v519
  %v729 = vmul.f32 %v522, %v522
  %v730 = vmul.f32 %v527, %v527
  %v731 = vmul.f32 %v530, %v530
  %v732 = vmul.f32 %v535, %v535
  %v733 = vmul.f32 %v538, %v538
  %v734 = vmul.f32 %v543, %v543
  %v735 = vmul.f32 %v546, %v546
  %v736 = vmul.f32 %v551, %v551
  %v737 = vmul.f32 %v554, %v554
  %v738 = vmul.f32 %v559, %v559
  %v739 = vmul.f32 %v562, %v562
  %v740 = vmul.f32 %v567, %v567
  %v741 = vmul.f32 %v570, %v570
  %v742 = vmul.f32 %v575, %v575
  %v743 = vmul.f32 %v578, %v578
  %v744 = vmul.f32 %v583, %v583
  %v745 = vmul.f32 %v586, %v586
  %v746 = vmul.f32 %v591, %v591
  %v747 = vmul.f32 %v594, %v594
  %v748 = vmul.f32 %v599, %v599
  %v749 = vmul.f32 %v602, %v602
  %v750 = vmul.f32 %v607, %v607
  %v751 = vmul.f32 %v610, %v610
  %v752 = vmul.f32 %v615, %v615
  %v753 = vmul.f32 %v618, %v618
  %v754 = vadd.f32 %v690, %v691
  %v755 = vadd.f32 %v754, %v692
  %v756 = vadd.f32 %v755, %v693
  %v757 = vadd.f32 %v756, %v694
  %v758 = vadd.f32 %v757, %v695
  %v759 = vadd.f32 %v758, %v696
  %v760 = vadd.f32 %v759, %v697
  %v761 = vadd.f32 %v760, %v698
  %v762 = vadd.f32 %v761, %v699
  %v763 = vadd.f32 %v762, %v700
  %v764 = vadd.f32 %v763, %v701
  %v765 = vadd.f32 %v764, %v702
  %v766 = vadd.f32 %v765, %v703
  %v767 = vadd.f32 %v766, %v704
  %v768 = vadd.f32 %v767, %v705
  %v769 = vadd.f32 %v768, %v706
  %v770 = vadd.f32 %v769, %v707
  %v771 = vadd.f32 %v770, %v708
  %v772 = vadd.f32 %v771, %v709
  %v773 = vadd.f32 %v772, %v710
  %v774 = vadd.f32 %v773, %v711
  %v775 = vadd.f32 %v774, %v712
  %v776 = vadd.f32 %v775, %v713
  %v777 = vadd.f32 %v776, %v714
  %v778 = vadd.f32 %v777, %v715
  %v779 = vadd.f32 %v778, %v716
  %v780 = vadd.f32 %v779, %v717
  %v781 = vadd.f32 %v780, %v718
  %v782 = vadd.f32 %v781, %v719
  %v783 = vadd.f32 %v782, %v720
  %v784 = vadd.f32 %v783, %v721
  %v785 = vadd.f32 %v784, %v722
  %v786 = vadd.f32 %v785, %v723
  %v787 = vadd.f32 %v786, %v724
  %v788 = vadd.f32 %v787, %v725
  %v789 = vadd.f32 %v788, %v726
  %v790 = vadd.f32 %v789, %v727
  %v791 = vadd.f32 %v790, %v728
  %v792 = vadd.f32 %v791, %v729
  %v793 = vadd.f32 %v792, %v730
  %v794 = vadd.f32 %v793, %v731
  %v795 = vadd.f32 %v794, %v732
  %v796 = vadd.f32 %v795, %v733
  %v797 = vadd.f32 %v796, %v734
  %v798 = vadd.f32 %v797, %v735
  %v799 = vadd.f32 %v798, %v736
  %v800 = vadd.f32 %v799, %v737
  %v801 = vadd.f32 %v800, %v738
  %v802 = vadd.f32 %v801, %v739
  %v803 = vadd.f32 %v802, %v740
  %v804 = vadd.f32 %v803, %v741
  %v805 = vadd.f32 %v804, %v742
  %v806 = vadd.f32 %v805, %v743
  %v807 = vadd.f32 %v806, %v744
  %v808 = vadd.f32 %v807, %v745
  %v809 = vadd.f32 %v808, %v746
  %v810 = vadd.f32 %v809, %v747
  %v811 = vadd.f32 %v810, %v748
  %v812 = vadd.f32 %v811, %v749
  %v813 = vadd.f32 %v812, %v750
  %v814 = vadd.f32 %v813, %v751
  %v815 = vadd.f32 %v814, %v752
  %v816 = vadd.f32 %v815, %v753
  %v817 = vrot.slane %v816, 4
  %v818 = vadd.f32 %v816, %v817
  %v819 = vrot.slane %v818, 2
  %v820 = vadd.f32 %v818, %v819
  %v821 = vrot.slane %v820, 1
  %v822 = vadd.f32 %v820, %v821
  %v823 = vmul.f32 %v689, 0.001953125
  %v824 = vmul.f32 %v822, 0.001953125
  %v825 = vmul.f32 %v823, %v823
  %v826 = vsub.f32 %v824, %v825
  %v827 = vmax.f32 %v826, 0.0
  %v828 = vsub.f32 %v367, %v823
  %v829 = vsub.f32 %v370, %v823
  %v830 = vsub.f32 %v375, %v823
  %v831 = vsub.f32 %v378, %v823
  %v832 = vsub.f32 %v383, %v823
  %v833 = vsub.f32 %v386, %v823
  %v834 = vsub.f32 %v391, %v823
  %v835 = vsub.f32 %v394, %v823
  %v836 = vsub.f32 %v399, %v823
  %v837 = vsub.f32 %v402, %v823
  %v838 = vsub.f32 %v407, %v823
  %v839 = vsub.f32 %v410, %v823
  %v840 = vsub.f32 %v415, %v823
  %v841 = vsub.f32 %v418, %v823
  %v842 = vsub.f32 %v423, %v823
  %v843 = vsub.f32 %v426, %v823
  %v844 = vsub.f32 %v431, %v823
  %v845 = vsub.f32 %v434, %v823
  %v846 = vsub.f32 %v439, %v823
  %v847 = vsub.f32 %v442, %v823
  %v848 = vsub.f32 %v447, %v823
  %v849 = vsub.f32 %v450, %v823
  %v850 = vsub.f32 %v455, %v823
  %v851 = vsub.f32 %v458, %v823
  %v852 = vsub.f32 %v463, %v823
  %v853 = vsub.f32 %v466, %v823
  %v854 = vsub.f32 %v471, %v823
  %v855 = vsub.f32 %v474, %v823
  %v856 = vsub.f32 %v479, %v823
  %v857 = vsub.f32 %v482, %v823
  %v858 = vsub.f32 %v487, %v823
  %v859 = vsub.f32 %v490, %v823
  %v860 = vsub.f32 %v495, %v823
  %v861 = vsub.f32 %v498, %v823
  %v862 = vsub.f32 %v503, %v823
  %v863 = vsub.f32 %v506, %v823
  %v864 = vsub.f32 %v511, %v823
  %v865 = vsub.f32 %v514, %v823
  %v866 = vsub.f32 %v519, %v823
  %v867 = vsub.f32 %v522, %v823
  %v868 = vsub.f32 %v527, %v823
  %v869 = vsub.f32 %v530, %v823
  %v870 = vsub.f32 %v535, %v823
  %v871 = vsub.f32 %v538, %v823
  %v872 = vsub.f32 %v543, %v823
  %v873 = vsub.f32 %v546, %v823
  %v874 = vsub.f32 %v551, %v823
  %v875 = vsub.f32 %v554, %v823
  %v876 = vsub.f32 %v559, %v823
  %v877 = vsub.f32 %v562, %v823
  %v878 = vsub.f32 %v567, %v823
  %v879 = vsub.f32 %v570, %v823
  %v880 = vsub.f32 %v575, %v823
  %v881 = vsub.f32 %v578, %v823
  %v882 = vsub.f32 %v583, %v823
  %v883 = vsub.f32 %v586, %v823
  %v884 = vsub.f32 %v591, %v823
  %v885 = vsub.f32 %v594, %v823
  %v886 = vsub.f32 %v599, %v823
  %v887 = vsub.f32 %v602, %v823
  %v888 = vsub.f32 %v607, %v823
  %v889 = vsub.f32 %v610, %v823
  %v890 = vsub.f32 %v615, %v823
  %v891 = vsub.f32 %v618, %v823
  %v892 = vadd.f32 %v827, 1e-05
  %v893 = vrsqrt.pop %v892
  %v894 = vmul.f32 %v828, %v893
  %v895 = vmul.f32 %v829, %v893
  %v896 = vmul.f32 %v830, %v893
  %v897 = vmul.f32 %v831, %v893
  %v898 = vmul.f32 %v832, %v893
  %v899 = vmul.f32 %v833, %v893
  %v900 = vmul.f32 %v834, %v893
  %v901 = vmul.f32 %v835, %v893
  %v902 = vmul.f32 %v836, %v893
  %v903 = vmul.f32 %v837, %v893
  %v904 = vmul.f32 %v838, %v893
  %v905 = vmul.f32 %v839, %v893
  %v906 = vmul.f32 %v840, %v893
  %v907 = vmul.f32 %v841, %v893
  %v908 = vmul.f32 %v842, %v893
  %v909 = vmul.f32 %v843, %v893
  %v910 = vmul.f32 %v844, %v893
  %v911 = vmul.f32 %v845, %v893
  %v912 = vmul.f32 %v846, %v893
  %v913 = vmul.f32 %v847, %v893
  %v914 = vmul.f32 %v848, %v893
  %v915 = vmul.f32 %v849, %v893
  %v916 = vmul.f32 %v850, %v893
  %v917 = vmul.f32 %v851, %v893
  %v918 = vmul.f32 %v852, %v893
  %v919 = vmul.f32 %v853, %v893
  %v920 = vmul.f32 %v854, %v893
  %v921 = vmul.f32 %v855, %v893
  %v922 = vmul.f32 %v856, %v893
  %v923 = vmul.f32 %v857, %v893
  %v924 = vmul.f32 %v858, %v893
  %v925 = vmul.f32 %v859, %v893
  %v926 = vmul.f32 %v860, %v893
  %v927 = vmul.f32 %v861, %v893
  %v928 = vmul.f32 %v862, %v893
  %v929 = vmul.f32 %v863, %v893
  %v930 = vmul.f32 %v864, %v893
  %v931 = vmul.f32 %v865, %v893
  %v932 = vmul.f32 %v866, %v893
  %v933 = vmul.f32 %v867, %v893
  %v934 = vmul.f32 %v868, %v893
  %v935 = vmul.f32 %v869, %v893
  %v936 = vmul.f32 %v870, %v893
  %v937 = vmul.f32 %v871, %v893
  %v938 = vmul.f32 %v872, %v893
  %v939 = vmul.f32 %v873, %v893
  %v940 = vmul.f32 %v874, %v893
  %v941 = vmul.f32 %v875, %v893
  %v942 = vmul.f32 %v876, %v893
  %v943 = vmul.f32 %v877, %v893
  %v944 = vmul.f32 %v878, %v893
  %v945 = vmul.f32 %v879, %v893
  %v946 = vmul.f32 %v880, %v893
  %v947 = vmul.f32 %v881, %v893
  %v948 = vmul.f32 %v882, %v893
  %v949 = vmul.f32 %v883, %v893
  %v950 = vmul.f32 %v884, %v893
  %v951 = vmul.f32 %v885, %v893
  %v952 = vmul.f32 %v886, %v893
  %v953 = vmul.f32 %v887, %v893
  %v954 = vmul.f32 %v888, %v893
  %v955 = vmul.f32 %v889, %v893
  %v956 = vmul.f32 %v890, %v893
  %v957 = vmul.f32 %v891, %v893
  %vm958 = vcmp.gt.f32.partialorder %v894, 0.0
  %vm959 = vcmp.gt.f32.partialorder %v895, 0.0
  %vm960 = vcmp.gt.f32.partialorder %v896, 0.0
  %vm961 = vcmp.gt.f32.partialorder %v897, 0.0
  %vm962 = vcmp.gt.f32.partialorder %v898, 0.0
  %vm963 = vcmp.gt.f32.partialorder %v899, 0.0
  %vm964 = vcmp.gt.f32.partialorder %v900, 0.0
  %vm965 = vcmp.gt.f32.partialorder %v901, 0.0
  %vm966 = vcmp.gt.f32.partialorder %v902, 0.0
  %vm967 = vcmp.gt.f32.partialorder %v903, 0.0
  %vm968 = vcmp.gt.f32.partialorder %v904, 0.0
  %vm969 = vcmp.gt.f32.partialorder %v905, 0.0
  %vm970 = vcmp.gt.f32.partialorder %v906, 0.0
  %vm971 = vcmp.gt.f32.partialorder %v907, 0.0
  %vm972 = vcmp.gt.f32.partialorder %v908, 0.0
  %vm973 = vcmp.gt.f32.partialorder %v909, 0.0
  %vm974 = vcmp.gt.f32.partialorder %v910, 0.0
  %vm975 = vcmp.gt.f32.partialorder %v911, 0.0
  %vm976 = vcmp.gt.f32.partialorder %v912, 0.0
  %vm977 = vcmp.gt.f32.partialorder %v913, 0.0
  %vm978 = vcmp.gt.f32.partialorder %v914, 0.0
  %vm979 = vcmp.gt.f32.partialorder %v915, 0.0
  %vm980 = vcmp.gt.f32.partialorder %v916, 0.0
  %vm981 = vcmp.gt.f32.partialorder %v917, 0.0
  %vm982 = vcmp.gt.f32.partialorder %v918, 0.0
  %vm983 = vcmp.gt.f32.partialorder %v919, 0.0
  %vm984 = vcmp.gt.f32.partialorder %v920, 0.0
  %vm985 = vcmp.gt.f32.partialorder %v921, 0.0
  %vm986 = vcmp.gt.f32.partialorder %v922, 0.0
  %vm987 = vcmp.gt.f32.partialorder %v923, 0.0
  %vm988 = vcmp.gt.f32.partialorder %v924, 0.0
  %vm989 = vcmp.gt.f32.partialorder %v925, 0.0
  %vm990 = vcmp.gt.f32.partialorder %v926, 0.0
  %vm991 = vcmp.gt.f32.partialorder %v927, 0.0
  %vm992 = vcmp.gt.f32.partialorder %v928, 0.0
  %vm993 = vcmp.gt.f32.partialorder %v929, 0.0
  %vm994 = vcmp.gt.f32.partialorder %v930, 0.0
  %vm995 = vcmp.gt.f32.partialorder %v931, 0.0
  %vm996 = vcmp.gt.f32.partialorder %v932, 0.0
  %vm997 = vcmp.gt.f32.partialorder %v933, 0.0
  %vm998 = vcmp.gt.f32.partialorder %v934, 0.0
  %vm999 = vcmp.gt.f32.partialorder %v935, 0.0
  %vm1000 = vcmp.gt.f32.partialorder %v936, 0.0
  %vm1001 = vcmp.gt.f32.partialorder %v937, 0.0
  %vm1002 = vcmp.gt.f32.partialorder %v938, 0.0
  %vm1003 = vcmp.gt.f32.partialorder %v939, 0.0
  %vm1004 = vcmp.gt.f32.partialorder %v940, 0.0
  %vm1005 = vcmp.gt.f32.partialorder %v941, 0.0
  %vm1006 = vcmp.gt.f32.partialorder %v942, 0.0
  %vm1007 = vcmp.gt.f32.partialorder %v943, 0.0
  %vm1008 = vcmp.gt.f32.partialorder %v944, 0.0
  %vm1009 = vcmp.gt.f32.partialorder %v945, 0.0
  %vm1010 = vcmp.gt.f32.partialorder %v946, 0.0
  %vm1011 = vcmp.gt.f32.partialorder %v947, 0.0
  %vm1012 = vcmp.gt.f32.partialorder %v948, 0.0
  %vm1013 = vcmp.gt.f32.partialorder %v949, 0.0
  %vm1014 = vcmp.gt.f32.partialorder %v950, 0.0
  %vm1015 = vcmp.gt.f32.partialorder %v951, 0.0
  %vm1016 = vcmp.gt.f32.partialorder %v952, 0.0
  %vm1017 = vcmp.gt.f32.partialorder %v953, 0.0
  %vm1018 = vcmp.gt.f32.partialorder %v954, 0.0
  %vm1019 = vcmp.gt.f32.partialorder %v955, 0.0
  %vm1020 = vcmp.gt.f32.partialorder %v956, 0.0
  %vm1021 = vcmp.gt.f32.partialorder %v957, 0.0
  %v1022 = vmul.f32 %v894, 0.01
  %v1023 = vmul.f32 %v895, 0.01
  %v1024 = vmul.f32 %v896, 0.01
  %v1025 = vmul.f32 %v897, 0.01
  %v1026 = vmul.f32 %v898, 0.01
  %v1027 = vmul.f32 %v899, 0.01
  %v1028 = vmul.f32 %v900, 0.01
  %v1029 = vmul.f32 %v901, 0.01
  %v1030 = vmul.f32 %v902, 0.01
  %v1031 = vmul.f32 %v903, 0.01
  %v1032 = vmul.f32 %v904, 0.01
  %v1033 = vmul.f32 %v905, 0.01
  %v1034 = vmul.f32 %v906, 0.01
  %v1035 = vmul.f32 %v907, 0.01
  %v1036 = vmul.f32 %v908, 0.01
  %v1037 = vmul.f32 %v909, 0.01
  %v1038 = vmul.f32 %v910, 0.01
  %v1039 = vmul.f32 %v911, 0.01
  %v1040 = vmul.f32 %v912, 0.01
  %v1041 = vmul.f32 %v913, 0.01
  %v1042 = vmul.f32 %v914, 0.01
  %v1043 = vmul.f32 %v915, 0.01
  %v1044 = vmul.f32 %v916, 0.01
  %v1045 = vmul.f32 %v917, 0.01
  %v1046 = vmul.f32 %v918, 0.01
  %v1047 = vmul.f32 %v919, 0.01
  %v1048 = vmul.f32 %v920, 0.01
  %v1049 = vmul.f32 %v921, 0.01
  %v1050 = vmul.f32 %v922, 0.01
  %v1051 = vmul.f32 %v923, 0.01
  %v1052 = vmul.f32 %v924, 0.01
  %v1053 = vmul.f32 %v925, 0.01
  %v1054 = vmul.f32 %v926, 0.01
  %v1055 = vmul.f32 %v927, 0.01
  %v1056 = vmul.f32 %v928, 0.01
  %v1057 = vmul.f32 %v929, 0.01
  %v1058 = vmul.f32 %v930, 0.01
  %v1059 = vmul.f32 %v931, 0.01
  %v1060 = vmul.f32 %v932, 0.01
  %v1061 = vmul.f32 %v933, 0.01
  %v1062 = vmul.f32 %v934, 0.01
  %v1063 = vmul.f32 %v935, 0.01
  %v1064 = vmul.f32 %v936, 0.01
  %v1065 = vmul.f32 %v937, 0.01
  %v1066 = vmul.f32 %v938, 0.01
  %v1067 = vmul.f32 %v939, 0.01
  %v1068 = vmul.f32 %v940, 0.01
  %v1069 = vmul.f32 %v941, 0.01
  %v1070 = vmul.f32 %v942, 0.01
  %v1071 = vmul.f32 %v943, 0.01
  %v1072 = vmul.f32 %v944, 0.01
  %v1073 = vmul.f32 %v945, 0.01
  %v1074 = vmul.f32 %v946, 0.01
  %v1075 = vmul.f32 %v947, 0.01
  %v1076 = vmul.f32 %v948, 0.01
  %v1077 = vmul.f32 %v949, 0.01
  %v1078 = vmul.f32 %v950, 0.01
  %v1079 = vmul.f32 %v951, 0.01
  %v1080 = vmul.f32 %v952, 0.01
  %v1081 = vmul.f32 %v953, 0.01
  %v1082 = vmul.f32 %v954, 0.01
  %v1083 = vmul.f32 %v955, 0.01
  %v1084 = vmul.f32 %v956, 0.01
  %v1085 = vmul.f32 %v957, 0.01
  %v1086 = vsel %vm958, %v894, %v1022
  %v1087 = vsel %vm959, %v895, %v1023
  %v1088 = vsel %vm960, %v896, %v1024
  %v1089 = vsel %vm961, %v897, %v1025
  %v1090 = vsel %vm962, %v898, %v1026
  %v1091 = vsel %vm963, %v899, %v1027
  %v1092 = vsel %vm964, %v900, %v1028
  %v1093 = vsel %vm965, %v901, %v1029
  %v1094 = vsel %vm966, %v902, %v1030
  %v1095 = vsel %vm967, %v903, %v1031
  %v1096 = vsel %vm968, %v904, %v1032
  %v1097 = vsel %vm969, %v905, %v1033
  %v1098 = vsel %vm970, %v906, %v1034
  %v1099 = vsel %vm971, %v907, %v1035
  %v1100 = vsel %vm972, %v908, %v1036
  %v1101 = vsel %vm973, %v909, %v1037
  %v1102 = vsel %vm974, %v910, %v1038
  %v1103 = vsel %vm975, %v911, %v1039
  %v1104 = vsel %vm976, %v912, %v1040
  %v1105 = vsel %vm977, %v913, %v1041
  %v1106 = vsel %vm978, %v914, %v1042
  %v1107 = vsel %vm979, %v915, %v1043
  %v1108 = vsel %vm980, %v916, %v1044
  %v1109 = vsel %vm981, %v917, %v1045
  %v1110 = vsel %vm982, %v918, %v1046
  %v1111 = vsel %vm983, %v919, %v1047
  %v1112 = vsel %vm984, %v920, %v1048
  %v1113 = vsel %vm985, %v921, %v1049
  %v1114 = vsel %vm986, %v922, %v1050
  %v1115 = vsel %vm987, %v923, %v1051
  %v1116 = vsel %vm988, %v924, %v1052
  %v1117 = vsel %vm989, %v925, %v1053
  %v1118 = vsel %vm990, %v926, %v1054
  %v1119 = vsel %vm991, %v927, %v1055
  %v1120 = vsel %vm992, %v928, %v1056
  %v1121 = vsel %vm993, %v929, %v1057
  %v1122 = vsel %vm994, %v930, %v1058
  %v1123 = vsel %vm995, %v931, %v1059
  %v1124 = vsel %vm996, %v932, %v1060
  %v1125 = vsel %vm997, %v933, %v1061
  %v1126 = vsel %vm998, %v934, %v1062
  %v1127 = vsel %vm999, %v935, %v1063
  %v1128 = vsel %vm1000, %v936, %v1064
  %v1129 = vsel %vm1001, %v937, %v1065
  %v1130 = vsel %vm1002, %v938, %v1066
  %v1131 = vsel %vm1003, %v939, %v1067
  %v1132 = vsel %vm1004, %v940, %v1068
  %v1133 = vsel %vm1005, %v941, %v1069
  %v1134 = vsel %vm1006, %v942, %v1070
  %v1135 = vsel %vm1007, %v943, %v1071
  %v1136 = vsel %vm1008, %v944, %v1072
  %v1137 = vsel %vm1009, %v945, %v1073
  %v1138 = vsel %vm1010, %v946, %v1074
  %v1139 = vsel %vm1011, %v947, %v1075
  %v1140 = vsel %vm1012, %v948, %v1076
  %v1141 = vsel %vm1013, %v949, %v1077
  %v1142 = vsel %vm1014, %v950, %v1078
  %v1143 = vsel %vm1015, %v951, %v1079
  %v1144 = vsel %vm1016, %v952, %v1080
  %v1145 = vsel %vm1017, %v953, %v1081
  %v1146 = vsel %vm1018, %v954, %v1082
  %v1147 = vsel %vm1019, %v955, %v1083
  %v1148 = vsel %vm1020, %v956, %v1084
  %v1149 = vsel %vm1021, %v957, %v1085
  %v1150 = vpack.c.bf16 %v1087, %v1086
  %v1151 = vpack.c.bf16 %v1089, %v1088
  %v1152 = vpack.c.bf16 %v1091, %v1090
  %v1153 = vpack.c.bf16 %v1093, %v1092
  %v1154 = vpack.c.bf16 %v1095, %v1094
  %v1155 = vpack.c.bf16 %v1097, %v1096
  %v1156 = vpack.c.bf16 %v1099, %v1098
  %v1157 = vpack.c.bf16 %v1101, %v1100
  %v1158 = vpack.c.bf16 %v1103, %v1102
  %v1159 = vpack.c.bf16 %v1105, %v1104
  %v1160 = vpack.c.bf16 %v1107, %v1106
  %v1161 = vpack.c.bf16 %v1109, %v1108
  %v1162 = vpack.c.bf16 %v1111, %v1110
  %v1163 = vpack.c.bf16 %v1113, %v1112
  %v1164 = vpack.c.bf16 %v1115, %v1114
  %v1165 = vpack.c.bf16 %v1117, %v1116
  %v1166 = vpack.c.bf16 %v1119, %v1118
  %v1167 = vpack.c.bf16 %v1121, %v1120
  %v1168 = vpack.c.bf16 %v1123, %v1122
  %v1169 = vpack.c.bf16 %v1125, %v1124
  %v1170 = vpack.c.bf16 %v1127, %v1126
  %v1171 = vpack.c.bf16 %v1129, %v1128
  %v1172 = vpack.c.bf16 %v1131, %v1130
  %v1173 = vpack.c.bf16 %v1133, %v1132
  %v1174 = vpack.c.bf16 %v1135, %v1134
  %v1175 = vpack.c.bf16 %v1137, %v1136
  %v1176 = vpack.c.bf16 %v1139, %v1138
  %v1177 = vpack.c.bf16 %v1141, %v1140
  %v1178 = vpack.c.bf16 %v1143, %v1142
  %v1179 = vpack.c.bf16 %v1145, %v1144
  %v1180 = vpack.c.bf16 %v1147, %v1146
  %v1181 = vpack.c.bf16 %v1149, %v1148
  %v1214 = vunpack.c.l.b16 %v1150
  %v1215 = vunpack.c.h.b16 %v1150
  %v1216 = vunpack.c.l.b16 %v1151
  %v1217 = vunpack.c.h.b16 %v1151
  %v1218 = vunpack.c.l.b16 %v1152
  %v1219 = vunpack.c.h.b16 %v1152
  %v1220 = vunpack.c.l.b16 %v1153
  %v1221 = vunpack.c.h.b16 %v1153
  %v1222 = vunpack.c.l.b16 %v1154
  %v1223 = vunpack.c.h.b16 %v1154
  %v1224 = vunpack.c.l.b16 %v1155
  %v1225 = vunpack.c.h.b16 %v1155
  %v1226 = vunpack.c.l.b16 %v1156
  %v1227 = vunpack.c.h.b16 %v1156
  %v1228 = vunpack.c.l.b16 %v1157
  %v1229 = vunpack.c.h.b16 %v1157
  %v1230 = vunpack.c.l.b16 %v1158
  %v1231 = vunpack.c.h.b16 %v1158
  %v1232 = vunpack.c.l.b16 %v1159
  %v1233 = vunpack.c.h.b16 %v1159
  %v1234 = vunpack.c.l.b16 %v1160
  %v1235 = vunpack.c.h.b16 %v1160
  %v1236 = vunpack.c.l.b16 %v1161
  %v1237 = vunpack.c.h.b16 %v1161
  %v1238 = vunpack.c.l.b16 %v1162
  %v1239 = vunpack.c.h.b16 %v1162
  %v1240 = vunpack.c.l.b16 %v1163
  %v1241 = vunpack.c.h.b16 %v1163
  %v1242 = vunpack.c.l.b16 %v1164
  %v1243 = vunpack.c.h.b16 %v1164
  %v1244 = vunpack.c.l.b16 %v1165
  %v1245 = vunpack.c.h.b16 %v1165
  %v1246 = vunpack.c.l.b16 %v1166
  %v1247 = vunpack.c.h.b16 %v1166
  %v1248 = vunpack.c.l.b16 %v1167
  %v1249 = vunpack.c.h.b16 %v1167
  %v1250 = vunpack.c.l.b16 %v1168
  %v1251 = vunpack.c.h.b16 %v1168
  %v1252 = vunpack.c.l.b16 %v1169
  %v1253 = vunpack.c.h.b16 %v1169
  %v1254 = vunpack.c.l.b16 %v1170
  %v1255 = vunpack.c.h.b16 %v1170
  %v1256 = vunpack.c.l.b16 %v1171
  %v1257 = vunpack.c.h.b16 %v1171
  %v1258 = vunpack.c.l.b16 %v1172
  %v1259 = vunpack.c.h.b16 %v1172
  %v1260 = vunpack.c.l.b16 %v1173
  %v1261 = vunpack.c.h.b16 %v1173
  %v1262 = vunpack.c.l.b16 %v1174
  %v1263 = vunpack.c.h.b16 %v1174
  %v1264 = vunpack.c.l.b16 %v1175
  %v1265 = vunpack.c.h.b16 %v1175
  %v1266 = vunpack.c.l.b16 %v1176
  %v1267 = vunpack.c.h.b16 %v1176
  %v1268 = vunpack.c.l.b16 %v1177
  %v1269 = vunpack.c.h.b16 %v1177
  %v1270 = vunpack.c.l.b16 %v1178
  %v1271 = vunpack.c.h.b16 %v1178
  %v1272 = vunpack.c.l.b16 %v1179
  %v1273 = vunpack.c.h.b16 %v1179
  %v1274 = vunpack.c.l.b16 %v1180
  %v1275 = vunpack.c.h.b16 %v1180
  %v1276 = vunpack.c.l.b16 %v1181
  %v1277 = vunpack.c.h.b16 %v1181
  %v1278 = vpack.c.b16 %v1214, %v1214
  %v1279 = vpack.c.b16 %v1215, %v1215
  %v1280 = vpack.c.b16 %v1216, %v1216
  %v1281 = vpack.c.b16 %v1217, %v1217
  %v1282 = vpack.c.b16 %v1218, %v1218
  %v1283 = vpack.c.b16 %v1219, %v1219
  %v1284 = vpack.c.b16 %v1220, %v1220
  %v1285 = vpack.c.b16 %v1221, %v1221
  %v1286 = vpack.c.b16 %v1222, %v1222
  %v1287 = vpack.c.b16 %v1223, %v1223
  %v1288 = vpack.c.b16 %v1224, %v1224
  %v1289 = vpack.c.b16 %v1225, %v1225
  %v1290 = vpack.c.b16 %v1226, %v1226
  %v1291 = vpack.c.b16 %v1227, %v1227
  %v1292 = vpack.c.b16 %v1228, %v1228
  %v1293 = vpack.c.b16 %v1229, %v1229
  %v1294 = vpack.c.b16 %v1230, %v1230
  %v1295 = vpack.c.b16 %v1231, %v1231
  %v1296 = vpack.c.b16 %v1232, %v1232
  %v1297 = vpack.c.b16 %v1233, %v1233
  %v1298 = vpack.c.b16 %v1234, %v1234
  %v1299 = vpack.c.b16 %v1235, %v1235
  %v1300 = vpack.c.b16 %v1236, %v1236
  %v1301 = vpack.c.b16 %v1237, %v1237
  %v1302 = vpack.c.b16 %v1238, %v1238
  %v1303 = vpack.c.b16 %v1239, %v1239
  %v1304 = vpack.c.b16 %v1240, %v1240
  %v1305 = vpack.c.b16 %v1241, %v1241
  %v1306 = vpack.c.b16 %v1242, %v1242
  %v1307 = vpack.c.b16 %v1243, %v1243
  %v1308 = vpack.c.b16 %v1244, %v1244
  %v1309 = vpack.c.b16 %v1245, %v1245
  %v1310 = vpack.c.b16 %v1246, %v1246
  %v1311 = vpack.c.b16 %v1247, %v1247
  %v1312 = vpack.c.b16 %v1248, %v1248
  %v1313 = vpack.c.b16 %v1249, %v1249
  %v1314 = vpack.c.b16 %v1250, %v1250
  %v1315 = vpack.c.b16 %v1251, %v1251
  %v1316 = vpack.c.b16 %v1252, %v1252
  %v1317 = vpack.c.b16 %v1253, %v1253
  %v1318 = vpack.c.b16 %v1254, %v1254
  %v1319 = vpack.c.b16 %v1255, %v1255
  %v1320 = vpack.c.b16 %v1256, %v1256
  %v1321 = vpack.c.b16 %v1257, %v1257
  %v1322 = vpack.c.b16 %v1258, %v1258
  %v1323 = vpack.c.b16 %v1259, %v1259
  %v1324 = vpack.c.b16 %v1260, %v1260
  %v1325 = vpack.c.b16 %v1261, %v1261
  %v1326 = vpack.c.b16 %v1262, %v1262
  %v1327 = vpack.c.b16 %v1263, %v1263
  %v1328 = vpack.c.b16 %v1264, %v1264
  %v1329 = vpack.c.b16 %v1265, %v1265
  %v1330 = vpack.c.b16 %v1266, %v1266
  %v1331 = vpack.c.b16 %v1267, %v1267
  %v1332 = vpack.c.b16 %v1268, %v1268
  %v1333 = vpack.c.b16 %v1269, %v1269
  %v1334 = vpack.c.b16 %v1270, %v1270
  %v1335 = vpack.c.b16 %v1271, %v1271
  %v1336 = vpack.c.b16 %v1272, %v1272
  %v1337 = vpack.c.b16 %v1273, %v1273
  %v1338 = vpack.c.b16 %v1274, %v1274
  %v1339 = vpack.c.b16 %v1275, %v1275
  %v1340 = vpack.c.b16 %v1276, %v1276
  %v1341 = vpack.c.b16 %v1277, %v1277
  %1406 = vst [vmem:[%s2] sm:$0xf] %v1278
  %1407 = vst [vmem:[%s2 + $0x4] sm:$0xf] %v1279
  %1408 = vst [vmem:[%s2 + $0x8] sm:$0xf] %v1280
  %1409 = vst [vmem:[%s2 + $0xc] sm:$0xf] %v1281
  %1410 = vst [vmem:[%s2 + $0x10] sm:$0xf] %v1282
  %1411 = vst [vmem:[%s2 + $0x14] sm:$0xf] %v1283
  %1412 = vst [vmem:[%s2 + $0x18] sm:$0xf] %v1284
  %1413 = vst [vmem:[%s2 + $0x1c] sm:$0xf] %v1285
  %1414 = vst [vmem:[%s2 + $0x20] sm:$0xf] %v1286
  %1415 = vst [vmem:[%s2 + $0x24] sm:$0xf] %v1287
  %1416 = vst [vmem:[%s2 + $0x28] sm:$0xf] %v1288
  %1417 = vst [vmem:[%s2 + $0x2c] sm:$0xf] %v1289
  %1418 = vst [vmem:[%s2 + $0x30] sm:$0xf] %v1290
  %1419 = vst [vmem:[%s2 + $0x34] sm:$0xf] %v1291
  %1420 = vst [vmem:[%s2 + $0x38] sm:$0xf] %v1292
  %1421 = vst [vmem:[%s2 + $0x3c] sm:$0xf] %v1293
  %1422 = vst [vmem:[%s2 + $0x40] sm:$0xf] %v1294
  %1423 = vst [vmem:[%s2 + $0x44] sm:$0xf] %v1295
  %1424 = vst [vmem:[%s2 + $0x48] sm:$0xf] %v1296
  %1425 = vst [vmem:[%s2 + $0x4c] sm:$0xf] %v1297
  %1426 = vst [vmem:[%s2 + $0x50] sm:$0xf] %v1298
  %1427 = vst [vmem:[%s2 + $0x54] sm:$0xf] %v1299
  %1428 = vst [vmem:[%s2 + $0x58] sm:$0xf] %v1300
  %1429 = vst [vmem:[%s2 + $0x5c] sm:$0xf] %v1301
  %1430 = vst [vmem:[%s2 + $0x60] sm:$0xf] %v1302
  %1431 = vst [vmem:[%s2 + $0x64] sm:$0xf] %v1303
  %1432 = vst [vmem:[%s2 + $0x68] sm:$0xf] %v1304
  %1433 = vst [vmem:[%s2 + $0x6c] sm:$0xf] %v1305
  %1434 = vst [vmem:[%s2 + $0x70] sm:$0xf] %v1306
  %1435 = vst [vmem:[%s2 + $0x74] sm:$0xf] %v1307
  %1436 = vst [vmem:[%s2 + $0x78] sm:$0xf] %v1308
  %1437 = vst [vmem:[%s2 + $0x7c] sm:$0xf] %v1309
  %1438 = vst [vmem:[%s2 + $0x80] sm:$0xf] %v1310
  %1439 = vst [vmem:[%s2 + $0x84] sm:$0xf] %v1311
  %1440 = vst [vmem:[%s2 + $0x88] sm:$0xf] %v1312
  %1441 = vst [vmem:[%s2 + $0x8c] sm:$0xf] %v1313
  %1442 = vst [vmem:[%s2 + $0x90] sm:$0xf] %v1314
  %1443 = vst [vmem:[%s2 + $0x94] sm:$0xf] %v1315
  %1444 = vst [vmem:[%s2 + $0x98] sm:$0xf] %v1316
  %1445 = vst [vmem:[%s2 + $0x9c] sm:$0xf] %v1317
  %1446 = vst [vmem:[%s2 + $0xa0] sm:$0xf] %v1318
  %1447 = vst [vmem:[%s2 + $0xa4] sm:$0xf] %v1319
  %1448 = vst [vmem:[%s2 + $0xa8] sm:$0xf] %v1320
  %1449 = vst [vmem:[%s2 + $0xac] sm:$0xf] %v1321
  %1450 = vst [vmem:[%s2 + $0xb0] sm:$0xf] %v1322
  %1451 = vst [vmem:[%s2 + $0xb4] sm:$0xf] %v1323
  %1452 = vst [vmem:[%s2 + $0xb8] sm:$0xf] %v1324
  %1453 = vst [vmem:[%s2 + $0xbc] sm:$0xf] %v1325
  %1454 = vst [vmem:[%s2 + $0xc0] sm:$0xf] %v1326
  %1455 = vst [vmem:[%s2 + $0xc4] sm:$0xf] %v1327
  %1456 = vst [vmem:[%s2 + $0xc8] sm:$0xf] %v1328
  %1457 = vst [vmem:[%s2 + $0xcc] sm:$0xf] %v1329
  %1458 = vst [vmem:[%s2 + $0xd0] sm:$0xf] %v1330
  %1459 = vst [vmem:[%s2 + $0xd4] sm:$0xf] %v1331
  %1460 = vst [vmem:[%s2 + $0xd8] sm:$0xf] %v1332
  %1461 = vst [vmem:[%s2 + $0xdc] sm:$0xf] %v1333
  %1462 = vst [vmem:[%s2 + $0xe0] sm:$0xf] %v1334
  %1463 = vst [vmem:[%s2 + $0xe4] sm:$0xf] %v1335
  %1464 = vst [vmem:[%s2 + $0xe8] sm:$0xf] %v1336
  %1465 = vst [vmem:[%s2 + $0xec] sm:$0xf] %v1337
  %1466 = vst [vmem:[%s2 + $0xf0] sm:$0xf] %v1338
  %1467 = vst [vmem:[%s2 + $0xf4] sm:$0xf] %v1339
  %1468 = vst [vmem:[%s2 + $0xf8] sm:$0xf] %v1340
  %1469 = vst [vmem:[%s2 + $0xfc] sm:$0xf] %v1341
  // Predicated region
  $region10: #{_lambda_.23} parent=0 // pred_check
    _
  $region11: #{_lambda_.23} parent=0 // pred_check_branch
    %1471 = sbr.rel (0) target = $region13
  $region12: #{_lambda_.23} parent=0 // pred_region
    _
  $region13: #{_lambda_.23} parent=0 // pred_fallthru
    _
  // Predicated region
  $region14: #{_lambda_.23} parent=0 // pred_check
    _
  $region15: #{_lambda_.23} parent=0 // pred_check_branch
    %1473 = sbr.rel (0) target = $region17
  $region16: #{_lambda_.23} parent=0 // pred_region
    _
  $region17: #{_lambda_.23} parent=0 // pred_fallthru
    _

// kernel: _lambda_.25
$region0: #{_lambda_.25}
  #allocation0 [shape = 'u32[]', space=smem, size = 0x4, offset = 0x4, fixed_abs, tag = 'smem constant byte address 0x4 - core index']
  #allocation1 [shape = 'u32[144,128]{1,0:T(1,128)}', space=vmem, size = 0x12000, scoped, tag = 'internal scratch']
  %s0 = inlined_call_operand.vmem [shape: bf16[128,128], index: 0, kind: input, shape index: {}]
  %s1 = inlined_call_operand.vmem [shape: bf16[128,128], index: 1, kind: input, shape index: {}]
  %s2 = inlined_call_operand.vmem [shape: bf16[128,128], index: 2, kind: output, shape index: {}]
  %s3 = sld [smem:[#allocation0]]
  $region18: #{_lambda_.25} parent=0
    _
  %s5 = ssub.s32 1, %s3
  %s6 = scalar_select 0, %s5, %s3
  // Predicated region
  $region2: #{_lambda_.25} parent=0 // pred_check
    _
  $region3: #{_lambda_.25} parent=0 // pred_check_branch
    %8 = sbr.rel (0) target = $region5
  $region4: #{_lambda_.25} parent=0 // pred_region
    _
  $region5: #{_lambda_.25} parent=0 // pred_fallthru
    _
  // Predicated region
  $region6: #{_lambda_.25} parent=0 // pred_check
    _
  $region7: #{_lambda_.25} parent=0 // pred_check_branch
    %10 = sbr.rel (0) target = $region9
  $region8: #{_lambda_.25} parent=0 // pred_region
    _
  $region9: #{_lambda_.25} parent=0 // pred_fallthru
    _
  %v12 = vld [vmem:[%s0] sm:$0xf]
  %v13 = vld [vmem:[%s0 + $0x4] sm:$0xf]
  %v14 = vld [vmem:[%s0 + $0x8] sm:$0xf]
  %v15 = vld [vmem:[%s0 + $0xc] sm:$0xf]
  %v16 = vld [vmem:[%s0 + $0x10] sm:$0xf]
  %v17 = vld [vmem:[%s0 + $0x14] sm:$0xf]
  %v18 = vld [vmem:[%s0 + $0x18] sm:$0xf]
  %v19 = vld [vmem:[%s0 + $0x1c] sm:$0xf]
  %v20 = vld [vmem:[%s0 + $0x20] sm:$0xf]
  %v21 = vld [vmem:[%s0 + $0x24] sm:$0xf]
  %v22 = vld [vmem:[%s0 + $0x28] sm:$0xf]
  %v23 = vld [vmem:[%s0 + $0x2c] sm:$0xf]
  %v24 = vld [vmem:[%s0 + $0x30] sm:$0xf]
  %v25 = vld [vmem:[%s0 + $0x34] sm:$0xf]
  %v26 = vld [vmem:[%s0 + $0x38] sm:$0xf]
  %v27 = vld [vmem:[%s0 + $0x3c] sm:$0xf]
  %v28 = vld [vmem:[%s1] sm:$0xf]
  %v29 = vld [vmem:[%s1 + $0x4] sm:$0xf]
  %v30 = vld [vmem:[%s1 + $0x8] sm:$0xf]
  %v31 = vld [vmem:[%s1 + $0xc] sm:$0xf]
  %v32 = vld [vmem:[%s1 + $0x10] sm:$0xf]
  %v33 = vld [vmem:[%s1 + $0x14] sm:$0xf]
  %v34 = vld [vmem:[%s1 + $0x18] sm:$0xf]
  %v35 = vld [vmem:[%s1 + $0x1c] sm:$0xf]
  %v36 = vld [vmem:[%s1 + $0x20] sm:$0xf]
  %v37 = vld [vmem:[%s1 + $0x24] sm:$0xf]
  %v38 = vld [vmem:[%s1 + $0x28] sm:$0xf]
  %v39 = vld [vmem:[%s1 + $0x2c] sm:$0xf]
  %v40 = vld [vmem:[%s1 + $0x30] sm:$0xf]
  %v41 = vld [vmem:[%s1 + $0x34] sm:$0xf]
  %v42 = vld [vmem:[%s1 + $0x38] sm:$0xf]
  %v43 = vld [vmem:[%s1 + $0x3c] sm:$0xf]
  %v60 = vunpack.c.l.b16 %v12
  %v61 = vunpack.c.l.b16 %v13
  %v62 = vunpack.c.l.b16 %v14
  %v63 = vunpack.c.l.b16 %v15
  %v64 = vunpack.c.l.b16 %v16
  %v65 = vunpack.c.l.b16 %v17
  %v66 = vunpack.c.l.b16 %v18
  %v67 = vunpack.c.l.b16 %v19
  %v68 = vunpack.c.l.b16 %v20
  %v69 = vunpack.c.l.b16 %v21
  %v70 = vunpack.c.l.b16 %v22
  %v71 = vunpack.c.l.b16 %v23
  %v72 = vunpack.c.l.b16 %v24
  %v73 = vunpack.c.l.b16 %v25
  %v74 = vunpack.c.l.b16 %v26
  %v75 = vunpack.c.l.b16 %v27
  %v76 = vpack.c.b16 %v61, %v60
  %v77 = vpack.c.b16 %v63, %v62
  %v78 = vpack.c.b16 %v65, %v64
  %v79 = vpack.c.b16 %v67, %v66
  %v80 = vpack.c.b16 %v69, %v68
  %v81 = vpack.c.b16 %v71, %v70
  %v82 = vpack.c.b16 %v73, %v72
  %v83 = vpack.c.b16 %v75, %v74
  %v108 = vunpack.c.l.b16 %v28
  %v109 = vunpack.c.l.b16 %v29
  %v110 = vunpack.c.l.b16 %v30
  %v111 = vunpack.c.l.b16 %v31
  %v112 = vunpack.c.l.b16 %v32
  %v113 = vunpack.c.l.b16 %v33
  %v114 = vunpack.c.l.b16 %v34
  %v115 = vunpack.c.l.b16 %v35
  %v116 = vunpack.c.l.b16 %v36
  %v117 = vunpack.c.l.b16 %v37
  %v118 = vunpack.c.l.b16 %v38
  %v119 = vunpack.c.l.b16 %v39
  %v120 = vunpack.c.l.b16 %v40
  %v121 = vunpack.c.l.b16 %v41
  %v122 = vunpack.c.l.b16 %v42
  %v123 = vunpack.c.l.b16 %v43
  %v124 = vpack.c.b16 %v109, %v108
  %v125 = vpack.c.b16 %v111, %v110
  %v126 = vpack.c.b16 %v113, %v112
  %v127 = vpack.c.b16 %v115, %v114
  %v128 = vpack.c.b16 %v117, %v116
  %v129 = vpack.c.b16 %v119, %v118
  %v130 = vpack.c.b16 %v121, %v120
  %v131 = vpack.c.b16 %v123, %v122
  %140 = vmatprep.subr.bf16.mxu0 0
  %141 = vmatpush1.bf16.msra.mxu0 %v124
  %142 = vmatprep.subr.bf16.mxu0 0
  %143 = vmatpush1.bf16.msra.mxu0 %v125
  %144 = vmatprep.subr.bf16.mxu0 0
  %145 = vmatpush1.bf16.msra.mxu0 %v126
  %146 = vmatprep.subr.bf16.mxu0 0
  %147 = vmatpush1.bf16.msra.mxu0 %v127
  %148 = vmatprep.subr.bf16.mxu0 0
  %149 = vmatpush1.bf16.msra.mxu0 %v128
  %150 = vmatprep.subr.bf16.mxu0 0
  %151 = vmatpush1.bf16.msra.mxu0 %v129
  %152 = vmatprep.subr.bf16.mxu0 0
  %153 = vmatpush1.bf16.msra.mxu0 %v130
  %154 = vmatprep.subr.bf16.mxu0 0
  %155 = vmatpush1.bf16.msra.mxu0 %v131
  %156 = vmatprep.subr.bf16.mxu0 0
  %157 = vmatpush1.bf16.msra.mxu0 0
  %158 = vmatprep.subr.bf16.mxu0 0
  %159 = vmatpush1.bf16.msra.mxu0 0
  %160 = vmatprep.subr.bf16.mxu0 0
  %161 = vmatpush1.bf16.msra.mxu0 0
  %162 = vmatprep.subr.bf16.mxu0 0
  %163 = vmatpush1.bf16.msra.mxu0 0
  %164 = vmatprep.subr.bf16.mxu0 0
  %165 = vmatpush1.bf16.msra.mxu0 0
  %166 = vmatprep.subr.bf16.mxu0 0
  %167 = vmatpush1.bf16.msra.mxu0 0
  %168 = vmatprep.subr.bf16.mxu0 0
  %169 = vmatpush1.bf16.msra.mxu0 0
  %170 = vmatprep.subr.bf16.mxu0 0
  %171 = vmatpush1.bf16.msra.mxu0 0
  %172 = vmatprep.mubr.bf16.mxu0 0
  %173 = vmatmul.mubr.bf16.gmra.mrb[0].mxu0 %v76
  %v174 = vpop.f32.mrb[0].mxu0
  %v175 = vadd.f32 0.0, %v174
  %v176 = vpop.f32.mrb[0].mxu0
  %v177 = vpop.f32.mrb[0].mxu0
  %v178 = vadd.f32 0.0, %v177
  %v179 = vpop.f32.mrb[0].mxu0
  %180 = vmatprep.mubr.bf16.mxu0 0
  %181 = vmatmul.mubr.bf16.gmra.mrb[0].mxu0 %v77
  %v182 = vpop.f32.mrb[0].mxu0
  %v183 = vadd.f32 0.0, %v182
  %v184 = vpop.f32.mrb[0].mxu0
  %v185 = vpop.f32.mrb[0].mxu0
  %v186 = vadd.f32 0.0, %v185
  %v187 = vpop.f32.mrb[0].mxu0
  %188 = vmatprep.mubr.bf16.mxu0 0
  %189 = vmatmul.mubr.bf16.gmra.mrb[0].mxu0 %v78
  %v190 = vpop.f32.mrb[0].mxu0
  %v191 = vadd.f32 0.0, %v190
  %v192 = vpop.f32.mrb[0].mxu0
  %v193 = vpop.f32.mrb[0].mxu0
  %v194 = vadd.f32 0.0, %v193
  %v195 = vpop.f32.mrb[0].mxu0
  %196 = vmatprep.mubr.bf16.mxu0 0
  %197 = vmatmul.mubr.bf16.gmra.mrb[0].mxu0 %v79
  %v198 = vpop.f32.mrb[0].mxu0
  %v199 = vadd.f32 0.0, %v198
  %v200 = vpop.f32.mrb[0].mxu0
  %v201 = vpop.f32.mrb[0].mxu0
  %v202 = vadd.f32 0.0, %v201
  %v203 = vpop.f32.mrb[0].mxu0
  %204 = vmatprep.mubr.bf16.mxu0 0
  %205 = vmatmul.mubr.bf16.gmra.mrb[0].mxu0 %v80
  %v206 = vpop.f32.mrb[0].mxu0
  %v207 = vadd.f32 0.0, %v206
  %v208 = vpop.f32.mrb[0].mxu0
  %v209 = vpop.f32.mrb[0].mxu0
  %v210 = vadd.f32 0.0, %v209
  %v211 = vpop.f32.mrb[0].mxu0
  %212 = vmatprep.mubr.bf16.mxu0 0
  %213 = vmatmul.mubr.bf16.gmra.mrb[0].mxu0 %v81
  %v214 = vpop.f32.mrb[0].mxu0
  %v215 = vadd.f32 0.0, %v214
  %v216 = vpop.f32.mrb[0].mxu0
  %v217 = vpop.f32.mrb[0].mxu0
  %v218 = vadd.f32 0.0, %v217
  %v219 = vpop.f32.mrb[0].mxu0
  %220 = vmatprep.mubr.bf16.mxu0 0
  %221 = vmatmul.mubr.bf16.gmra.mrb[0].mxu0 %v82
  %v222 = vpop.f32.mrb[0].mxu0
  %v223 = vadd.f32 0.0, %v222
  %v224 = vpop.f32.mrb[0].mxu0
  %v225 = vpop.f32.mrb[0].mxu0
  %v226 = vadd.f32 0.0, %v225
  %v227 = vpop.f32.mrb[0].mxu0
  %228 = vmatprep.mubr.bf16.mxu0 0
  %229 = vmatmul.mubr.bf16.gmra.mrb[0].mxu0 %v83
  %v230 = vpop.f32.mrb[0].mxu0
  %v231 = vadd.f32 0.0, %v230
  %v232 = vpop.f32.mrb[0].mxu0
  %v233 = vpop.f32.mrb[0].mxu0
  %v234 = vadd.f32 0.0, %v233
  %v235 = vpop.f32.mrb[0].mxu0
  %236 = vdwg.mxu0
  %v237 = vadd.f32 %v175, %v178
  %v238 = vadd.f32 %v237, %v183
  %v239 = vadd.f32 %v238, %v186
  %v240 = vadd.f32 %v239, %v191
  %v241 = vadd.f32 %v240, %v194
  %v242 = vadd.f32 %v241, %v199
  %v243 = vadd.f32 %v242, %v202
  %v244 = vadd.f32 %v243, %v207
  %v245 = vadd.f32 %v244, %v210
  %v246 = vadd.f32 %v245, %v215
  %v247 = vadd.f32 %v246, %v218
  %v248 = vadd.f32 %v247, %v223
  %v249 = vadd.f32 %v248, %v226
  %v250 = vadd.f32 %v249, %v231
  %v251 = vadd.f32 %v250, %v234
  %v252 = vrot.slane %v251, 4
  %v253 = vadd.f32 %v251, %v252
  %v254 = vrot.slane %v253, 2
  %v255 = vadd.f32 %v253, %v254
  %v256 = vrot.slane %v255, 1
  %v257 = vadd.f32 %v255, %v256
  %v258 = vmul.f32 %v175, %v175
  %v259 = vmul.f32 %v178, %v178
  %v260 = vmul.f32 %v183, %v183
  %v261 = vmul.f32 %v186, %v186
  %v262 = vmul.f32 %v191, %v191
  %v263 = vmul.f32 %v194, %v194
  %v264 = vmul.f32 %v199, %v199
  %v265 = vmul.f32 %v202, %v202
  %v266 = vmul.f32 %v207, %v207
  %v267 = vmul.f32 %v210, %v210
  %v268 = vmul.f32 %v215, %v215
  %v269 = vmul.f32 %v218, %v218
  %v270 = vmul.f32 %v223, %v223
  %v271 = vmul.f32 %v226, %v226
  %v272 = vmul.f32 %v231, %v231
  %v273 = vmul.f32 %v234, %v234
  %v274 = vadd.f32 %v258, %v259
  %v275 = vadd.f32 %v274, %v260
  %v276 = vadd.f32 %v275, %v261
  %v277 = vadd.f32 %v276, %v262
  %v278 = vadd.f32 %v277, %v263
  %v279 = vadd.f32 %v278, %v264
  %v280 = vadd.f32 %v279, %v265
  %v281 = vadd.f32 %v280, %v266
  %v282 = vadd.f32 %v281, %v267
  %v283 = vadd.f32 %v282, %v268
  %v284 = vadd.f32 %v283, %v269
  %v285 = vadd.f32 %v284, %v270
  %v286 = vadd.f32 %v285, %v271
  %v287 = vadd.f32 %v286, %v272
  %v288 = vadd.f32 %v287, %v273
  %v289 = vrot.slane %v288, 4
  %v290 = vadd.f32 %v288, %v289
  %v291 = vrot.slane %v290, 2
  %v292 = vadd.f32 %v290, %v291
  %v293 = vrot.slane %v292, 1
  %v294 = vadd.f32 %v292, %v293
  %v295 = vmul.f32 %v257, 0.0078125
  %v296 = vmul.f32 %v294, 0.0078125
  %v297 = vmul.f32 %v295, %v295
  %v298 = vsub.f32 %v296, %v297
  %v299 = vmax.f32 %v298, 0.0
  %v300 = vsub.f32 %v175, %v295
  %v301 = vsub.f32 %v178, %v295
  %v302 = vsub.f32 %v183, %v295
  %v303 = vsub.f32 %v186, %v295
  %v304 = vsub.f32 %v191, %v295
  %v305 = vsub.f32 %v194, %v295
  %v306 = vsub.f32 %v199, %v295
  %v307 = vsub.f32 %v202, %v295
  %v308 = vsub.f32 %v207, %v295
  %v309 = vsub.f32 %v210, %v295
  %v310 = vsub.f32 %v215, %v295
  %v311 = vsub.f32 %v218, %v295
  %v312 = vsub.f32 %v223, %v295
  %v313 = vsub.f32 %v226, %v295
  %v314 = vsub.f32 %v231, %v295
  %v315 = vsub.f32 %v234, %v295
  %v316 = vadd.f32 %v299, 1e-05
  %v317 = vrsqrt.pop %v316
  %v318 = vmul.f32 %v300, %v317
  %v319 = vmul.f32 %v301, %v317
  %v320 = vmul.f32 %v302, %v317
  %v321 = vmul.f32 %v303, %v317
  %v322 = vmul.f32 %v304, %v317
  %v323 = vmul.f32 %v305, %v317
  %v324 = vmul.f32 %v306, %v317
  %v325 = vmul.f32 %v307, %v317
  %v326 = vmul.f32 %v308, %v317
  %v327 = vmul.f32 %v309, %v317
  %v328 = vmul.f32 %v310, %v317
  %v329 = vmul.f32 %v311, %v317
  %v330 = vmul.f32 %v312, %v317
  %v331 = vmul.f32 %v313, %v317
  %v332 = vmul.f32 %v314, %v317
  %v333 = vmul.f32 %v315, %v317
  %vm334 = vcmp.gt.f32.partialorder %v318, 0.0
  %vm335 = vcmp.gt.f32.partialorder %v319, 0.0
  %vm336 = vcmp.gt.f32.partialorder %v320, 0.0
  %vm337 = vcmp.gt.f32.partialorder %v321, 0.0
  %vm338 = vcmp.gt.f32.partialorder %v322, 0.0
  %vm339 = vcmp.gt.f32.partialorder %v323, 0.0
  %vm340 = vcmp.gt.f32.partialorder %v324, 0.0
  %vm341 = vcmp.gt.f32.partialorder %v325, 0.0
  %vm342 = vcmp.gt.f32.partialorder %v326, 0.0
  %vm343 = vcmp.gt.f32.partialorder %v327, 0.0
  %vm344 = vcmp.gt.f32.partialorder %v328, 0.0
  %vm345 = vcmp.gt.f32.partialorder %v329, 0.0
  %vm346 = vcmp.gt.f32.partialorder %v330, 0.0
  %vm347 = vcmp.gt.f32.partialorder %v331, 0.0
  %vm348 = vcmp.gt.f32.partialorder %v332, 0.0
  %vm349 = vcmp.gt.f32.partialorder %v333, 0.0
  %v350 = vmul.f32 %v318, 0.01
  %v351 = vmul.f32 %v319, 0.01
  %v352 = vmul.f32 %v320, 0.01
  %v353 = vmul.f32 %v321, 0.01
  %v354 = vmul.f32 %v322, 0.01
  %v355 = vmul.f32 %v323, 0.01
  %v356 = vmul.f32 %v324, 0.01
  %v357 = vmul.f32 %v325, 0.01
  %v358 = vmul.f32 %v326, 0.01
  %v359 = vmul.f32 %v327, 0.01
  %v360 = vmul.f32 %v328, 0.01
  %v361 = vmul.f32 %v329, 0.01
  %v362 = vmul.f32 %v330, 0.01
  %v363 = vmul.f32 %v331, 0.01
  %v364 = vmul.f32 %v332, 0.01
  %v365 = vmul.f32 %v333, 0.01
  %v366 = vsel %vm334, %v318, %v350
  %v367 = vsel %vm335, %v319, %v351
  %v368 = vsel %vm336, %v320, %v352
  %v369 = vsel %vm337, %v321, %v353
  %v370 = vsel %vm338, %v322, %v354
  %v371 = vsel %vm339, %v323, %v355
  %v372 = vsel %vm340, %v324, %v356
  %v373 = vsel %vm341, %v325, %v357
  %v374 = vsel %vm342, %v326, %v358
  %v375 = vsel %vm343, %v327, %v359
  %v376 = vsel %vm344, %v328, %v360
  %v377 = vsel %vm345, %v329, %v361
  %v378 = vsel %vm346, %v330, %v362
  %v379 = vsel %vm347, %v331, %v363
  %v380 = vsel %vm348, %v332, %v364
  %v381 = vsel %vm349, %v333, %v365
  %v382 = vpack.c.bf16 %v367, %v366
  %v383 = vpack.c.bf16 %v369, %v368
  %v384 = vpack.c.bf16 %v371, %v370
  %v385 = vpack.c.bf16 %v373, %v372
  %v386 = vpack.c.bf16 %v375, %v374
  %v387 = vpack.c.bf16 %v377, %v376
  %v388 = vpack.c.bf16 %v379, %v378
  %v389 = vpack.c.bf16 %v381, %v380
  %v398 = vunpack.c.l.b16 %v382
  %v399 = vunpack.c.h.b16 %v382
  %v400 = vunpack.c.l.b16 %v383
  %v401 = vunpack.c.h.b16 %v383
  %v402 = vunpack.c.l.b16 %v384
  %v403 = vunpack.c.h.b16 %v384
  %v404 = vunpack.c.l.b16 %v385
  %v405 = vunpack.c.h.b16 %v385
  %v406 = vunpack.c.l.b16 %v386
  %v407 = vunpack.c.h.b16 %v386
  %v408 = vunpack.c.l.b16 %v387
  %v409 = vunpack.c.h.b16 %v387
  %v410 = vunpack.c.l.b16 %v388
  %v411 = vunpack.c.h.b16 %v388
  %v412 = vunpack.c.l.b16 %v389
  %v413 = vunpack.c.h.b16 %v389
  %v414 = vpack.c.b16 %v398, %v398
  %v415 = vpack.c.b16 %v399, %v399
  %v416 = vpack.c.b16 %v400, %v400
  %v417 = vpack.c.b16 %v401, %v401
  %v418 = vpack.c.b16 %v402, %v402
  %v419 = vpack.c.b16 %v403, %v403
  %v420 = vpack.c.b16 %v404, %v404
  %v421 = vpack.c.b16 %v405, %v405
  %v422 = vpack.c.b16 %v406, %v406
  %v423 = vpack.c.b16 %v407, %v407
  %v424 = vpack.c.b16 %v408, %v408
  %v425 = vpack.c.b16 %v409, %v409
  %v426 = vpack.c.b16 %v410, %v410
  %v427 = vpack.c.b16 %v411, %v411
  %v428 = vpack.c.b16 %v412, %v412
  %v429 = vpack.c.b16 %v413, %v413
  %446 = vst [vmem:[%s2] sm:$0xf] %v414
  %447 = vst [vmem:[%s2 + $0x4] sm:$0xf] %v415
  %448 = vst [vmem:[%s2 + $0x8] sm:$0xf] %v416
  %449 = vst [vmem:[%s2 + $0xc] sm:$0xf] %v417
  %450 = vst [vmem:[%s2 + $0x10] sm:$0xf] %v418
  %451 = vst [vmem:[%s2 + $0x14] sm:$0xf] %v419
  %452 = vst [vmem:[%s2 + $0x18] sm:$0xf] %v420
  %453 = vst [vmem:[%s2 + $0x1c] sm:$0xf] %v421
  %454 = vst [vmem:[%s2 + $0x20] sm:$0xf] %v422
  %455 = vst [vmem:[%s2 + $0x24] sm:$0xf] %v423
  %456 = vst [vmem:[%s2 + $0x28] sm:$0xf] %v424
  %457 = vst [vmem:[%s2 + $0x2c] sm:$0xf] %v425
  %458 = vst [vmem:[%s2 + $0x30] sm:$0xf] %v426
  %459 = vst [vmem:[%s2 + $0x34] sm:$0xf] %v427
  %460 = vst [vmem:[%s2 + $0x38] sm:$0xf] %v428
  %461 = vst [vmem:[%s2 + $0x3c] sm:$0xf] %v429
  // Predicated region
  $region10: #{_lambda_.25} parent=0 // pred_check
    _
  $region11: #{_lambda_.25} parent=0 // pred_check_branch
    %463 = sbr.rel (0) target = $region13
  $region12: #{_lambda_.25} parent=0 // pred_region
    _
  $region13: #{_lambda_.25} parent=0 // pred_fallthru
    _
  // Predicated region
  $region14: #{_lambda_.25} parent=0 // pred_check
    _
  $region15: #{_lambda_.25} parent=0 // pred_check_branch
    %465 = sbr.rel (0) target = $region17
  $region16: #{_lambda_.25} parent=0 // pred_region
    _
  $region17: #{_lambda_.25} parent=0 // pred_fallthru
    _

// kernel: _lambda_.26
$region0: #{_lambda_.26}
  #allocation0 [shape = 'u32[]', space=smem, size = 0x4, offset = 0x4, fixed_abs, tag = 'smem constant byte address 0x4 - core index']
  #allocation1 [shape = 'u32[144,128]{1,0:T(1,128)}', space=vmem, size = 0x12000, scoped, tag = 'internal scratch']
  %s0 = inlined_call_operand.vmem [shape: bf16[128,256], index: 0, kind: input, shape index: {}]
  %s1 = inlined_call_operand.vmem [shape: bf16[256,128], index: 1, kind: input, shape index: {}]
  %s2 = inlined_call_operand.vmem [shape: bf16[128,128], index: 2, kind: output, shape index: {}]
  %s3 = sld [smem:[#allocation0]]
  $region18: #{_lambda_.26} parent=0
    _
  %s5 = ssub.s32 1, %s3
  %s6 = scalar_select 0, %s5, %s3
  // Predicated region
  $region2: #{_lambda_.26} parent=0 // pred_check
    _
  $region3: #{_lambda_.26} parent=0 // pred_check_branch
    %8 = sbr.rel (0) target = $region5
  $region4: #{_lambda_.26} parent=0 // pred_region
    _
  $region5: #{_lambda_.26} parent=0 // pred_fallthru
    _
  // Predicated region
  $region6: #{_lambda_.26} parent=0 // pred_check
    _
  $region7: #{_lambda_.26} parent=0 // pred_check_branch
    %10 = sbr.rel (0) target = $region9
  $region8: #{_lambda_.26} parent=0 // pred_region
    _
  $region9: #{_lambda_.26} parent=0 // pred_fallthru
    _
  %v12 = vld [vmem:[%s0] sm:$0xff]
  %v13 = vld [vmem:[%s0 + $0x8] sm:$0xff]
  %v14 = vld [vmem:[%s0 + $0x10] sm:$0xff]
  %v15 = vld [vmem:[%s0 + $0x18] sm:$0xff]
  %v16 = vld [vmem:[%s0 + $0x20] sm:$0xff]
  %v17 = vld [vmem:[%s0 + $0x28] sm:$0xff]
  %v18 = vld [vmem:[%s0 + $0x30] sm:$0xff]
  %v19 = vld [vmem:[%s0 + $0x38] sm:$0xff]
  %v20 = vld [vmem:[%s0 + $0x40] sm:$0xff]
  %v21 = vld [vmem:[%s0 + $0x48] sm:$0xff]
  %v22 = vld [vmem:[%s0 + $0x50] sm:$0xff]
  %v23 = vld [vmem:[%s0 + $0x58] sm:$0xff]
  %v24 = vld [vmem:[%s0 + $0x60] sm:$0xff]
  %v25 = vld [vmem:[%s0 + $0x68] sm:$0xff]
  %v26 = vld [vmem:[%s0 + $0x70] sm:$0xff]
  %v27 = vld [vmem:[%s0 + $0x78] sm:$0xff]
  %v28 = vld [vmem:[%s1] sm:$0xf]
  %v29 = vld [vmem:[%s1 + $0x4] sm:$0xf]
  %v30 = vld [vmem:[%s1 + $0x8] sm:$0xf]
  %v31 = vld [vmem:[%s1 + $0xc] sm:$0xf]
  %v32 = vld [vmem:[%s1 + $0x10] sm:$0xf]
  %v33 = vld [vmem:[%s1 + $0x14] sm:$0xf]
  %v34 = vld [vmem:[%s1 + $0x18] sm:$0xf]
  %v35 = vld [vmem:[%s1 + $0x1c] sm:$0xf]
  %v36 = vld [vmem:[%s1 + $0x20] sm:$0xf]
  %v37 = vld [vmem:[%s1 + $0x24] sm:$0xf]
  %v38 = vld [vmem:[%s1 + $0x28] sm:$0xf]
  %v39 = vld [vmem:[%s1 + $0x2c] sm:$0xf]
  %v40 = vld [vmem:[%s1 + $0x30] sm:$0xf]
  %v41 = vld [vmem:[%s1 + $0x34] sm:$0xf]
  %v42 = vld [vmem:[%s1 + $0x38] sm:$0xf]
  %v43 = vld [vmem:[%s1 + $0x3c] sm:$0xf]
  %v44 = vld [vmem:[%s1 + $0x40] sm:$0xf]
  %v45 = vld [vmem:[%s1 + $0x44] sm:$0xf]
  %v46 = vld [vmem:[%s1 + $0x48] sm:$0xf]
  %v47 = vld [vmem:[%s1 + $0x4c] sm:$0xf]
  %v48 = vld [vmem:[%s1 + $0x50] sm:$0xf]
  %v49 = vld [vmem:[%s1 + $0x54] sm:$0xf]
  %v50 = vld [vmem:[%s1 + $0x58] sm:$0xf]
  %v51 = vld [vmem:[%s1 + $0x5c] sm:$0xf]
  %v52 = vld [vmem:[%s1 + $0x60] sm:$0xf]
  %v53 = vld [vmem:[%s1 + $0x64] sm:$0xf]
  %v54 = vld [vmem:[%s1 + $0x68] sm:$0xf]
  %v55 = vld [vmem:[%s1 + $0x6c] sm:$0xf]
  %v56 = vld [vmem:[%s1 + $0x70] sm:$0xf]
  %v57 = vld [vmem:[%s1 + $0x74] sm:$0xf]
  %v58 = vld [vmem:[%s1 + $0x78] sm:$0xf]
  %v59 = vld [vmem:[%s1 + $0x7c] sm:$0xf]
  %v76 = vunpack.c.l.b16 %v12
  %v77 = vunpack.c.h.b16 %v12
  %v78 = vunpack.c.l.b16 %v13
  %v79 = vunpack.c.h.b16 %v13
  %v80 = vunpack.c.l.b16 %v14
  %v81 = vunpack.c.h.b16 %v14
  %v82 = vunpack.c.l.b16 %v15
  %v83 = vunpack.c.h.b16 %v15
  %v84 = vunpack.c.l.b16 %v16
  %v85 = vunpack.c.h.b16 %v16
  %v86 = vunpack.c.l.b16 %v17
  %v87 = vunpack.c.h.b16 %v17
  %v88 = vunpack.c.l.b16 %v18
  %v89 = vunpack.c.h.b16 %v18
  %v90 = vunpack.c.l.b16 %v19
  %v91 = vunpack.c.h.b16 %v19
  %v92 = vunpack.c.l.b16 %v20
  %v93 = vunpack.c.h.b16 %v20
  %v94 = vunpack.c.l.b16 %v21
  %v95 = vunpack.c.h.b16 %v21
  %v96 = vunpack.c.l.b16 %v22
  %v97 = vunpack.c.h.b16 %v22
  %v98 = vunpack.c.l.b16 %v23
  %v99 = vunpack.c.h.b16 %v23
  %v100 = vunpack.c.l.b16 %v24
  %v101 = vunpack.c.h.b16 %v24
  %v102 = vunpack.c.l.b16 %v25
  %v103 = vunpack.c.h.b16 %v25
  %v104 = vunpack.c.l.b16 %v26
  %v105 = vunpack.c.h.b16 %v26
  %v106 = vunpack.c.l.b16 %v27
  %v107 = vunpack.c.h.b16 %v27
  %v108 = vpack.c.b16 %v78, %v76
  %v109 = vpack.c.b16 %v79, %v77
  %v110 = vpack.c.b16 %v82, %v80
  %v111 = vpack.c.b16 %v83, %v81
  %v112 = vpack.c.b16 %v86, %v84
  %v113 = vpack.c.b16 %v87, %v85
  %v114 = vpack.c.b16 %v90, %v88
  %v115 = vpack.c.b16 %v91, %v89
  %v116 = vpack.c.b16 %v94, %v92
  %v117 = vpack.c.b16 %v95, %v93
  %v118 = vpack.c.b16 %v98, %v96
  %v119 = vpack.c.b16 %v99, %v97
  %v120 = vpack.c.b16 %v102, %v100
  %v121 = vpack.c.b16 %v103, %v101
  %v122 = vpack.c.b16 %v106, %v104
  %v123 = vpack.c.b16 %v107, %v105
  %v172 = vunpack.c.l.b16 %v28
  %v173 = vunpack.c.l.b16 %v29
  %v174 = vunpack.c.l.b16 %v30
  %v175 = vunpack.c.l.b16 %v31
  %v176 = vunpack.c.l.b16 %v32
  %v177 = vunpack.c.l.b16 %v33
  %v178 = vunpack.c.l.b16 %v34
  %v179 = vunpack.c.l.b16 %v35
  %v180 = vunpack.c.l.b16 %v36
  %v181 = vunpack.c.l.b16 %v37
  %v182 = vunpack.c.l.b16 %v38
  %v183 = vunpack.c.l.b16 %v39
  %v184 = vunpack.c.l.b16 %v40
  %v185 = vunpack.c.l.b16 %v41
  %v186 = vunpack.c.l.b16 %v42
  %v187 = vunpack.c.l.b16 %v43
  %v188 = vunpack.c.l.b16 %v44
  %v189 = vunpack.c.l.b16 %v45
  %v190 = vunpack.c.l.b16 %v46
  %v191 = vunpack.c.l.b16 %v47
  %v192 = vunpack.c.l.b16 %v48
  %v193 = vunpack.c.l.b16 %v49
  %v194 = vunpack.c.l.b16 %v50
  %v195 = vunpack.c.l.b16 %v51
  %v196 = vunpack.c.l.b16 %v52
  %v197 = vunpack.c.l.b16 %v53
  %v198 = vunpack.c.l.b16 %v54
  %v199 = vunpack.c.l.b16 %v55
  %v200 = vunpack.c.l.b16 %v56
  %v201 = vunpack.c.l.b16 %v57
  %v202 = vunpack.c.l.b16 %v58
  %v203 = vunpack.c.l.b16 %v59
  %v204 = vpack.c.b16 %v173, %v172
  %v205 = vpack.c.b16 %v175, %v174
  %v206 = vpack.c.b16 %v177, %v176
  %v207 = vpack.c.b16 %v179, %v178
  %v208 = vpack.c.b16 %v181, %v180
  %v209 = vpack.c.b16 %v183, %v182
  %v210 = vpack.c.b16 %v185, %v184
  %v211 = vpack.c.b16 %v187, %v186
  %v212 = vpack.c.b16 %v189, %v188
  %v213 = vpack.c.b16 %v191, %v190
  %v214 = vpack.c.b16 %v193, %v192
  %v215 = vpack.c.b16 %v195, %v194
  %v216 = vpack.c.b16 %v197, %v196
  %v217 = vpack.c.b16 %v199, %v198
  %v218 = vpack.c.b16 %v201, %v200
  %v219 = vpack.c.b16 %v203, %v202
  %236 = vmatprep.subr.bf16.mxu0 0
  %237 = vmatpush1.bf16.msra.mxu0 %v204
  %238 = vmatprep.subr.bf16.mxu0 0
  %239 = vmatpush1.bf16.msra.mxu0 %v205
  %240 = vmatprep.subr.bf16.mxu0 0
  %241 = vmatpush1.bf16.msra.mxu0 %v206
  %242 = vmatprep.subr.bf16.mxu0 0
  %243 = vmatpush1.bf16.msra.mxu0 %v207
  %244 = vmatprep.subr.bf16.mxu0 0
  %245 = vmatpush1.bf16.msra.mxu0 %v208
  %246 = vmatprep.subr.bf16.mxu0 0
  %247 = vmatpush1.bf16.msra.mxu0 %v209
  %248 = vmatprep.subr.bf16.mxu0 0
  %249 = vmatpush1.bf16.msra.mxu0 %v210
  %250 = vmatprep.subr.bf16.mxu0 0
  %251 = vmatpush1.bf16.msra.mxu0 %v211
  %252 = vmatprep.subr.bf16.mxu0 0
  %253 = vmatpush1.bf16.msra.mxu0 %v212
  %254 = vmatprep.subr.bf16.mxu0 0
  %255 = vmatpush1.bf16.msra.mxu0 %v213
  %256 = vmatprep.subr.bf16.mxu0 0
  %257 = vmatpush1.bf16.msra.mxu0 %v214
  %258 = vmatprep.subr.bf16.mxu0 0
  %259 = vmatpush1.bf16.msra.mxu0 %v215
  %260 = vmatprep.subr.bf16.mxu0 0
  %261 = vmatpush1.bf16.msra.mxu0 %v216
  %262 = vmatprep.subr.bf16.mxu0 0
  %263 = vmatpush1.bf16.msra.mxu0 %v217
  %264 = vmatprep.subr.bf16.mxu0 0
  %265 = vmatpush1.bf16.msra.mxu0 %v218
  %266 = vmatprep.subr.bf16.mxu0 0
  %267 = vmatpush1.bf16.msra.mxu0 %v219
  %268 = vmatprep.mubr.bf16.mxu0 %v109
  %269 = vmatmul.mubr.bf16.gmra.mrb[0].mxu0 %v108
  %v270 = vpop.f32.mrb[0].mxu0
  %v271 = vadd.f32 0.0, %v270
  %v272 = vpop.f32.mrb[0].mxu0
  %v273 = vpop.f32.mrb[0].mxu0
  %v274 = vadd.f32 0.0, %v273
  %v275 = vpop.f32.mrb[0].mxu0
  %276 = vmatprep.mubr.bf16.mxu0 %v111
  %277 = vmatmul.mubr.bf16.gmra.mrb[0].mxu0 %v110
  %v278 = vpop.f32.mrb[0].mxu0
  %v279 = vadd.f32 0.0, %v278
  %v280 = vpop.f32.mrb[0].mxu0
  %v281 = vpop.f32.mrb[0].mxu0
  %v282 = vadd.f32 0.0, %v281
  %v283 = vpop.f32.mrb[0].mxu0
  %284 = vmatprep.mubr.bf16.mxu0 %v113
  %285 = vmatmul.mubr.bf16.gmra.mrb[0].mxu0 %v112
  %v286 = vpop.f32.mrb[0].mxu0
  %v287 = vadd.f32 0.0, %v286
  %v288 = vpop.f32.mrb[0].mxu0
  %v289 = vpop.f32.mrb[0].mxu0
  %v290 = vadd.f32 0.0, %v289
  %v291 = vpop.f32.mrb[0].mxu0
  %292 = vmatprep.mubr.bf16.mxu0 %v115
  %293 = vmatmul.mubr.bf16.gmra.mrb[0].mxu0 %v114
  %v294 = vpop.f32.mrb[0].mxu0
  %v295 = vadd.f32 0.0, %v294
  %v296 = vpop.f32.mrb[0].mxu0
  %v297 = vpop.f32.mrb[0].mxu0
  %v298 = vadd.f32 0.0, %v297
  %v299 = vpop.f32.mrb[0].mxu0
  %300 = vmatprep.mubr.bf16.mxu0 %v117
  %301 = vmatmul.mubr.bf16.gmra.mrb[0].mxu0 %v116
  %v302 = vpop.f32.mrb[0].mxu0
  %v303 = vadd.f32 0.0, %v302
  %v304 = vpop.f32.mrb[0].mxu0
  %v305 = vpop.f32.mrb[0].mxu0
  %v306 = vadd.f32 0.0, %v305
  %v307 = vpop.f32.mrb[0].mxu0
  %308 = vmatprep.mubr.bf16.mxu0 %v119
  %309 = vmatmul.mubr.bf16.gmra.mrb[0].mxu0 %v118
  %v310 = vpop.f32.mrb[0].mxu0
  %v311 = vadd.f32 0.0, %v310
  %v312 = vpop.f32.mrb[0].mxu0
  %v313 = vpop.f32.mrb[0].mxu0
  %v314 = vadd.f32 0.0, %v313
  %v315 = vpop.f32.mrb[0].mxu0
  %316 = vmatprep.mubr.bf16.mxu0 %v121
  %317 = vmatmul.mubr.bf16.gmra.mrb[0].mxu0 %v120
  %v318 = vpop.f32.mrb[0].mxu0
  %v319 = vadd.f32 0.0, %v318
  %v320 = vpop.f32.mrb[0].mxu0
  %v321 = vpop.f32.mrb[0].mxu0
  %v322 = vadd.f32 0.0, %v321
  %v323 = vpop.f32.mrb[0].mxu0
  %324 = vmatprep.mubr.bf16.mxu0 %v123
  %325 = vmatmul.mubr.bf16.gmra.mrb[0].mxu0 %v122
  %v326 = vpop.f32.mrb[0].mxu0
  %v327 = vadd.f32 0.0, %v326
  %v328 = vpop.f32.mrb[0].mxu0
  %v329 = vpop.f32.mrb[0].mxu0
  %v330 = vadd.f32 0.0, %v329
  %v331 = vpop.f32.mrb[0].mxu0
  %332 = vdwg.mxu0
  %v333 = vadd.f32 %v271, %v274
  %v334 = vadd.f32 %v333, %v279
  %v335 = vadd.f32 %v334, %v282
  %v336 = vadd.f32 %v335, %v287
  %v337 = vadd.f32 %v336, %v290
  %v338 = vadd.f32 %v337, %v295
  %v339 = vadd.f32 %v338, %v298
  %v340 = vadd.f32 %v339, %v303
  %v341 = vadd.f32 %v340, %v306
  %v342 = vadd.f32 %v341, %v311
  %v343 = vadd.f32 %v342, %v314
  %v344 = vadd.f32 %v343, %v319
  %v345 = vadd.f32 %v344, %v322
  %v346 = vadd.f32 %v345, %v327
  %v347 = vadd.f32 %v346, %v330
  %v348 = vrot.slane %v347, 4
  %v349 = vadd.f32 %v347, %v348
  %v350 = vrot.slane %v349, 2
  %v351 = vadd.f32 %v349, %v350
  %v352 = vrot.slane %v351, 1
  %v353 = vadd.f32 %v351, %v352
  %v354 = vmul.f32 %v271, %v271
  %v355 = vmul.f32 %v274, %v274
  %v356 = vmul.f32 %v279, %v279
  %v357 = vmul.f32 %v282, %v282
  %v358 = vmul.f32 %v287, %v287
  %v359 = vmul.f32 %v290, %v290
  %v360 = vmul.f32 %v295, %v295
  %v361 = vmul.f32 %v298, %v298
  %v362 = vmul.f32 %v303, %v303
  %v363 = vmul.f32 %v306, %v306
  %v364 = vmul.f32 %v311, %v311
  %v365 = vmul.f32 %v314, %v314
  %v366 = vmul.f32 %v319, %v319
  %v367 = vmul.f32 %v322, %v322
  %v368 = vmul.f32 %v327, %v327
  %v369 = vmul.f32 %v330, %v330
  %v370 = vadd.f32 %v354, %v355
  %v371 = vadd.f32 %v370, %v356
  %v372 = vadd.f32 %v371, %v357
  %v373 = vadd.f32 %v372, %v358
  %v374 = vadd.f32 %v373, %v359
  %v375 = vadd.f32 %v374, %v360
  %v376 = vadd.f32 %v375, %v361
  %v377 = vadd.f32 %v376, %v362
  %v378 = vadd.f32 %v377, %v363
  %v379 = vadd.f32 %v378, %v364
  %v380 = vadd.f32 %v379, %v365
  %v381 = vadd.f32 %v380, %v366
  %v382 = vadd.f32 %v381, %v367
  %v383 = vadd.f32 %v382, %v368
  %v384 = vadd.f32 %v383, %v369
  %v385 = vrot.slane %v384, 4
  %v386 = vadd.f32 %v384, %v385
  %v387 = vrot.slane %v386, 2
  %v388 = vadd.f32 %v386, %v387
  %v389 = vrot.slane %v388, 1
  %v390 = vadd.f32 %v388, %v389
  %v391 = vmul.f32 %v353, 0.0078125
  %v392 = vmul.f32 %v390, 0.0078125
  %v393 = vmul.f32 %v391, %v391
  %v394 = vsub.f32 %v392, %v393
  %v395 = vmax.f32 %v394, 0.0
  %v396 = vsub.f32 %v271, %v391
  %v397 = vsub.f32 %v274, %v391
  %v398 = vsub.f32 %v279, %v391
  %v399 = vsub.f32 %v282, %v391
  %v400 = vsub.f32 %v287, %v391
  %v401 = vsub.f32 %v290, %v391
  %v402 = vsub.f32 %v295, %v391
  %v403 = vsub.f32 %v298, %v391
  %v404 = vsub.f32 %v303, %v391
  %v405 = vsub.f32 %v306, %v391
  %v406 = vsub.f32 %v311, %v391
  %v407 = vsub.f32 %v314, %v391
  %v408 = vsub.f32 %v319, %v391
  %v409 = vsub.f32 %v322, %v391
  %v410 = vsub.f32 %v327, %v391
  %v411 = vsub.f32 %v330, %v391
  %v412 = vadd.f32 %v395, 1e-05
  %v413 = vrsqrt.pop %v412
  %v414 = vmul.f32 %v396, %v413
  %v415 = vmul.f32 %v397, %v413
  %v416 = vmul.f32 %v398, %v413
  %v417 = vmul.f32 %v399, %v413
  %v418 = vmul.f32 %v400, %v413
  %v419 = vmul.f32 %v401, %v413
  %v420 = vmul.f32 %v402, %v413
  %v421 = vmul.f32 %v403, %v413
  %v422 = vmul.f32 %v404, %v413
  %v423 = vmul.f32 %v405, %v413
  %v424 = vmul.f32 %v406, %v413
  %v425 = vmul.f32 %v407, %v413
  %v426 = vmul.f32 %v408, %v413
  %v427 = vmul.f32 %v409, %v413
  %v428 = vmul.f32 %v410, %v413
  %v429 = vmul.f32 %v411, %v413
  %vm430 = vcmp.gt.f32.partialorder %v414, 0.0
  %vm431 = vcmp.gt.f32.partialorder %v415, 0.0
  %vm432 = vcmp.gt.f32.partialorder %v416, 0.0
  %vm433 = vcmp.gt.f32.partialorder %v417, 0.0
  %vm434 = vcmp.gt.f32.partialorder %v418, 0.0
  %vm435 = vcmp.gt.f32.partialorder %v419, 0.0
  %vm436 = vcmp.gt.f32.partialorder %v420, 0.0
  %vm437 = vcmp.gt.f32.partialorder %v421, 0.0
  %vm438 = vcmp.gt.f32.partialorder %v422, 0.0
  %vm439 = vcmp.gt.f32.partialorder %v423, 0.0
  %vm440 = vcmp.gt.f32.partialorder %v424, 0.0
  %vm441 = vcmp.gt.f32.partialorder %v425, 0.0
  %vm442 = vcmp.gt.f32.partialorder %v426, 0.0
  %vm443 = vcmp.gt.f32.partialorder %v427, 0.0
  %vm444 = vcmp.gt.f32.partialorder %v428, 0.0
  %vm445 = vcmp.gt.f32.partialorder %v429, 0.0
  %v446 = vmul.f32 %v414, 0.01
  %v447 = vmul.f32 %v415, 0.01
  %v448 = vmul.f32 %v416, 0.01
  %v449 = vmul.f32 %v417, 0.01
  %v450 = vmul.f32 %v418, 0.01
  %v451 = vmul.f32 %v419, 0.01
  %v452 = vmul.f32 %v420, 0.01
  %v453 = vmul.f32 %v421, 0.01
  %v454 = vmul.f32 %v422, 0.01
  %v455 = vmul.f32 %v423, 0.01
  %v456 = vmul.f32 %v424, 0.01
  %v457 = vmul.f32 %v425, 0.01
  %v458 = vmul.f32 %v426, 0.01
  %v459 = vmul.f32 %v427, 0.01
  %v460 = vmul.f32 %v428, 0.01
  %v461 = vmul.f32 %v429, 0.01
  %v462 = vsel %vm430, %v414, %v446
  %v463 = vsel %vm431, %v415, %v447
  %v464 = vsel %vm432, %v416, %v448
  %v465 = vsel %vm433, %v417, %v449
  %v466 = vsel %vm434, %v418, %v450
  %v467 = vsel %vm435, %v419, %v451
  %v468 = vsel %vm436, %v420, %v452
  %v469 = vsel %vm437, %v421, %v453
  %v470 = vsel %vm438, %v422, %v454
  %v471 = vsel %vm439, %v423, %v455
  %v472 = vsel %vm440, %v424, %v456
  %v473 = vsel %vm441, %v425, %v457
  %v474 = vsel %vm442, %v426, %v458
  %v475 = vsel %vm443, %v427, %v459
  %v476 = vsel %vm444, %v428, %v460
  %v477 = vsel %vm445, %v429, %v461
  %v478 = vpack.c.bf16 %v463, %v462
  %v479 = vpack.c.bf16 %v465, %v464
  %v480 = vpack.c.bf16 %v467, %v466
  %v481 = vpack.c.bf16 %v469, %v468
  %v482 = vpack.c.bf16 %v471, %v470
  %v483 = vpack.c.bf16 %v473, %v472
  %v484 = vpack.c.bf16 %v475, %v474
  %v485 = vpack.c.bf16 %v477, %v476
  %v494 = vunpack.c.l.b16 %v478
  %v495 = vunpack.c.h.b16 %v478
  %v496 = vunpack.c.l.b16 %v479
  %v497 = vunpack.c.h.b16 %v479
  %v498 = vunpack.c.l.b16 %v480
  %v499 = vunpack.c.h.b16 %v480
  %v500 = vunpack.c.l.b16 %v481
  %v501 = vunpack.c.h.b16 %v481
  %v502 = vunpack.c.l.b16 %v482
  %v503 = vunpack.c.h.b16 %v482
  %v504 = vunpack.c.l.b16 %v483
  %v505 = vunpack.c.h.b16 %v483
  %v506 = vunpack.c.l.b16 %v484
  %v507 = vunpack.c.h.b16 %v484
  %v508 = vunpack.c.l.b16 %v485
  %v509 = vunpack.c.h.b16 %v485
  %v510 = vpack.c.b16 %v494, %v494
  %v511 = vpack.c.b16 %v495, %v495
  %v512 = vpack.c.b16 %v496, %v496
  %v513 = vpack.c.b16 %v497, %v497
  %v514 = vpack.c.b16 %v498, %v498
  %v515 = vpack.c.b16 %v499, %v499
  %v516 = vpack.c.b16 %v500, %v500
  %v517 = vpack.c.b16 %v501, %v501
  %v518 = vpack.c.b16 %v502, %v502
  %v519 = vpack.c.b16 %v503, %v503
  %v520 = vpack.c.b16 %v504, %v504
  %v521 = vpack.c.b16 %v505, %v505
  %v522 = vpack.c.b16 %v506, %v506
  %v523 = vpack.c.b16 %v507, %v507
  %v524 = vpack.c.b16 %v508, %v508
  %v525 = vpack.c.b16 %v509, %v509
  %542 = vst [vmem:[%s2] sm:$0xf] %v510
  %543 = vst [vmem:[%s2 + $0x4] sm:$0xf] %v511
  %544 = vst [vmem:[%s2 + $0x8] sm:$0xf] %v512
  %545 = vst [vmem:[%s2 + $0xc] sm:$0xf] %v513
  %546 = vst [vmem:[%s2 + $0x10] sm:$0xf] %v514
  %547 = vst [vmem:[%s2 + $0x14] sm:$0xf] %v515
  %548 = vst [vmem:[%s2 + $0x18] sm:$0xf] %v516
  %549 = vst [vmem:[%s2 + $0x1c] sm:$0xf] %v517
  %550 = vst [vmem:[%s2 + $0x20] sm:$0xf] %v518
  %551 = vst [vmem:[%s2 + $0x24] sm:$0xf] %v519
  %552 = vst [vmem:[%s2 + $0x28] sm:$0xf] %v520
  %553 = vst [vmem:[%s2 + $0x2c] sm:$0xf] %v521
  %554 = vst [vmem:[%s2 + $0x30] sm:$0xf] %v522
  %555 = vst [vmem:[%s2 + $0x34] sm:$0xf] %v523
  %556 = vst [vmem:[%s2 + $0x38] sm:$0xf] %v524
  %557 = vst [vmem:[%s2 + $0x3c] sm:$0xf] %v525
  // Predicated region
  $region10: #{_lambda_.26} parent=0 // pred_check
    _
  $region11: #{_lambda_.26} parent=0 // pred_check_branch
    %559 = sbr.rel (0) target = $region13
  $region12: #{_lambda_.26} parent=0 // pred_region
    _
  $region13: #{_lambda_.26} parent=0 // pred_fallthru
    _
  // Predicated region
  $region14: #{_lambda_.26} parent=0 // pred_check
    _
  $region15: #{_lambda_.26} parent=0 // pred_check_branch
    %561 = sbr.rel (0) target = $region17
  $region16: #{_lambda_.26} parent=0 // pred_region
    _
  $region17: #{_lambda_.26} parent=0 // pred_fallthru
    _

// kernel: _lambda_.27
$region0: #{_lambda_.27}
  #allocation0 [shape = 'u32[]', space=smem, size = 0x4, offset = 0x4, fixed_abs, tag = 'smem constant byte address 0x4 - core index']
  #allocation1 [shape = 'u32[144,128]{1,0:T(1,128)}', space=vmem, size = 0x12000, scoped, tag = 'internal scratch']
  %s0 = inlined_call_operand.vmem [shape: bf16[32,256], index: 0, kind: input, shape index: {}]
  %s1 = inlined_call_operand.vmem [shape: bf16[256,128], index: 1, kind: input, shape index: {}]
  %s2 = inlined_call_operand.vmem [shape: bf16[32,128], index: 2, kind: output, shape index: {}]
  %s3 = sld [smem:[#allocation0]]
  $region18: #{_lambda_.27} parent=0
    _
  %s5 = ssub.s32 1, %s3
  %s6 = scalar_select 0, %s5, %s3
  // Predicated region
  $region2: #{_lambda_.27} parent=0 // pred_check
    _
  $region3: #{_lambda_.27} parent=0 // pred_check_branch
    %8 = sbr.rel (0) target = $region5
  $region4: #{_lambda_.27} parent=0 // pred_region
    _
  $region5: #{_lambda_.27} parent=0 // pred_fallthru
    _
  // Predicated region
  $region6: #{_lambda_.27} parent=0 // pred_check
    _
  $region7: #{_lambda_.27} parent=0 // pred_check_branch
    %10 = sbr.rel (0) target = $region9
  $region8: #{_lambda_.27} parent=0 // pred_region
    _
  $region9: #{_lambda_.27} parent=0 // pred_fallthru
    _
  %v12 = vld [vmem:[%s0] sm:$0xff]
  %v13 = vld [vmem:[%s0 + $0x8] sm:$0xff]
  %v14 = vld [vmem:[%s0 + $0x10] sm:$0xff]
  %v15 = vld [vmem:[%s0 + $0x18] sm:$0xff]
  %v16 = vld [vmem:[%s1] sm:$0xf]
  %v17 = vld [vmem:[%s1 + $0x4] sm:$0xf]
  %v18 = vld [vmem:[%s1 + $0x8] sm:$0xf]
  %v19 = vld [vmem:[%s1 + $0xc] sm:$0xf]
  %v20 = vld [vmem:[%s1 + $0x10] sm:$0xf]
  %v21 = vld [vmem:[%s1 + $0x14] sm:$0xf]
  %v22 = vld [vmem:[%s1 + $0x18] sm:$0xf]
  %v23 = vld [vmem:[%s1 + $0x1c] sm:$0xf]
  %v24 = vld [vmem:[%s1 + $0x20] sm:$0xf]
  %v25 = vld [vmem:[%s1 + $0x24] sm:$0xf]
  %v26 = vld [vmem:[%s1 + $0x28] sm:$0xf]
  %v27 = vld [vmem:[%s1 + $0x2c] sm:$0xf]
  %v28 = vld [vmem:[%s1 + $0x30] sm:$0xf]
  %v29 = vld [vmem:[%s1 + $0x34] sm:$0xf]
  %v30 = vld [vmem:[%s1 + $0x38] sm:$0xf]
  %v31 = vld [vmem:[%s1 + $0x3c] sm:$0xf]
  %v32 = vld [vmem:[%s1 + $0x40] sm:$0xf]
  %v33 = vld [vmem:[%s1 + $0x44] sm:$0xf]
  %v34 = vld [vmem:[%s1 + $0x48] sm:$0xf]
  %v35 = vld [vmem:[%s1 + $0x4c] sm:$0xf]
  %v36 = vld [vmem:[%s1 + $0x50] sm:$0xf]
  %v37 = vld [vmem:[%s1 + $0x54] sm:$0xf]
  %v38 = vld [vmem:[%s1 + $0x58] sm:$0xf]
  %v39 = vld [vmem:[%s1 + $0x5c] sm:$0xf]
  %v40 = vld [vmem:[%s1 + $0x60] sm:$0xf]
  %v41 = vld [vmem:[%s1 + $0x64] sm:$0xf]
  %v42 = vld [vmem:[%s1 + $0x68] sm:$0xf]
  %v43 = vld [vmem:[%s1 + $0x6c] sm:$0xf]
  %v44 = vld [vmem:[%s1 + $0x70] sm:$0xf]
  %v45 = vld [vmem:[%s1 + $0x74] sm:$0xf]
  %v46 = vld [vmem:[%s1 + $0x78] sm:$0xf]
  %v47 = vld [vmem:[%s1 + $0x7c] sm:$0xf]
  %v52 = vunpack.c.l.b16 %v12
  %v53 = vunpack.c.h.b16 %v12
  %v54 = vunpack.c.l.b16 %v13
  %v55 = vunpack.c.h.b16 %v13
  %v56 = vunpack.c.l.b16 %v14
  %v57 = vunpack.c.h.b16 %v14
  %v58 = vunpack.c.l.b16 %v15
  %v59 = vunpack.c.h.b16 %v15
  %v60 = vpack.c.b16 %v54, %v52
  %v61 = vpack.c.b16 %v55, %v53
  %v62 = vpack.c.b16 %v58, %v56
  %v63 = vpack.c.b16 %v59, %v57
  %v100 = vunpack.c.l.b16 %v16
  %v101 = vunpack.c.l.b16 %v17
  %v102 = vunpack.c.l.b16 %v18
  %v103 = vunpack.c.l.b16 %v19
  %v104 = vunpack.c.l.b16 %v20
  %v105 = vunpack.c.l.b16 %v21
  %v106 = vunpack.c.l.b16 %v22
  %v107 = vunpack.c.l.b16 %v23
  %v108 = vunpack.c.l.b16 %v24
  %v109 = vunpack.c.l.b16 %v25
  %v110 = vunpack.c.l.b16 %v26
  %v111 = vunpack.c.l.b16 %v27
  %v112 = vunpack.c.l.b16 %v28
  %v113 = vunpack.c.l.b16 %v29
  %v114 = vunpack.c.l.b16 %v30
  %v115 = vunpack.c.l.b16 %v31
  %v116 = vunpack.c.l.b16 %v32
  %v117 = vunpack.c.l.b16 %v33
  %v118 = vunpack.c.l.b16 %v34
  %v119 = vunpack.c.l.b16 %v35
  %v120 = vunpack.c.l.b16 %v36
  %v121 = vunpack.c.l.b16 %v37
  %v122 = vunpack.c.l.b16 %v38
  %v123 = vunpack.c.l.b16 %v39
  %v124 = vunpack.c.l.b16 %v40
  %v125 = vunpack.c.l.b16 %v41
  %v126 = vunpack.c.l.b16 %v42
  %v127 = vunpack.c.l.b16 %v43
  %v128 = vunpack.c.l.b16 %v44
  %v129 = vunpack.c.l.b16 %v45
  %v130 = vunpack.c.l.b16 %v46
  %v131 = vunpack.c.l.b16 %v47
  %v132 = vpack.c.b16 %v101, %v100
  %v133 = vpack.c.b16 %v103, %v102
  %v134 = vpack.c.b16 %v105, %v104
  %v135 = vpack.c.b16 %v107, %v106
  %v136 = vpack.c.b16 %v109, %v108
  %v137 = vpack.c.b16 %v111, %v110
  %v138 = vpack.c.b16 %v113, %v112
  %v139 = vpack.c.b16 %v115, %v114
  %v140 = vpack.c.b16 %v117, %v116
  %v141 = vpack.c.b16 %v119, %v118
  %v142 = vpack.c.b16 %v121, %v120
  %v143 = vpack.c.b16 %v123, %v122
  %v144 = vpack.c.b16 %v125, %v124
  %v145 = vpack.c.b16 %v127, %v126
  %v146 = vpack.c.b16 %v129, %v128
  %v147 = vpack.c.b16 %v131, %v130
  %164 = vmatprep.subr.bf16.mxu0 0
  %165 = vmatpush1.bf16.msra.mxu0 %v132
  %166 = vmatprep.subr.bf16.mxu0 0
  %167 = vmatpush1.bf16.msra.mxu0 %v133
  %168 = vmatprep.subr.bf16.mxu0 0
  %169 = vmatpush1.bf16.msra.mxu0 %v134
  %170 = vmatprep.subr.bf16.mxu0 0
  %171 = vmatpush1.bf16.msra.mxu0 %v135
  %172 = vmatprep.subr.bf16.mxu0 0
  %173 = vmatpush1.bf16.msra.mxu0 %v136
  %174 = vmatprep.subr.bf16.mxu0 0
  %175 = vmatpush1.bf16.msra.mxu0 %v137
  %176 = vmatprep.subr.bf16.mxu0 0
  %177 = vmatpush1.bf16.msra.mxu0 %v138
  %178 = vmatprep.subr.bf16.mxu0 0
  %179 = vmatpush1.bf16.msra.mxu0 %v139
  %180 = vmatprep.subr.bf16.mxu0 0
  %181 = vmatpush1.bf16.msra.mxu0 %v140
  %182 = vmatprep.subr.bf16.mxu0 0
  %183 = vmatpush1.bf16.msra.mxu0 %v141
  %184 = vmatprep.subr.bf16.mxu0 0
  %185 = vmatpush1.bf16.msra.mxu0 %v142
  %186 = vmatprep.subr.bf16.mxu0 0
  %187 = vmatpush1.bf16.msra.mxu0 %v143
  %188 = vmatprep.subr.bf16.mxu0 0
  %189 = vmatpush1.bf16.msra.mxu0 %v144
  %190 = vmatprep.subr.bf16.mxu0 0
  %191 = vmatpush1.bf16.msra.mxu0 %v145
  %192 = vmatprep.subr.bf16.mxu0 0
  %193 = vmatpush1.bf16.msra.mxu0 %v146
  %194 = vmatprep.subr.bf16.mxu0 0
  %195 = vmatpush1.bf16.msra.mxu0 %v147
  %196 = vmatprep.mubr.bf16.mxu0 %v61
  %197 = vmatmul.mubr.bf16.gmra.mrb[0].mxu0 %v60
  %v198 = vpop.f32.mrb[0].mxu0
  %v199 = vadd.f32 0.0, %v198
  %v200 = vpop.f32.mrb[0].mxu0
  %v201 = vpop.f32.mrb[0].mxu0
  %v202 = vadd.f32 0.0, %v201
  %v203 = vpop.f32.mrb[0].mxu0
  %204 = vmatprep.mubr.bf16.mxu0 %v63
  %205 = vmatmul.mubr.bf16.gmra.mrb[0].mxu0 %v62
  %v206 = vpop.f32.mrb[0].mxu0
  %v207 = vadd.f32 0.0, %v206
  %v208 = vpop.f32.mrb[0].mxu0
  %v209 = vpop.f32.mrb[0].mxu0
  %v210 = vadd.f32 0.0, %v209
  %v211 = vpop.f32.mrb[0].mxu0
  %212 = vdwg.mxu0
  %v213 = vadd.f32 %v199, %v202
  %v214 = vadd.f32 %v213, %v207
  %v215 = vadd.f32 %v214, %v210
  %v216 = vrot.slane %v215, 4
  %v217 = vadd.f32 %v215, %v216
  %v218 = vrot.slane %v217, 2
  %v219 = vadd.f32 %v217, %v218
  %v220 = vrot.slane %v219, 1
  %v221 = vadd.f32 %v219, %v220
  %v222 = vmul.f32 %v199, %v199
  %v223 = vmul.f32 %v202, %v202
  %v224 = vmul.f32 %v207, %v207
  %v225 = vmul.f32 %v210, %v210
  %v226 = vadd.f32 %v222, %v223
  %v227 = vadd.f32 %v226, %v224
  %v228 = vadd.f32 %v227, %v225
  %v229 = vrot.slane %v228, 4
  %v230 = vadd.f32 %v228, %v229
  %v231 = vrot.slane %v230, 2
  %v232 = vadd.f32 %v230, %v231
  %v233 = vrot.slane %v232, 1
  %v234 = vadd.f32 %v232, %v233
  %v235 = vmul.f32 %v221, 0.03125
  %v236 = vmul.f32 %v234, 0.03125
  %v237 = vmul.f32 %v235, %v235
  %v238 = vsub.f32 %v236, %v237
  %v239 = vmax.f32 %v238, 0.0
  %v240 = vsub.f32 %v199, %v235
  %v241 = vsub.f32 %v202, %v235
  %v242 = vsub.f32 %v207, %v235
  %v243 = vsub.f32 %v210, %v235
  %v244 = vadd.f32 %v239, 1e-05
  %v245 = vrsqrt.pop %v244
  %v246 = vmul.f32 %v240, %v245
  %v247 = vmul.f32 %v241, %v245
  %v248 = vmul.f32 %v242, %v245
  %v249 = vmul.f32 %v243, %v245
  %vm250 = vcmp.gt.f32.partialorder %v246, 0.0
  %vm251 = vcmp.gt.f32.partialorder %v247, 0.0
  %vm252 = vcmp.gt.f32.partialorder %v248, 0.0
  %vm253 = vcmp.gt.f32.partialorder %v249, 0.0
  %v254 = vmul.f32 %v246, 0.01
  %v255 = vmul.f32 %v247, 0.01
  %v256 = vmul.f32 %v248, 0.01
  %v257 = vmul.f32 %v249, 0.01
  %v258 = vsel %vm250, %v246, %v254
  %v259 = vsel %vm251, %v247, %v255
  %v260 = vsel %vm252, %v248, %v256
  %v261 = vsel %vm253, %v249, %v257
  %v262 = vpack.c.bf16 %v259, %v258
  %v263 = vpack.c.bf16 %v261, %v260
  %v266 = vunpack.c.l.b16 %v262
  %v267 = vunpack.c.h.b16 %v262
  %v268 = vunpack.c.l.b16 %v263
  %v269 = vunpack.c.h.b16 %v263
  %v270 = vpack.c.b16 %v266, %v266
  %v271 = vpack.c.b16 %v267, %v267
  %v272 = vpack.c.b16 %v268, %v268
  %v273 = vpack.c.b16 %v269, %v269
  %278 = vst [vmem:[%s2] sm:$0xf] %v270
  %279 = vst [vmem:[%s2 + $0x4] sm:$0xf] %v271
  %280 = vst [vmem:[%s2 + $0x8] sm:$0xf] %v272
  %281 = vst [vmem:[%s2 + $0xc] sm:$0xf] %v273
  // Predicated region
  $region10: #{_lambda_.27} parent=0 // pred_check
    _
  $region11: #{_lambda_.27} parent=0 // pred_check_branch
    %283 = sbr.rel (0) target = $region13
  $region12: #{_lambda_.27} parent=0 // pred_region
    _
  $region13: #{_lambda_.27} parent=0 // pred_fallthru
    _
  // Predicated region
  $region14: #{_lambda_.27} parent=0 // pred_check
    _
  $region15: #{_lambda_.27} parent=0 // pred_check_branch
    %285 = sbr.rel (0) target = $region17
  $region16: #{_lambda_.27} parent=0 // pred_region
    _
  $region17: #{_lambda_.27} parent=0 // pred_fallthru
    _

// kernel: _lambda_.28
$region0: #{_lambda_.28}
  #allocation0 [shape = 'u32[]', space=smem, size = 0x4, offset = 0x4, fixed_abs, tag = 'smem constant byte address 0x4 - core index']
  #allocation1 [shape = 'u32[144,128]{1,0:T(1,128)}', space=vmem, size = 0x12000, scoped, tag = 'internal scratch']
  %s0 = inlined_call_operand.vmem [shape: bf16[32,384], index: 0, kind: input, shape index: {}]
  %s1 = inlined_call_operand.vmem [shape: bf16[384,128], index: 1, kind: input, shape index: {}]
  %s2 = inlined_call_operand.vmem [shape: bf16[32,128], index: 2, kind: output, shape index: {}]
  %s3 = sld [smem:[#allocation0]]
  $region18: #{_lambda_.28} parent=0
    _
  %s5 = ssub.s32 1, %s3
  %s6 = scalar_select 0, %s5, %s3
  // Predicated region
  $region2: #{_lambda_.28} parent=0 // pred_check
    _
  $region3: #{_lambda_.28} parent=0 // pred_check_branch
    %8 = sbr.rel (0) target = $region5
  $region4: #{_lambda_.28} parent=0 // pred_region
    _
  $region5: #{_lambda_.28} parent=0 // pred_fallthru
    _
  // Predicated region
  $region6: #{_lambda_.28} parent=0 // pred_check
    _
  $region7: #{_lambda_.28} parent=0 // pred_check_branch
    %10 = sbr.rel (0) target = $region9
  $region8: #{_lambda_.28} parent=0 // pred_region
    _
  $region9: #{_lambda_.28} parent=0 // pred_fallthru
    _
  %v12 = vld [vmem:[%s0] sm:$0xff]
  %v13 = vld [vmem:[%s0 + $0x8] sm:$0xf]
  %v14 = vld [vmem:[%s0 + $0xc] sm:$0xff]
  %v15 = vld [vmem:[%s0 + $0x14] sm:$0xf]
  %v16 = vld [vmem:[%s0 + $0x18] sm:$0xff]
  %v17 = vld [vmem:[%s0 + $0x20] sm:$0xf]
  %v18 = vld [vmem:[%s0 + $0x24] sm:$0xff]
  %v19 = vld [vmem:[%s0 + $0x2c] sm:$0xf]
  %v20 = vld [vmem:[%s1] sm:$0xf]
  %v21 = vld [vmem:[%s1 + $0x4] sm:$0xf]
  %v22 = vld [vmem:[%s1 + $0x8] sm:$0xf]
  %v23 = vld [vmem:[%s1 + $0xc] sm:$0xf]
  %v24 = vld [vmem:[%s1 + $0x10] sm:$0xf]
  %v25 = vld [vmem:[%s1 + $0x14] sm:$0xf]
  %v26 = vld [vmem:[%s1 + $0x18] sm:$0xf]
  %v27 = vld [vmem:[%s1 + $0x1c] sm:$0xf]
  %v28 = vld [vmem:[%s1 + $0x20] sm:$0xf]
  %v29 = vld [vmem:[%s1 + $0x24] sm:$0xf]
  %v30 = vld [vmem:[%s1 + $0x28] sm:$0xf]
  %v31 = vld [vmem:[%s1 + $0x2c] sm:$0xf]
  %v32 = vld [vmem:[%s1 + $0x30] sm:$0xf]
  %v33 = vld [vmem:[%s1 + $0x34] sm:$0xf]
  %v34 = vld [vmem:[%s1 + $0x38] sm:$0xf]
  %v35 = vld [vmem:[%s1 + $0x3c] sm:$0xf]
  %v36 = vld [vmem:[%s1 + $0x40] sm:$0xf]
  %v37 = vld [vmem:[%s1 + $0x44] sm:$0xf]
  %v38 = vld [vmem:[%s1 + $0x48] sm:$0xf]
  %v39 = vld [vmem:[%s1 + $0x4c] sm:$0xf]
  %v40 = vld [vmem:[%s1 + $0x50] sm:$0xf]
  %v41 = vld [vmem:[%s1 + $0x54] sm:$0xf]
  %v42 = vld [vmem:[%s1 + $0x58] sm:$0xf]
  %v43 = vld [vmem:[%s1 + $0x5c] sm:$0xf]
  %v44 = vld [vmem:[%s1 + $0x60] sm:$0xf]
  %v45 = vld [vmem:[%s1 + $0x64] sm:$0xf]
  %v46 = vld [vmem:[%s1 + $0x68] sm:$0xf]
  %v47 = vld [vmem:[%s1 + $0x6c] sm:$0xf]
  %v48 = vld [vmem:[%s1 + $0x70] sm:$0xf]
  %v49 = vld [vmem:[%s1 + $0x74] sm:$0xf]
  %v50 = vld [vmem:[%s1 + $0x78] sm:$0xf]
  %v51 = vld [vmem:[%s1 + $0x7c] sm:$0xf]
  %v52 = vld [vmem:[%s1 + $0x80] sm:$0xf]
  %v53 = vld [vmem:[%s1 + $0x84] sm:$0xf]
  %v54 = vld [vmem:[%s1 + $0x88] sm:$0xf]
  %v55 = vld [vmem:[%s1 + $0x8c] sm:$0xf]
  %v56 = vld [vmem:[%s1 + $0x90] sm:$0xf]
  %v57 = vld [vmem:[%s1 + $0x94] sm:$0xf]
  %v58 = vld [vmem:[%s1 + $0x98] sm:$0xf]
  %v59 = vld [vmem:[%s1 + $0x9c] sm:$0xf]
  %v60 = vld [vmem:[%s1 + $0xa0] sm:$0xf]
  %v61 = vld [vmem:[%s1 + $0xa4] sm:$0xf]
  %v62 = vld [vmem:[%s1 + $0xa8] sm:$0xf]
  %v63 = vld [vmem:[%s1 + $0xac] sm:$0xf]
  %v64 = vld [vmem:[%s1 + $0xb0] sm:$0xf]
  %v65 = vld [vmem:[%s1 + $0xb4] sm:$0xf]
  %v66 = vld [vmem:[%s1 + $0xb8] sm:$0xf]
  %v67 = vld [vmem:[%s1 + $0xbc] sm:$0xf]
  %v76 = vunpack.c.l.b16 %v12
  %v77 = vunpack.c.h.b16 %v12
  %v78 = vunpack.c.l.b16 %v13
  %v79 = vunpack.c.l.b16 %v14
  %v80 = vunpack.c.h.b16 %v14
  %v81 = vunpack.c.l.b16 %v15
  %v82 = vunpack.c.l.b16 %v16
  %v83 = vunpack.c.h.b16 %v16
  %v84 = vunpack.c.l.b16 %v17
  %v85 = vunpack.c.l.b16 %v18
  %v86 = vunpack.c.h.b16 %v18
  %v87 = vunpack.c.l.b16 %v19
  %v88 = vpack.c.b16 %v79, %v76
  %v89 = vpack.c.b16 %v80, %v77
  %v90 = vpack.c.b16 %v81, %v78
  %v91 = vpack.c.b16 %v85, %v82
  %v92 = vpack.c.b16 %v86, %v83
  %v93 = vpack.c.b16 %v87, %v84
  %v148 = vunpack.c.l.b16 %v20
  %v149 = vunpack.c.l.b16 %v21
  %v150 = vunpack.c.l.b16 %v22
  %v151 = vunpack.c.l.b16 %v23
  %v152 = vunpack.c.l.b16 %v24
  %v153 = vunpack.c.l.b16 %v25
  %v154 = vunpack.c.l.b16 %v26
  %v155 = vunpack.c.l.b16 %v27
  %v156 = vunpack.c.l.b16 %v28
  %v157 = vunpack.c.l.b16 %v29
  %v158 = vunpack.c.l.b16 %v30
  %v159 = vunpack.c.l.b16 %v31
  %v160 = vunpack.c.l.b16 %v32
  %v161 = vunpack.c.l.b16 %v33
  %v162 = vunpack.c.l.b16 %v34
  %v163 = vunpack.c.l.b16 %v35
  %v164 = vunpack.c.l.b16 %v36
  %v165 = vunpack.c.l.b16 %v37
  %v166 = vunpack.c.l.b16 %v38
  %v167 = vunpack.c.l.b16 %v39
  %v168 = vunpack.c.l.b16 %v40
  %v169 = vunpack.c.l.b16 %v41
  %v170 = vunpack.c.l.b16 %v42
  %v171 = vunpack.c.l.b16 %v43
  %v172 = vunpack.c.l.b16 %v44
  %v173 = vunpack.c.l.b16 %v45
  %v174 = vunpack.c.l.b16 %v46
  %v175 = vunpack.c.l.b16 %v47
  %v176 = vunpack.c.l.b16 %v48
  %v177 = vunpack.c.l.b16 %v49
  %v178 = vunpack.c.l.b16 %v50
  %v179 = vunpack.c.l.b16 %v51
  %v180 = vunpack.c.l.b16 %v52
  %v181 = vunpack.c.l.b16 %v53
  %v182 = vunpack.c.l.b16 %v54
  %v183 = vunpack.c.l.b16 %v55
  %v184 = vunpack.c.l.b16 %v56
  %v185 = vunpack.c.l.b16 %v57
  %v186 = vunpack.c.l.b16 %v58
  %v187 = vunpack.c.l.b16 %v59
  %v188 = vunpack.c.l.b16 %v60
  %v189 = vunpack.c.l.b16 %v61
  %v190 = vunpack.c.l.b16 %v62
  %v191 = vunpack.c.l.b16 %v63
  %v192 = vunpack.c.l.b16 %v64
  %v193 = vunpack.c.l.b16 %v65
  %v194 = vunpack.c.l.b16 %v66
  %v195 = vunpack.c.l.b16 %v67
  %v196 = vpack.c.b16 %v149, %v148
  %v197 = vpack.c.b16 %v151, %v150
  %v198 = vpack.c.b16 %v153, %v152
  %v199 = vpack.c.b16 %v155, %v154
  %v200 = vpack.c.b16 %v157, %v156
  %v201 = vpack.c.b16 %v159, %v158
  %v202 = vpack.c.b16 %v161, %v160
  %v203 = vpack.c.b16 %v163, %v162
  %v204 = vpack.c.b16 %v165, %v164
  %v205 = vpack.c.b16 %v167, %v166
  %v206 = vpack.c.b16 %v169, %v168
  %v207 = vpack.c.b16 %v171, %v170
  %v208 = vpack.c.b16 %v173, %v172
  %v209 = vpack.c.b16 %v175, %v174
  %v210 = vpack.c.b16 %v177, %v176
  %v211 = vpack.c.b16 %v179, %v178
  %v212 = vpack.c.b16 %v181, %v180
  %v213 = vpack.c.b16 %v183, %v182
  %v214 = vpack.c.b16 %v185, %v184
  %v215 = vpack.c.b16 %v187, %v186
  %v216 = vpack.c.b16 %v189, %v188
  %v217 = vpack.c.b16 %v191, %v190
  %v218 = vpack.c.b16 %v193, %v192
  %v219 = vpack.c.b16 %v195, %v194
  %244 = vmatprep.subr.bf16.mxu0 0
  %245 = vmatpush1.bf16.msra.mxu0 %v196
  %246 = vmatprep.subr.bf16.mxu0 0
  %247 = vmatpush1.bf16.msra.mxu0 %v197
  %248 = vmatprep.subr.bf16.mxu0 0
  %249 = vmatpush1.bf16.msra.mxu0 %v198
  %250 = vmatprep.subr.bf16.mxu0 0
  %251 = vmatpush1.bf16.msra.mxu0 %v199
  %252 = vmatprep.subr.bf16.mxu0 0
  %253 = vmatpush1.bf16.msra.mxu0 %v200
  %254 = vmatprep.subr.bf16.mxu0 0
  %255 = vmatpush1.bf16.msra.mxu0 %v201
  %256 = vmatprep.subr.bf16.mxu0 0
  %257 = vmatpush1.bf16.msra.mxu0 %v202
  %258 = vmatprep.subr.bf16.mxu0 0
  %259 = vmatpush1.bf16.msra.mxu0 %v203
  %260 = vmatprep.subr.bf16.mxu0 0
  %261 = vmatpush1.bf16.msra.mxu0 %v204
  %262 = vmatprep.subr.bf16.mxu0 0
  %263 = vmatpush1.bf16.msra.mxu0 %v205
  %264 = vmatprep.subr.bf16.mxu0 0
  %265 = vmatpush1.bf16.msra.mxu0 %v206
  %266 = vmatprep.subr.bf16.mxu0 0
  %267 = vmatpush1.bf16.msra.mxu0 %v207
  %268 = vmatprep.subr.bf16.mxu0 0
  %269 = vmatpush1.bf16.msra.mxu0 %v208
  %270 = vmatprep.subr.bf16.mxu0 0
  %271 = vmatpush1.bf16.msra.mxu0 %v209
  %272 = vmatprep.subr.bf16.mxu0 0
  %273 = vmatpush1.bf16.msra.mxu0 %v210
  %274 = vmatprep.subr.bf16.mxu0 0
  %275 = vmatpush1.bf16.msra.mxu0 %v211
  %276 = vmatprep.mubr.bf16.mxu0 %v89
  %277 = vmatmul.mubr.bf16.gmra.mrb[0].mxu0 %v88
  %v278 = vpop.f32.mrb[0].mxu0
  %v279 = vadd.f32 0.0, %v278
  %v280 = vpop.f32.mrb[0].mxu0
  %v281 = vpop.f32.mrb[0].mxu0
  %v282 = vadd.f32 0.0, %v281
  %v283 = vpop.f32.mrb[0].mxu0
  %284 = vmatprep.mubr.bf16.mxu0 %v92
  %285 = vmatmul.mubr.bf16.gmra.mrb[0].mxu0 %v91
  %v286 = vpop.f32.mrb[0].mxu0
  %v287 = vadd.f32 0.0, %v286
  %v288 = vpop.f32.mrb[0].mxu0
  %v289 = vpop.f32.mrb[0].mxu0
  %v290 = vadd.f32 0.0, %v289
  %v291 = vpop.f32.mrb[0].mxu0
  %292 = vdwg.mxu0
  %293 = vmatprep.subr.bf16.mxu0 0
  %294 = vmatpush1.bf16.msra.mxu0 %v212
  %295 = vmatprep.subr.bf16.mxu0 0
  %296 = vmatpush1.bf16.msra.mxu0 %v213
  %297 = vmatprep.subr.bf16.mxu0 0
  %298 = vmatpush1.bf16.msra.mxu0 %v214
  %299 = vmatprep.subr.bf16.mxu0 0
  %300 = vmatpush1.bf16.msra.mxu0 %v215
  %301 = vmatprep.subr.bf16.mxu0 0
  %302 = vmatpush1.bf16.msra.mxu0 %v216
  %303 = vmatprep.subr.bf16.mxu0 0
  %304 = vmatpush1.bf16.msra.mxu0 %v217
  %305 = vmatprep.subr.bf16.mxu0 0
  %306 = vmatpush1.bf16.msra.mxu0 %v218
  %307 = vmatprep.subr.bf16.mxu0 0
  %308 = vmatpush1.bf16.msra.mxu0 %v219
  %309 = vmatprep.subr.bf16.mxu0 0
  %310 = vmatpush1.bf16.msra.mxu0 0
  %311 = vmatprep.subr.bf16.mxu0 0
  %312 = vmatpush1.bf16.msra.mxu0 0
  %313 = vmatprep.subr.bf16.mxu0 0
  %314 = vmatpush1.bf16.msra.mxu0 0
  %315 = vmatprep.subr.bf16.mxu0 0
  %316 = vmatpush1.bf16.msra.mxu0 0
  %317 = vmatprep.subr.bf16.mxu0 0
  %318 = vmatpush1.bf16.msra.mxu0 0
  %319 = vmatprep.subr.bf16.mxu0 0
  %320 = vmatpush1.bf16.msra.mxu0 0
  %321 = vmatprep.subr.bf16.mxu0 0
  %322 = vmatpush1.bf16.msra.mxu0 0
  %323 = vmatprep.subr.bf16.mxu0 0
  %324 = vmatpush1.bf16.msra.mxu0 0
  %325 = vmatprep.mubr.bf16.mxu0 0
  %326 = vmatmul.mubr.bf16.gmra.mrb[0].mxu0 %v90
  %v327 = vpop.f32.mrb[0].mxu0
  %v328 = vadd.f32 %v279, %v327
  %v329 = vpop.f32.mrb[0].mxu0
  %v330 = vpop.f32.mrb[0].mxu0
  %v331 = vadd.f32 %v282, %v330
  %v332 = vpop.f32.mrb[0].mxu0
  %333 = vmatprep.mubr.bf16.mxu0 0
  %334 = vmatmul.mubr.bf16.gmra.mrb[0].mxu0 %v93
  %v335 = vpop.f32.mrb[0].mxu0
  %v336 = vadd.f32 %v287, %v335
  %v337 = vpop.f32.mrb[0].mxu0
  %v338 = vpop.f32.mrb[0].mxu0
  %v339 = vadd.f32 %v290, %v338
  %v340 = vpop.f32.mrb[0].mxu0
  %341 = vdwg.mxu0
  %v342 = vadd.f32 %v328, %v331
  %v343 = vadd.f32 %v342, %v336
  %v344 = vadd.f32 %v343, %v339
  %v345 = vrot.slane %v344, 4
  %v346 = vadd.f32 %v344, %v345
  %v347 = vrot.slane %v346, 2
  %v348 = vadd.f32 %v346, %v347
  %v349 = vrot.slane %v348, 1
  %v350 = vadd.f32 %v348, %v349
  %v351 = vmul.f32 %v328, %v328
  %v352 = vmul.f32 %v331, %v331
  %v353 = vmul.f32 %v336, %v336
  %v354 = vmul.f32 %v339, %v339
  %v355 = vadd.f32 %v351, %v352
  %v356 = vadd.f32 %v355, %v353
  %v357 = vadd.f32 %v356, %v354
  %v358 = vrot.slane %v357, 4
  %v359 = vadd.f32 %v357, %v358
  %v360 = vrot.slane %v359, 2
  %v361 = vadd.f32 %v359, %v360
  %v362 = vrot.slane %v361, 1
  %v363 = vadd.f32 %v361, %v362
  %v364 = vmul.f32 %v350, 0.03125
  %v365 = vmul.f32 %v363, 0.03125
  %v366 = vmul.f32 %v364, %v364
  %v367 = vsub.f32 %v365, %v366
  %v368 = vmax.f32 %v367, 0.0
  %v369 = vsub.f32 %v328, %v364
  %v370 = vsub.f32 %v331, %v364
  %v371 = vsub.f32 %v336, %v364
  %v372 = vsub.f32 %v339, %v364
  %v373 = vadd.f32 %v368, 1e-05
  %v374 = vrsqrt.pop %v373
  %v375 = vmul.f32 %v369, %v374
  %v376 = vmul.f32 %v370, %v374
  %v377 = vmul.f32 %v371, %v374
  %v378 = vmul.f32 %v372, %v374
  %vm379 = vcmp.gt.f32.partialorder %v375, 0.0
  %vm380 = vcmp.gt.f32.partialorder %v376, 0.0
  %vm381 = vcmp.gt.f32.partialorder %v377, 0.0
  %vm382 = vcmp.gt.f32.partialorder %v378, 0.0
  %v383 = vmul.f32 %v375, 0.01
  %v384 = vmul.f32 %v376, 0.01
  %v385 = vmul.f32 %v377, 0.01
  %v386 = vmul.f32 %v378, 0.01
  %v387 = vsel %vm379, %v375, %v383
  %v388 = vsel %vm380, %v376, %v384
  %v389 = vsel %vm381, %v377, %v385
  %v390 = vsel %vm382, %v378, %v386
  %v391 = vpack.c.bf16 %v388, %v387
  %v392 = vpack.c.bf16 %v390, %v389
  %v395 = vunpack.c.l.b16 %v391
  %v396 = vunpack.c.h.b16 %v391
  %v397 = vunpack.c.l.b16 %v392
  %v398 = vunpack.c.h.b16 %v392
  %v399 = vpack.c.b16 %v395, %v395
  %v400 = vpack.c.b16 %v396, %v396
  %v401 = vpack.c.b16 %v397, %v397
  %v402 = vpack.c.b16 %v398, %v398
  %407 = vst [vmem:[%s2] sm:$0xf] %v399
  %408 = vst [vmem:[%s2 + $0x4] sm:$0xf] %v400
  %409 = vst [vmem:[%s2 + $0x8] sm:$0xf] %v401
  %410 = vst [vmem:[%s2 + $0xc] sm:$0xf] %v402
  // Predicated region
  $region10: #{_lambda_.28} parent=0 // pred_check
    _
  $region11: #{_lambda_.28} parent=0 // pred_check_branch
    %412 = sbr.rel (0) target = $region13
  $region12: #{_lambda_.28} parent=0 // pred_region
    _
  $region13: #{_lambda_.28} parent=0 // pred_fallthru
    _
  // Predicated region
  $region14: #{_lambda_.28} parent=0 // pred_check
    _
  $region15: #{_lambda_.28} parent=0 // pred_check_branch
    %414 = sbr.rel (0) target = $region17
  $region16: #{_lambda_.28} parent=0 // pred_region
    _
  $region17: #{_lambda_.28} parent=0 // pred_fallthru
    _

// kernel: _lambda_.29
$region0: #{_lambda_.29}
  #allocation0 [shape = 'u32[]', space=smem, size = 0x4, offset = 0x4, fixed_abs, tag = 'smem constant byte address 0x4 - core index']
  #allocation1 [shape = 'u32[144,128]{1,0:T(1,128)}', space=vmem, size = 0x12000, scoped, tag = 'internal scratch']
  %s0 = inlined_call_operand.vmem [shape: bf16[8,384], index: 0, kind: input, shape index: {}]
  %s1 = inlined_call_operand.vmem [shape: bf16[384,128], index: 1, kind: input, shape index: {}]
  %s2 = inlined_call_operand.vmem [shape: bf16[8,128], index: 2, kind: output, shape index: {}]
  %s3 = sld [smem:[#allocation0]]
  $region18: #{_lambda_.29} parent=0
    _
  %s5 = ssub.s32 1, %s3
  %s6 = scalar_select 0, %s5, %s3
  // Predicated region
  $region2: #{_lambda_.29} parent=0 // pred_check
    _
  $region3: #{_lambda_.29} parent=0 // pred_check_branch
    %8 = sbr.rel (0) target = $region5
  $region4: #{_lambda_.29} parent=0 // pred_region
    _
  $region5: #{_lambda_.29} parent=0 // pred_fallthru
    _
  // Predicated region
  $region6: #{_lambda_.29} parent=0 // pred_check
    _
  $region7: #{_lambda_.29} parent=0 // pred_check_branch
    %10 = sbr.rel (0) target = $region9
  $region8: #{_lambda_.29} parent=0 // pred_region
    _
  $region9: #{_lambda_.29} parent=0 // pred_fallthru
    _
  %v12 = vld [vmem:[%s0] sm:$0xff]
  %v13 = vld [vmem:[%s0 + $0x8] sm:$0xf]
  %v14 = vld [vmem:[%s1] sm:$0xf]
  %v15 = vld [vmem:[%s1 + $0x4] sm:$0xf]
  %v16 = vld [vmem:[%s1 + $0x8] sm:$0xf]
  %v17 = vld [vmem:[%s1 + $0xc] sm:$0xf]
  %v18 = vld [vmem:[%s1 + $0x10] sm:$0xf]
  %v19 = vld [vmem:[%s1 + $0x14] sm:$0xf]
  %v20 = vld [vmem:[%s1 + $0x18] sm:$0xf]
  %v21 = vld [vmem:[%s1 + $0x1c] sm:$0xf]
  %v22 = vld [vmem:[%s1 + $0x20] sm:$0xf]
  %v23 = vld [vmem:[%s1 + $0x24] sm:$0xf]
  %v24 = vld [vmem:[%s1 + $0x28] sm:$0xf]
  %v25 = vld [vmem:[%s1 + $0x2c] sm:$0xf]
  %v26 = vld [vmem:[%s1 + $0x30] sm:$0xf]
  %v27 = vld [vmem:[%s1 + $0x34] sm:$0xf]
  %v28 = vld [vmem:[%s1 + $0x38] sm:$0xf]
  %v29 = vld [vmem:[%s1 + $0x3c] sm:$0xf]
  %v30 = vld [vmem:[%s1 + $0x40] sm:$0xf]
  %v31 = vld [vmem:[%s1 + $0x44] sm:$0xf]
  %v32 = vld [vmem:[%s1 + $0x48] sm:$0xf]
  %v33 = vld [vmem:[%s1 + $0x4c] sm:$0xf]
  %v34 = vld [vmem:[%s1 + $0x50] sm:$0xf]
  %v35 = vld [vmem:[%s1 + $0x54] sm:$0xf]
  %v36 = vld [vmem:[%s1 + $0x58] sm:$0xf]
  %v37 = vld [vmem:[%s1 + $0x5c] sm:$0xf]
  %v38 = vld [vmem:[%s1 + $0x60] sm:$0xf]
  %v39 = vld [vmem:[%s1 + $0x64] sm:$0xf]
  %v40 = vld [vmem:[%s1 + $0x68] sm:$0xf]
  %v41 = vld [vmem:[%s1 + $0x6c] sm:$0xf]
  %v42 = vld [vmem:[%s1 + $0x70] sm:$0xf]
  %v43 = vld [vmem:[%s1 + $0x74] sm:$0xf]
  %v44 = vld [vmem:[%s1 + $0x78] sm:$0xf]
  %v45 = vld [vmem:[%s1 + $0x7c] sm:$0xf]
  %v46 = vld [vmem:[%s1 + $0x80] sm:$0xf]
  %v47 = vld [vmem:[%s1 + $0x84] sm:$0xf]
  %v48 = vld [vmem:[%s1 + $0x88] sm:$0xf]
  %v49 = vld [vmem:[%s1 + $0x8c] sm:$0xf]
  %v50 = vld [vmem:[%s1 + $0x90] sm:$0xf]
  %v51 = vld [vmem:[%s1 + $0x94] sm:$0xf]
  %v52 = vld [vmem:[%s1 + $0x98] sm:$0xf]
  %v53 = vld [vmem:[%s1 + $0x9c] sm:$0xf]
  %v54 = vld [vmem:[%s1 + $0xa0] sm:$0xf]
  %v55 = vld [vmem:[%s1 + $0xa4] sm:$0xf]
  %v56 = vld [vmem:[%s1 + $0xa8] sm:$0xf]
  %v57 = vld [vmem:[%s1 + $0xac] sm:$0xf]
  %v58 = vld [vmem:[%s1 + $0xb0] sm:$0xf]
  %v59 = vld [vmem:[%s1 + $0xb4] sm:$0xf]
  %v60 = vld [vmem:[%s1 + $0xb8] sm:$0xf]
  %v61 = vld [vmem:[%s1 + $0xbc] sm:$0xf]
  %v64 = vunpack.c.l.b16 %v12
  %v65 = vunpack.c.h.b16 %v12
  %v66 = vunpack.c.l.b16 %v13
  %v67 = vpack.c.b16 %v64, %v64
  %v68 = vpack.c.b16 %v65, %v65
  %v69 = vpack.c.b16 %v66, %v66
  %v121 = vunpack.c.l.b16 %v14
  %v122 = vunpack.c.l.b16 %v15
  %v123 = vunpack.c.l.b16 %v16
  %v124 = vunpack.c.l.b16 %v17
  %v125 = vunpack.c.l.b16 %v18
  %v126 = vunpack.c.l.b16 %v19
  %v127 = vunpack.c.l.b16 %v20
  %v128 = vunpack.c.l.b16 %v21
  %v129 = vunpack.c.l.b16 %v22
  %v130 = vunpack.c.l.b16 %v23
  %v131 = vunpack.c.l.b16 %v24
  %v132 = vunpack.c.l.b16 %v25
  %v133 = vunpack.c.l.b16 %v26
  %v134 = vunpack.c.l.b16 %v27
  %v135 = vunpack.c.l.b16 %v28
  %v136 = vunpack.c.l.b16 %v29
  %v137 = vunpack.c.l.b16 %v30
  %v138 = vunpack.c.l.b16 %v31
  %v139 = vunpack.c.l.b16 %v32
  %v140 = vunpack.c.l.b16 %v33
  %v141 = vunpack.c.l.b16 %v34
  %v142 = vunpack.c.l.b16 %v35
  %v143 = vunpack.c.l.b16 %v36
  %v144 = vunpack.c.l.b16 %v37
  %v145 = vunpack.c.l.b16 %v38
  %v146 = vunpack.c.l.b16 %v39
  %v147 = vunpack.c.l.b16 %v40
  %v148 = vunpack.c.l.b16 %v41
  %v149 = vunpack.c.l.b16 %v42
  %v150 = vunpack.c.l.b16 %v43
  %v151 = vunpack.c.l.b16 %v44
  %v152 = vunpack.c.l.b16 %v45
  %v153 = vunpack.c.l.b16 %v46
  %v154 = vunpack.c.l.b16 %v47
  %v155 = vunpack.c.l.b16 %v48
  %v156 = vunpack.c.l.b16 %v49
  %v157 = vunpack.c.l.b16 %v50
  %v158 = vunpack.c.l.b16 %v51
  %v159 = vunpack.c.l.b16 %v52
  %v160 = vunpack.c.l.b16 %v53
  %v161 = vunpack.c.l.b16 %v54
  %v162 = vunpack.c.l.b16 %v55
  %v163 = vunpack.c.l.b16 %v56
  %v164 = vunpack.c.l.b16 %v57
  %v165 = vunpack.c.l.b16 %v58
  %v166 = vunpack.c.l.b16 %v59
  %v167 = vunpack.c.l.b16 %v60
  %v168 = vunpack.c.l.b16 %v61
  %v169 = vpack.c.b16 %v122, %v121
  %v170 = vpack.c.b16 %v124, %v123
  %v171 = vpack.c.b16 %v126, %v125
  %v172 = vpack.c.b16 %v128, %v127
  %v173 = vpack.c.b16 %v130, %v129
  %v174 = vpack.c.b16 %v132, %v131
  %v175 = vpack.c.b16 %v134, %v133
  %v176 = vpack.c.b16 %v136, %v135
  %v177 = vpack.c.b16 %v138, %v137
  %v178 = vpack.c.b16 %v140, %v139
  %v179 = vpack.c.b16 %v142, %v141
  %v180 = vpack.c.b16 %v144, %v143
  %v181 = vpack.c.b16 %v146, %v145
  %v182 = vpack.c.b16 %v148, %v147
  %v183 = vpack.c.b16 %v150, %v149
  %v184 = vpack.c.b16 %v152, %v151
  %v185 = vpack.c.b16 %v154, %v153
  %v186 = vpack.c.b16 %v156, %v155
  %v187 = vpack.c.b16 %v158, %v157
  %v188 = vpack.c.b16 %v160, %v159
  %v189 = vpack.c.b16 %v162, %v161
  %v190 = vpack.c.b16 %v164, %v163
  %v191 = vpack.c.b16 %v166, %v165
  %v192 = vpack.c.b16 %v168, %v167
  %217 = vmatprep.subr.bf16.mxu0 0
  %218 = vmatpush1.bf16.msra.mxu0 %v169
  %219 = vmatprep.subr.bf16.mxu0 0
  %220 = vmatpush1.bf16.msra.mxu0 %v170
  %221 = vmatprep.subr.bf16.mxu0 0
  %222 = vmatpush1.bf16.msra.mxu0 %v171
  %223 = vmatprep.subr.bf16.mxu0 0
  %224 = vmatpush1.bf16.msra.mxu0 %v172
  %225 = vmatprep.subr.bf16.mxu0 0
  %226 = vmatpush1.bf16.msra.mxu0 %v173
  %227 = vmatprep.subr.bf16.mxu0 0
  %228 = vmatpush1.bf16.msra.mxu0 %v174
  %229 = vmatprep.subr.bf16.mxu0 0
  %230 = vmatpush1.bf16.msra.mxu0 %v175
  %231 = vmatprep.subr.bf16.mxu0 0
  %232 = vmatpush1.bf16.msra.mxu0 %v176
  %233 = vmatprep.subr.bf16.mxu0 0
  %234 = vmatpush1.bf16.msra.mxu0 %v177
  %235 = vmatprep.subr.bf16.mxu0 0
  %236 = vmatpush1.bf16.msra.mxu0 %v178
  %237 = vmatprep.subr.bf16.mxu0 0
  %238 = vmatpush1.bf16.msra.mxu0 %v179
  %239 = vmatprep.subr.bf16.mxu0 0
  %240 = vmatpush1.bf16.msra.mxu0 %v180
  %241 = vmatprep.subr.bf16.mxu0 0
  %242 = vmatpush1.bf16.msra.mxu0 %v181
  %243 = vmatprep.subr.bf16.mxu0 0
  %244 = vmatpush1.bf16.msra.mxu0 %v182
  %245 = vmatprep.subr.bf16.mxu0 0
  %246 = vmatpush1.bf16.msra.mxu0 %v183
  %247 = vmatprep.subr.bf16.mxu0 0
  %248 = vmatpush1.bf16.msra.mxu0 %v184
  %249 = vmatprep.mubr.bf16.mxu0 %v68
  %250 = vmatmul.mubr.bf16.gmra.mrb[0].mxu0 %v67
  %v251 = vpop.f32.mrb[0].mxu0
  %v252 = vadd.f32 0.0, %v251
  %v253 = vpop.f32.mrb[0].mxu0
  %v254 = vpop.f32.mrb[0].mxu0
  %v255 = vpop.f32.mrb[0].mxu0
  %256 = vdwg.mxu0
  %257 = vmatprep.subr.bf16.mxu0 0
  %258 = vmatpush1.bf16.msra.mxu0 %v185
  %259 = vmatprep.subr.bf16.mxu0 0
  %260 = vmatpush1.bf16.msra.mxu0 %v186
  %261 = vmatprep.subr.bf16.mxu0 0
  %262 = vmatpush1.bf16.msra.mxu0 %v187
  %263 = vmatprep.subr.bf16.mxu0 0
  %264 = vmatpush1.bf16.msra.mxu0 %v188
  %265 = vmatprep.subr.bf16.mxu0 0
  %266 = vmatpush1.bf16.msra.mxu0 %v189
  %267 = vmatprep.subr.bf16.mxu0 0
  %268 = vmatpush1.bf16.msra.mxu0 %v190
  %269 = vmatprep.subr.bf16.mxu0 0
  %270 = vmatpush1.bf16.msra.mxu0 %v191
  %271 = vmatprep.subr.bf16.mxu0 0
  %272 = vmatpush1.bf16.msra.mxu0 %v192
  %273 = vmatprep.subr.bf16.mxu0 0
  %274 = vmatpush1.bf16.msra.mxu0 0
  %275 = vmatprep.subr.bf16.mxu0 0
  %276 = vmatpush1.bf16.msra.mxu0 0
  %277 = vmatprep.subr.bf16.mxu0 0
  %278 = vmatpush1.bf16.msra.mxu0 0
  %279 = vmatprep.subr.bf16.mxu0 0
  %280 = vmatpush1.bf16.msra.mxu0 0
  %281 = vmatprep.subr.bf16.mxu0 0
  %282 = vmatpush1.bf16.msra.mxu0 0
  %283 = vmatprep.subr.bf16.mxu0 0
  %284 = vmatpush1.bf16.msra.mxu0 0
  %285 = vmatprep.subr.bf16.mxu0 0
  %286 = vmatpush1.bf16.msra.mxu0 0
  %287 = vmatprep.subr.bf16.mxu0 0
  %288 = vmatpush1.bf16.msra.mxu0 0
  %289 = vmatprep.mubr.bf16.mxu0 0
  %290 = vmatmul.mubr.bf16.gmra.mrb[0].mxu0 %v69
  %v291 = vpop.f32.mrb[0].mxu0
  %v292 = vadd.f32 %v252, %v291
  %v293 = vpop.f32.mrb[0].mxu0
  %v294 = vpop.f32.mrb[0].mxu0
  %v295 = vpop.f32.mrb[0].mxu0
  %296 = vdwg.mxu0
  %v297 = vrot.slane %v292, 4
  %v298 = vadd.f32 %v292, %v297
  %v299 = vrot.slane %v298, 2
  %v300 = vadd.f32 %v298, %v299
  %v301 = vrot.slane %v300, 1
  %v302 = vadd.f32 %v300, %v301
  %v303 = vmul.f32 %v292, %v292
  %v304 = vrot.slane %v303, 4
  %v305 = vadd.f32 %v303, %v304
  %v306 = vrot.slane %v305, 2
  %v307 = vadd.f32 %v305, %v306
  %v308 = vrot.slane %v307, 1
  %v309 = vadd.f32 %v307, %v308
  %v310 = vmul.f32 %v302, 0.125
  %v311 = vmul.f32 %v309, 0.125
  %v312 = vmul.f32 %v310, %v310
  %v313 = vsub.f32 %v311, %v312
  %v314 = vmax.f32 %v313, 0.0
  %v315 = vsub.f32 %v292, %v310
  %v316 = vadd.f32 %v314, 1e-05
  %v317 = vrsqrt.pop %v316
  %v318 = vmul.f32 %v315, %v317
  %vm319 = vcmp.gt.f32.partialorder %v318, 0.0
  %v320 = vmul.f32 %v318, 0.01
  %v321 = vsel %vm319, %v318, %v320
  %v322 = vpack.c.bf16 %v321, %v321
  %323 = vst [vmem:[%s2] sm:$0xf] %v322
  // Predicated region
  $region10: #{_lambda_.29} parent=0 // pred_check
    _
  $region11: #{_lambda_.29} parent=0 // pred_check_branch
    %325 = sbr.rel (0) target = $region13
  $region12: #{_lambda_.29} parent=0 // pred_region
    _
  $region13: #{_lambda_.29} parent=0 // pred_fallthru
    _
  // Predicated region
  $region14: #{_lambda_.29} parent=0 // pred_check
    _
  $region15: #{_lambda_.29} parent=0 // pred_check_branch
    %327 = sbr.rel (0) target = $region17
  $region16: #{_lambda_.29} parent=0 // pred_region
    _
  $region17: #{_lambda_.29} parent=0 // pred_fallthru
    _

// kernel: _lambda_.30
$region0: #{_lambda_.30}
  #allocation0 [shape = 'u32[]', space=smem, size = 0x4, offset = 0x4, fixed_abs, tag = 'smem constant byte address 0x4 - core index']
  #allocation1 [shape = 'u32[144,128]{1,0:T(1,128)}', space=vmem, size = 0x12000, scoped, tag = 'internal scratch']
  %s0 = inlined_call_operand.vmem [shape: bf16[8,640], index: 0, kind: input, shape index: {}]
  %s1 = inlined_call_operand.vmem [shape: bf16[640,128], index: 1, kind: input, shape index: {}]
  %s2 = inlined_call_operand.vmem [shape: bf16[8,128], index: 2, kind: output, shape index: {}]
  %s3 = sld [smem:[#allocation0]]
  $region18: #{_lambda_.30} parent=0
    _
  %s5 = ssub.s32 1, %s3
  %s6 = scalar_select 0, %s5, %s3
  // Predicated region
  $region2: #{_lambda_.30} parent=0 // pred_check
    _
  $region3: #{_lambda_.30} parent=0 // pred_check_branch
    %8 = sbr.rel (0) target = $region5
  $region4: #{_lambda_.30} parent=0 // pred_region
    _
  $region5: #{_lambda_.30} parent=0 // pred_fallthru
    _
  // Predicated region
  $region6: #{_lambda_.30} parent=0 // pred_check
    _
  $region7: #{_lambda_.30} parent=0 // pred_check_branch
    %10 = sbr.rel (0) target = $region9
  $region8: #{_lambda_.30} parent=0 // pred_region
    _
  $region9: #{_lambda_.30} parent=0 // pred_fallthru
    _
  %v12 = vld [vmem:[%s0] sm:$0xff]
  %v13 = vld [vmem:[%s0 + $0x8] sm:$0xff]
  %v14 = vld [vmem:[%s0 + $0x10] sm:$0xf]
  %v15 = vld [vmem:[%s1] sm:$0xf]
  %v16 = vld [vmem:[%s1 + $0x4] sm:$0xf]
  %v17 = vld [vmem:[%s1 + $0x8] sm:$0xf]
  %v18 = vld [vmem:[%s1 + $0xc] sm:$0xf]
  %v19 = vld [vmem:[%s1 + $0x10] sm:$0xf]
  %v20 = vld [vmem:[%s1 + $0x14] sm:$0xf]
  %v21 = vld [vmem:[%s1 + $0x18] sm:$0xf]
  %v22 = vld [vmem:[%s1 + $0x1c] sm:$0xf]
  %v23 = vld [vmem:[%s1 + $0x20] sm:$0xf]
  %v24 = vld [vmem:[%s1 + $0x24] sm:$0xf]
  %v25 = vld [vmem:[%s1 + $0x28] sm:$0xf]
  %v26 = vld [vmem:[%s1 + $0x2c] sm:$0xf]
  %v27 = vld [vmem:[%s1 + $0x30] sm:$0xf]
  %v28 = vld [vmem:[%s1 + $0x34] sm:$0xf]
  %v29 = vld [vmem:[%s1 + $0x38] sm:$0xf]
  %v30 = vld [vmem:[%s1 + $0x3c] sm:$0xf]
  %v31 = vld [vmem:[%s1 + $0x40] sm:$0xf]
  %v32 = vld [vmem:[%s1 + $0x44] sm:$0xf]
  %v33 = vld [vmem:[%s1 + $0x48] sm:$0xf]
  %v34 = vld [vmem:[%s1 + $0x4c] sm:$0xf]
  %v35 = vld [vmem:[%s1 + $0x50] sm:$0xf]
  %v36 = vld [vmem:[%s1 + $0x54] sm:$0xf]
  %v37 = vld [vmem:[%s1 + $0x58] sm:$0xf]
  %v38 = vld [vmem:[%s1 + $0x5c] sm:$0xf]
  %v39 = vld [vmem:[%s1 + $0x60] sm:$0xf]
  %v40 = vld [vmem:[%s1 + $0x64] sm:$0xf]
  %v41 = vld [vmem:[%s1 + $0x68] sm:$0xf]
  %v42 = vld [vmem:[%s1 + $0x6c] sm:$0xf]
  %v43 = vld [vmem:[%s1 + $0x70] sm:$0xf]
  %v44 = vld [vmem:[%s1 + $0x74] sm:$0xf]
  %v45 = vld [vmem:[%s1 + $0x78] sm:$0xf]
  %v46 = vld [vmem:[%s1 + $0x7c] sm:$0xf]
  %v47 = vld [vmem:[%s1 + $0x80] sm:$0xf]
  %v48 = vld [vmem:[%s1 + $0x84] sm:$0xf]
  %v49 = vld [vmem:[%s1 + $0x88] sm:$0xf]
  %v50 = vld [vmem:[%s1 + $0x8c] sm:$0xf]
  %v51 = vld [vmem:[%s1 + $0x90] sm:$0xf]
  %v52 = vld [vmem:[%s1 + $0x94] sm:$0xf]
  %v53 = vld [vmem:[%s1 + $0x98] sm:$0xf]
  %v54 = vld [vmem:[%s1 + $0x9c] sm:$0xf]
  %v55 = vld [vmem:[%s1 + $0xa0] sm:$0xf]
  %v56 = vld [vmem:[%s1 + $0xa4] sm:$0xf]
  %v57 = vld [vmem:[%s1 + $0xa8] sm:$0xf]
  %v58 = vld [vmem:[%s1 + $0xac] sm:$0xf]
  %v59 = vld [vmem:[%s1 + $0xb0] sm:$0xf]
  %v60 = vld [vmem:[%s1 + $0xb4] sm:$0xf]
  %v61 = vld [vmem:[%s1 + $0xb8] sm:$0xf]
  %v62 = vld [vmem:[%s1 + $0xbc] sm:$0xf]
  %v63 = vld [vmem:[%s1 + $0xc0] sm:$0xf]
  %v64 = vld [vmem:[%s1 + $0xc4] sm:$0xf]
  %v65 = vld [vmem:[%s1 + $0xc8] sm:$0xf]
  %v66 = vld [vmem:[%s1 + $0xcc] sm:$0xf]
  %v67 = vld [vmem:[%s1 + $0xd0] sm:$0xf]
  %v68 = vld [vmem:[%s1 + $0xd4] sm:$0xf]
  %v69 = vld [vmem:[%s1 + $0xd8] sm:$0xf]
  %v70 = vld [vmem:[%s1 + $0xdc] sm:$0xf]
  %v71 = vld [vmem:[%s1 + $0xe0] sm:$0xf]
  %v72 = vld [vmem:[%s1 + $0xe4] sm:$0xf]
  %v73 = vld [vmem:[%s1 + $0xe8] sm:$0xf]
  %v74 = vld [vmem:[%s1 + $0xec] sm:$0xf]
  %v75 = vld [vmem:[%s1 + $0xf0] sm:$0xf]
  %v76 = vld [vmem:[%s1 + $0xf4] sm:$0xf]
  %v77 = vld [vmem:[%s1 + $0xf8] sm:$0xf]
  %v78 = vld [vmem:[%s1 + $0xfc] sm:$0xf]
  %v79 = vld [vmem:[%s1 + $0x100] sm:$0xf]
  %v80 = vld [vmem:[%s1 + $0x104] sm:$0xf]
  %v81 = vld [vmem:[%s1 + $0x108] sm:$0xf]
  %v82 = vld [vmem:[%s1 + $0x10c] sm:$0xf]
  %v83 = vld [vmem:[%s1 + $0x110] sm:$0xf]
  %v84 = vld [vmem:[%s1 + $0x114] sm:$0xf]
  %v85 = vld [vmem:[%s1 + $0x118] sm:$0xf]
  %v86 = vld [vmem:[%s1 + $0x11c] sm:$0xf]
  %v87 = vld [vmem:[%s1 + $0x120] sm:$0xf]
  %v88 = vld [vmem:[%s1 + $0x124] sm:$0xf]
  %v89 = vld [vmem:[%s1 + $0x128] sm:$0xf]
  %v90 = vld [vmem:[%s1 + $0x12c] sm:$0xf]
  %v91 = vld [vmem:[%s1 + $0x130] sm:$0xf]
  %v92 = vld [vmem:[%s1 + $0x134] sm:$0xf]
  %v93 = vld [vmem:[%s1 + $0x138] sm:$0xf]
  %v94 = vld [vmem:[%s1 + $0x13c] sm:$0xf]
  %v98 = vunpack.c.l.b16 %v12
  %v99 = vunpack.c.h.b16 %v12
  %v100 = vunpack.c.l.b16 %v13
  %v101 = vunpack.c.h.b16 %v13
  %v102 = vunpack.c.l.b16 %v14
  %v103 = vpack.c.b16 %v98, %v98
  %v104 = vpack.c.b16 %v99, %v99
  %v105 = vpack.c.b16 %v100, %v100
  %v106 = vpack.c.b16 %v101, %v101
  %v107 = vpack.c.b16 %v102, %v102
  %v193 = vunpack.c.l.b16 %v15
  %v194 = vunpack.c.l.b16 %v16
  %v195 = vunpack.c.l.b16 %v17
  %v196 = vunpack.c.l.b16 %v18
  %v197 = vunpack.c.l.b16 %v19
  %v198 = vunpack.c.l.b16 %v20
  %v199 = vunpack.c.l.b16 %v21
  %v200 = vunpack.c.l.b16 %v22
  %v201 = vunpack.c.l.b16 %v23
  %v202 = vunpack.c.l.b16 %v24
  %v203 = vunpack.c.l.b16 %v25
  %v204 = vunpack.c.l.b16 %v26
  %v205 = vunpack.c.l.b16 %v27
  %v206 = vunpack.c.l.b16 %v28
  %v207 = vunpack.c.l.b16 %v29
  %v208 = vunpack.c.l.b16 %v30
  %v209 = vunpack.c.l.b16 %v31
  %v210 = vunpack.c.l.b16 %v32
  %v211 = vunpack.c.l.b16 %v33
  %v212 = vunpack.c.l.b16 %v34
  %v213 = vunpack.c.l.b16 %v35
  %v214 = vunpack.c.l.b16 %v36
  %v215 = vunpack.c.l.b16 %v37
  %v216 = vunpack.c.l.b16 %v38
  %v217 = vunpack.c.l.b16 %v39
  %v218 = vunpack.c.l.b16 %v40
  %v219 = vunpack.c.l.b16 %v41
  %v220 = vunpack.c.l.b16 %v42
  %v221 = vunpack.c.l.b16 %v43
  %v222 = vunpack.c.l.b16 %v44
  %v223 = vunpack.c.l.b16 %v45
  %v224 = vunpack.c.l.b16 %v46
  %v225 = vunpack.c.l.b16 %v47
  %v226 = vunpack.c.l.b16 %v48
  %v227 = vunpack.c.l.b16 %v49
  %v228 = vunpack.c.l.b16 %v50
  %v229 = vunpack.c.l.b16 %v51
  %v230 = vunpack.c.l.b16 %v52
  %v231 = vunpack.c.l.b16 %v53
  %v232 = vunpack.c.l.b16 %v54
  %v233 = vunpack.c.l.b16 %v55
  %v234 = vunpack.c.l.b16 %v56
  %v235 = vunpack.c.l.b16 %v57
  %v236 = vunpack.c.l.b16 %v58
  %v237 = vunpack.c.l.b16 %v59
  %v238 = vunpack.c.l.b16 %v60
  %v239 = vunpack.c.l.b16 %v61
  %v240 = vunpack.c.l.b16 %v62
  %v241 = vunpack.c.l.b16 %v63
  %v242 = vunpack.c.l.b16 %v64
  %v243 = vunpack.c.l.b16 %v65
  %v244 = vunpack.c.l.b16 %v66
  %v245 = vunpack.c.l.b16 %v67
  %v246 = vunpack.c.l.b16 %v68
  %v247 = vunpack.c.l.b16 %v69
  %v248 = vunpack.c.l.b16 %v70
  %v249 = vunpack.c.l.b16 %v71
  %v250 = vunpack.c.l.b16 %v72
  %v251 = vunpack.c.l.b16 %v73
  %v252 = vunpack.c.l.b16 %v74
  %v253 = vunpack.c.l.b16 %v75
  %v254 = vunpack.c.l.b16 %v76
  %v255 = vunpack.c.l.b16 %v77
  %v256 = vunpack.c.l.b16 %v78
  %v257 = vunpack.c.l.b16 %v79
  %v258 = vunpack.c.l.b16 %v80
  %v259 = vunpack.c.l.b16 %v81
  %v260 = vunpack.c.l.b16 %v82
  %v261 = vunpack.c.l.b16 %v83
  %v262 = vunpack.c.l.b16 %v84
  %v263 = vunpack.c.l.b16 %v85
  %v264 = vunpack.c.l.b16 %v86
  %v265 = vunpack.c.l.b16 %v87
  %v266 = vunpack.c.l.b16 %v88
  %v267 = vunpack.c.l.b16 %v89
  %v268 = vunpack.c.l.b16 %v90
  %v269 = vunpack.c.l.b16 %v91
  %v270 = vunpack.c.l.b16 %v92
  %v271 = vunpack.c.l.b16 %v93
  %v272 = vunpack.c.l.b16 %v94
  %v273 = vpack.c.b16 %v194, %v193
  %v274 = vpack.c.b16 %v196, %v195
  %v275 = vpack.c.b16 %v198, %v197
  %v276 = vpack.c.b16 %v200, %v199
  %v277 = vpack.c.b16 %v202, %v201
  %v278 = vpack.c.b16 %v204, %v203
  %v279 = vpack.c.b16 %v206, %v205
  %v280 = vpack.c.b16 %v208, %v207
  %v281 = vpack.c.b16 %v210, %v209
  %v282 = vpack.c.b16 %v212, %v211
  %v283 = vpack.c.b16 %v214, %v213
  %v284 = vpack.c.b16 %v216, %v215
  %v285 = vpack.c.b16 %v218, %v217
  %v286 = vpack.c.b16 %v220, %v219
  %v287 = vpack.c.b16 %v222, %v221
  %v288 = vpack.c.b16 %v224, %v223
  %v289 = vpack.c.b16 %v226, %v225
  %v290 = vpack.c.b16 %v228, %v227
  %v291 = vpack.c.b16 %v230, %v229
  %v292 = vpack.c.b16 %v232, %v231
  %v293 = vpack.c.b16 %v234, %v233
  %v294 = vpack.c.b16 %v236, %v235
  %v295 = vpack.c.b16 %v238, %v237
  %v296 = vpack.c.b16 %v240, %v239
  %v297 = vpack.c.b16 %v242, %v241
  %v298 = vpack.c.b16 %v244, %v243
  %v299 = vpack.c.b16 %v246, %v245
  %v300 = vpack.c.b16 %v248, %v247
  %v301 = vpack.c.b16 %v250, %v249
  %v302 = vpack.c.b16 %v252, %v251
  %v303 = vpack.c.b16 %v254, %v253
  %v304 = vpack.c.b16 %v256, %v255
  %v305 = vpack.c.b16 %v258, %v257
  %v306 = vpack.c.b16 %v260, %v259
  %v307 = vpack.c.b16 %v262, %v261
  %v308 = vpack.c.b16 %v264, %v263
  %v309 = vpack.c.b16 %v266, %v265
  %v310 = vpack.c.b16 %v268, %v267
  %v311 = vpack.c.b16 %v270, %v269
  %v312 = vpack.c.b16 %v272, %v271
  %353 = vmatprep.subr.bf16.mxu0 0
  %354 = vmatpush1.bf16.msra.mxu0 %v273
  %355 = vmatprep.subr.bf16.mxu0 0
  %356 = vmatpush1.bf16.msra.mxu0 %v274
  %357 = vmatprep.subr.bf16.mxu0 0
  %358 = vmatpush1.bf16.msra.mxu0 %v275
  %359 = vmatprep.subr.bf16.mxu0 0
  %360 = vmatpush1.bf16.msra.mxu0 %v276
  %361 = vmatprep.subr.bf16.mxu0 0
  %362 = vmatpush1.bf16.msra.mxu0 %v277
  %363 = vmatprep.subr.bf16.mxu0 0
  %364 = vmatpush1.bf16.msra.mxu0 %v278
  %365 = vmatprep.subr.bf16.mxu0 0
  %366 = vmatpush1.bf16.msra.mxu0 %v279
  %367 = vmatprep.subr.bf16.mxu0 0
  %368 = vmatpush1.bf16.msra.mxu0 %v280
  %369 = vmatprep.subr.bf16.mxu0 0
  %370 = vmatpush1.bf16.msra.mxu0 %v281
  %371 = vmatprep.subr.bf16.mxu0 0
  %372 = vmatpush1.bf16.msra.mxu0 %v282
  %373 = vmatprep.subr.bf16.mxu0 0
  %374 = vmatpush1.bf16.msra.mxu0 %v283
  %375 = vmatprep.subr.bf16.mxu0 0
  %376 = vmatpush1.bf16.msra.mxu0 %v284
  %377 = vmatprep.subr.bf16.mxu0 0
  %378 = vmatpush1.bf16.msra.mxu0 %v285
  %379 = vmatprep.subr.bf16.mxu0 0
  %380 = vmatpush1.bf16.msra.mxu0 %v286
  %381 = vmatprep.subr.bf16.mxu0 0
  %382 = vmatpush1.bf16.msra.mxu0 %v287
  %383 = vmatprep.subr.bf16.mxu0 0
  %384 = vmatpush1.bf16.msra.mxu0 %v288
  %385 = vmatprep.mubr.bf16.mxu0 %v104
  %386 = vmatmul.mubr.bf16.gmra.mrb[0].mxu0 %v103
  %v387 = vpop.f32.mrb[0].mxu0
  %v388 = vadd.f32 0.0, %v387
  %v389 = vpop.f32.mrb[0].mxu0
  %v390 = vpop.f32.mrb[0].mxu0
  %v391 = vpop.f32.mrb[0].mxu0
  %392 = vdwg.mxu0
  %393 = vmatprep.subr.bf16.mxu0 0
  %394 = vmatpush1.bf16.msra.mxu0 %v289
  %395 = vmatprep.subr.bf16.mxu0 0
  %396 = vmatpush1.bf16.msra.mxu0 %v290
  %397 = vmatprep.subr.bf16.mxu0 0
  %398 = vmatpush1.bf16.msra.mxu0 %v291
  %399 = vmatprep.subr.bf16.mxu0 0
  %400 = vmatpush1.bf16.msra.mxu0 %v292
  %401 = vmatprep.subr.bf16.mxu0 0
  %402 = vmatpush1.bf16.msra.mxu0 %v293
  %403 = vmatprep.subr.bf16.mxu0 0
  %404 = vmatpush1.bf16.msra.mxu0 %v294
  %405 = vmatprep.subr.bf16.mxu0 0
  %406 = vmatpush1.bf16.msra.mxu0 %v295
  %407 = vmatprep.subr.bf16.mxu0 0
  %408 = vmatpush1.bf16.msra.mxu0 %v296
  %409 = vmatprep.subr.bf16.mxu0 0
  %410 = vmatpush1.bf16.msra.mxu0 %v297
  %411 = vmatprep.subr.bf16.mxu0 0
  %412 = vmatpush1.bf16.msra.mxu0 %v298
  %413 = vmatprep.subr.bf16.mxu0 0
  %414 = vmatpush1.bf16.msra.mxu0 %v299
  %415 = vmatprep.subr.bf16.mxu0 0
  %416 = vmatpush1.bf16.msra.mxu0 %v300
  %417 = vmatprep.subr.bf16.mxu0 0
  %418 = vmatpush1.bf16.msra.mxu0 %v301
  %419 = vmatprep.subr.bf16.mxu0 0
  %420 = vmatpush1.bf16.msra.mxu0 %v302
  %421 = vmatprep.subr.bf16.mxu0 0
  %422 = vmatpush1.bf16.msra.mxu0 %v303
  %423 = vmatprep.subr.bf16.mxu0 0
  %424 = vmatpush1.bf16.msra.mxu0 %v304
  %425 = vmatprep.mubr.bf16.mxu0 %v106
  %426 = vmatmul.mubr.bf16.gmra.mrb[0].mxu0 %v105
  %v427 = vpop.f32.mrb[0].mxu0
  %v428 = vadd.f32 %v388, %v427
  %v429 = vpop.f32.mrb[0].mxu0
  %v430 = vpop.f32.mrb[0].mxu0
  %v431 = vpop.f32.mrb[0].mxu0
  %432 = vdwg.mxu0
  %433 = vmatprep.subr.bf16.mxu0 0
  %434 = vmatpush1.bf16.msra.mxu0 %v305
  %435 = vmatprep.subr.bf16.mxu0 0
  %436 = vmatpush1.bf16.msra.mxu0 %v306
  %437 = vmatprep.subr.bf16.mxu0 0
  %438 = vmatpush1.bf16.msra.mxu0 %v307
  %439 = vmatprep.subr.bf16.mxu0 0
  %440 = vmatpush1.bf16.msra.mxu0 %v308
  %441 = vmatprep.subr.bf16.mxu0 0
  %442 = vmatpush1.bf16.msra.mxu0 %v309
  %443 = vmatprep.subr.bf16.mxu0 0
  %444 = vmatpush1.bf16.msra.mxu0 %v310
  %445 = vmatprep.subr.bf16.mxu0 0
  %446 = vmatpush1.bf16.msra.mxu0 %v311
  %447 = vmatprep.subr.bf16.mxu0 0
  %448 = vmatpush1.bf16.msra.mxu0 %v312
  %449 = vmatprep.subr.bf16.mxu0 0
  %450 = vmatpush1.bf16.msra.mxu0 0
  %451 = vmatprep.subr.bf16.mxu0 0
  %452 = vmatpush1.bf16.msra.mxu0 0
  %453 = vmatprep.subr.bf16.mxu0 0
  %454 = vmatpush1.bf16.msra.mxu0 0
  %455 = vmatprep.subr.bf16.mxu0 0
  %456 = vmatpush1.bf16.msra.mxu0 0
  %457 = vmatprep.subr.bf16.mxu0 0
  %458 = vmatpush1.bf16.msra.mxu0 0
  %459 = vmatprep.subr.bf16.mxu0 0
  %460 = vmatpush1.bf16.msra.mxu0 0
  %461 = vmatprep.subr.bf16.mxu0 0
  %462 = vmatpush1.bf16.msra.mxu0 0
  %463 = vmatprep.subr.bf16.mxu0 0
  %464 = vmatpush1.bf16.msra.mxu0 0
  %465 = vmatprep.mubr.bf16.mxu0 0
  %466 = vmatmul.mubr.bf16.gmra.mrb[0].mxu0 %v107
  %v467 = vpop.f32.mrb[0].mxu0
  %v468 = vadd.f32 %v428, %v467
  %v469 = vpop.f32.mrb[0].mxu0
  %v470 = vpop.f32.mrb[0].mxu0
  %v471 = vpop.f32.mrb[0].mxu0
  %472 = vdwg.mxu0
  %v473 = vrot.slane %v468, 4
  %v474 = vadd.f32 %v468, %v473
  %v475 = vrot.slane %v474, 2
  %v476 = vadd.f32 %v474, %v475
  %v477 = vrot.slane %v476, 1
  %v478 = vadd.f32 %v476, %v477
  %v479 = vmul.f32 %v468, %v468
  %v480 = vrot.slane %v479, 4
  %v481 = vadd.f32 %v479, %v480
  %v482 = vrot.slane %v481, 2
  %v483 = vadd.f32 %v481, %v482
  %v484 = vrot.slane %v483, 1
  %v485 = vadd.f32 %v483, %v484
  %v486 = vmul.f32 %v478, 0.125
  %v487 = vmul.f32 %v485, 0.125
  %v488 = vmul.f32 %v486, %v486
  %v489 = vsub.f32 %v487, %v488
  %v490 = vmax.f32 %v489, 0.0
  %v491 = vsub.f32 %v468, %v486
  %v492 = vadd.f32 %v490, 1e-05
  %v493 = vrsqrt.pop %v492
  %v494 = vmul.f32 %v491, %v493
  %vm495 = vcmp.gt.f32.partialorder %v494, 0.0
  %v496 = vmul.f32 %v494, 0.01
  %v497 = vsel %vm495, %v494, %v496
  %v498 = vpack.c.bf16 %v497, %v497
  %499 = vst [vmem:[%s2] sm:$0xf] %v498
  // Predicated region
  $region10: #{_lambda_.30} parent=0 // pred_check
    _
  $region11: #{_lambda_.30} parent=0 // pred_check_branch
    %501 = sbr.rel (0) target = $region13
  $region12: #{_lambda_.30} parent=0 // pred_region
    _
  $region13: #{_lambda_.30} parent=0 // pred_fallthru
    _
  // Predicated region
  $region14: #{_lambda_.30} parent=0 // pred_check
    _
  $region15: #{_lambda_.30} parent=0 // pred_check_branch
    %503 = sbr.rel (0) target = $region17
  $region16: #{_lambda_.30} parent=0 // pred_region
    _
  $region17: #{_lambda_.30} parent=0 // pred_fallthru
    _

// kernel: _lambda_.31
$region0: #{_lambda_.31}
  #allocation0 [shape = 'u32[]', space=smem, size = 0x4, offset = 0x4, fixed_abs, tag = 'smem constant byte address 0x4 - core index']
  #allocation1 [shape = 'u32[144,128]{1,0:T(1,128)}', space=vmem, size = 0x12000, scoped, tag = 'internal scratch']
  %s0 = inlined_call_operand.vmem [shape: bf16[8,640], index: 0, kind: input, shape index: {}]
  %s1 = inlined_call_operand.vmem [shape: bf16[640,128], index: 1, kind: input, shape index: {}]
  %s2 = inlined_call_operand.vmem [shape: bf16[8,128], index: 2, kind: output, shape index: {}]
  %s3 = sld [smem:[#allocation0]]
  $region18: #{_lambda_.31} parent=0
    _
  %s5 = ssub.s32 1, %s3
  %s6 = scalar_select 0, %s5, %s3
  // Predicated region
  $region2: #{_lambda_.31} parent=0 // pred_check
    _
  $region3: #{_lambda_.31} parent=0 // pred_check_branch
    %8 = sbr.rel (0) target = $region5
  $region4: #{_lambda_.31} parent=0 // pred_region
    _
  $region5: #{_lambda_.31} parent=0 // pred_fallthru
    _
  // Predicated region
  $region6: #{_lambda_.31} parent=0 // pred_check
    _
  $region7: #{_lambda_.31} parent=0 // pred_check_branch
    %10 = sbr.rel (0) target = $region9
  $region8: #{_lambda_.31} parent=0 // pred_region
    _
  $region9: #{_lambda_.31} parent=0 // pred_fallthru
    _
  %v12 = vld [vmem:[%s0] sm:$0xff]
  %v13 = vld [vmem:[%s0 + $0x8] sm:$0xff]
  %v14 = vld [vmem:[%s0 + $0x10] sm:$0xf]
  %v15 = vld [vmem:[%s1] sm:$0xf]
  %v16 = vld [vmem:[%s1 + $0x4] sm:$0xf]
  %v17 = vld [vmem:[%s1 + $0x8] sm:$0xf]
  %v18 = vld [vmem:[%s1 + $0xc] sm:$0xf]
  %v19 = vld [vmem:[%s1 + $0x10] sm:$0xf]
  %v20 = vld [vmem:[%s1 + $0x14] sm:$0xf]
  %v21 = vld [vmem:[%s1 + $0x18] sm:$0xf]
  %v22 = vld [vmem:[%s1 + $0x1c] sm:$0xf]
  %v23 = vld [vmem:[%s1 + $0x20] sm:$0xf]
  %v24 = vld [vmem:[%s1 + $0x24] sm:$0xf]
  %v25 = vld [vmem:[%s1 + $0x28] sm:$0xf]
  %v26 = vld [vmem:[%s1 + $0x2c] sm:$0xf]
  %v27 = vld [vmem:[%s1 + $0x30] sm:$0xf]
  %v28 = vld [vmem:[%s1 + $0x34] sm:$0xf]
  %v29 = vld [vmem:[%s1 + $0x38] sm:$0xf]
  %v30 = vld [vmem:[%s1 + $0x3c] sm:$0xf]
  %v31 = vld [vmem:[%s1 + $0x40] sm:$0xf]
  %v32 = vld [vmem:[%s1 + $0x44] sm:$0xf]
  %v33 = vld [vmem:[%s1 + $0x48] sm:$0xf]
  %v34 = vld [vmem:[%s1 + $0x4c] sm:$0xf]
  %v35 = vld [vmem:[%s1 + $0x50] sm:$0xf]
  %v36 = vld [vmem:[%s1 + $0x54] sm:$0xf]
  %v37 = vld [vmem:[%s1 + $0x58] sm:$0xf]
  %v38 = vld [vmem:[%s1 + $0x5c] sm:$0xf]
  %v39 = vld [vmem:[%s1 + $0x60] sm:$0xf]
  %v40 = vld [vmem:[%s1 + $0x64] sm:$0xf]
  %v41 = vld [vmem:[%s1 + $0x68] sm:$0xf]
  %v42 = vld [vmem:[%s1 + $0x6c] sm:$0xf]
  %v43 = vld [vmem:[%s1 + $0x70] sm:$0xf]
  %v44 = vld [vmem:[%s1 + $0x74] sm:$0xf]
  %v45 = vld [vmem:[%s1 + $0x78] sm:$0xf]
  %v46 = vld [vmem:[%s1 + $0x7c] sm:$0xf]
  %v47 = vld [vmem:[%s1 + $0x80] sm:$0xf]
  %v48 = vld [vmem:[%s1 + $0x84] sm:$0xf]
  %v49 = vld [vmem:[%s1 + $0x88] sm:$0xf]
  %v50 = vld [vmem:[%s1 + $0x8c] sm:$0xf]
  %v51 = vld [vmem:[%s1 + $0x90] sm:$0xf]
  %v52 = vld [vmem:[%s1 + $0x94] sm:$0xf]
  %v53 = vld [vmem:[%s1 + $0x98] sm:$0xf]
  %v54 = vld [vmem:[%s1 + $0x9c] sm:$0xf]
  %v55 = vld [vmem:[%s1 + $0xa0] sm:$0xf]
  %v56 = vld [vmem:[%s1 + $0xa4] sm:$0xf]
  %v57 = vld [vmem:[%s1 + $0xa8] sm:$0xf]
  %v58 = vld [vmem:[%s1 + $0xac] sm:$0xf]
  %v59 = vld [vmem:[%s1 + $0xb0] sm:$0xf]
  %v60 = vld [vmem:[%s1 + $0xb4] sm:$0xf]
  %v61 = vld [vmem:[%s1 + $0xb8] sm:$0xf]
  %v62 = vld [vmem:[%s1 + $0xbc] sm:$0xf]
  %v63 = vld [vmem:[%s1 + $0xc0] sm:$0xf]
  %v64 = vld [vmem:[%s1 + $0xc4] sm:$0xf]
  %v65 = vld [vmem:[%s1 + $0xc8] sm:$0xf]
  %v66 = vld [vmem:[%s1 + $0xcc] sm:$0xf]
  %v67 = vld [vmem:[%s1 + $0xd0] sm:$0xf]
  %v68 = vld [vmem:[%s1 + $0xd4] sm:$0xf]
  %v69 = vld [vmem:[%s1 + $0xd8] sm:$0xf]
  %v70 = vld [vmem:[%s1 + $0xdc] sm:$0xf]
  %v71 = vld [vmem:[%s1 + $0xe0] sm:$0xf]
  %v72 = vld [vmem:[%s1 + $0xe4] sm:$0xf]
  %v73 = vld [vmem:[%s1 + $0xe8] sm:$0xf]
  %v74 = vld [vmem:[%s1 + $0xec] sm:$0xf]
  %v75 = vld [vmem:[%s1 + $0xf0] sm:$0xf]
  %v76 = vld [vmem:[%s1 + $0xf4] sm:$0xf]
  %v77 = vld [vmem:[%s1 + $0xf8] sm:$0xf]
  %v78 = vld [vmem:[%s1 + $0xfc] sm:$0xf]
  %v79 = vld [vmem:[%s1 + $0x100] sm:$0xf]
  %v80 = vld [vmem:[%s1 + $0x104] sm:$0xf]
  %v81 = vld [vmem:[%s1 + $0x108] sm:$0xf]
  %v82 = vld [vmem:[%s1 + $0x10c] sm:$0xf]
  %v83 = vld [vmem:[%s1 + $0x110] sm:$0xf]
  %v84 = vld [vmem:[%s1 + $0x114] sm:$0xf]
  %v85 = vld [vmem:[%s1 + $0x118] sm:$0xf]
  %v86 = vld [vmem:[%s1 + $0x11c] sm:$0xf]
  %v87 = vld [vmem:[%s1 + $0x120] sm:$0xf]
  %v88 = vld [vmem:[%s1 + $0x124] sm:$0xf]
  %v89 = vld [vmem:[%s1 + $0x128] sm:$0xf]
  %v90 = vld [vmem:[%s1 + $0x12c] sm:$0xf]
  %v91 = vld [vmem:[%s1 + $0x130] sm:$0xf]
  %v92 = vld [vmem:[%s1 + $0x134] sm:$0xf]
  %v93 = vld [vmem:[%s1 + $0x138] sm:$0xf]
  %v94 = vld [vmem:[%s1 + $0x13c] sm:$0xf]
  %v98 = vunpack.c.l.b16 %v12
  %v99 = vunpack.c.h.b16 %v12
  %v100 = vunpack.c.l.b16 %v13
  %v101 = vunpack.c.h.b16 %v13
  %v102 = vunpack.c.l.b16 %v14
  %v103 = vpack.c.b16 %v98, %v98
  %v104 = vpack.c.b16 %v99, %v99
  %v105 = vpack.c.b16 %v100, %v100
  %v106 = vpack.c.b16 %v101, %v101
  %v107 = vpack.c.b16 %v102, %v102
  %v193 = vunpack.c.l.b16 %v15
  %v194 = vunpack.c.l.b16 %v16
  %v195 = vunpack.c.l.b16 %v17
  %v196 = vunpack.c.l.b16 %v18
  %v197 = vunpack.c.l.b16 %v19
  %v198 = vunpack.c.l.b16 %v20
  %v199 = vunpack.c.l.b16 %v21
  %v200 = vunpack.c.l.b16 %v22
  %v201 = vunpack.c.l.b16 %v23
  %v202 = vunpack.c.l.b16 %v24
  %v203 = vunpack.c.l.b16 %v25
  %v204 = vunpack.c.l.b16 %v26
  %v205 = vunpack.c.l.b16 %v27
  %v206 = vunpack.c.l.b16 %v28
  %v207 = vunpack.c.l.b16 %v29
  %v208 = vunpack.c.l.b16 %v30
  %v209 = vunpack.c.l.b16 %v31
  %v210 = vunpack.c.l.b16 %v32
  %v211 = vunpack.c.l.b16 %v33
  %v212 = vunpack.c.l.b16 %v34
  %v213 = vunpack.c.l.b16 %v35
  %v214 = vunpack.c.l.b16 %v36
  %v215 = vunpack.c.l.b16 %v37
  %v216 = vunpack.c.l.b16 %v38
  %v217 = vunpack.c.l.b16 %v39
  %v218 = vunpack.c.l.b16 %v40
  %v219 = vunpack.c.l.b16 %v41
  %v220 = vunpack.c.l.b16 %v42
  %v221 = vunpack.c.l.b16 %v43
  %v222 = vunpack.c.l.b16 %v44
  %v223 = vunpack.c.l.b16 %v45
  %v224 = vunpack.c.l.b16 %v46
  %v225 = vunpack.c.l.b16 %v47
  %v226 = vunpack.c.l.b16 %v48
  %v227 = vunpack.c.l.b16 %v49
  %v228 = vunpack.c.l.b16 %v50
  %v229 = vunpack.c.l.b16 %v51
  %v230 = vunpack.c.l.b16 %v52
  %v231 = vunpack.c.l.b16 %v53
  %v232 = vunpack.c.l.b16 %v54
  %v233 = vunpack.c.l.b16 %v55
  %v234 = vunpack.c.l.b16 %v56
  %v235 = vunpack.c.l.b16 %v57
  %v236 = vunpack.c.l.b16 %v58
  %v237 = vunpack.c.l.b16 %v59
  %v238 = vunpack.c.l.b16 %v60
  %v239 = vunpack.c.l.b16 %v61
  %v240 = vunpack.c.l.b16 %v62
  %v241 = vunpack.c.l.b16 %v63
  %v242 = vunpack.c.l.b16 %v64
  %v243 = vunpack.c.l.b16 %v65
  %v244 = vunpack.c.l.b16 %v66
  %v245 = vunpack.c.l.b16 %v67
  %v246 = vunpack.c.l.b16 %v68
  %v247 = vunpack.c.l.b16 %v69
  %v248 = vunpack.c.l.b16 %v70
  %v249 = vunpack.c.l.b16 %v71
  %v250 = vunpack.c.l.b16 %v72
  %v251 = vunpack.c.l.b16 %v73
  %v252 = vunpack.c.l.b16 %v74
  %v253 = vunpack.c.l.b16 %v75
  %v254 = vunpack.c.l.b16 %v76
  %v255 = vunpack.c.l.b16 %v77
  %v256 = vunpack.c.l.b16 %v78
  %v257 = vunpack.c.l.b16 %v79
  %v258 = vunpack.c.l.b16 %v80
  %v259 = vunpack.c.l.b16 %v81
  %v260 = vunpack.c.l.b16 %v82
  %v261 = vunpack.c.l.b16 %v83
  %v262 = vunpack.c.l.b16 %v84
  %v263 = vunpack.c.l.b16 %v85
  %v264 = vunpack.c.l.b16 %v86
  %v265 = vunpack.c.l.b16 %v87
  %v266 = vunpack.c.l.b16 %v88
  %v267 = vunpack.c.l.b16 %v89
  %v268 = vunpack.c.l.b16 %v90
  %v269 = vunpack.c.l.b16 %v91
  %v270 = vunpack.c.l.b16 %v92
  %v271 = vunpack.c.l.b16 %v93
  %v272 = vunpack.c.l.b16 %v94
  %v273 = vpack.c.b16 %v194, %v193
  %v274 = vpack.c.b16 %v196, %v195
  %v275 = vpack.c.b16 %v198, %v197
  %v276 = vpack.c.b16 %v200, %v199
  %v277 = vpack.c.b16 %v202, %v201
  %v278 = vpack.c.b16 %v204, %v203
  %v279 = vpack.c.b16 %v206, %v205
  %v280 = vpack.c.b16 %v208, %v207
  %v281 = vpack.c.b16 %v210, %v209
  %v282 = vpack.c.b16 %v212, %v211
  %v283 = vpack.c.b16 %v214, %v213
  %v284 = vpack.c.b16 %v216, %v215
  %v285 = vpack.c.b16 %v218, %v217
  %v286 = vpack.c.b16 %v220, %v219
  %v287 = vpack.c.b16 %v222, %v221
  %v288 = vpack.c.b16 %v224, %v223
  %v289 = vpack.c.b16 %v226, %v225
  %v290 = vpack.c.b16 %v228, %v227
  %v291 = vpack.c.b16 %v230, %v229
  %v292 = vpack.c.b16 %v232, %v231
  %v293 = vpack.c.b16 %v234, %v233
  %v294 = vpack.c.b16 %v236, %v235
  %v295 = vpack.c.b16 %v238, %v237
  %v296 = vpack.c.b16 %v240, %v239
  %v297 = vpack.c.b16 %v242, %v241
  %v298 = vpack.c.b16 %v244, %v243
  %v299 = vpack.c.b16 %v246, %v245
  %v300 = vpack.c.b16 %v248, %v247
  %v301 = vpack.c.b16 %v250, %v249
  %v302 = vpack.c.b16 %v252, %v251
  %v303 = vpack.c.b16 %v254, %v253
  %v304 = vpack.c.b16 %v256, %v255
  %v305 = vpack.c.b16 %v258, %v257
  %v306 = vpack.c.b16 %v260, %v259
  %v307 = vpack.c.b16 %v262, %v261
  %v308 = vpack.c.b16 %v264, %v263
  %v309 = vpack.c.b16 %v266, %v265
  %v310 = vpack.c.b16 %v268, %v267
  %v311 = vpack.c.b16 %v270, %v269
  %v312 = vpack.c.b16 %v272, %v271
  %353 = vmatprep.subr.bf16.mxu0 0
  %354 = vmatpush1.bf16.msra.mxu0 %v273
  %355 = vmatprep.subr.bf16.mxu0 0
  %356 = vmatpush1.bf16.msra.mxu0 %v274
  %357 = vmatprep.subr.bf16.mxu0 0
  %358 = vmatpush1.bf16.msra.mxu0 %v275
  %359 = vmatprep.subr.bf16.mxu0 0
  %360 = vmatpush1.bf16.msra.mxu0 %v276
  %361 = vmatprep.subr.bf16.mxu0 0
  %362 = vmatpush1.bf16.msra.mxu0 %v277
  %363 = vmatprep.subr.bf16.mxu0 0
  %364 = vmatpush1.bf16.msra.mxu0 %v278
  %365 = vmatprep.subr.bf16.mxu0 0
  %366 = vmatpush1.bf16.msra.mxu0 %v279
  %367 = vmatprep.subr.bf16.mxu0 0
  %368 = vmatpush1.bf16.msra.mxu0 %v280
  %369 = vmatprep.subr.bf16.mxu0 0
  %370 = vmatpush1.bf16.msra.mxu0 %v281
  %371 = vmatprep.subr.bf16.mxu0 0
  %372 = vmatpush1.bf16.msra.mxu0 %v282
  %373 = vmatprep.subr.bf16.mxu0 0
  %374 = vmatpush1.bf16.msra.mxu0 %v283
  %375 = vmatprep.subr.bf16.mxu0 0
  %376 = vmatpush1.bf16.msra.mxu0 %v284
  %377 = vmatprep.subr.bf16.mxu0 0
  %378 = vmatpush1.bf16.msra.mxu0 %v285
  %379 = vmatprep.subr.bf16.mxu0 0
  %380 = vmatpush1.bf16.msra.mxu0 %v286
  %381 = vmatprep.subr.bf16.mxu0 0
  %382 = vmatpush1.bf16.msra.mxu0 %v287
  %383 = vmatprep.subr.bf16.mxu0 0
  %384 = vmatpush1.bf16.msra.mxu0 %v288
  %385 = vmatprep.mubr.bf16.mxu0 %v104
  %386 = vmatmul.mubr.bf16.gmra.mrb[0].mxu0 %v103
  %v387 = vpop.f32.mrb[0].mxu0
  %v388 = vadd.f32 0.0, %v387
  %v389 = vpop.f32.mrb[0].mxu0
  %v390 = vpop.f32.mrb[0].mxu0
  %v391 = vpop.f32.mrb[0].mxu0
  %392 = vdwg.mxu0
  %393 = vmatprep.subr.bf16.mxu0 0
  %394 = vmatpush1.bf16.msra.mxu0 %v289
  %395 = vmatprep.subr.bf16.mxu0 0
  %396 = vmatpush1.bf16.msra.mxu0 %v290
  %397 = vmatprep.subr.bf16.mxu0 0
  %398 = vmatpush1.bf16.msra.mxu0 %v291
  %399 = vmatprep.subr.bf16.mxu0 0
  %400 = vmatpush1.bf16.msra.mxu0 %v292
  %401 = vmatprep.subr.bf16.mxu0 0
  %402 = vmatpush1.bf16.msra.mxu0 %v293
  %403 = vmatprep.subr.bf16.mxu0 0
  %404 = vmatpush1.bf16.msra.mxu0 %v294
  %405 = vmatprep.subr.bf16.mxu0 0
  %406 = vmatpush1.bf16.msra.mxu0 %v295
  %407 = vmatprep.subr.bf16.mxu0 0
  %408 = vmatpush1.bf16.msra.mxu0 %v296
  %409 = vmatprep.subr.bf16.mxu0 0
  %410 = vmatpush1.bf16.msra.mxu0 %v297
  %411 = vmatprep.subr.bf16.mxu0 0
  %412 = vmatpush1.bf16.msra.mxu0 %v298
  %413 = vmatprep.subr.bf16.mxu0 0
  %414 = vmatpush1.bf16.msra.mxu0 %v299
  %415 = vmatprep.subr.bf16.mxu0 0
  %416 = vmatpush1.bf16.msra.mxu0 %v300
  %417 = vmatprep.subr.bf16.mxu0 0
  %418 = vmatpush1.bf16.msra.mxu0 %v301
  %419 = vmatprep.subr.bf16.mxu0 0
  %420 = vmatpush1.bf16.msra.mxu0 %v302
  %421 = vmatprep.subr.bf16.mxu0 0
  %422 = vmatpush1.bf16.msra.mxu0 %v303
  %423 = vmatprep.subr.bf16.mxu0 0
  %424 = vmatpush1.bf16.msra.mxu0 %v304
  %425 = vmatprep.mubr.bf16.mxu0 %v106
  %426 = vmatmul.mubr.bf16.gmra.mrb[0].mxu0 %v105
  %v427 = vpop.f32.mrb[0].mxu0
  %v428 = vadd.f32 %v388, %v427
  %v429 = vpop.f32.mrb[0].mxu0
  %v430 = vpop.f32.mrb[0].mxu0
  %v431 = vpop.f32.mrb[0].mxu0
  %432 = vdwg.mxu0
  %433 = vmatprep.subr.bf16.mxu0 0
  %434 = vmatpush1.bf16.msra.mxu0 %v305
  %435 = vmatprep.subr.bf16.mxu0 0
  %436 = vmatpush1.bf16.msra.mxu0 %v306
  %437 = vmatprep.subr.bf16.mxu0 0
  %438 = vmatpush1.bf16.msra.mxu0 %v307
  %439 = vmatprep.subr.bf16.mxu0 0
  %440 = vmatpush1.bf16.msra.mxu0 %v308
  %441 = vmatprep.subr.bf16.mxu0 0
  %442 = vmatpush1.bf16.msra.mxu0 %v309
  %443 = vmatprep.subr.bf16.mxu0 0
  %444 = vmatpush1.bf16.msra.mxu0 %v310
  %445 = vmatprep.subr.bf16.mxu0 0
  %446 = vmatpush1.bf16.msra.mxu0 %v311
  %447 = vmatprep.subr.bf16.mxu0 0
  %448 = vmatpush1.bf16.msra.mxu0 %v312
  %449 = vmatprep.subr.bf16.mxu0 0
  %450 = vmatpush1.bf16.msra.mxu0 0
  %451 = vmatprep.subr.bf16.mxu0 0
  %452 = vmatpush1.bf16.msra.mxu0 0
  %453 = vmatprep.subr.bf16.mxu0 0
  %454 = vmatpush1.bf16.msra.mxu0 0
  %455 = vmatprep.subr.bf16.mxu0 0
  %456 = vmatpush1.bf16.msra.mxu0 0
  %457 = vmatprep.subr.bf16.mxu0 0
  %458 = vmatpush1.bf16.msra.mxu0 0
  %459 = vmatprep.subr.bf16.mxu0 0
  %460 = vmatpush1.bf16.msra.mxu0 0
  %461 = vmatprep.subr.bf16.mxu0 0
  %462 = vmatpush1.bf16.msra.mxu0 0
  %463 = vmatprep.subr.bf16.mxu0 0
  %464 = vmatpush1.bf16.msra.mxu0 0
  %465 = vmatprep.mubr.bf16.mxu0 0
  %466 = vmatmul.mubr.bf16.gmra.mrb[0].mxu0 %v107
  %v467 = vpop.f32.mrb[0].mxu0
  %v468 = vadd.f32 %v428, %v467
  %v469 = vpop.f32.mrb[0].mxu0
  %v470 = vpop.f32.mrb[0].mxu0
  %v471 = vpop.f32.mrb[0].mxu0
  %472 = vdwg.mxu0
  %v473 = vrot.slane %v468, 4
  %v474 = vadd.f32 %v468, %v473
  %v475 = vrot.slane %v474, 2
  %v476 = vadd.f32 %v474, %v475
  %v477 = vrot.slane %v476, 1
  %v478 = vadd.f32 %v476, %v477
  %v479 = vmul.f32 %v468, %v468
  %v480 = vrot.slane %v479, 4
  %v481 = vadd.f32 %v479, %v480
  %v482 = vrot.slane %v481, 2
  %v483 = vadd.f32 %v481, %v482
  %v484 = vrot.slane %v483, 1
  %v485 = vadd.f32 %v483, %v484
  %v486 = vmul.f32 %v478, 0.5
  %v487 = vmul.f32 %v485, 0.5
  %v488 = vmul.f32 %v486, %v486
  %v489 = vsub.f32 %v487, %v488
  %v490 = vmax.f32 %v489, 0.0
  %v491 = vsub.f32 %v468, %v486
  %v492 = vadd.f32 %v490, 1e-05
  %v493 = vrsqrt.pop %v492
  %v494 = vmul.f32 %v491, %v493
  %vm495 = vcmp.gt.f32.partialorder %v494, 0.0
  %v496 = vmul.f32 %v494, 0.01
  %v497 = vsel %vm495, %v494, %v496
  %v498 = vpack.c.bf16 %v497, %v497
  %499 = vst [vmem:[%s2] sm:$0xf] %v498
  // Predicated region
  $region10: #{_lambda_.31} parent=0 // pred_check
    _
  $region11: #{_lambda_.31} parent=0 // pred_check_branch
    %501 = sbr.rel (0) target = $region13
  $region12: #{_lambda_.31} parent=0 // pred_region
    _
  $region13: #{_lambda_.31} parent=0 // pred_fallthru
    _
  // Predicated region
  $region14: #{_lambda_.31} parent=0 // pred_check
    _
  $region15: #{_lambda_.31} parent=0 // pred_check_branch
    %503 = sbr.rel (0) target = $region17
  $region16: #{_lambda_.31} parent=0 // pred_region
    _
  $region17: #{_lambda_.31} parent=0 // pred_fallthru
    _

// kernel: _lambda_.32
$region0: #{_lambda_.32}
  #allocation0 [shape = 'u32[]', space=smem, size = 0x4, offset = 0x4, fixed_abs, tag = 'smem constant byte address 0x4 - core index']
  #allocation1 [shape = 'u32[144,128]{1,0:T(1,128)}', space=vmem, size = 0x12000, scoped, tag = 'internal scratch']
  %s0 = inlined_call_operand.vmem [shape: bf16[8,1152], index: 0, kind: input, shape index: {}]
  %s1 = inlined_call_operand.vmem [shape: bf16[1152,128], index: 1, kind: input, shape index: {}]
  %s2 = inlined_call_operand.vmem [shape: bf16[8,128], index: 2, kind: output, shape index: {}]
  %s3 = sld [smem:[#allocation0]]
  $region18: #{_lambda_.32} parent=0
    _
  %s5 = ssub.s32 1, %s3
  %s6 = scalar_select 0, %s5, %s3
  // Predicated region
  $region2: #{_lambda_.32} parent=0 // pred_check
    _
  $region3: #{_lambda_.32} parent=0 // pred_check_branch
    %8 = sbr.rel (0) target = $region5
  $region4: #{_lambda_.32} parent=0 // pred_region
    _
  $region5: #{_lambda_.32} parent=0 // pred_fallthru
    _
  // Predicated region
  $region6: #{_lambda_.32} parent=0 // pred_check
    _
  $region7: #{_lambda_.32} parent=0 // pred_check_branch
    %10 = sbr.rel (0) target = $region9
  $region8: #{_lambda_.32} parent=0 // pred_region
    _
  $region9: #{_lambda_.32} parent=0 // pred_fallthru
    _
  %v12 = vld [vmem:[%s0] sm:$0xff]
  %v13 = vld [vmem:[%s0 + $0x8] sm:$0xff]
  %v14 = vld [vmem:[%s0 + $0x10] sm:$0xff]
  %v15 = vld [vmem:[%s0 + $0x18] sm:$0xff]
  %v16 = vld [vmem:[%s0 + $0x20] sm:$0xf]
  %v17 = vld [vmem:[%s1] sm:$0xf]
  %v18 = vld [vmem:[%s1 + $0x4] sm:$0xf]
  %v19 = vld [vmem:[%s1 + $0x8] sm:$0xf]
  %v20 = vld [vmem:[%s1 + $0xc] sm:$0xf]
  %v21 = vld [vmem:[%s1 + $0x10] sm:$0xf]
  %v22 = vld [vmem:[%s1 + $0x14] sm:$0xf]
  %v23 = vld [vmem:[%s1 + $0x18] sm:$0xf]
  %v24 = vld [vmem:[%s1 + $0x1c] sm:$0xf]
  %v25 = vld [vmem:[%s1 + $0x20] sm:$0xf]
  %v26 = vld [vmem:[%s1 + $0x24] sm:$0xf]
  %v27 = vld [vmem:[%s1 + $0x28] sm:$0xf]
  %v28 = vld [vmem:[%s1 + $0x2c] sm:$0xf]
  %v29 = vld [vmem:[%s1 + $0x30] sm:$0xf]
  %v30 = vld [vmem:[%s1 + $0x34] sm:$0xf]
  %v31 = vld [vmem:[%s1 + $0x38] sm:$0xf]
  %v32 = vld [vmem:[%s1 + $0x3c] sm:$0xf]
  %v33 = vld [vmem:[%s1 + $0x40] sm:$0xf]
  %v34 = vld [vmem:[%s1 + $0x44] sm:$0xf]
  %v35 = vld [vmem:[%s1 + $0x48] sm:$0xf]
  %v36 = vld [vmem:[%s1 + $0x4c] sm:$0xf]
  %v37 = vld [vmem:[%s1 + $0x50] sm:$0xf]
  %v38 = vld [vmem:[%s1 + $0x54] sm:$0xf]
  %v39 = vld [vmem:[%s1 + $0x58] sm:$0xf]
  %v40 = vld [vmem:[%s1 + $0x5c] sm:$0xf]
  %v41 = vld [vmem:[%s1 + $0x60] sm:$0xf]
  %v42 = vld [vmem:[%s1 + $0x64] sm:$0xf]
  %v43 = vld [vmem:[%s1 + $0x68] sm:$0xf]
  %v44 = vld [vmem:[%s1 + $0x6c] sm:$0xf]
  %v45 = vld [vmem:[%s1 + $0x70] sm:$0xf]
  %v46 = vld [vmem:[%s1 + $0x74] sm:$0xf]
  %v47 = vld [vmem:[%s1 + $0x78] sm:$0xf]
  %v48 = vld [vmem:[%s1 + $0x7c] sm:$0xf]
  %v49 = vld [vmem:[%s1 + $0x80] sm:$0xf]
  %v50 = vld [vmem:[%s1 + $0x84] sm:$0xf]
  %v51 = vld [vmem:[%s1 + $0x88] sm:$0xf]
  %v52 = vld [vmem:[%s1 + $0x8c] sm:$0xf]
  %v53 = vld [vmem:[%s1 + $0x90] sm:$0xf]
  %v54 = vld [vmem:[%s1 + $0x94] sm:$0xf]
  %v55 = vld [vmem:[%s1 + $0x98] sm:$0xf]
  %v56 = vld [vmem:[%s1 + $0x9c] sm:$0xf]
  %v57 = vld [vmem:[%s1 + $0xa0] sm:$0xf]
  %v58 = vld [vmem:[%s1 + $0xa4] sm:$0xf]
  %v59 = vld [vmem:[%s1 + $0xa8] sm:$0xf]
  %v60 = vld [vmem:[%s1 + $0xac] sm:$0xf]
  %v61 = vld [vmem:[%s1 + $0xb0] sm:$0xf]
  %v62 = vld [vmem:[%s1 + $0xb4] sm:$0xf]
  %v63 = vld [vmem:[%s1 + $0xb8] sm:$0xf]
  %v64 = vld [vmem:[%s1 + $0xbc] sm:$0xf]
  %v65 = vld [vmem:[%s1 + $0xc0] sm:$0xf]
  %v66 = vld [vmem:[%s1 + $0xc4] sm:$0xf]
  %v67 = vld [vmem:[%s1 + $0xc8] sm:$0xf]
  %v68 = vld [vmem:[%s1 + $0xcc] sm:$0xf]
  %v69 = vld [vmem:[%s1 + $0xd0] sm:$0xf]
  %v70 = vld [vmem:[%s1 + $0xd4] sm:$0xf]
  %v71 = vld [vmem:[%s1 + $0xd8] sm:$0xf]
  %v72 = vld [vmem:[%s1 + $0xdc] sm:$0xf]
  %v73 = vld [vmem:[%s1 + $0xe0] sm:$0xf]
  %v74 = vld [vmem:[%s1 + $0xe4] sm:$0xf]
  %v75 = vld [vmem:[%s1 + $0xe8] sm:$0xf]
  %v76 = vld [vmem:[%s1 + $0xec] sm:$0xf]
  %v77 = vld [vmem:[%s1 + $0xf0] sm:$0xf]
  %v78 = vld [vmem:[%s1 + $0xf4] sm:$0xf]
  %v79 = vld [vmem:[%s1 + $0xf8] sm:$0xf]
  %v80 = vld [vmem:[%s1 + $0xfc] sm:$0xf]
  %v81 = vld [vmem:[%s1 + $0x100] sm:$0xf]
  %v82 = vld [vmem:[%s1 + $0x104] sm:$0xf]
  %v83 = vld [vmem:[%s1 + $0x108] sm:$0xf]
  %v84 = vld [vmem:[%s1 + $0x10c] sm:$0xf]
  %v85 = vld [vmem:[%s1 + $0x110] sm:$0xf]
  %v86 = vld [vmem:[%s1 + $0x114] sm:$0xf]
  %v87 = vld [vmem:[%s1 + $0x118] sm:$0xf]
  %v88 = vld [vmem:[%s1 + $0x11c] sm:$0xf]
  %v89 = vld [vmem:[%s1 + $0x120] sm:$0xf]
  %v90 = vld [vmem:[%s1 + $0x124] sm:$0xf]
  %v91 = vld [vmem:[%s1 + $0x128] sm:$0xf]
  %v92 = vld [vmem:[%s1 + $0x12c] sm:$0xf]
  %v93 = vld [vmem:[%s1 + $0x130] sm:$0xf]
  %v94 = vld [vmem:[%s1 + $0x134] sm:$0xf]
  %v95 = vld [vmem:[%s1 + $0x138] sm:$0xf]
  %v96 = vld [vmem:[%s1 + $0x13c] sm:$0xf]
  %v97 = vld [vmem:[%s1 + $0x140] sm:$0xf]
  %v98 = vld [vmem:[%s1 + $0x144] sm:$0xf]
  %v99 = vld [vmem:[%s1 + $0x148] sm:$0xf]
  %v100 = vld [vmem:[%s1 + $0x14c] sm:$0xf]
  %v101 = vld [vmem:[%s1 + $0x150] sm:$0xf]
  %v102 = vld [vmem:[%s1 + $0x154] sm:$0xf]
  %v103 = vld [vmem:[%s1 + $0x158] sm:$0xf]
  %v104 = vld [vmem:[%s1 + $0x15c] sm:$0xf]
  %v105 = vld [vmem:[%s1 + $0x160] sm:$0xf]
  %v106 = vld [vmem:[%s1 + $0x164] sm:$0xf]
  %v107 = vld [vmem:[%s1 + $0x168] sm:$0xf]
  %v108 = vld [vmem:[%s1 + $0x16c] sm:$0xf]
  %v109 = vld [vmem:[%s1 + $0x170] sm:$0xf]
  %v110 = vld [vmem:[%s1 + $0x174] sm:$0xf]
  %v111 = vld [vmem:[%s1 + $0x178] sm:$0xf]
  %v112 = vld [vmem:[%s1 + $0x17c] sm:$0xf]
  %v113 = vld [vmem:[%s1 + $0x180] sm:$0xf]
  %v114 = vld [vmem:[%s1 + $0x184] sm:$0xf]
  %v115 = vld [vmem:[%s1 + $0x188] sm:$0xf]
  %v116 = vld [vmem:[%s1 + $0x18c] sm:$0xf]
  %v117 = vld [vmem:[%s1 + $0x190] sm:$0xf]
  %v118 = vld [vmem:[%s1 + $0x194] sm:$0xf]
  %v119 = vld [vmem:[%s1 + $0x198] sm:$0xf]
  %v120 = vld [vmem:[%s1 + $0x19c] sm:$0xf]
  %v121 = vld [vmem:[%s1 + $0x1a0] sm:$0xf]
  %v122 = vld [vmem:[%s1 + $0x1a4] sm:$0xf]
  %v123 = vld [vmem:[%s1 + $0x1a8] sm:$0xf]
  %v124 = vld [vmem:[%s1 + $0x1ac] sm:$0xf]
  %v125 = vld [vmem:[%s1 + $0x1b0] sm:$0xf]
  %v126 = vld [vmem:[%s1 + $0x1b4] sm:$0xf]
  %v127 = vld [vmem:[%s1 + $0x1b8] sm:$0xf]
  %v128 = vld [vmem:[%s1 + $0x1bc] sm:$0xf]
  %v129 = vld [vmem:[%s1 + $0x1c0] sm:$0xf]
  %v130 = vld [vmem:[%s1 + $0x1c4] sm:$0xf]
  %v131 = vld [vmem:[%s1 + $0x1c8] sm:$0xf]
  %v132 = vld [vmem:[%s1 + $0x1cc] sm:$0xf]
  %v133 = vld [vmem:[%s1 + $0x1d0] sm:$0xf]
  %v134 = vld [vmem:[%s1 + $0x1d4] sm:$0xf]
  %v135 = vld [vmem:[%s1 + $0x1d8] sm:$0xf]
  %v136 = vld [vmem:[%s1 + $0x1dc] sm:$0xf]
  %v137 = vld [vmem:[%s1 + $0x1e0] sm:$0xf]
  %v138 = vld [vmem:[%s1 + $0x1e4] sm:$0xf]
  %v139 = vld [vmem:[%s1 + $0x1e8] sm:$0xf]
  %v140 = vld [vmem:[%s1 + $0x1ec] sm:$0xf]
  %v141 = vld [vmem:[%s1 + $0x1f0] sm:$0xf]
  %v142 = vld [vmem:[%s1 + $0x1f4] sm:$0xf]
  %v143 = vld [vmem:[%s1 + $0x1f8] sm:$0xf]
  %v144 = vld [vmem:[%s1 + $0x1fc] sm:$0xf]
  %v145 = vld [vmem:[%s1 + $0x200] sm:$0xf]
  %v146 = vld [vmem:[%s1 + $0x204] sm:$0xf]
  %v147 = vld [vmem:[%s1 + $0x208] sm:$0xf]
  %v148 = vld [vmem:[%s1 + $0x20c] sm:$0xf]
  %v149 = vld [vmem:[%s1 + $0x210] sm:$0xf]
  %v150 = vld [vmem:[%s1 + $0x214] sm:$0xf]
  %v151 = vld [vmem:[%s1 + $0x218] sm:$0xf]
  %v152 = vld [vmem:[%s1 + $0x21c] sm:$0xf]
  %v153 = vld [vmem:[%s1 + $0x220] sm:$0xf]
  %v154 = vld [vmem:[%s1 + $0x224] sm:$0xf]
  %v155 = vld [vmem:[%s1 + $0x228] sm:$0xf]
  %v156 = vld [vmem:[%s1 + $0x22c] sm:$0xf]
  %v157 = vld [vmem:[%s1 + $0x230] sm:$0xf]
  %v158 = vld [vmem:[%s1 + $0x234] sm:$0xf]
  %v159 = vld [vmem:[%s1 + $0x238] sm:$0xf]
  %v160 = vld [vmem:[%s1 + $0x23c] sm:$0xf]
  %v166 = vunpack.c.l.b16 %v12
  %v167 = vunpack.c.h.b16 %v12
  %v168 = vunpack.c.l.b16 %v13
  %v169 = vunpack.c.h.b16 %v13
  %v170 = vunpack.c.l.b16 %v14
  %v171 = vunpack.c.h.b16 %v14
  %v172 = vunpack.c.l.b16 %v15
  %v173 = vunpack.c.h.b16 %v15
  %v174 = vunpack.c.l.b16 %v16
  %v175 = vpack.c.b16 %v166, %v166
  %v176 = vpack.c.b16 %v167, %v167
  %v177 = vpack.c.b16 %v168, %v168
  %v178 = vpack.c.b16 %v169, %v169
  %v179 = vpack.c.b16 %v170, %v170
  %v180 = vpack.c.b16 %v171, %v171
  %v181 = vpack.c.b16 %v172, %v172
  %v182 = vpack.c.b16 %v173, %v173
  %v183 = vpack.c.b16 %v174, %v174
  %v337 = vunpack.c.l.b16 %v17
  %v338 = vunpack.c.l.b16 %v18
  %v339 = vunpack.c.l.b16 %v19
  %v340 = vunpack.c.l.b16 %v20
  %v341 = vunpack.c.l.b16 %v21
  %v342 = vunpack.c.l.b16 %v22
  %v343 = vunpack.c.l.b16 %v23
  %v344 = vunpack.c.l.b16 %v24
  %v345 = vunpack.c.l.b16 %v25
  %v346 = vunpack.c.l.b16 %v26
  %v347 = vunpack.c.l.b16 %v27
  %v348 = vunpack.c.l.b16 %v28
  %v349 = vunpack.c.l.b16 %v29
  %v350 = vunpack.c.l.b16 %v30
  %v351 = vunpack.c.l.b16 %v31
  %v352 = vunpack.c.l.b16 %v32
  %v353 = vunpack.c.l.b16 %v33
  %v354 = vunpack.c.l.b16 %v34
  %v355 = vunpack.c.l.b16 %v35
  %v356 = vunpack.c.l.b16 %v36
  %v357 = vunpack.c.l.b16 %v37
  %v358 = vunpack.c.l.b16 %v38
  %v359 = vunpack.c.l.b16 %v39
  %v360 = vunpack.c.l.b16 %v40
  %v361 = vunpack.c.l.b16 %v41
  %v362 = vunpack.c.l.b16 %v42
  %v363 = vunpack.c.l.b16 %v43
  %v364 = vunpack.c.l.b16 %v44
  %v365 = vunpack.c.l.b16 %v45
  %v366 = vunpack.c.l.b16 %v46
  %v367 = vunpack.c.l.b16 %v47
  %v368 = vunpack.c.l.b16 %v48
  %v369 = vunpack.c.l.b16 %v49
  %v370 = vunpack.c.l.b16 %v50
  %v371 = vunpack.c.l.b16 %v51
  %v372 = vunpack.c.l.b16 %v52
  %v373 = vunpack.c.l.b16 %v53
  %v374 = vunpack.c.l.b16 %v54
  %v375 = vunpack.c.l.b16 %v55
  %v376 = vunpack.c.l.b16 %v56
  %v377 = vunpack.c.l.b16 %v57
  %v378 = vunpack.c.l.b16 %v58
  %v379 = vunpack.c.l.b16 %v59
  %v380 = vunpack.c.l.b16 %v60
  %v381 = vunpack.c.l.b16 %v61
  %v382 = vunpack.c.l.b16 %v62
  %v383 = vunpack.c.l.b16 %v63
  %v384 = vunpack.c.l.b16 %v64
  %v385 = vunpack.c.l.b16 %v65
  %v386 = vunpack.c.l.b16 %v66
  %v387 = vunpack.c.l.b16 %v67
  %v388 = vunpack.c.l.b16 %v68
  %v389 = vunpack.c.l.b16 %v69
  %v390 = vunpack.c.l.b16 %v70
  %v391 = vunpack.c.l.b16 %v71
  %v392 = vunpack.c.l.b16 %v72
  %v393 = vunpack.c.l.b16 %v73
  %v394 = vunpack.c.l.b16 %v74
  %v395 = vunpack.c.l.b16 %v75
  %v396 = vunpack.c.l.b16 %v76
  %v397 = vunpack.c.l.b16 %v77
  %v398 = vunpack.c.l.b16 %v78
  %v399 = vunpack.c.l.b16 %v79
  %v400 = vunpack.c.l.b16 %v80
  %v401 = vunpack.c.l.b16 %v81
  %v402 = vunpack.c.l.b16 %v82
  %v403 = vunpack.c.l.b16 %v83
  %v404 = vunpack.c.l.b16 %v84
  %v405 = vunpack.c.l.b16 %v85
  %v406 = vunpack.c.l.b16 %v86
  %v407 = vunpack.c.l.b16 %v87
  %v408 = vunpack.c.l.b16 %v88
  %v409 = vunpack.c.l.b16 %v89
  %v410 = vunpack.c.l.b16 %v90
  %v411 = vunpack.c.l.b16 %v91
  %v412 = vunpack.c.l.b16 %v92
  %v413 = vunpack.c.l.b16 %v93
  %v414 = vunpack.c.l.b16 %v94
  %v415 = vunpack.c.l.b16 %v95
  %v416 = vunpack.c.l.b16 %v96
  %v417 = vunpack.c.l.b16 %v97
  %v418 = vunpack.c.l.b16 %v98
  %v419 = vunpack.c.l.b16 %v99
  %v420 = vunpack.c.l.b16 %v100
  %v421 = vunpack.c.l.b16 %v101
  %v422 = vunpack.c.l.b16 %v102
  %v423 = vunpack.c.l.b16 %v103
  %v424 = vunpack.c.l.b16 %v104
  %v425 = vunpack.c.l.b16 %v105
  %v426 = vunpack.c.l.b16 %v106
  %v427 = vunpack.c.l.b16 %v107
  %v428 = vunpack.c.l.b16 %v108
  %v429 = vunpack.c.l.b16 %v109
  %v430 = vunpack.c.l.b16 %v110
  %v431 = vunpack.c.l.b16 %v111
  %v432 = vunpack.c.l.b16 %v112
  %v433 = vunpack.c.l.b16 %v113
  %v434 = vunpack.c.l.b16 %v114
  %v435 = vunpack.c.l.b16 %v115
  %v436 = vunpack.c.l.b16 %v116
  %v437 = vunpack.c.l.b16 %v117
  %v438 = vunpack.c.l.b16 %v118
  %v439 = vunpack.c.l.b16 %v119
  %v440 = vunpack.c.l.b16 %v120
  %v441 = vunpack.c.l.b16 %v121
  %v442 = vunpack.c.l.b16 %v122
  %v443 = vunpack.c.l.b16 %v123
  %v444 = vunpack.c.l.b16 %v124
  %v445 = vunpack.c.l.b16 %v125
  %v446 = vunpack.c.l.b16 %v126
  %v447 = vunpack.c.l.b16 %v127
  %v448 = vunpack.c.l.b16 %v128
  %v449 = vunpack.c.l.b16 %v129
  %v450 = vunpack.c.l.b16 %v130
  %v451 = vunpack.c.l.b16 %v131
  %v452 = vunpack.c.l.b16 %v132
  %v453 = vunpack.c.l.b16 %v133
  %v454 = vunpack.c.l.b16 %v134
  %v455 = vunpack.c.l.b16 %v135
  %v456 = vunpack.c.l.b16 %v136
  %v457 = vunpack.c.l.b16 %v137
  %v458 = vunpack.c.l.b16 %v138
  %v459 = vunpack.c.l.b16 %v139
  %v460 = vunpack.c.l.b16 %v140
  %v461 = vunpack.c.l.b16 %v141
  %v462 = vunpack.c.l.b16 %v142
  %v463 = vunpack.c.l.b16 %v143
  %v464 = vunpack.c.l.b16 %v144
  %v465 = vunpack.c.l.b16 %v145
  %v466 = vunpack.c.l.b16 %v146
  %v467 = vunpack.c.l.b16 %v147
  %v468 = vunpack.c.l.b16 %v148
  %v469 = vunpack.c.l.b16 %v149
  %v470 = vunpack.c.l.b16 %v150
  %v471 = vunpack.c.l.b16 %v151
  %v472 = vunpack.c.l.b16 %v152
  %v473 = vunpack.c.l.b16 %v153
  %v474 = vunpack.c.l.b16 %v154
  %v475 = vunpack.c.l.b16 %v155
  %v476 = vunpack.c.l.b16 %v156
  %v477 = vunpack.c.l.b16 %v157
  %v478 = vunpack.c.l.b16 %v158
  %v479 = vunpack.c.l.b16 %v159
  %v480 = vunpack.c.l.b16 %v160
  %v481 = vpack.c.b16 %v338, %v337
  %v482 = vpack.c.b16 %v340, %v339
  %v483 = vpack.c.b16 %v342, %v341
  %v484 = vpack.c.b16 %v344, %v343
  %v485 = vpack.c.b16 %v346, %v345
  %v486 = vpack.c.b16 %v348, %v347
  %v487 = vpack.c.b16 %v350, %v349
  %v488 = vpack.c.b16 %v352, %v351
  %v489 = vpack.c.b16 %v354, %v353
  %v490 = vpack.c.b16 %v356, %v355
  %v491 = vpack.c.b16 %v358, %v357
  %v492 = vpack.c.b16 %v360, %v359
  %v493 = vpack.c.b16 %v362, %v361
  %v494 = vpack.c.b16 %v364, %v363
  %v495 = vpack.c.b16 %v366, %v365
  %v496 = vpack.c.b16 %v368, %v367
  %v497 = vpack.c.b16 %v370, %v369
  %v498 = vpack.c.b16 %v372, %v371
  %v499 = vpack.c.b16 %v374, %v373
  %v500 = vpack.c.b16 %v376, %v375
  %v501 = vpack.c.b16 %v378, %v377
  %v502 = vpack.c.b16 %v380, %v379
  %v503 = vpack.c.b16 %v382, %v381
  %v504 = vpack.c.b16 %v384, %v383
  %v505 = vpack.c.b16 %v386, %v385
  %v506 = vpack.c.b16 %v388, %v387
  %v507 = vpack.c.b16 %v390, %v389
  %v508 = vpack.c.b16 %v392, %v391
  %v509 = vpack.c.b16 %v394, %v393
  %v510 = vpack.c.b16 %v396, %v395
  %v511 = vpack.c.b16 %v398, %v397
  %v512 = vpack.c.b16 %v400, %v399
  %v513 = vpack.c.b16 %v402, %v401
  %v514 = vpack.c.b16 %v404, %v403
  %v515 = vpack.c.b16 %v406, %v405
  %v516 = vpack.c.b16 %v408, %v407
  %v517 = vpack.c.b16 %v410, %v409
  %v518 = vpack.c.b16 %v412, %v411
  %v519 = vpack.c.b16 %v414, %v413
  %v520 = vpack.c.b16 %v416, %v415
  %v521 = vpack.c.b16 %v418, %v417
  %v522 = vpack.c.b16 %v420, %v419
  %v523 = vpack.c.b16 %v422, %v421
  %v524 = vpack.c.b16 %v424, %v423
  %v525 = vpack.c.b16 %v426, %v425
  %v526 = vpack.c.b16 %v428, %v427
  %v527 = vpack.c.b16 %v430, %v429
  %v528 = vpack.c.b16 %v432, %v431
  %v529 = vpack.c.b16 %v434, %v433
  %v530 = vpack.c.b16 %v436, %v435
  %v531 = vpack.c.b16 %v438, %v437
  %v532 = vpack.c.b16 %v440, %v439
  %v533 = vpack.c.b16 %v442, %v441
  %v534 = vpack.c.b16 %v444, %v443
  %v535 = vpack.c.b16 %v446, %v445
  %v536 = vpack.c.b16 %v448, %v447
  %v537 = vpack.c.b16 %v450, %v449
  %v538 = vpack.c.b16 %v452, %v451
  %v539 = vpack.c.b16 %v454, %v453
  %v540 = vpack.c.b16 %v456, %v455
  %v541 = vpack.c.b16 %v458, %v457
  %v542 = vpack.c.b16 %v460, %v459
  %v543 = vpack.c.b16 %v462, %v461
  %v544 = vpack.c.b16 %v464, %v463
  %v545 = vpack.c.b16 %v466, %v465
  %v546 = vpack.c.b16 %v468, %v467
  %v547 = vpack.c.b16 %v470, %v469
  %v548 = vpack.c.b16 %v472, %v471
  %v549 = vpack.c.b16 %v474, %v473
  %v550 = vpack.c.b16 %v476, %v475
  %v551 = vpack.c.b16 %v478, %v477
  %v552 = vpack.c.b16 %v480, %v479
  %625 = vmatprep.subr.bf16.mxu0 0
  %626 = vmatpush1.bf16.msra.mxu0 %v481
  %627 = vmatprep.subr.bf16.mxu0 0
  %628 = vmatpush1.bf16.msra.mxu0 %v482
  %629 = vmatprep.subr.bf16.mxu0 0
  %630 = vmatpush1.bf16.msra.mxu0 %v483
  %631 = vmatprep.subr.bf16.mxu0 0
  %632 = vmatpush1.bf16.msra.mxu0 %v484
  %633 = vmatprep.subr.bf16.mxu0 0
  %634 = vmatpush1.bf16.msra.mxu0 %v485
  %635 = vmatprep.subr.bf16.mxu0 0
  %636 = vmatpush1.bf16.msra.mxu0 %v486
  %637 = vmatprep.subr.bf16.mxu0 0
  %638 = vmatpush1.bf16.msra.mxu0 %v487
  %639 = vmatprep.subr.bf16.mxu0 0
  %640 = vmatpush1.bf16.msra.mxu0 %v488
  %641 = vmatprep.subr.bf16.mxu0 0
  %642 = vmatpush1.bf16.msra.mxu0 %v489
  %643 = vmatprep.subr.bf16.mxu0 0
  %644 = vmatpush1.bf16.msra.mxu0 %v490
  %645 = vmatprep.subr.bf16.mxu0 0
  %646 = vmatpush1.bf16.msra.mxu0 %v491
  %647 = vmatprep.subr.bf16.mxu0 0
  %648 = vmatpush1.bf16.msra.mxu0 %v492
  %649 = vmatprep.subr.bf16.mxu0 0
  %650 = vmatpush1.bf16.msra.mxu0 %v493
  %651 = vmatprep.subr.bf16.mxu0 0
  %652 = vmatpush1.bf16.msra.mxu0 %v494
  %653 = vmatprep.subr.bf16.mxu0 0
  %654 = vmatpush1.bf16.msra.mxu0 %v495
  %655 = vmatprep.subr.bf16.mxu0 0
  %656 = vmatpush1.bf16.msra.mxu0 %v496
  %657 = vmatprep.mubr.bf16.mxu0 %v176
  %658 = vmatmul.mubr.bf16.gmra.mrb[0].mxu0 %v175
  %v659 = vpop.f32.mrb[0].mxu0
  %v660 = vadd.f32 0.0, %v659
  %v661 = vpop.f32.mrb[0].mxu0
  %v662 = vpop.f32.mrb[0].mxu0
  %v663 = vpop.f32.mrb[0].mxu0
  %664 = vdwg.mxu0
  %665 = vmatprep.subr.bf16.mxu0 0
  %666 = vmatpush1.bf16.msra.mxu0 %v497
  %667 = vmatprep.subr.bf16.mxu0 0
  %668 = vmatpush1.bf16.msra.mxu0 %v498
  %669 = vmatprep.subr.bf16.mxu0 0
  %670 = vmatpush1.bf16.msra.mxu0 %v499
  %671 = vmatprep.subr.bf16.mxu0 0
  %672 = vmatpush1.bf16.msra.mxu0 %v500
  %673 = vmatprep.subr.bf16.mxu0 0
  %674 = vmatpush1.bf16.msra.mxu0 %v501
  %675 = vmatprep.subr.bf16.mxu0 0
  %676 = vmatpush1.bf16.msra.mxu0 %v502
  %677 = vmatprep.subr.bf16.mxu0 0
  %678 = vmatpush1.bf16.msra.mxu0 %v503
  %679 = vmatprep.subr.bf16.mxu0 0
  %680 = vmatpush1.bf16.msra.mxu0 %v504
  %681 = vmatprep.subr.bf16.mxu0 0
  %682 = vmatpush1.bf16.msra.mxu0 %v505
  %683 = vmatprep.subr.bf16.mxu0 0
  %684 = vmatpush1.bf16.msra.mxu0 %v506
  %685 = vmatprep.subr.bf16.mxu0 0
  %686 = vmatpush1.bf16.msra.mxu0 %v507
  %687 = vmatprep.subr.bf16.mxu0 0
  %688 = vmatpush1.bf16.msra.mxu0 %v508
  %689 = vmatprep.subr.bf16.mxu0 0
  %690 = vmatpush1.bf16.msra.mxu0 %v509
  %691 = vmatprep.subr.bf16.mxu0 0
  %692 = vmatpush1.bf16.msra.mxu0 %v510
  %693 = vmatprep.subr.bf16.mxu0 0
  %694 = vmatpush1.bf16.msra.mxu0 %v511
  %695 = vmatprep.subr.bf16.mxu0 0
  %696 = vmatpush1.bf16.msra.mxu0 %v512
  %697 = vmatprep.mubr.bf16.mxu0 %v178
  %698 = vmatmul.mubr.bf16.gmra.mrb[0].mxu0 %v177
  %v699 = vpop.f32.mrb[0].mxu0
  %v700 = vadd.f32 %v660, %v699
  %v701 = vpop.f32.mrb[0].mxu0
  %v702 = vpop.f32.mrb[0].mxu0
  %v703 = vpop.f32.mrb[0].mxu0
  %704 = vdwg.mxu0
  %705 = vmatprep.subr.bf16.mxu0 0
  %706 = vmatpush1.bf16.msra.mxu0 %v513
  %707 = vmatprep.subr.bf16.mxu0 0
  %708 = vmatpush1.bf16.msra.mxu0 %v514
  %709 = vmatprep.subr.bf16.mxu0 0
  %710 = vmatpush1.bf16.msra.mxu0 %v515
  %711 = vmatprep.subr.bf16.mxu0 0
  %712 = vmatpush1.bf16.msra.mxu0 %v516
  %713 = vmatprep.subr.bf16.mxu0 0
  %714 = vmatpush1.bf16.msra.mxu0 %v517
  %715 = vmatprep.subr.bf16.mxu0 0
  %716 = vmatpush1.bf16.msra.mxu0 %v518
  %717 = vmatprep.subr.bf16.mxu0 0
  %718 = vmatpush1.bf16.msra.mxu0 %v519
  %719 = vmatprep.subr.bf16.mxu0 0
  %720 = vmatpush1.bf16.msra.mxu0 %v520
  %721 = vmatprep.subr.bf16.mxu0 0
  %722 = vmatpush1.bf16.msra.mxu0 %v521
  %723 = vmatprep.subr.bf16.mxu0 0
  %724 = vmatpush1.bf16.msra.mxu0 %v522
  %725 = vmatprep.subr.bf16.mxu0 0
  %726 = vmatpush1.bf16.msra.mxu0 %v523
  %727 = vmatprep.subr.bf16.mxu0 0
  %728 = vmatpush1.bf16.msra.mxu0 %v524
  %729 = vmatprep.subr.bf16.mxu0 0
  %730 = vmatpush1.bf16.msra.mxu0 %v525
  %731 = vmatprep.subr.bf16.mxu0 0
  %732 = vmatpush1.bf16.msra.mxu0 %v526
  %733 = vmatprep.subr.bf16.mxu0 0
  %734 = vmatpush1.bf16.msra.mxu0 %v527
  %735 = vmatprep.subr.bf16.mxu0 0
  %736 = vmatpush1.bf16.msra.mxu0 %v528
  %737 = vmatprep.mubr.bf16.mxu0 %v180
  %738 = vmatmul.mubr.bf16.gmra.mrb[0].mxu0 %v179
  %v739 = vpop.f32.mrb[0].mxu0
  %v740 = vadd.f32 %v700, %v739
  %v741 = vpop.f32.mrb[0].mxu0
  %v742 = vpop.f32.mrb[0].mxu0
  %v743 = vpop.f32.mrb[0].mxu0
  %744 = vdwg.mxu0
  %745 = vmatprep.subr.bf16.mxu0 0
  %746 = vmatpush1.bf16.msra.mxu0 %v529
  %747 = vmatprep.subr.bf16.mxu0 0
  %748 = vmatpush1.bf16.msra.mxu0 %v530
  %749 = vmatprep.subr.bf16.mxu0 0
  %750 = vmatpush1.bf16.msra.mxu0 %v531
  %751 = vmatprep.subr.bf16.mxu0 0
  %752 = vmatpush1.bf16.msra.mxu0 %v532
  %753 = vmatprep.subr.bf16.mxu0 0
  %754 = vmatpush1.bf16.msra.mxu0 %v533
  %755 = vmatprep.subr.bf16.mxu0 0
  %756 = vmatpush1.bf16.msra.mxu0 %v534
  %757 = vmatprep.subr.bf16.mxu0 0
  %758 = vmatpush1.bf16.msra.mxu0 %v535
  %759 = vmatprep.subr.bf16.mxu0 0
  %760 = vmatpush1.bf16.msra.mxu0 %v536
  %761 = vmatprep.subr.bf16.mxu0 0
  %762 = vmatpush1.bf16.msra.mxu0 %v537
  %763 = vmatprep.subr.bf16.mxu0 0
  %764 = vmatpush1.bf16.msra.mxu0 %v538
  %765 = vmatprep.subr.bf16.mxu0 0
  %766 = vmatpush1.bf16.msra.mxu0 %v539
  %767 = vmatprep.subr.bf16.mxu0 0
  %768 = vmatpush1.bf16.msra.mxu0 %v540
  %769 = vmatprep.subr.bf16.mxu0 0
  %770 = vmatpush1.bf16.msra.mxu0 %v541
  %771 = vmatprep.subr.bf16.mxu0 0
  %772 = vmatpush1.bf16.msra.mxu0 %v542
  %773 = vmatprep.subr.bf16.mxu0 0
  %774 = vmatpush1.bf16.msra.mxu0 %v543
  %775 = vmatprep.subr.bf16.mxu0 0
  %776 = vmatpush1.bf16.msra.mxu0 %v544
  %777 = vmatprep.mubr.bf16.mxu0 %v182
  %778 = vmatmul.mubr.bf16.gmra.mrb[0].mxu0 %v181
  %v779 = vpop.f32.mrb[0].mxu0
  %v780 = vadd.f32 %v740, %v779
  %v781 = vpop.f32.mrb[0].mxu0
  %v782 = vpop.f32.mrb[0].mxu0
  %v783 = vpop.f32.mrb[0].mxu0
  %784 = vdwg.mxu0
  %785 = vmatprep.subr.bf16.mxu0 0
  %786 = vmatpush1.bf16.msra.mxu0 %v545
  %787 = vmatprep.subr.bf16.mxu0 0
  %788 = vmatpush1.bf16.msra.mxu0 %v546
  %789 = vmatprep.subr.bf16.mxu0 0
  %790 = vmatpush1.bf16.msra.mxu0 %v547
  %791 = vmatprep.subr.bf16.mxu0 0
  %792 = vmatpush1.bf16.msra.mxu0 %v548
  %793 = vmatprep.subr.bf16.mxu0 0
  %794 = vmatpush1.bf16.msra.mxu0 %v549
  %795 = vmatprep.subr.bf16.mxu0 0
  %796 = vmatpush1.bf16.msra.mxu0 %v550
  %797 = vmatprep.subr.bf16.mxu0 0
  %798 = vmatpush1.bf16.msra.mxu0 %v551
  %799 = vmatprep.subr.bf16.mxu0 0
  %800 = vmatpush1.bf16.msra.mxu0 %v552
  %801 = vmatprep.subr.bf16.mxu0 0
  %802 = vmatpush1.bf16.msra.mxu0 0
  %803 = vmatprep.subr.bf16.mxu0 0
  %804 = vmatpush1.bf16.msra.mxu0 0
  %805 = vmatprep.subr.bf16.mxu0 0
  %806 = vmatpush1.bf16.msra.mxu0 0
  %807 = vmatprep.subr.bf16.mxu0 0
  %808 = vmatpush1.bf16.msra.mxu0 0
  %809 = vmatprep.subr.bf16.mxu0 0
  %810 = vmatpush1.bf16.msra.mxu0 0
  %811 = vmatprep.subr.bf16.mxu0 0
  %812 = vmatpush1.bf16.msra.mxu0 0
  %813 = vmatprep.subr.bf16.mxu0 0
  %814 = vmatpush1.bf16.msra.mxu0 0
  %815 = vmatprep.subr.bf16.mxu0 0
  %816 = vmatpush1.bf16.msra.mxu0 0
  %817 = vmatprep.mubr.bf16.mxu0 0
  %818 = vmatmul.mubr.bf16.gmra.mrb[0].mxu0 %v183
  %v819 = vpop.f32.mrb[0].mxu0
  %v820 = vadd.f32 %v780, %v819
  %v821 = vpop.f32.mrb[0].mxu0
  %v822 = vpop.f32.mrb[0].mxu0
  %v823 = vpop.f32.mrb[0].mxu0
  %824 = vdwg.mxu0
  %v825 = vrot.slane %v820, 4
  %v826 = vadd.f32 %v820, %v825
  %v827 = vrot.slane %v826, 2
  %v828 = vadd.f32 %v826, %v827
  %v829 = vrot.slane %v828, 1
  %v830 = vadd.f32 %v828, %v829
  %v831 = vmul.f32 %v820, %v820
  %v832 = vrot.slane %v831, 4
  %v833 = vadd.f32 %v831, %v832
  %v834 = vrot.slane %v833, 2
  %v835 = vadd.f32 %v833, %v834
  %v836 = vrot.slane %v835, 1
  %v837 = vadd.f32 %v835, %v836
  %v838 = vmul.f32 %v830, 0.5
  %v839 = vmul.f32 %v837, 0.5
  %v840 = vmul.f32 %v838, %v838
  %v841 = vsub.f32 %v839, %v840
  %v842 = vmax.f32 %v841, 0.0
  %v843 = vsub.f32 %v820, %v838
  %v844 = vadd.f32 %v842, 1e-05
  %v845 = vrsqrt.pop %v844
  %v846 = vmul.f32 %v843, %v845
  %vm847 = vcmp.gt.f32.partialorder %v846, 0.0
  %v848 = vmul.f32 %v846, 0.01
  %v849 = vsel %vm847, %v846, %v848
  %v850 = vpack.c.bf16 %v849, %v849
  %851 = vst [vmem:[%s2] sm:$0xf] %v850
  // Predicated region
  $region10: #{_lambda_.32} parent=0 // pred_check
    _
  $region11: #{_lambda_.32} parent=0 // pred_check_branch
    %853 = sbr.rel (0) target = $region13
  $region12: #{_lambda_.32} parent=0 // pred_region
    _
  $region13: #{_lambda_.32} parent=0 // pred_fallthru
    _
  // Predicated region
  $region14: #{_lambda_.32} parent=0 // pred_check
    _
  $region15: #{_lambda_.32} parent=0 // pred_check_branch
    %855 = sbr.rel (0) target = $region17
  $region16: #{_lambda_.32} parent=0 // pred_region
    _
  $region17: #{_lambda_.32} parent=0 // pred_fallthru
    _

// kernel: _lambda_.33
$region0: #{_lambda_.33}
  #allocation0 [shape = 'u32[]', space=smem, size = 0x4, offset = 0x4, fixed_abs, tag = 'smem constant byte address 0x4 - core index']
  #allocation1 [shape = 'u32[144,128]{1,0:T(1,128)}', space=vmem, size = 0x12000, scoped, tag = 'internal scratch']
  %s0 = inlined_call_operand.vmem [shape: bf16[8,1152], index: 0, kind: input, shape index: {}]
  %s1 = inlined_call_operand.vmem [shape: bf16[1152,128], index: 1, kind: input, shape index: {}]
  %s2 = inlined_call_operand.vmem [shape: bf16[8,128], index: 2, kind: output, shape index: {}]
  %s3 = sld [smem:[#allocation0]]
  $region18: #{_lambda_.33} parent=0
    _
  %s5 = ssub.s32 1, %s3
  %s6 = scalar_select 0, %s5, %s3
  // Predicated region
  $region2: #{_lambda_.33} parent=0 // pred_check
    _
  $region3: #{_lambda_.33} parent=0 // pred_check_branch
    %8 = sbr.rel (0) target = $region5
  $region4: #{_lambda_.33} parent=0 // pred_region
    _
  $region5: #{_lambda_.33} parent=0 // pred_fallthru
    _
  // Predicated region
  $region6: #{_lambda_.33} parent=0 // pred_check
    _
  $region7: #{_lambda_.33} parent=0 // pred_check_branch
    %10 = sbr.rel (0) target = $region9
  $region8: #{_lambda_.33} parent=0 // pred_region
    _
  $region9: #{_lambda_.33} parent=0 // pred_fallthru
    _
  %v12 = vld [vmem:[%s0] sm:$0xff]
  %v13 = vld [vmem:[%s0 + $0x8] sm:$0xff]
  %v14 = vld [vmem:[%s0 + $0x10] sm:$0xff]
  %v15 = vld [vmem:[%s0 + $0x18] sm:$0xff]
  %v16 = vld [vmem:[%s0 + $0x20] sm:$0xf]
  %v17 = vld [vmem:[%s1] sm:$0xf]
  %v18 = vld [vmem:[%s1 + $0x4] sm:$0xf]
  %v19 = vld [vmem:[%s1 + $0x8] sm:$0xf]
  %v20 = vld [vmem:[%s1 + $0xc] sm:$0xf]
  %v21 = vld [vmem:[%s1 + $0x10] sm:$0xf]
  %v22 = vld [vmem:[%s1 + $0x14] sm:$0xf]
  %v23 = vld [vmem:[%s1 + $0x18] sm:$0xf]
  %v24 = vld [vmem:[%s1 + $0x1c] sm:$0xf]
  %v25 = vld [vmem:[%s1 + $0x20] sm:$0xf]
  %v26 = vld [vmem:[%s1 + $0x24] sm:$0xf]
  %v27 = vld [vmem:[%s1 + $0x28] sm:$0xf]
  %v28 = vld [vmem:[%s1 + $0x2c] sm:$0xf]
  %v29 = vld [vmem:[%s1 + $0x30] sm:$0xf]
  %v30 = vld [vmem:[%s1 + $0x34] sm:$0xf]
  %v31 = vld [vmem:[%s1 + $0x38] sm:$0xf]
  %v32 = vld [vmem:[%s1 + $0x3c] sm:$0xf]
  %v33 = vld [vmem:[%s1 + $0x40] sm:$0xf]
  %v34 = vld [vmem:[%s1 + $0x44] sm:$0xf]
  %v35 = vld [vmem:[%s1 + $0x48] sm:$0xf]
  %v36 = vld [vmem:[%s1 + $0x4c] sm:$0xf]
  %v37 = vld [vmem:[%s1 + $0x50] sm:$0xf]
  %v38 = vld [vmem:[%s1 + $0x54] sm:$0xf]
  %v39 = vld [vmem:[%s1 + $0x58] sm:$0xf]
  %v40 = vld [vmem:[%s1 + $0x5c] sm:$0xf]
  %v41 = vld [vmem:[%s1 + $0x60] sm:$0xf]
  %v42 = vld [vmem:[%s1 + $0x64] sm:$0xf]
  %v43 = vld [vmem:[%s1 + $0x68] sm:$0xf]
  %v44 = vld [vmem:[%s1 + $0x6c] sm:$0xf]
  %v45 = vld [vmem:[%s1 + $0x70] sm:$0xf]
  %v46 = vld [vmem:[%s1 + $0x74] sm:$0xf]
  %v47 = vld [vmem:[%s1 + $0x78] sm:$0xf]
  %v48 = vld [vmem:[%s1 + $0x7c] sm:$0xf]
  %v49 = vld [vmem:[%s1 + $0x80] sm:$0xf]
  %v50 = vld [vmem:[%s1 + $0x84] sm:$0xf]
  %v51 = vld [vmem:[%s1 + $0x88] sm:$0xf]
  %v52 = vld [vmem:[%s1 + $0x8c] sm:$0xf]
  %v53 = vld [vmem:[%s1 + $0x90] sm:$0xf]
  %v54 = vld [vmem:[%s1 + $0x94] sm:$0xf]
  %v55 = vld [vmem:[%s1 + $0x98] sm:$0xf]
  %v56 = vld [vmem:[%s1 + $0x9c] sm:$0xf]
  %v57 = vld [vmem:[%s1 + $0xa0] sm:$0xf]
  %v58 = vld [vmem:[%s1 + $0xa4] sm:$0xf]
  %v59 = vld [vmem:[%s1 + $0xa8] sm:$0xf]
  %v60 = vld [vmem:[%s1 + $0xac] sm:$0xf]
  %v61 = vld [vmem:[%s1 + $0xb0] sm:$0xf]
  %v62 = vld [vmem:[%s1 + $0xb4] sm:$0xf]
  %v63 = vld [vmem:[%s1 + $0xb8] sm:$0xf]
  %v64 = vld [vmem:[%s1 + $0xbc] sm:$0xf]
  %v65 = vld [vmem:[%s1 + $0xc0] sm:$0xf]
  %v66 = vld [vmem:[%s1 + $0xc4] sm:$0xf]
  %v67 = vld [vmem:[%s1 + $0xc8] sm:$0xf]
  %v68 = vld [vmem:[%s1 + $0xcc] sm:$0xf]
  %v69 = vld [vmem:[%s1 + $0xd0] sm:$0xf]
  %v70 = vld [vmem:[%s1 + $0xd4] sm:$0xf]
  %v71 = vld [vmem:[%s1 + $0xd8] sm:$0xf]
  %v72 = vld [vmem:[%s1 + $0xdc] sm:$0xf]
  %v73 = vld [vmem:[%s1 + $0xe0] sm:$0xf]
  %v74 = vld [vmem:[%s1 + $0xe4] sm:$0xf]
  %v75 = vld [vmem:[%s1 + $0xe8] sm:$0xf]
  %v76 = vld [vmem:[%s1 + $0xec] sm:$0xf]
  %v77 = vld [vmem:[%s1 + $0xf0] sm:$0xf]
  %v78 = vld [vmem:[%s1 + $0xf4] sm:$0xf]
  %v79 = vld [vmem:[%s1 + $0xf8] sm:$0xf]
  %v80 = vld [vmem:[%s1 + $0xfc] sm:$0xf]
  %v81 = vld [vmem:[%s1 + $0x100] sm:$0xf]
  %v82 = vld [vmem:[%s1 + $0x104] sm:$0xf]
  %v83 = vld [vmem:[%s1 + $0x108] sm:$0xf]
  %v84 = vld [vmem:[%s1 + $0x10c] sm:$0xf]
  %v85 = vld [vmem:[%s1 + $0x110] sm:$0xf]
  %v86 = vld [vmem:[%s1 + $0x114] sm:$0xf]
  %v87 = vld [vmem:[%s1 + $0x118] sm:$0xf]
  %v88 = vld [vmem:[%s1 + $0x11c] sm:$0xf]
  %v89 = vld [vmem:[%s1 + $0x120] sm:$0xf]
  %v90 = vld [vmem:[%s1 + $0x124] sm:$0xf]
  %v91 = vld [vmem:[%s1 + $0x128] sm:$0xf]
  %v92 = vld [vmem:[%s1 + $0x12c] sm:$0xf]
  %v93 = vld [vmem:[%s1 + $0x130] sm:$0xf]
  %v94 = vld [vmem:[%s1 + $0x134] sm:$0xf]
  %v95 = vld [vmem:[%s1 + $0x138] sm:$0xf]
  %v96 = vld [vmem:[%s1 + $0x13c] sm:$0xf]
  %v97 = vld [vmem:[%s1 + $0x140] sm:$0xf]
  %v98 = vld [vmem:[%s1 + $0x144] sm:$0xf]
  %v99 = vld [vmem:[%s1 + $0x148] sm:$0xf]
  %v100 = vld [vmem:[%s1 + $0x14c] sm:$0xf]
  %v101 = vld [vmem:[%s1 + $0x150] sm:$0xf]
  %v102 = vld [vmem:[%s1 + $0x154] sm:$0xf]
  %v103 = vld [vmem:[%s1 + $0x158] sm:$0xf]
  %v104 = vld [vmem:[%s1 + $0x15c] sm:$0xf]
  %v105 = vld [vmem:[%s1 + $0x160] sm:$0xf]
  %v106 = vld [vmem:[%s1 + $0x164] sm:$0xf]
  %v107 = vld [vmem:[%s1 + $0x168] sm:$0xf]
  %v108 = vld [vmem:[%s1 + $0x16c] sm:$0xf]
  %v109 = vld [vmem:[%s1 + $0x170] sm:$0xf]
  %v110 = vld [vmem:[%s1 + $0x174] sm:$0xf]
  %v111 = vld [vmem:[%s1 + $0x178] sm:$0xf]
  %v112 = vld [vmem:[%s1 + $0x17c] sm:$0xf]
  %v113 = vld [vmem:[%s1 + $0x180] sm:$0xf]
  %v114 = vld [vmem:[%s1 + $0x184] sm:$0xf]
  %v115 = vld [vmem:[%s1 + $0x188] sm:$0xf]
  %v116 = vld [vmem:[%s1 + $0x18c] sm:$0xf]
  %v117 = vld [vmem:[%s1 + $0x190] sm:$0xf]
  %v118 = vld [vmem:[%s1 + $0x194] sm:$0xf]
  %v119 = vld [vmem:[%s1 + $0x198] sm:$0xf]
  %v120 = vld [vmem:[%s1 + $0x19c] sm:$0xf]
  %v121 = vld [vmem:[%s1 + $0x1a0] sm:$0xf]
  %v122 = vld [vmem:[%s1 + $0x1a4] sm:$0xf]
  %v123 = vld [vmem:[%s1 + $0x1a8] sm:$0xf]
  %v124 = vld [vmem:[%s1 + $0x1ac] sm:$0xf]
  %v125 = vld [vmem:[%s1 + $0x1b0] sm:$0xf]
  %v126 = vld [vmem:[%s1 + $0x1b4] sm:$0xf]
  %v127 = vld [vmem:[%s1 + $0x1b8] sm:$0xf]
  %v128 = vld [vmem:[%s1 + $0x1bc] sm:$0xf]
  %v129 = vld [vmem:[%s1 + $0x1c0] sm:$0xf]
  %v130 = vld [vmem:[%s1 + $0x1c4] sm:$0xf]
  %v131 = vld [vmem:[%s1 + $0x1c8] sm:$0xf]
  %v132 = vld [vmem:[%s1 + $0x1cc] sm:$0xf]
  %v133 = vld [vmem:[%s1 + $0x1d0] sm:$0xf]
  %v134 = vld [vmem:[%s1 + $0x1d4] sm:$0xf]
  %v135 = vld [vmem:[%s1 + $0x1d8] sm:$0xf]
  %v136 = vld [vmem:[%s1 + $0x1dc] sm:$0xf]
  %v137 = vld [vmem:[%s1 + $0x1e0] sm:$0xf]
  %v138 = vld [vmem:[%s1 + $0x1e4] sm:$0xf]
  %v139 = vld [vmem:[%s1 + $0x1e8] sm:$0xf]
  %v140 = vld [vmem:[%s1 + $0x1ec] sm:$0xf]
  %v141 = vld [vmem:[%s1 + $0x1f0] sm:$0xf]
  %v142 = vld [vmem:[%s1 + $0x1f4] sm:$0xf]
  %v143 = vld [vmem:[%s1 + $0x1f8] sm:$0xf]
  %v144 = vld [vmem:[%s1 + $0x1fc] sm:$0xf]
  %v145 = vld [vmem:[%s1 + $0x200] sm:$0xf]
  %v146 = vld [vmem:[%s1 + $0x204] sm:$0xf]
  %v147 = vld [vmem:[%s1 + $0x208] sm:$0xf]
  %v148 = vld [vmem:[%s1 + $0x20c] sm:$0xf]
  %v149 = vld [vmem:[%s1 + $0x210] sm:$0xf]
  %v150 = vld [vmem:[%s1 + $0x214] sm:$0xf]
  %v151 = vld [vmem:[%s1 + $0x218] sm:$0xf]
  %v152 = vld [vmem:[%s1 + $0x21c] sm:$0xf]
  %v153 = vld [vmem:[%s1 + $0x220] sm:$0xf]
  %v154 = vld [vmem:[%s1 + $0x224] sm:$0xf]
  %v155 = vld [vmem:[%s1 + $0x228] sm:$0xf]
  %v156 = vld [vmem:[%s1 + $0x22c] sm:$0xf]
  %v157 = vld [vmem:[%s1 + $0x230] sm:$0xf]
  %v158 = vld [vmem:[%s1 + $0x234] sm:$0xf]
  %v159 = vld [vmem:[%s1 + $0x238] sm:$0xf]
  %v160 = vld [vmem:[%s1 + $0x23c] sm:$0xf]
  %v166 = vunpack.c.l.b16 %v12
  %v167 = vunpack.c.h.b16 %v12
  %v168 = vunpack.c.l.b16 %v13
  %v169 = vunpack.c.h.b16 %v13
  %v170 = vunpack.c.l.b16 %v14
  %v171 = vunpack.c.h.b16 %v14
  %v172 = vunpack.c.l.b16 %v15
  %v173 = vunpack.c.h.b16 %v15
  %v174 = vunpack.c.l.b16 %v16
  %v175 = vpack.c.b16 %v166, %v166
  %v176 = vpack.c.b16 %v167, %v167
  %v177 = vpack.c.b16 %v168, %v168
  %v178 = vpack.c.b16 %v169, %v169
  %v179 = vpack.c.b16 %v170, %v170
  %v180 = vpack.c.b16 %v171, %v171
  %v181 = vpack.c.b16 %v172, %v172
  %v182 = vpack.c.b16 %v173, %v173
  %v183 = vpack.c.b16 %v174, %v174
  %v337 = vunpack.c.l.b16 %v17
  %v338 = vunpack.c.l.b16 %v18
  %v339 = vunpack.c.l.b16 %v19
  %v340 = vunpack.c.l.b16 %v20
  %v341 = vunpack.c.l.b16 %v21
  %v342 = vunpack.c.l.b16 %v22
  %v343 = vunpack.c.l.b16 %v23
  %v344 = vunpack.c.l.b16 %v24
  %v345 = vunpack.c.l.b16 %v25
  %v346 = vunpack.c.l.b16 %v26
  %v347 = vunpack.c.l.b16 %v27
  %v348 = vunpack.c.l.b16 %v28
  %v349 = vunpack.c.l.b16 %v29
  %v350 = vunpack.c.l.b16 %v30
  %v351 = vunpack.c.l.b16 %v31
  %v352 = vunpack.c.l.b16 %v32
  %v353 = vunpack.c.l.b16 %v33
  %v354 = vunpack.c.l.b16 %v34
  %v355 = vunpack.c.l.b16 %v35
  %v356 = vunpack.c.l.b16 %v36
  %v357 = vunpack.c.l.b16 %v37
  %v358 = vunpack.c.l.b16 %v38
  %v359 = vunpack.c.l.b16 %v39
  %v360 = vunpack.c.l.b16 %v40
  %v361 = vunpack.c.l.b16 %v41
  %v362 = vunpack.c.l.b16 %v42
  %v363 = vunpack.c.l.b16 %v43
  %v364 = vunpack.c.l.b16 %v44
  %v365 = vunpack.c.l.b16 %v45
  %v366 = vunpack.c.l.b16 %v46
  %v367 = vunpack.c.l.b16 %v47
  %v368 = vunpack.c.l.b16 %v48
  %v369 = vunpack.c.l.b16 %v49
  %v370 = vunpack.c.l.b16 %v50
  %v371 = vunpack.c.l.b16 %v51
  %v372 = vunpack.c.l.b16 %v52
  %v373 = vunpack.c.l.b16 %v53
  %v374 = vunpack.c.l.b16 %v54
  %v375 = vunpack.c.l.b16 %v55
  %v376 = vunpack.c.l.b16 %v56
  %v377 = vunpack.c.l.b16 %v57
  %v378 = vunpack.c.l.b16 %v58
  %v379 = vunpack.c.l.b16 %v59
  %v380 = vunpack.c.l.b16 %v60
  %v381 = vunpack.c.l.b16 %v61
  %v382 = vunpack.c.l.b16 %v62
  %v383 = vunpack.c.l.b16 %v63
  %v384 = vunpack.c.l.b16 %v64
  %v385 = vunpack.c.l.b16 %v65
  %v386 = vunpack.c.l.b16 %v66
  %v387 = vunpack.c.l.b16 %v67
  %v388 = vunpack.c.l.b16 %v68
  %v389 = vunpack.c.l.b16 %v69
  %v390 = vunpack.c.l.b16 %v70
  %v391 = vunpack.c.l.b16 %v71
  %v392 = vunpack.c.l.b16 %v72
  %v393 = vunpack.c.l.b16 %v73
  %v394 = vunpack.c.l.b16 %v74
  %v395 = vunpack.c.l.b16 %v75
  %v396 = vunpack.c.l.b16 %v76
  %v397 = vunpack.c.l.b16 %v77
  %v398 = vunpack.c.l.b16 %v78
  %v399 = vunpack.c.l.b16 %v79
  %v400 = vunpack.c.l.b16 %v80
  %v401 = vunpack.c.l.b16 %v81
  %v402 = vunpack.c.l.b16 %v82
  %v403 = vunpack.c.l.b16 %v83
  %v404 = vunpack.c.l.b16 %v84
  %v405 = vunpack.c.l.b16 %v85
  %v406 = vunpack.c.l.b16 %v86
  %v407 = vunpack.c.l.b16 %v87
  %v408 = vunpack.c.l.b16 %v88
  %v409 = vunpack.c.l.b16 %v89
  %v410 = vunpack.c.l.b16 %v90
  %v411 = vunpack.c.l.b16 %v91
  %v412 = vunpack.c.l.b16 %v92
  %v413 = vunpack.c.l.b16 %v93
  %v414 = vunpack.c.l.b16 %v94
  %v415 = vunpack.c.l.b16 %v95
  %v416 = vunpack.c.l.b16 %v96
  %v417 = vunpack.c.l.b16 %v97
  %v418 = vunpack.c.l.b16 %v98
  %v419 = vunpack.c.l.b16 %v99
  %v420 = vunpack.c.l.b16 %v100
  %v421 = vunpack.c.l.b16 %v101
  %v422 = vunpack.c.l.b16 %v102
  %v423 = vunpack.c.l.b16 %v103
  %v424 = vunpack.c.l.b16 %v104
  %v425 = vunpack.c.l.b16 %v105
  %v426 = vunpack.c.l.b16 %v106
  %v427 = vunpack.c.l.b16 %v107
  %v428 = vunpack.c.l.b16 %v108
  %v429 = vunpack.c.l.b16 %v109
  %v430 = vunpack.c.l.b16 %v110
  %v431 = vunpack.c.l.b16 %v111
  %v432 = vunpack.c.l.b16 %v112
  %v433 = vunpack.c.l.b16 %v113
  %v434 = vunpack.c.l.b16 %v114
  %v435 = vunpack.c.l.b16 %v115
  %v436 = vunpack.c.l.b16 %v116
  %v437 = vunpack.c.l.b16 %v117
  %v438 = vunpack.c.l.b16 %v118
  %v439 = vunpack.c.l.b16 %v119
  %v440 = vunpack.c.l.b16 %v120
  %v441 = vunpack.c.l.b16 %v121
  %v442 = vunpack.c.l.b16 %v122
  %v443 = vunpack.c.l.b16 %v123
  %v444 = vunpack.c.l.b16 %v124
  %v445 = vunpack.c.l.b16 %v125
  %v446 = vunpack.c.l.b16 %v126
  %v447 = vunpack.c.l.b16 %v127
  %v448 = vunpack.c.l.b16 %v128
  %v449 = vunpack.c.l.b16 %v129
  %v450 = vunpack.c.l.b16 %v130
  %v451 = vunpack.c.l.b16 %v131
  %v452 = vunpack.c.l.b16 %v132
  %v453 = vunpack.c.l.b16 %v133
  %v454 = vunpack.c.l.b16 %v134
  %v455 = vunpack.c.l.b16 %v135
  %v456 = vunpack.c.l.b16 %v136
  %v457 = vunpack.c.l.b16 %v137
  %v458 = vunpack.c.l.b16 %v138
  %v459 = vunpack.c.l.b16 %v139
  %v460 = vunpack.c.l.b16 %v140
  %v461 = vunpack.c.l.b16 %v141
  %v462 = vunpack.c.l.b16 %v142
  %v463 = vunpack.c.l.b16 %v143
  %v464 = vunpack.c.l.b16 %v144
  %v465 = vunpack.c.l.b16 %v145
  %v466 = vunpack.c.l.b16 %v146
  %v467 = vunpack.c.l.b16 %v147
  %v468 = vunpack.c.l.b16 %v148
  %v469 = vunpack.c.l.b16 %v149
  %v470 = vunpack.c.l.b16 %v150
  %v471 = vunpack.c.l.b16 %v151
  %v472 = vunpack.c.l.b16 %v152
  %v473 = vunpack.c.l.b16 %v153
  %v474 = vunpack.c.l.b16 %v154
  %v475 = vunpack.c.l.b16 %v155
  %v476 = vunpack.c.l.b16 %v156
  %v477 = vunpack.c.l.b16 %v157
  %v478 = vunpack.c.l.b16 %v158
  %v479 = vunpack.c.l.b16 %v159
  %v480 = vunpack.c.l.b16 %v160
  %v481 = vpack.c.b16 %v338, %v337
  %v482 = vpack.c.b16 %v340, %v339
  %v483 = vpack.c.b16 %v342, %v341
  %v484 = vpack.c.b16 %v344, %v343
  %v485 = vpack.c.b16 %v346, %v345
  %v486 = vpack.c.b16 %v348, %v347
  %v487 = vpack.c.b16 %v350, %v349
  %v488 = vpack.c.b16 %v352, %v351
  %v489 = vpack.c.b16 %v354, %v353
  %v490 = vpack.c.b16 %v356, %v355
  %v491 = vpack.c.b16 %v358, %v357
  %v492 = vpack.c.b16 %v360, %v359
  %v493 = vpack.c.b16 %v362, %v361
  %v494 = vpack.c.b16 %v364, %v363
  %v495 = vpack.c.b16 %v366, %v365
  %v496 = vpack.c.b16 %v368, %v367
  %v497 = vpack.c.b16 %v370, %v369
  %v498 = vpack.c.b16 %v372, %v371
  %v499 = vpack.c.b16 %v374, %v373
  %v500 = vpack.c.b16 %v376, %v375
  %v501 = vpack.c.b16 %v378, %v377
  %v502 = vpack.c.b16 %v380, %v379
  %v503 = vpack.c.b16 %v382, %v381
  %v504 = vpack.c.b16 %v384, %v383
  %v505 = vpack.c.b16 %v386, %v385
  %v506 = vpack.c.b16 %v388, %v387
  %v507 = vpack.c.b16 %v390, %v389
  %v508 = vpack.c.b16 %v392, %v391
  %v509 = vpack.c.b16 %v394, %v393
  %v510 = vpack.c.b16 %v396, %v395
  %v511 = vpack.c.b16 %v398, %v397
  %v512 = vpack.c.b16 %v400, %v399
  %v513 = vpack.c.b16 %v402, %v401
  %v514 = vpack.c.b16 %v404, %v403
  %v515 = vpack.c.b16 %v406, %v405
  %v516 = vpack.c.b16 %v408, %v407
  %v517 = vpack.c.b16 %v410, %v409
  %v518 = vpack.c.b16 %v412, %v411
  %v519 = vpack.c.b16 %v414, %v413
  %v520 = vpack.c.b16 %v416, %v415
  %v521 = vpack.c.b16 %v418, %v417
  %v522 = vpack.c.b16 %v420, %v419
  %v523 = vpack.c.b16 %v422, %v421
  %v524 = vpack.c.b16 %v424, %v423
  %v525 = vpack.c.b16 %v426, %v425
  %v526 = vpack.c.b16 %v428, %v427
  %v527 = vpack.c.b16 %v430, %v429
  %v528 = vpack.c.b16 %v432, %v431
  %v529 = vpack.c.b16 %v434, %v433
  %v530 = vpack.c.b16 %v436, %v435
  %v531 = vpack.c.b16 %v438, %v437
  %v532 = vpack.c.b16 %v440, %v439
  %v533 = vpack.c.b16 %v442, %v441
  %v534 = vpack.c.b16 %v444, %v443
  %v535 = vpack.c.b16 %v446, %v445
  %v536 = vpack.c.b16 %v448, %v447
  %v537 = vpack.c.b16 %v450, %v449
  %v538 = vpack.c.b16 %v452, %v451
  %v539 = vpack.c.b16 %v454, %v453
  %v540 = vpack.c.b16 %v456, %v455
  %v541 = vpack.c.b16 %v458, %v457
  %v542 = vpack.c.b16 %v460, %v459
  %v543 = vpack.c.b16 %v462, %v461
  %v544 = vpack.c.b16 %v464, %v463
  %v545 = vpack.c.b16 %v466, %v465
  %v546 = vpack.c.b16 %v468, %v467
  %v547 = vpack.c.b16 %v470, %v469
  %v548 = vpack.c.b16 %v472, %v471
  %v549 = vpack.c.b16 %v474, %v473
  %v550 = vpack.c.b16 %v476, %v475
  %v551 = vpack.c.b16 %v478, %v477
  %v552 = vpack.c.b16 %v480, %v479
  %625 = vmatprep.subr.bf16.mxu0 0
  %626 = vmatpush1.bf16.msra.mxu0 %v481
  %627 = vmatprep.subr.bf16.mxu0 0
  %628 = vmatpush1.bf16.msra.mxu0 %v482
  %629 = vmatprep.subr.bf16.mxu0 0
  %630 = vmatpush1.bf16.msra.mxu0 %v483
  %631 = vmatprep.subr.bf16.mxu0 0
  %632 = vmatpush1.bf16.msra.mxu0 %v484
  %633 = vmatprep.subr.bf16.mxu0 0
  %634 = vmatpush1.bf16.msra.mxu0 %v485
  %635 = vmatprep.subr.bf16.mxu0 0
  %636 = vmatpush1.bf16.msra.mxu0 %v486
  %637 = vmatprep.subr.bf16.mxu0 0
  %638 = vmatpush1.bf16.msra.mxu0 %v487
  %639 = vmatprep.subr.bf16.mxu0 0
  %640 = vmatpush1.bf16.msra.mxu0 %v488
  %641 = vmatprep.subr.bf16.mxu0 0
  %642 = vmatpush1.bf16.msra.mxu0 %v489
  %643 = vmatprep.subr.bf16.mxu0 0
  %644 = vmatpush1.bf16.msra.mxu0 %v490
  %645 = vmatprep.subr.bf16.mxu0 0
  %646 = vmatpush1.bf16.msra.mxu0 %v491
  %647 = vmatprep.subr.bf16.mxu0 0
  %648 = vmatpush1.bf16.msra.mxu0 %v492
  %649 = vmatprep.subr.bf16.mxu0 0
  %650 = vmatpush1.bf16.msra.mxu0 %v493
  %651 = vmatprep.subr.bf16.mxu0 0
  %652 = vmatpush1.bf16.msra.mxu0 %v494
  %653 = vmatprep.subr.bf16.mxu0 0
  %654 = vmatpush1.bf16.msra.mxu0 %v495
  %655 = vmatprep.subr.bf16.mxu0 0
  %656 = vmatpush1.bf16.msra.mxu0 %v496
  %657 = vmatprep.mubr.bf16.mxu0 %v176
  %658 = vmatmul.mubr.bf16.gmra.mrb[0].mxu0 %v175
  %v659 = vpop.f32.mrb[0].mxu0
  %v660 = vadd.f32 0.0, %v659
  %v661 = vpop.f32.mrb[0].mxu0
  %v662 = vpop.f32.mrb[0].mxu0
  %v663 = vpop.f32.mrb[0].mxu0
  %664 = vdwg.mxu0
  %665 = vmatprep.subr.bf16.mxu0 0
  %666 = vmatpush1.bf16.msra.mxu0 %v497
  %667 = vmatprep.subr.bf16.mxu0 0
  %668 = vmatpush1.bf16.msra.mxu0 %v498
  %669 = vmatprep.subr.bf16.mxu0 0
  %670 = vmatpush1.bf16.msra.mxu0 %v499
  %671 = vmatprep.subr.bf16.mxu0 0
  %672 = vmatpush1.bf16.msra.mxu0 %v500
  %673 = vmatprep.subr.bf16.mxu0 0
  %674 = vmatpush1.bf16.msra.mxu0 %v501
  %675 = vmatprep.subr.bf16.mxu0 0
  %676 = vmatpush1.bf16.msra.mxu0 %v502
  %677 = vmatprep.subr.bf16.mxu0 0
  %678 = vmatpush1.bf16.msra.mxu0 %v503
  %679 = vmatprep.subr.bf16.mxu0 0
  %680 = vmatpush1.bf16.msra.mxu0 %v504
  %681 = vmatprep.subr.bf16.mxu0 0
  %682 = vmatpush1.bf16.msra.mxu0 %v505
  %683 = vmatprep.subr.bf16.mxu0 0
  %684 = vmatpush1.bf16.msra.mxu0 %v506
  %685 = vmatprep.subr.bf16.mxu0 0
  %686 = vmatpush1.bf16.msra.mxu0 %v507
  %687 = vmatprep.subr.bf16.mxu0 0
  %688 = vmatpush1.bf16.msra.mxu0 %v508
  %689 = vmatprep.subr.bf16.mxu0 0
  %690 = vmatpush1.bf16.msra.mxu0 %v509
  %691 = vmatprep.subr.bf16.mxu0 0
  %692 = vmatpush1.bf16.msra.mxu0 %v510
  %693 = vmatprep.subr.bf16.mxu0 0
  %694 = vmatpush1.bf16.msra.mxu0 %v511
  %695 = vmatprep.subr.bf16.mxu0 0
  %696 = vmatpush1.bf16.msra.mxu0 %v512
  %697 = vmatprep.mubr.bf16.mxu0 %v178
  %698 = vmatmul.mubr.bf16.gmra.mrb[0].mxu0 %v177
  %v699 = vpop.f32.mrb[0].mxu0
  %v700 = vadd.f32 %v660, %v699
  %v701 = vpop.f32.mrb[0].mxu0
  %v702 = vpop.f32.mrb[0].mxu0
  %v703 = vpop.f32.mrb[0].mxu0
  %704 = vdwg.mxu0
  %705 = vmatprep.subr.bf16.mxu0 0
  %706 = vmatpush1.bf16.msra.mxu0 %v513
  %707 = vmatprep.subr.bf16.mxu0 0
  %708 = vmatpush1.bf16.msra.mxu0 %v514
  %709 = vmatprep.subr.bf16.mxu0 0
  %710 = vmatpush1.bf16.msra.mxu0 %v515
  %711 = vmatprep.subr.bf16.mxu0 0
  %712 = vmatpush1.bf16.msra.mxu0 %v516
  %713 = vmatprep.subr.bf16.mxu0 0
  %714 = vmatpush1.bf16.msra.mxu0 %v517
  %715 = vmatprep.subr.bf16.mxu0 0
  %716 = vmatpush1.bf16.msra.mxu0 %v518
  %717 = vmatprep.subr.bf16.mxu0 0
  %718 = vmatpush1.bf16.msra.mxu0 %v519
  %719 = vmatprep.subr.bf16.mxu0 0
  %720 = vmatpush1.bf16.msra.mxu0 %v520
  %721 = vmatprep.subr.bf16.mxu0 0
  %722 = vmatpush1.bf16.msra.mxu0 %v521
  %723 = vmatprep.subr.bf16.mxu0 0
  %724 = vmatpush1.bf16.msra.mxu0 %v522
  %725 = vmatprep.subr.bf16.mxu0 0
  %726 = vmatpush1.bf16.msra.mxu0 %v523
  %727 = vmatprep.subr.bf16.mxu0 0
  %728 = vmatpush1.bf16.msra.mxu0 %v524
  %729 = vmatprep.subr.bf16.mxu0 0
  %730 = vmatpush1.bf16.msra.mxu0 %v525
  %731 = vmatprep.subr.bf16.mxu0 0
  %732 = vmatpush1.bf16.msra.mxu0 %v526
  %733 = vmatprep.subr.bf16.mxu0 0
  %734 = vmatpush1.bf16.msra.mxu0 %v527
  %735 = vmatprep.subr.bf16.mxu0 0
  %736 = vmatpush1.bf16.msra.mxu0 %v528
  %737 = vmatprep.mubr.bf16.mxu0 %v180
  %738 = vmatmul.mubr.bf16.gmra.mrb[0].mxu0 %v179
  %v739 = vpop.f32.mrb[0].mxu0
  %v740 = vadd.f32 %v700, %v739
  %v741 = vpop.f32.mrb[0].mxu0
  %v742 = vpop.f32.mrb[0].mxu0
  %v743 = vpop.f32.mrb[0].mxu0
  %744 = vdwg.mxu0
  %745 = vmatprep.subr.bf16.mxu0 0
  %746 = vmatpush1.bf16.msra.mxu0 %v529
  %747 = vmatprep.subr.bf16.mxu0 0
  %748 = vmatpush1.bf16.msra.mxu0 %v530
  %749 = vmatprep.subr.bf16.mxu0 0
  %750 = vmatpush1.bf16.msra.mxu0 %v531
  %751 = vmatprep.subr.bf16.mxu0 0
  %752 = vmatpush1.bf16.msra.mxu0 %v532
  %753 = vmatprep.subr.bf16.mxu0 0
  %754 = vmatpush1.bf16.msra.mxu0 %v533
  %755 = vmatprep.subr.bf16.mxu0 0
  %756 = vmatpush1.bf16.msra.mxu0 %v534
  %757 = vmatprep.subr.bf16.mxu0 0
  %758 = vmatpush1.bf16.msra.mxu0 %v535
  %759 = vmatprep.subr.bf16.mxu0 0
  %760 = vmatpush1.bf16.msra.mxu0 %v536
  %761 = vmatprep.subr.bf16.mxu0 0
  %762 = vmatpush1.bf16.msra.mxu0 %v537
  %763 = vmatprep.subr.bf16.mxu0 0
  %764 = vmatpush1.bf16.msra.mxu0 %v538
  %765 = vmatprep.subr.bf16.mxu0 0
  %766 = vmatpush1.bf16.msra.mxu0 %v539
  %767 = vmatprep.subr.bf16.mxu0 0
  %768 = vmatpush1.bf16.msra.mxu0 %v540
  %769 = vmatprep.subr.bf16.mxu0 0
  %770 = vmatpush1.bf16.msra.mxu0 %v541
  %771 = vmatprep.subr.bf16.mxu0 0
  %772 = vmatpush1.bf16.msra.mxu0 %v542
  %773 = vmatprep.subr.bf16.mxu0 0
  %774 = vmatpush1.bf16.msra.mxu0 %v543
  %775 = vmatprep.subr.bf16.mxu0 0
  %776 = vmatpush1.bf16.msra.mxu0 %v544
  %777 = vmatprep.mubr.bf16.mxu0 %v182
  %778 = vmatmul.mubr.bf16.gmra.mrb[0].mxu0 %v181
  %v779 = vpop.f32.mrb[0].mxu0
  %v780 = vadd.f32 %v740, %v779
  %v781 = vpop.f32.mrb[0].mxu0
  %v782 = vpop.f32.mrb[0].mxu0
  %v783 = vpop.f32.mrb[0].mxu0
  %784 = vdwg.mxu0
  %785 = vmatprep.subr.bf16.mxu0 0
  %786 = vmatpush1.bf16.msra.mxu0 %v545
  %787 = vmatprep.subr.bf16.mxu0 0
  %788 = vmatpush1.bf16.msra.mxu0 %v546
  %789 = vmatprep.subr.bf16.mxu0 0
  %790 = vmatpush1.bf16.msra.mxu0 %v547
  %791 = vmatprep.subr.bf16.mxu0 0
  %792 = vmatpush1.bf16.msra.mxu0 %v548
  %793 = vmatprep.subr.bf16.mxu0 0
  %794 = vmatpush1.bf16.msra.mxu0 %v549
  %795 = vmatprep.subr.bf16.mxu0 0
  %796 = vmatpush1.bf16.msra.mxu0 %v550
  %797 = vmatprep.subr.bf16.mxu0 0
  %798 = vmatpush1.bf16.msra.mxu0 %v551
  %799 = vmatprep.subr.bf16.mxu0 0
  %800 = vmatpush1.bf16.msra.mxu0 %v552
  %801 = vmatprep.subr.bf16.mxu0 0
  %802 = vmatpush1.bf16.msra.mxu0 0
  %803 = vmatprep.subr.bf16.mxu0 0
  %804 = vmatpush1.bf16.msra.mxu0 0
  %805 = vmatprep.subr.bf16.mxu0 0
  %806 = vmatpush1.bf16.msra.mxu0 0
  %807 = vmatprep.subr.bf16.mxu0 0
  %808 = vmatpush1.bf16.msra.mxu0 0
  %809 = vmatprep.subr.bf16.mxu0 0
  %810 = vmatpush1.bf16.msra.mxu0 0
  %811 = vmatprep.subr.bf16.mxu0 0
  %812 = vmatpush1.bf16.msra.mxu0 0
  %813 = vmatprep.subr.bf16.mxu0 0
  %814 = vmatpush1.bf16.msra.mxu0 0
  %815 = vmatprep.subr.bf16.mxu0 0
  %816 = vmatpush1.bf16.msra.mxu0 0
  %817 = vmatprep.mubr.bf16.mxu0 0
  %818 = vmatmul.mubr.bf16.gmra.mrb[0].mxu0 %v183
  %v819 = vpop.f32.mrb[0].mxu0
  %v820 = vadd.f32 %v780, %v819
  %v821 = vpop.f32.mrb[0].mxu0
  %v822 = vpop.f32.mrb[0].mxu0
  %v823 = vpop.f32.mrb[0].mxu0
  %824 = vdwg.mxu0
  %v825 = vrot.slane %v820, 4
  %v826 = vadd.f32 %v820, %v825
  %v827 = vrot.slane %v826, 2
  %v828 = vadd.f32 %v826, %v827
  %v829 = vrot.slane %v828, 1
  %v830 = vadd.f32 %v828, %v829
  %v831 = vmul.f32 %v820, %v820
  %v832 = vrot.slane %v831, 4
  %v833 = vadd.f32 %v831, %v832
  %v834 = vrot.slane %v833, 2
  %v835 = vadd.f32 %v833, %v834
  %v836 = vrot.slane %v835, 1
  %v837 = vadd.f32 %v835, %v836
  %v838 = vmul.f32 %v830, 0.125
  %v839 = vmul.f32 %v837, 0.125
  %v840 = vmul.f32 %v838, %v838
  %v841 = vsub.f32 %v839, %v840
  %v842 = vmax.f32 %v841, 0.0
  %v843 = vsub.f32 %v820, %v838
  %v844 = vadd.f32 %v842, 1e-05
  %v845 = vrsqrt.pop %v844
  %v846 = vmul.f32 %v843, %v845
  %vm847 = vcmp.gt.f32.partialorder %v846, 0.0
  %v848 = vmul.f32 %v846, 0.01
  %v849 = vsel %vm847, %v846, %v848
  %v850 = vpack.c.bf16 %v849, %v849
  %851 = vst [vmem:[%s2] sm:$0xf] %v850
  // Predicated region
  $region10: #{_lambda_.33} parent=0 // pred_check
    _
  $region11: #{_lambda_.33} parent=0 // pred_check_branch
    %853 = sbr.rel (0) target = $region13
  $region12: #{_lambda_.33} parent=0 // pred_region
    _
  $region13: #{_lambda_.33} parent=0 // pred_fallthru
    _
  // Predicated region
  $region14: #{_lambda_.33} parent=0 // pred_check
    _
  $region15: #{_lambda_.33} parent=0 // pred_check_branch
    %855 = sbr.rel (0) target = $region17
  $region16: #{_lambda_.33} parent=0 // pred_region
    _
  $region17: #{_lambda_.33} parent=0 // pred_fallthru
    _

// kernel: _lambda_.36
$region0: #{_lambda_.36}
  #allocation0 [shape = 'u32[]', space=smem, size = 0x4, offset = 0x4, fixed_abs, tag = 'smem constant byte address 0x4 - core index']
  #allocation1 [shape = 'u32[144,128]{1,0:T(1,128)}', space=vmem, size = 0x12000, scoped, tag = 'internal scratch']
  %s0 = inlined_call_operand.vmem [shape: bf16[32,640], index: 0, kind: input, shape index: {}]
  %s1 = inlined_call_operand.vmem [shape: bf16[640,128], index: 1, kind: input, shape index: {}]
  %s2 = inlined_call_operand.vmem [shape: bf16[32,128], index: 2, kind: output, shape index: {}]
  %s3 = sld [smem:[#allocation0]]
  $region18: #{_lambda_.36} parent=0
    _
  %s5 = ssub.s32 1, %s3
  %s6 = scalar_select 0, %s5, %s3
  // Predicated region
  $region2: #{_lambda_.36} parent=0 // pred_check
    _
  $region3: #{_lambda_.36} parent=0 // pred_check_branch
    %8 = sbr.rel (0) target = $region5
  $region4: #{_lambda_.36} parent=0 // pred_region
    _
  $region5: #{_lambda_.36} parent=0 // pred_fallthru
    _
  // Predicated region
  $region6: #{_lambda_.36} parent=0 // pred_check
    _
  $region7: #{_lambda_.36} parent=0 // pred_check_branch
    %10 = sbr.rel (0) target = $region9
  $region8: #{_lambda_.36} parent=0 // pred_region
    _
  $region9: #{_lambda_.36} parent=0 // pred_fallthru
    _
  %v12 = vld [vmem:[%s0] sm:$0xff]
  %v13 = vld [vmem:[%s0 + $0x8] sm:$0xff]
  %v14 = vld [vmem:[%s0 + $0x10] sm:$0xf]
  %v15 = vld [vmem:[%s0 + $0x14] sm:$0xff]
  %v16 = vld [vmem:[%s0 + $0x1c] sm:$0xff]
  %v17 = vld [vmem:[%s0 + $0x24] sm:$0xf]
  %v18 = vld [vmem:[%s0 + $0x28] sm:$0xff]
  %v19 = vld [vmem:[%s0 + $0x30] sm:$0xff]
  %v20 = vld [vmem:[%s0 + $0x38] sm:$0xf]
  %v21 = vld [vmem:[%s0 + $0x3c] sm:$0xff]
  %v22 = vld [vmem:[%s0 + $0x44] sm:$0xff]
  %v23 = vld [vmem:[%s0 + $0x4c] sm:$0xf]
  %v24 = vld [vmem:[%s1] sm:$0xf]
  %v25 = vld [vmem:[%s1 + $0x4] sm:$0xf]
  %v26 = vld [vmem:[%s1 + $0x8] sm:$0xf]
  %v27 = vld [vmem:[%s1 + $0xc] sm:$0xf]
  %v28 = vld [vmem:[%s1 + $0x10] sm:$0xf]
  %v29 = vld [vmem:[%s1 + $0x14] sm:$0xf]
  %v30 = vld [vmem:[%s1 + $0x18] sm:$0xf]
  %v31 = vld [vmem:[%s1 + $0x1c] sm:$0xf]
  %v32 = vld [vmem:[%s1 + $0x20] sm:$0xf]
  %v33 = vld [vmem:[%s1 + $0x24] sm:$0xf]
  %v34 = vld [vmem:[%s1 + $0x28] sm:$0xf]
  %v35 = vld [vmem:[%s1 + $0x2c] sm:$0xf]
  %v36 = vld [vmem:[%s1 + $0x30] sm:$0xf]
  %v37 = vld [vmem:[%s1 + $0x34] sm:$0xf]
  %v38 = vld [vmem:[%s1 + $0x38] sm:$0xf]
  %v39 = vld [vmem:[%s1 + $0x3c] sm:$0xf]
  %v40 = vld [vmem:[%s1 + $0x40] sm:$0xf]
  %v41 = vld [vmem:[%s1 + $0x44] sm:$0xf]
  %v42 = vld [vmem:[%s1 + $0x48] sm:$0xf]
  %v43 = vld [vmem:[%s1 + $0x4c] sm:$0xf]
  %v44 = vld [vmem:[%s1 + $0x50] sm:$0xf]
  %v45 = vld [vmem:[%s1 + $0x54] sm:$0xf]
  %v46 = vld [vmem:[%s1 + $0x58] sm:$0xf]
  %v47 = vld [vmem:[%s1 + $0x5c] sm:$0xf]
  %v48 = vld [vmem:[%s1 + $0x60] sm:$0xf]
  %v49 = vld [vmem:[%s1 + $0x64] sm:$0xf]
  %v50 = vld [vmem:[%s1 + $0x68] sm:$0xf]
  %v51 = vld [vmem:[%s1 + $0x6c] sm:$0xf]
  %v52 = vld [vmem:[%s1 + $0x70] sm:$0xf]
  %v53 = vld [vmem:[%s1 + $0x74] sm:$0xf]
  %v54 = vld [vmem:[%s1 + $0x78] sm:$0xf]
  %v55 = vld [vmem:[%s1 + $0x7c] sm:$0xf]
  %v56 = vld [vmem:[%s1 + $0x80] sm:$0xf]
  %v57 = vld [vmem:[%s1 + $0x84] sm:$0xf]
  %v58 = vld [vmem:[%s1 + $0x88] sm:$0xf]
  %v59 = vld [vmem:[%s1 + $0x8c] sm:$0xf]
  %v60 = vld [vmem:[%s1 + $0x90] sm:$0xf]
  %v61 = vld [vmem:[%s1 + $0x94] sm:$0xf]
  %v62 = vld [vmem:[%s1 + $0x98] sm:$0xf]
  %v63 = vld [vmem:[%s1 + $0x9c] sm:$0xf]
  %v64 = vld [vmem:[%s1 + $0xa0] sm:$0xf]
  %v65 = vld [vmem:[%s1 + $0xa4] sm:$0xf]
  %v66 = vld [vmem:[%s1 + $0xa8] sm:$0xf]
  %v67 = vld [vmem:[%s1 + $0xac] sm:$0xf]
  %v68 = vld [vmem:[%s1 + $0xb0] sm:$0xf]
  %v69 = vld [vmem:[%s1 + $0xb4] sm:$0xf]
  %v70 = vld [vmem:[%s1 + $0xb8] sm:$0xf]
  %v71 = vld [vmem:[%s1 + $0xbc] sm:$0xf]
  %v72 = vld [vmem:[%s1 + $0xc0] sm:$0xf]
  %v73 = vld [vmem:[%s1 + $0xc4] sm:$0xf]
  %v74 = vld [vmem:[%s1 + $0xc8] sm:$0xf]
  %v75 = vld [vmem:[%s1 + $0xcc] sm:$0xf]
  %v76 = vld [vmem:[%s1 + $0xd0] sm:$0xf]
  %v77 = vld [vmem:[%s1 + $0xd4] sm:$0xf]
  %v78 = vld [vmem:[%s1 + $0xd8] sm:$0xf]
  %v79 = vld [vmem:[%s1 + $0xdc] sm:$0xf]
  %v80 = vld [vmem:[%s1 + $0xe0] sm:$0xf]
  %v81 = vld [vmem:[%s1 + $0xe4] sm:$0xf]
  %v82 = vld [vmem:[%s1 + $0xe8] sm:$0xf]
  %v83 = vld [vmem:[%s1 + $0xec] sm:$0xf]
  %v84 = vld [vmem:[%s1 + $0xf0] sm:$0xf]
  %v85 = vld [vmem:[%s1 + $0xf4] sm:$0xf]
  %v86 = vld [vmem:[%s1 + $0xf8] sm:$0xf]
  %v87 = vld [vmem:[%s1 + $0xfc] sm:$0xf]
  %v88 = vld [vmem:[%s1 + $0x100] sm:$0xf]
  %v89 = vld [vmem:[%s1 + $0x104] sm:$0xf]
  %v90 = vld [vmem:[%s1 + $0x108] sm:$0xf]
  %v91 = vld [vmem:[%s1 + $0x10c] sm:$0xf]
  %v92 = vld [vmem:[%s1 + $0x110] sm:$0xf]
  %v93 = vld [vmem:[%s1 + $0x114] sm:$0xf]
  %v94 = vld [vmem:[%s1 + $0x118] sm:$0xf]
  %v95 = vld [vmem:[%s1 + $0x11c] sm:$0xf]
  %v96 = vld [vmem:[%s1 + $0x120] sm:$0xf]
  %v97 = vld [vmem:[%s1 + $0x124] sm:$0xf]
  %v98 = vld [vmem:[%s1 + $0x128] sm:$0xf]
  %v99 = vld [vmem:[%s1 + $0x12c] sm:$0xf]
  %v100 = vld [vmem:[%s1 + $0x130] sm:$0xf]
  %v101 = vld [vmem:[%s1 + $0x134] sm:$0xf]
  %v102 = vld [vmem:[%s1 + $0x138] sm:$0xf]
  %v103 = vld [vmem:[%s1 + $0x13c] sm:$0xf]
  %v116 = vunpack.c.l.b16 %v12
  %v117 = vunpack.c.h.b16 %v12
  %v118 = vunpack.c.l.b16 %v13
  %v119 = vunpack.c.h.b16 %v13
  %v120 = vunpack.c.l.b16 %v14
  %v121 = vunpack.c.l.b16 %v15
  %v122 = vunpack.c.h.b16 %v15
  %v123 = vunpack.c.l.b16 %v16
  %v124 = vunpack.c.h.b16 %v16
  %v125 = vunpack.c.l.b16 %v17
  %v126 = vunpack.c.l.b16 %v18
  %v127 = vunpack.c.h.b16 %v18
  %v128 = vunpack.c.l.b16 %v19
  %v129 = vunpack.c.h.b16 %v19
  %v130 = vunpack.c.l.b16 %v20
  %v131 = vunpack.c.l.b16 %v21
  %v132 = vunpack.c.h.b16 %v21
  %v133 = vunpack.c.l.b16 %v22
  %v134 = vunpack.c.h.b16 %v22
  %v135 = vunpack.c.l.b16 %v23
  %v136 = vpack.c.b16 %v121, %v116
  %v137 = vpack.c.b16 %v122, %v117
  %v138 = vpack.c.b16 %v123, %v118
  %v139 = vpack.c.b16 %v124, %v119
  %v140 = vpack.c.b16 %v125, %v120
  %v141 = vpack.c.b16 %v131, %v126
  %v142 = vpack.c.b16 %v132, %v127
  %v143 = vpack.c.b16 %v133, %v128
  %v144 = vpack.c.b16 %v134, %v129
  %v145 = vpack.c.b16 %v135, %v130
  %v236 = vunpack.c.l.b16 %v24
  %v237 = vunpack.c.l.b16 %v25
  %v238 = vunpack.c.l.b16 %v26
  %v239 = vunpack.c.l.b16 %v27
  %v240 = vunpack.c.l.b16 %v28
  %v241 = vunpack.c.l.b16 %v29
  %v242 = vunpack.c.l.b16 %v30
  %v243 = vunpack.c.l.b16 %v31
  %v244 = vunpack.c.l.b16 %v32
  %v245 = vunpack.c.l.b16 %v33
  %v246 = vunpack.c.l.b16 %v34
  %v247 = vunpack.c.l.b16 %v35
  %v248 = vunpack.c.l.b16 %v36
  %v249 = vunpack.c.l.b16 %v37
  %v250 = vunpack.c.l.b16 %v38
  %v251 = vunpack.c.l.b16 %v39
  %v252 = vunpack.c.l.b16 %v40
  %v253 = vunpack.c.l.b16 %v41
  %v254 = vunpack.c.l.b16 %v42
  %v255 = vunpack.c.l.b16 %v43
  %v256 = vunpack.c.l.b16 %v44
  %v257 = vunpack.c.l.b16 %v45
  %v258 = vunpack.c.l.b16 %v46
  %v259 = vunpack.c.l.b16 %v47
  %v260 = vunpack.c.l.b16 %v48
  %v261 = vunpack.c.l.b16 %v49
  %v262 = vunpack.c.l.b16 %v50
  %v263 = vunpack.c.l.b16 %v51
  %v264 = vunpack.c.l.b16 %v52
  %v265 = vunpack.c.l.b16 %v53
  %v266 = vunpack.c.l.b16 %v54
  %v267 = vunpack.c.l.b16 %v55
  %v268 = vunpack.c.l.b16 %v56
  %v269 = vunpack.c.l.b16 %v57
  %v270 = vunpack.c.l.b16 %v58
  %v271 = vunpack.c.l.b16 %v59
  %v272 = vunpack.c.l.b16 %v60
  %v273 = vunpack.c.l.b16 %v61
  %v274 = vunpack.c.l.b16 %v62
  %v275 = vunpack.c.l.b16 %v63
  %v276 = vunpack.c.l.b16 %v64
  %v277 = vunpack.c.l.b16 %v65
  %v278 = vunpack.c.l.b16 %v66
  %v279 = vunpack.c.l.b16 %v67
  %v280 = vunpack.c.l.b16 %v68
  %v281 = vunpack.c.l.b16 %v69
  %v282 = vunpack.c.l.b16 %v70
  %v283 = vunpack.c.l.b16 %v71
  %v284 = vunpack.c.l.b16 %v72
  %v285 = vunpack.c.l.b16 %v73
  %v286 = vunpack.c.l.b16 %v74
  %v287 = vunpack.c.l.b16 %v75
  %v288 = vunpack.c.l.b16 %v76
  %v289 = vunpack.c.l.b16 %v77
  %v290 = vunpack.c.l.b16 %v78
  %v291 = vunpack.c.l.b16 %v79
  %v292 = vunpack.c.l.b16 %v80
  %v293 = vunpack.c.l.b16 %v81
  %v294 = vunpack.c.l.b16 %v82
  %v295 = vunpack.c.l.b16 %v83
  %v296 = vunpack.c.l.b16 %v84
  %v297 = vunpack.c.l.b16 %v85
  %v298 = vunpack.c.l.b16 %v86
  %v299 = vunpack.c.l.b16 %v87
  %v300 = vunpack.c.l.b16 %v88
  %v301 = vunpack.c.l.b16 %v89
  %v302 = vunpack.c.l.b16 %v90
  %v303 = vunpack.c.l.b16 %v91
  %v304 = vunpack.c.l.b16 %v92
  %v305 = vunpack.c.l.b16 %v93
  %v306 = vunpack.c.l.b16 %v94
  %v307 = vunpack.c.l.b16 %v95
  %v308 = vunpack.c.l.b16 %v96
  %v309 = vunpack.c.l.b16 %v97
  %v310 = vunpack.c.l.b16 %v98
  %v311 = vunpack.c.l.b16 %v99
  %v312 = vunpack.c.l.b16 %v100
  %v313 = vunpack.c.l.b16 %v101
  %v314 = vunpack.c.l.b16 %v102
  %v315 = vunpack.c.l.b16 %v103
  %v316 = vpack.c.b16 %v237, %v236
  %v317 = vpack.c.b16 %v239, %v238
  %v318 = vpack.c.b16 %v241, %v240
  %v319 = vpack.c.b16 %v243, %v242
  %v320 = vpack.c.b16 %v245, %v244
  %v321 = vpack.c.b16 %v247, %v246
  %v322 = vpack.c.b16 %v249, %v248
  %v323 = vpack.c.b16 %v251, %v250
  %v324 = vpack.c.b16 %v253, %v252
  %v325 = vpack.c.b16 %v255, %v254
  %v326 = vpack.c.b16 %v257, %v256
  %v327 = vpack.c.b16 %v259, %v258
  %v328 = vpack.c.b16 %v261, %v260
  %v329 = vpack.c.b16 %v263, %v262
  %v330 = vpack.c.b16 %v265, %v264
  %v331 = vpack.c.b16 %v267, %v266
  %v332 = vpack.c.b16 %v269, %v268
  %v333 = vpack.c.b16 %v271, %v270
  %v334 = vpack.c.b16 %v273, %v272
  %v335 = vpack.c.b16 %v275, %v274
  %v336 = vpack.c.b16 %v277, %v276
  %v337 = vpack.c.b16 %v279, %v278
  %v338 = vpack.c.b16 %v281, %v280
  %v339 = vpack.c.b16 %v283, %v282
  %v340 = vpack.c.b16 %v285, %v284
  %v341 = vpack.c.b16 %v287, %v286
  %v342 = vpack.c.b16 %v289, %v288
  %v343 = vpack.c.b16 %v291, %v290
  %v344 = vpack.c.b16 %v293, %v292
  %v345 = vpack.c.b16 %v295, %v294
  %v346 = vpack.c.b16 %v297, %v296
  %v347 = vpack.c.b16 %v299, %v298
  %v348 = vpack.c.b16 %v301, %v300
  %v349 = vpack.c.b16 %v303, %v302
  %v350 = vpack.c.b16 %v305, %v304
  %v351 = vpack.c.b16 %v307, %v306
  %v352 = vpack.c.b16 %v309, %v308
  %v353 = vpack.c.b16 %v311, %v310
  %v354 = vpack.c.b16 %v313, %v312
  %v355 = vpack.c.b16 %v315, %v314
  %396 = vmatprep.subr.bf16.mxu0 0
  %397 = vmatpush1.bf16.msra.mxu0 %v316
  %398 = vmatprep.subr.bf16.mxu0 0
  %399 = vmatpush1.bf16.msra.mxu0 %v317
  %400 = vmatprep.subr.bf16.mxu0 0
  %401 = vmatpush1.bf16.msra.mxu0 %v318
  %402 = vmatprep.subr.bf16.mxu0 0
  %403 = vmatpush1.bf16.msra.mxu0 %v319
  %404 = vmatprep.subr.bf16.mxu0 0
  %405 = vmatpush1.bf16.msra.mxu0 %v320
  %406 = vmatprep.subr.bf16.mxu0 0
  %407 = vmatpush1.bf16.msra.mxu0 %v321
  %408 = vmatprep.subr.bf16.mxu0 0
  %409 = vmatpush1.bf16.msra.mxu0 %v322
  %410 = vmatprep.subr.bf16.mxu0 0
  %411 = vmatpush1.bf16.msra.mxu0 %v323
  %412 = vmatprep.subr.bf16.mxu0 0
  %413 = vmatpush1.bf16.msra.mxu0 %v324
  %414 = vmatprep.subr.bf16.mxu0 0
  %415 = vmatpush1.bf16.msra.mxu0 %v325
  %416 = vmatprep.subr.bf16.mxu0 0
  %417 = vmatpush1.bf16.msra.mxu0 %v326
  %418 = vmatprep.subr.bf16.mxu0 0
  %419 = vmatpush1.bf16.msra.mxu0 %v327
  %420 = vmatprep.subr.bf16.mxu0 0
  %421 = vmatpush1.bf16.msra.mxu0 %v328
  %422 = vmatprep.subr.bf16.mxu0 0
  %423 = vmatpush1.bf16.msra.mxu0 %v329
  %424 = vmatprep.subr.bf16.mxu0 0
  %425 = vmatpush1.bf16.msra.mxu0 %v330
  %426 = vmatprep.subr.bf16.mxu0 0
  %427 = vmatpush1.bf16.msra.mxu0 %v331
  %428 = vmatprep.mubr.bf16.mxu0 %v137
  %429 = vmatmul.mubr.bf16.gmra.mrb[0].mxu0 %v136
  %v430 = vpop.f32.mrb[0].mxu0
  %v431 = vadd.f32 0.0, %v430
  %v432 = vpop.f32.mrb[0].mxu0
  %v433 = vpop.f32.mrb[0].mxu0
  %v434 = vadd.f32 0.0, %v433
  %v435 = vpop.f32.mrb[0].mxu0
  %436 = vmatprep.mubr.bf16.mxu0 %v142
  %437 = vmatmul.mubr.bf16.gmra.mrb[0].mxu0 %v141
  %v438 = vpop.f32.mrb[0].mxu0
  %v439 = vadd.f32 0.0, %v438
  %v440 = vpop.f32.mrb[0].mxu0
  %v441 = vpop.f32.mrb[0].mxu0
  %v442 = vadd.f32 0.0, %v441
  %v443 = vpop.f32.mrb[0].mxu0
  %444 = vdwg.mxu0
  %445 = vmatprep.subr.bf16.mxu0 0
  %446 = vmatpush1.bf16.msra.mxu0 %v332
  %447 = vmatprep.subr.bf16.mxu0 0
  %448 = vmatpush1.bf16.msra.mxu0 %v333
  %449 = vmatprep.subr.bf16.mxu0 0
  %450 = vmatpush1.bf16.msra.mxu0 %v334
  %451 = vmatprep.subr.bf16.mxu0 0
  %452 = vmatpush1.bf16.msra.mxu0 %v335
  %453 = vmatprep.subr.bf16.mxu0 0
  %454 = vmatpush1.bf16.msra.mxu0 %v336
  %455 = vmatprep.subr.bf16.mxu0 0
  %456 = vmatpush1.bf16.msra.mxu0 %v337
  %457 = vmatprep.subr.bf16.mxu0 0
  %458 = vmatpush1.bf16.msra.mxu0 %v338
  %459 = vmatprep.subr.bf16.mxu0 0
  %460 = vmatpush1.bf16.msra.mxu0 %v339
  %461 = vmatprep.subr.bf16.mxu0 0
  %462 = vmatpush1.bf16.msra.mxu0 %v340
  %463 = vmatprep.subr.bf16.mxu0 0
  %464 = vmatpush1.bf16.msra.mxu0 %v341
  %465 = vmatprep.subr.bf16.mxu0 0
  %466 = vmatpush1.bf16.msra.mxu0 %v342
  %467 = vmatprep.subr.bf16.mxu0 0
  %468 = vmatpush1.bf16.msra.mxu0 %v343
  %469 = vmatprep.subr.bf16.mxu0 0
  %470 = vmatpush1.bf16.msra.mxu0 %v344
  %471 = vmatprep.subr.bf16.mxu0 0
  %472 = vmatpush1.bf16.msra.mxu0 %v345
  %473 = vmatprep.subr.bf16.mxu0 0
  %474 = vmatpush1.bf16.msra.mxu0 %v346
  %475 = vmatprep.subr.bf16.mxu0 0
  %476 = vmatpush1.bf16.msra.mxu0 %v347
  %477 = vmatprep.mubr.bf16.mxu0 %v139
  %478 = vmatmul.mubr.bf16.gmra.mrb[0].mxu0 %v138
  %v479 = vpop.f32.mrb[0].mxu0
  %v480 = vadd.f32 %v431, %v479
  %v481 = vpop.f32.mrb[0].mxu0
  %v482 = vpop.f32.mrb[0].mxu0
  %v483 = vadd.f32 %v434, %v482
  %v484 = vpop.f32.mrb[0].mxu0
  %485 = vmatprep.mubr.bf16.mxu0 %v144
  %486 = vmatmul.mubr.bf16.gmra.mrb[0].mxu0 %v143
  %v487 = vpop.f32.mrb[0].mxu0
  %v488 = vadd.f32 %v439, %v487
  %v489 = vpop.f32.mrb[0].mxu0
  %v490 = vpop.f32.mrb[0].mxu0
  %v491 = vadd.f32 %v442, %v490
  %v492 = vpop.f32.mrb[0].mxu0
  %493 = vdwg.mxu0
  %494 = vmatprep.subr.bf16.mxu0 0
  %495 = vmatpush1.bf16.msra.mxu0 %v348
  %496 = vmatprep.subr.bf16.mxu0 0
  %497 = vmatpush1.bf16.msra.mxu0 %v349
  %498 = vmatprep.subr.bf16.mxu0 0
  %499 = vmatpush1.bf16.msra.mxu0 %v350
  %500 = vmatprep.subr.bf16.mxu0 0
  %501 = vmatpush1.bf16.msra.mxu0 %v351
  %502 = vmatprep.subr.bf16.mxu0 0
  %503 = vmatpush1.bf16.msra.mxu0 %v352
  %504 = vmatprep.subr.bf16.mxu0 0
  %505 = vmatpush1.bf16.msra.mxu0 %v353
  %506 = vmatprep.subr.bf16.mxu0 0
  %507 = vmatpush1.bf16.msra.mxu0 %v354
  %508 = vmatprep.subr.bf16.mxu0 0
  %509 = vmatpush1.bf16.msra.mxu0 %v355
  %510 = vmatprep.subr.bf16.mxu0 0
  %511 = vmatpush1.bf16.msra.mxu0 0
  %512 = vmatprep.subr.bf16.mxu0 0
  %513 = vmatpush1.bf16.msra.mxu0 0
  %514 = vmatprep.subr.bf16.mxu0 0
  %515 = vmatpush1.bf16.msra.mxu0 0
  %516 = vmatprep.subr.bf16.mxu0 0
  %517 = vmatpush1.bf16.msra.mxu0 0
  %518 = vmatprep.subr.bf16.mxu0 0
  %519 = vmatpush1.bf16.msra.mxu0 0
  %520 = vmatprep.subr.bf16.mxu0 0
  %521 = vmatpush1.bf16.msra.mxu0 0
  %522 = vmatprep.subr.bf16.mxu0 0
  %523 = vmatpush1.bf16.msra.mxu0 0
  %524 = vmatprep.subr.bf16.mxu0 0
  %525 = vmatpush1.bf16.msra.mxu0 0
  %526 = vmatprep.mubr.bf16.mxu0 0
  %527 = vmatmul.mubr.bf16.gmra.mrb[0].mxu0 %v140
  %v528 = vpop.f32.mrb[0].mxu0
  %v529 = vadd.f32 %v480, %v528
  %v530 = vpop.f32.mrb[0].mxu0
  %v531 = vpop.f32.mrb[0].mxu0
  %v532 = vadd.f32 %v483, %v531
  %v533 = vpop.f32.mrb[0].mxu0
  %534 = vmatprep.mubr.bf16.mxu0 0
  %535 = vmatmul.mubr.bf16.gmra.mrb[0].mxu0 %v145
  %v536 = vpop.f32.mrb[0].mxu0
  %v537 = vadd.f32 %v488, %v536
  %v538 = vpop.f32.mrb[0].mxu0
  %v539 = vpop.f32.mrb[0].mxu0
  %v540 = vadd.f32 %v491, %v539
  %v541 = vpop.f32.mrb[0].mxu0
  %542 = vdwg.mxu0
  %v543 = vadd.f32 %v529, %v532
  %v544 = vadd.f32 %v543, %v537
  %v545 = vadd.f32 %v544, %v540
  %v546 = vrot.slane %v545, 4
  %v547 = vadd.f32 %v545, %v546
  %v548 = vrot.slane %v547, 2
  %v549 = vadd.f32 %v547, %v548
  %v550 = vrot.slane %v549, 1
  %v551 = vadd.f32 %v549, %v550
  %v552 = vmul.f32 %v529, %v529
  %v553 = vmul.f32 %v532, %v532
  %v554 = vmul.f32 %v537, %v537
  %v555 = vmul.f32 %v540, %v540
  %v556 = vadd.f32 %v552, %v553
  %v557 = vadd.f32 %v556, %v554
  %v558 = vadd.f32 %v557, %v555
  %v559 = vrot.slane %v558, 4
  %v560 = vadd.f32 %v558, %v559
  %v561 = vrot.slane %v560, 2
  %v562 = vadd.f32 %v560, %v561
  %v563 = vrot.slane %v562, 1
  %v564 = vadd.f32 %v562, %v563
  %v565 = vmul.f32 %v551, 0.03125
  %v566 = vmul.f32 %v564, 0.03125
  %v567 = vmul.f32 %v565, %v565
  %v568 = vsub.f32 %v566, %v567
  %v569 = vmax.f32 %v568, 0.0
  %v570 = vsub.f32 %v529, %v565
  %v571 = vsub.f32 %v532, %v565
  %v572 = vsub.f32 %v537, %v565
  %v573 = vsub.f32 %v540, %v565
  %v574 = vadd.f32 %v569, 1e-05
  %v575 = vrsqrt.pop %v574
  %v576 = vmul.f32 %v570, %v575
  %v577 = vmul.f32 %v571, %v575
  %v578 = vmul.f32 %v572, %v575
  %v579 = vmul.f32 %v573, %v575
  %vm580 = vcmp.gt.f32.partialorder %v576, 0.0
  %vm581 = vcmp.gt.f32.partialorder %v577, 0.0
  %vm582 = vcmp.gt.f32.partialorder %v578, 0.0
  %vm583 = vcmp.gt.f32.partialorder %v579, 0.0
  %v584 = vmul.f32 %v576, 0.01
  %v585 = vmul.f32 %v577, 0.01
  %v586 = vmul.f32 %v578, 0.01
  %v587 = vmul.f32 %v579, 0.01
  %v588 = vsel %vm580, %v576, %v584
  %v589 = vsel %vm581, %v577, %v585
  %v590 = vsel %vm582, %v578, %v586
  %v591 = vsel %vm583, %v579, %v587
  %v592 = vpack.c.bf16 %v589, %v588
  %v593 = vpack.c.bf16 %v591, %v590
  %v596 = vunpack.c.l.b16 %v592
  %v597 = vunpack.c.h.b16 %v592
  %v598 = vunpack.c.l.b16 %v593
  %v599 = vunpack.c.h.b16 %v593
  %v600 = vpack.c.b16 %v596, %v596
  %v601 = vpack.c.b16 %v597, %v597
  %v602 = vpack.c.b16 %v598, %v598
  %v603 = vpack.c.b16 %v599, %v599
  %608 = vst [vmem:[%s2] sm:$0xf] %v600
  %609 = vst [vmem:[%s2 + $0x4] sm:$0xf] %v601
  %610 = vst [vmem:[%s2 + $0x8] sm:$0xf] %v602
  %611 = vst [vmem:[%s2 + $0xc] sm:$0xf] %v603
  // Predicated region
  $region10: #{_lambda_.36} parent=0 // pred_check
    _
  $region11: #{_lambda_.36} parent=0 // pred_check_branch
    %613 = sbr.rel (0) target = $region13
  $region12: #{_lambda_.36} parent=0 // pred_region
    _
  $region13: #{_lambda_.36} parent=0 // pred_fallthru
    _
  // Predicated region
  $region14: #{_lambda_.36} parent=0 // pred_check
    _
  $region15: #{_lambda_.36} parent=0 // pred_check_branch
    %615 = sbr.rel (0) target = $region17
  $region16: #{_lambda_.36} parent=0 // pred_region
    _
  $region17: #{_lambda_.36} parent=0 // pred_fallthru
    _

// kernel: _lambda_.39
$region0: #{_lambda_.39}
  #allocation0 [shape = 'u32[]', space=smem, size = 0x4, offset = 0x4, fixed_abs, tag = 'smem constant byte address 0x4 - core index']
  #allocation1 [shape = 'u32[144,128]{1,0:T(1,128)}', space=vmem, size = 0x12000, scoped, tag = 'internal scratch']
  %s0 = inlined_call_operand.vmem [shape: bf16[128,384], index: 0, kind: input, shape index: {}]
  %s1 = inlined_call_operand.vmem [shape: bf16[384,128], index: 1, kind: input, shape index: {}]
  %s2 = inlined_call_operand.vmem [shape: bf16[128,128], index: 2, kind: output, shape index: {}]
  %s3 = sld [smem:[#allocation0]]
  $region18: #{_lambda_.39} parent=0
    _
  %s5 = ssub.s32 1, %s3
  %s6 = scalar_select 0, %s5, %s3
  // Predicated region
  $region2: #{_lambda_.39} parent=0 // pred_check
    _
  $region3: #{_lambda_.39} parent=0 // pred_check_branch
    %8 = sbr.rel (0) target = $region5
  $region4: #{_lambda_.39} parent=0 // pred_region
    _
  $region5: #{_lambda_.39} parent=0 // pred_fallthru
    _
  // Predicated region
  $region6: #{_lambda_.39} parent=0 // pred_check
    _
  $region7: #{_lambda_.39} parent=0 // pred_check_branch
    %10 = sbr.rel (0) target = $region9
  $region8: #{_lambda_.39} parent=0 // pred_region
    _
  $region9: #{_lambda_.39} parent=0 // pred_fallthru
    _
  %v12 = vld [vmem:[%s0] sm:$0xff]
  %v13 = vld [vmem:[%s0 + $0x8] sm:$0xf]
  %v14 = vld [vmem:[%s0 + $0xc] sm:$0xff]
  %v15 = vld [vmem:[%s0 + $0x14] sm:$0xf]
  %v16 = vld [vmem:[%s0 + $0x18] sm:$0xff]
  %v17 = vld [vmem:[%s0 + $0x20] sm:$0xf]
  %v18 = vld [vmem:[%s0 + $0x24] sm:$0xff]
  %v19 = vld [vmem:[%s0 + $0x2c] sm:$0xf]
  %v20 = vld [vmem:[%s0 + $0x30] sm:$0xff]
  %v21 = vld [vmem:[%s0 + $0x38] sm:$0xf]
  %v22 = vld [vmem:[%s0 + $0x3c] sm:$0xff]
  %v23 = vld [vmem:[%s0 + $0x44] sm:$0xf]
  %v24 = vld [vmem:[%s0 + $0x48] sm:$0xff]
  %v25 = vld [vmem:[%s0 + $0x50] sm:$0xf]
  %v26 = vld [vmem:[%s0 + $0x54] sm:$0xff]
  %v27 = vld [vmem:[%s0 + $0x5c] sm:$0xf]
  %v28 = vld [vmem:[%s0 + $0x60] sm:$0xff]
  %v29 = vld [vmem:[%s0 + $0x68] sm:$0xf]
  %v30 = vld [vmem:[%s0 + $0x6c] sm:$0xff]
  %v31 = vld [vmem:[%s0 + $0x74] sm:$0xf]
  %v32 = vld [vmem:[%s0 + $0x78] sm:$0xff]
  %v33 = vld [vmem:[%s0 + $0x80] sm:$0xf]
  %v34 = vld [vmem:[%s0 + $0x84] sm:$0xff]
  %v35 = vld [vmem:[%s0 + $0x8c] sm:$0xf]
  %v36 = vld [vmem:[%s0 + $0x90] sm:$0xff]
  %v37 = vld [vmem:[%s0 + $0x98] sm:$0xf]
  %v38 = vld [vmem:[%s0 + $0x9c] sm:$0xff]
  %v39 = vld [vmem:[%s0 + $0xa4] sm:$0xf]
  %v40 = vld [vmem:[%s0 + $0xa8] sm:$0xff]
  %v41 = vld [vmem:[%s0 + $0xb0] sm:$0xf]
  %v42 = vld [vmem:[%s0 + $0xb4] sm:$0xff]
  %v43 = vld [vmem:[%s0 + $0xbc] sm:$0xf]
  %v44 = vld [vmem:[%s1] sm:$0xf]
  %v45 = vld [vmem:[%s1 + $0x4] sm:$0xf]
  %v46 = vld [vmem:[%s1 + $0x8] sm:$0xf]
  %v47 = vld [vmem:[%s1 + $0xc] sm:$0xf]
  %v48 = vld [vmem:[%s1 + $0x10] sm:$0xf]
  %v49 = vld [vmem:[%s1 + $0x14] sm:$0xf]
  %v50 = vld [vmem:[%s1 + $0x18] sm:$0xf]
  %v51 = vld [vmem:[%s1 + $0x1c] sm:$0xf]
  %v52 = vld [vmem:[%s1 + $0x20] sm:$0xf]
  %v53 = vld [vmem:[%s1 + $0x24] sm:$0xf]
  %v54 = vld [vmem:[%s1 + $0x28] sm:$0xf]
  %v55 = vld [vmem:[%s1 + $0x2c] sm:$0xf]
  %v56 = vld [vmem:[%s1 + $0x30] sm:$0xf]
  %v57 = vld [vmem:[%s1 + $0x34] sm:$0xf]
  %v58 = vld [vmem:[%s1 + $0x38] sm:$0xf]
  %v59 = vld [vmem:[%s1 + $0x3c] sm:$0xf]
  %v60 = vld [vmem:[%s1 + $0x40] sm:$0xf]
  %v61 = vld [vmem:[%s1 + $0x44] sm:$0xf]
  %v62 = vld [vmem:[%s1 + $0x48] sm:$0xf]
  %v63 = vld [vmem:[%s1 + $0x4c] sm:$0xf]
  %v64 = vld [vmem:[%s1 + $0x50] sm:$0xf]
  %v65 = vld [vmem:[%s1 + $0x54] sm:$0xf]
  %v66 = vld [vmem:[%s1 + $0x58] sm:$0xf]
  %v67 = vld [vmem:[%s1 + $0x5c] sm:$0xf]
  %v68 = vld [vmem:[%s1 + $0x60] sm:$0xf]
  %v69 = vld [vmem:[%s1 + $0x64] sm:$0xf]
  %v70 = vld [vmem:[%s1 + $0x68] sm:$0xf]
  %v71 = vld [vmem:[%s1 + $0x6c] sm:$0xf]
  %v72 = vld [vmem:[%s1 + $0x70] sm:$0xf]
  %v73 = vld [vmem:[%s1 + $0x74] sm:$0xf]
  %v74 = vld [vmem:[%s1 + $0x78] sm:$0xf]
  %v75 = vld [vmem:[%s1 + $0x7c] sm:$0xf]
  %v76 = vld [vmem:[%s1 + $0x80] sm:$0xf]
  %v77 = vld [vmem:[%s1 + $0x84] sm:$0xf]
  %v78 = vld [vmem:[%s1 + $0x88] sm:$0xf]
  %v79 = vld [vmem:[%s1 + $0x8c] sm:$0xf]
  %v80 = vld [vmem:[%s1 + $0x90] sm:$0xf]
  %v81 = vld [vmem:[%s1 + $0x94] sm:$0xf]
  %v82 = vld [vmem:[%s1 + $0x98] sm:$0xf]
  %v83 = vld [vmem:[%s1 + $0x9c] sm:$0xf]
  %v84 = vld [vmem:[%s1 + $0xa0] sm:$0xf]
  %v85 = vld [vmem:[%s1 + $0xa4] sm:$0xf]
  %v86 = vld [vmem:[%s1 + $0xa8] sm:$0xf]
  %v87 = vld [vmem:[%s1 + $0xac] sm:$0xf]
  %v88 = vld [vmem:[%s1 + $0xb0] sm:$0xf]
  %v89 = vld [vmem:[%s1 + $0xb4] sm:$0xf]
  %v90 = vld [vmem:[%s1 + $0xb8] sm:$0xf]
  %v91 = vld [vmem:[%s1 + $0xbc] sm:$0xf]
  %v124 = vunpack.c.l.b16 %v12
  %v125 = vunpack.c.h.b16 %v12
  %v126 = vunpack.c.l.b16 %v13
  %v127 = vunpack.c.l.b16 %v14
  %v128 = vunpack.c.h.b16 %v14
  %v129 = vunpack.c.l.b16 %v15
  %v130 = vunpack.c.l.b16 %v16
  %v131 = vunpack.c.h.b16 %v16
  %v132 = vunpack.c.l.b16 %v17
  %v133 = vunpack.c.l.b16 %v18
  %v134 = vunpack.c.h.b16 %v18
  %v135 = vunpack.c.l.b16 %v19
  %v136 = vunpack.c.l.b16 %v20
  %v137 = vunpack.c.h.b16 %v20
  %v138 = vunpack.c.l.b16 %v21
  %v139 = vunpack.c.l.b16 %v22
  %v140 = vunpack.c.h.b16 %v22
  %v141 = vunpack.c.l.b16 %v23
  %v142 = vunpack.c.l.b16 %v24
  %v143 = vunpack.c.h.b16 %v24
  %v144 = vunpack.c.l.b16 %v25
  %v145 = vunpack.c.l.b16 %v26
  %v146 = vunpack.c.h.b16 %v26
  %v147 = vunpack.c.l.b16 %v27
  %v148 = vunpack.c.l.b16 %v28
  %v149 = vunpack.c.h.b16 %v28
  %v150 = vunpack.c.l.b16 %v29
  %v151 = vunpack.c.l.b16 %v30
  %v152 = vunpack.c.h.b16 %v30
  %v153 = vunpack.c.l.b16 %v31
  %v154 = vunpack.c.l.b16 %v32
  %v155 = vunpack.c.h.b16 %v32
  %v156 = vunpack.c.l.b16 %v33
  %v157 = vunpack.c.l.b16 %v34
  %v158 = vunpack.c.h.b16 %v34
  %v159 = vunpack.c.l.b16 %v35
  %v160 = vunpack.c.l.b16 %v36
  %v161 = vunpack.c.h.b16 %v36
  %v162 = vunpack.c.l.b16 %v37
  %v163 = vunpack.c.l.b16 %v38
  %v164 = vunpack.c.h.b16 %v38
  %v165 = vunpack.c.l.b16 %v39
  %v166 = vunpack.c.l.b16 %v40
  %v167 = vunpack.c.h.b16 %v40
  %v168 = vunpack.c.l.b16 %v41
  %v169 = vunpack.c.l.b16 %v42
  %v170 = vunpack.c.h.b16 %v42
  %v171 = vunpack.c.l.b16 %v43
  %v172 = vpack.c.b16 %v127, %v124
  %v173 = vpack.c.b16 %v128, %v125
  %v174 = vpack.c.b16 %v129, %v126
  %v175 = vpack.c.b16 %v133, %v130
  %v176 = vpack.c.b16 %v134, %v131
  %v177 = vpack.c.b16 %v135, %v132
  %v178 = vpack.c.b16 %v139, %v136
  %v179 = vpack.c.b16 %v140, %v137
  %v180 = vpack.c.b16 %v141, %v138
  %v181 = vpack.c.b16 %v145, %v142
  %v182 = vpack.c.b16 %v146, %v143
  %v183 = vpack.c.b16 %v147, %v144
  %v184 = vpack.c.b16 %v151, %v148
  %v185 = vpack.c.b16 %v152, %v149
  %v186 = vpack.c.b16 %v153, %v150
  %v187 = vpack.c.b16 %v157, %v154
  %v188 = vpack.c.b16 %v158, %v155
  %v189 = vpack.c.b16 %v159, %v156
  %v190 = vpack.c.b16 %v163, %v160
  %v191 = vpack.c.b16 %v164, %v161
  %v192 = vpack.c.b16 %v165, %v162
  %v193 = vpack.c.b16 %v169, %v166
  %v194 = vpack.c.b16 %v170, %v167
  %v195 = vpack.c.b16 %v171, %v168
  %v268 = vunpack.c.l.b16 %v44
  %v269 = vunpack.c.l.b16 %v45
  %v270 = vunpack.c.l.b16 %v46
  %v271 = vunpack.c.l.b16 %v47
  %v272 = vunpack.c.l.b16 %v48
  %v273 = vunpack.c.l.b16 %v49
  %v274 = vunpack.c.l.b16 %v50
  %v275 = vunpack.c.l.b16 %v51
  %v276 = vunpack.c.l.b16 %v52
  %v277 = vunpack.c.l.b16 %v53
  %v278 = vunpack.c.l.b16 %v54
  %v279 = vunpack.c.l.b16 %v55
  %v280 = vunpack.c.l.b16 %v56
  %v281 = vunpack.c.l.b16 %v57
  %v282 = vunpack.c.l.b16 %v58
  %v283 = vunpack.c.l.b16 %v59
  %v284 = vunpack.c.l.b16 %v60
  %v285 = vunpack.c.l.b16 %v61
  %v286 = vunpack.c.l.b16 %v62
  %v287 = vunpack.c.l.b16 %v63
  %v288 = vunpack.c.l.b16 %v64
  %v289 = vunpack.c.l.b16 %v65
  %v290 = vunpack.c.l.b16 %v66
  %v291 = vunpack.c.l.b16 %v67
  %v292 = vunpack.c.l.b16 %v68
  %v293 = vunpack.c.l.b16 %v69
  %v294 = vunpack.c.l.b16 %v70
  %v295 = vunpack.c.l.b16 %v71
  %v296 = vunpack.c.l.b16 %v72
  %v297 = vunpack.c.l.b16 %v73
  %v298 = vunpack.c.l.b16 %v74
  %v299 = vunpack.c.l.b16 %v75
  %v300 = vunpack.c.l.b16 %v76
  %v301 = vunpack.c.l.b16 %v77
  %v302 = vunpack.c.l.b16 %v78
  %v303 = vunpack.c.l.b16 %v79
  %v304 = vunpack.c.l.b16 %v80
  %v305 = vunpack.c.l.b16 %v81
  %v306 = vunpack.c.l.b16 %v82
  %v307 = vunpack.c.l.b16 %v83
  %v308 = vunpack.c.l.b16 %v84
  %v309 = vunpack.c.l.b16 %v85
  %v310 = vunpack.c.l.b16 %v86
  %v311 = vunpack.c.l.b16 %v87
  %v312 = vunpack.c.l.b16 %v88
  %v313 = vunpack.c.l.b16 %v89
  %v314 = vunpack.c.l.b16 %v90
  %v315 = vunpack.c.l.b16 %v91
  %v316 = vpack.c.b16 %v269, %v268
  %v317 = vpack.c.b16 %v271, %v270
  %v318 = vpack.c.b16 %v273, %v272
  %v319 = vpack.c.b16 %v275, %v274
  %v320 = vpack.c.b16 %v277, %v276
  %v321 = vpack.c.b16 %v279, %v278
  %v322 = vpack.c.b16 %v281, %v280
  %v323 = vpack.c.b16 %v283, %v282
  %v324 = vpack.c.b16 %v285, %v284
  %v325 = vpack.c.b16 %v287, %v286
  %v326 = vpack.c.b16 %v289, %v288
  %v327 = vpack.c.b16 %v291, %v290
  %v328 = vpack.c.b16 %v293, %v292
  %v329 = vpack.c.b16 %v295, %v294
  %v330 = vpack.c.b16 %v297, %v296
  %v331 = vpack.c.b16 %v299, %v298
  %v332 = vpack.c.b16 %v301, %v300
  %v333 = vpack.c.b16 %v303, %v302
  %v334 = vpack.c.b16 %v305, %v304
  %v335 = vpack.c.b16 %v307, %v306
  %v336 = vpack.c.b16 %v309, %v308
  %v337 = vpack.c.b16 %v311, %v310
  %v338 = vpack.c.b16 %v313, %v312
  %v339 = vpack.c.b16 %v315, %v314
  %364 = vmatprep.subr.bf16.mxu0 0
  %365 = vmatpush1.bf16.msra.mxu0 %v316
  %366 = vmatprep.subr.bf16.mxu0 0
  %367 = vmatpush1.bf16.msra.mxu0 %v317
  %368 = vmatprep.subr.bf16.mxu0 0
  %369 = vmatpush1.bf16.msra.mxu0 %v318
  %370 = vmatprep.subr.bf16.mxu0 0
  %371 = vmatpush1.bf16.msra.mxu0 %v319
  %372 = vmatprep.subr.bf16.mxu0 0
  %373 = vmatpush1.bf16.msra.mxu0 %v320
  %374 = vmatprep.subr.bf16.mxu0 0
  %375 = vmatpush1.bf16.msra.mxu0 %v321
  %376 = vmatprep.subr.bf16.mxu0 0
  %377 = vmatpush1.bf16.msra.mxu0 %v322
  %378 = vmatprep.subr.bf16.mxu0 0
  %379 = vmatpush1.bf16.msra.mxu0 %v323
  %380 = vmatprep.subr.bf16.mxu0 0
  %381 = vmatpush1.bf16.msra.mxu0 %v324
  %382 = vmatprep.subr.bf16.mxu0 0
  %383 = vmatpush1.bf16.msra.mxu0 %v325
  %384 = vmatprep.subr.bf16.mxu0 0
  %385 = vmatpush1.bf16.msra.mxu0 %v326
  %386 = vmatprep.subr.bf16.mxu0 0
  %387 = vmatpush1.bf16.msra.mxu0 %v327
  %388 = vmatprep.subr.bf16.mxu0 0
  %389 = vmatpush1.bf16.msra.mxu0 %v328
  %390 = vmatprep.subr.bf16.mxu0 0
  %391 = vmatpush1.bf16.msra.mxu0 %v329
  %392 = vmatprep.subr.bf16.mxu0 0
  %393 = vmatpush1.bf16.msra.mxu0 %v330
  %394 = vmatprep.subr.bf16.mxu0 0
  %395 = vmatpush1.bf16.msra.mxu0 %v331
  %396 = vmatprep.mubr.bf16.mxu0 %v173
  %397 = vmatmul.mubr.bf16.gmra.mrb[0].mxu0 %v172
  %v398 = vpop.f32.mrb[0].mxu0
  %v399 = vadd.f32 0.0, %v398
  %v400 = vpop.f32.mrb[0].mxu0
  %v401 = vpop.f32.mrb[0].mxu0
  %v402 = vadd.f32 0.0, %v401
  %v403 = vpop.f32.mrb[0].mxu0
  %404 = vmatprep.mubr.bf16.mxu0 %v176
  %405 = vmatmul.mubr.bf16.gmra.mrb[0].mxu0 %v175
  %v406 = vpop.f32.mrb[0].mxu0
  %v407 = vadd.f32 0.0, %v406
  %v408 = vpop.f32.mrb[0].mxu0
  %v409 = vpop.f32.mrb[0].mxu0
  %v410 = vadd.f32 0.0, %v409
  %v411 = vpop.f32.mrb[0].mxu0
  %412 = vmatprep.mubr.bf16.mxu0 %v179
  %413 = vmatmul.mubr.bf16.gmra.mrb[0].mxu0 %v178
  %v414 = vpop.f32.mrb[0].mxu0
  %v415 = vadd.f32 0.0, %v414
  %v416 = vpop.f32.mrb[0].mxu0
  %v417 = vpop.f32.mrb[0].mxu0
  %v418 = vadd.f32 0.0, %v417
  %v419 = vpop.f32.mrb[0].mxu0
  %420 = vmatprep.mubr.bf16.mxu0 %v182
  %421 = vmatmul.mubr.bf16.gmra.mrb[0].mxu0 %v181
  %v422 = vpop.f32.mrb[0].mxu0
  %v423 = vadd.f32 0.0, %v422
  %v424 = vpop.f32.mrb[0].mxu0
  %v425 = vpop.f32.mrb[0].mxu0
  %v426 = vadd.f32 0.0, %v425
  %v427 = vpop.f32.mrb[0].mxu0
  %428 = vmatprep.mubr.bf16.mxu0 %v185
  %429 = vmatmul.mubr.bf16.gmra.mrb[0].mxu0 %v184
  %v430 = vpop.f32.mrb[0].mxu0
  %v431 = vadd.f32 0.0, %v430
  %v432 = vpop.f32.mrb[0].mxu0
  %v433 = vpop.f32.mrb[0].mxu0
  %v434 = vadd.f32 0.0, %v433
  %v435 = vpop.f32.mrb[0].mxu0
  %436 = vmatprep.mubr.bf16.mxu0 %v188
  %437 = vmatmul.mubr.bf16.gmra.mrb[0].mxu0 %v187
  %v438 = vpop.f32.mrb[0].mxu0
  %v439 = vadd.f32 0.0, %v438
  %v440 = vpop.f32.mrb[0].mxu0
  %v441 = vpop.f32.mrb[0].mxu0
  %v442 = vadd.f32 0.0, %v441
  %v443 = vpop.f32.mrb[0].mxu0
  %444 = vmatprep.mubr.bf16.mxu0 %v191
  %445 = vmatmul.mubr.bf16.gmra.mrb[0].mxu0 %v190
  %v446 = vpop.f32.mrb[0].mxu0
  %v447 = vadd.f32 0.0, %v446
  %v448 = vpop.f32.mrb[0].mxu0
  %v449 = vpop.f32.mrb[0].mxu0
  %v450 = vadd.f32 0.0, %v449
  %v451 = vpop.f32.mrb[0].mxu0
  %452 = vmatprep.mubr.bf16.mxu0 %v194
  %453 = vmatmul.mubr.bf16.gmra.mrb[0].mxu0 %v193
  %v454 = vpop.f32.mrb[0].mxu0
  %v455 = vadd.f32 0.0, %v454
  %v456 = vpop.f32.mrb[0].mxu0
  %v457 = vpop.f32.mrb[0].mxu0
  %v458 = vadd.f32 0.0, %v457
  %v459 = vpop.f32.mrb[0].mxu0
  %460 = vdwg.mxu0
  %461 = vmatprep.subr.bf16.mxu0 0
  %462 = vmatpush1.bf16.msra.mxu0 %v332
  %463 = vmatprep.subr.bf16.mxu0 0
  %464 = vmatpush1.bf16.msra.mxu0 %v333
  %465 = vmatprep.subr.bf16.mxu0 0
  %466 = vmatpush1.bf16.msra.mxu0 %v334
  %467 = vmatprep.subr.bf16.mxu0 0
  %468 = vmatpush1.bf16.msra.mxu0 %v335
  %469 = vmatprep.subr.bf16.mxu0 0
  %470 = vmatpush1.bf16.msra.mxu0 %v336
  %471 = vmatprep.subr.bf16.mxu0 0
  %472 = vmatpush1.bf16.msra.mxu0 %v337
  %473 = vmatprep.subr.bf16.mxu0 0
  %474 = vmatpush1.bf16.msra.mxu0 %v338
  %475 = vmatprep.subr.bf16.mxu0 0
  %476 = vmatpush1.bf16.msra.mxu0 %v339
  %477 = vmatprep.subr.bf16.mxu0 0
  %478 = vmatpush1.bf16.msra.mxu0 0
  %479 = vmatprep.subr.bf16.mxu0 0
  %480 = vmatpush1.bf16.msra.mxu0 0
  %481 = vmatprep.subr.bf16.mxu0 0
  %482 = vmatpush1.bf16.msra.mxu0 0
  %483 = vmatprep.subr.bf16.mxu0 0
  %484 = vmatpush1.bf16.msra.mxu0 0
  %485 = vmatprep.subr.bf16.mxu0 0
  %486 = vmatpush1.bf16.msra.mxu0 0
  %487 = vmatprep.subr.bf16.mxu0 0
  %488 = vmatpush1.bf16.msra.mxu0 0
  %489 = vmatprep.subr.bf16.mxu0 0
  %490 = vmatpush1.bf16.msra.mxu0 0
  %491 = vmatprep.subr.bf16.mxu0 0
  %492 = vmatpush1.bf16.msra.mxu0 0
  %493 = vmatprep.mubr.bf16.mxu0 0
  %494 = vmatmul.mubr.bf16.gmra.mrb[0].mxu0 %v174
  %v495 = vpop.f32.mrb[0].mxu0
  %v496 = vadd.f32 %v399, %v495
  %v497 = vpop.f32.mrb[0].mxu0
  %v498 = vpop.f32.mrb[0].mxu0
  %v499 = vadd.f32 %v402, %v498
  %v500 = vpop.f32.mrb[0].mxu0
  %501 = vmatprep.mubr.bf16.mxu0 0
  %502 = vmatmul.mubr.bf16.gmra.mrb[0].mxu0 %v177
  %v503 = vpop.f32.mrb[0].mxu0
  %v504 = vadd.f32 %v407, %v503
  %v505 = vpop.f32.mrb[0].mxu0
  %v506 = vpop.f32.mrb[0].mxu0
  %v507 = vadd.f32 %v410, %v506
  %v508 = vpop.f32.mrb[0].mxu0
  %509 = vmatprep.mubr.bf16.mxu0 0
  %510 = vmatmul.mubr.bf16.gmra.mrb[0].mxu0 %v180
  %v511 = vpop.f32.mrb[0].mxu0
  %v512 = vadd.f32 %v415, %v511
  %v513 = vpop.f32.mrb[0].mxu0
  %v514 = vpop.f32.mrb[0].mxu0
  %v515 = vadd.f32 %v418, %v514
  %v516 = vpop.f32.mrb[0].mxu0
  %517 = vmatprep.mubr.bf16.mxu0 0
  %518 = vmatmul.mubr.bf16.gmra.mrb[0].mxu0 %v183
  %v519 = vpop.f32.mrb[0].mxu0
  %v520 = vadd.f32 %v423, %v519
  %v521 = vpop.f32.mrb[0].mxu0
  %v522 = vpop.f32.mrb[0].mxu0
  %v523 = vadd.f32 %v426, %v522
  %v524 = vpop.f32.mrb[0].mxu0
  %525 = vmatprep.mubr.bf16.mxu0 0
  %526 = vmatmul.mubr.bf16.gmra.mrb[0].mxu0 %v186
  %v527 = vpop.f32.mrb[0].mxu0
  %v528 = vadd.f32 %v431, %v527
  %v529 = vpop.f32.mrb[0].mxu0
  %v530 = vpop.f32.mrb[0].mxu0
  %v531 = vadd.f32 %v434, %v530
  %v532 = vpop.f32.mrb[0].mxu0
  %533 = vmatprep.mubr.bf16.mxu0 0
  %534 = vmatmul.mubr.bf16.gmra.mrb[0].mxu0 %v189
  %v535 = vpop.f32.mrb[0].mxu0
  %v536 = vadd.f32 %v439, %v535
  %v537 = vpop.f32.mrb[0].mxu0
  %v538 = vpop.f32.mrb[0].mxu0
  %v539 = vadd.f32 %v442, %v538
  %v540 = vpop.f32.mrb[0].mxu0
  %541 = vmatprep.mubr.bf16.mxu0 0
  %542 = vmatmul.mubr.bf16.gmra.mrb[0].mxu0 %v192
  %v543 = vpop.f32.mrb[0].mxu0
  %v544 = vadd.f32 %v447, %v543
  %v545 = vpop.f32.mrb[0].mxu0
  %v546 = vpop.f32.mrb[0].mxu0
  %v547 = vadd.f32 %v450, %v546
  %v548 = vpop.f32.mrb[0].mxu0
  %549 = vmatprep.mubr.bf16.mxu0 0
  %550 = vmatmul.mubr.bf16.gmra.mrb[0].mxu0 %v195
  %v551 = vpop.f32.mrb[0].mxu0
  %v552 = vadd.f32 %v455, %v551
  %v553 = vpop.f32.mrb[0].mxu0
  %v554 = vpop.f32.mrb[0].mxu0
  %v555 = vadd.f32 %v458, %v554
  %v556 = vpop.f32.mrb[0].mxu0
  %557 = vdwg.mxu0
  %v558 = vadd.f32 %v496, %v499
  %v559 = vadd.f32 %v558, %v504
  %v560 = vadd.f32 %v559, %v507
  %v561 = vadd.f32 %v560, %v512
  %v562 = vadd.f32 %v561, %v515
  %v563 = vadd.f32 %v562, %v520
  %v564 = vadd.f32 %v563, %v523
  %v565 = vadd.f32 %v564, %v528
  %v566 = vadd.f32 %v565, %v531
  %v567 = vadd.f32 %v566, %v536
  %v568 = vadd.f32 %v567, %v539
  %v569 = vadd.f32 %v568, %v544
  %v570 = vadd.f32 %v569, %v547
  %v571 = vadd.f32 %v570, %v552
  %v572 = vadd.f32 %v571, %v555
  %v573 = vrot.slane %v572, 4
  %v574 = vadd.f32 %v572, %v573
  %v575 = vrot.slane %v574, 2
  %v576 = vadd.f32 %v574, %v575
  %v577 = vrot.slane %v576, 1
  %v578 = vadd.f32 %v576, %v577
  %v579 = vmul.f32 %v496, %v496
  %v580 = vmul.f32 %v499, %v499
  %v581 = vmul.f32 %v504, %v504
  %v582 = vmul.f32 %v507, %v507
  %v583 = vmul.f32 %v512, %v512
  %v584 = vmul.f32 %v515, %v515
  %v585 = vmul.f32 %v520, %v520
  %v586 = vmul.f32 %v523, %v523
  %v587 = vmul.f32 %v528, %v528
  %v588 = vmul.f32 %v531, %v531
  %v589 = vmul.f32 %v536, %v536
  %v590 = vmul.f32 %v539, %v539
  %v591 = vmul.f32 %v544, %v544
  %v592 = vmul.f32 %v547, %v547
  %v593 = vmul.f32 %v552, %v552
  %v594 = vmul.f32 %v555, %v555
  %v595 = vadd.f32 %v579, %v580
  %v596 = vadd.f32 %v595, %v581
  %v597 = vadd.f32 %v596, %v582
  %v598 = vadd.f32 %v597, %v583
  %v599 = vadd.f32 %v598, %v584
  %v600 = vadd.f32 %v599, %v585
  %v601 = vadd.f32 %v600, %v586
  %v602 = vadd.f32 %v601, %v587
  %v603 = vadd.f32 %v602, %v588
  %v604 = vadd.f32 %v603, %v589
  %v605 = vadd.f32 %v604, %v590
  %v606 = vadd.f32 %v605, %v591
  %v607 = vadd.f32 %v606, %v592
  %v608 = vadd.f32 %v607, %v593
  %v609 = vadd.f32 %v608, %v594
  %v610 = vrot.slane %v609, 4
  %v611 = vadd.f32 %v609, %v610
  %v612 = vrot.slane %v611, 2
  %v613 = vadd.f32 %v611, %v612
  %v614 = vrot.slane %v613, 1
  %v615 = vadd.f32 %v613, %v614
  %v616 = vmul.f32 %v578, 0.0078125
  %v617 = vmul.f32 %v615, 0.0078125
  %v618 = vmul.f32 %v616, %v616
  %v619 = vsub.f32 %v617, %v618
  %v620 = vmax.f32 %v619, 0.0
  %v621 = vsub.f32 %v496, %v616
  %v622 = vsub.f32 %v499, %v616
  %v623 = vsub.f32 %v504, %v616
  %v624 = vsub.f32 %v507, %v616
  %v625 = vsub.f32 %v512, %v616
  %v626 = vsub.f32 %v515, %v616
  %v627 = vsub.f32 %v520, %v616
  %v628 = vsub.f32 %v523, %v616
  %v629 = vsub.f32 %v528, %v616
  %v630 = vsub.f32 %v531, %v616
  %v631 = vsub.f32 %v536, %v616
  %v632 = vsub.f32 %v539, %v616
  %v633 = vsub.f32 %v544, %v616
  %v634 = vsub.f32 %v547, %v616
  %v635 = vsub.f32 %v552, %v616
  %v636 = vsub.f32 %v555, %v616
  %v637 = vadd.f32 %v620, 1e-05
  %v638 = vrsqrt.pop %v637
  %v639 = vmul.f32 %v621, %v638
  %v640 = vmul.f32 %v622, %v638
  %v641 = vmul.f32 %v623, %v638
  %v642 = vmul.f32 %v624, %v638
  %v643 = vmul.f32 %v625, %v638
  %v644 = vmul.f32 %v626, %v638
  %v645 = vmul.f32 %v627, %v638
  %v646 = vmul.f32 %v628, %v638
  %v647 = vmul.f32 %v629, %v638
  %v648 = vmul.f32 %v630, %v638
  %v649 = vmul.f32 %v631, %v638
  %v650 = vmul.f32 %v632, %v638
  %v651 = vmul.f32 %v633, %v638
  %v652 = vmul.f32 %v634, %v638
  %v653 = vmul.f32 %v635, %v638
  %v654 = vmul.f32 %v636, %v638
  %vm655 = vcmp.gt.f32.partialorder %v639, 0.0
  %vm656 = vcmp.gt.f32.partialorder %v640, 0.0
  %vm657 = vcmp.gt.f32.partialorder %v641, 0.0
  %vm658 = vcmp.gt.f32.partialorder %v642, 0.0
  %vm659 = vcmp.gt.f32.partialorder %v643, 0.0
  %vm660 = vcmp.gt.f32.partialorder %v644, 0.0
  %vm661 = vcmp.gt.f32.partialorder %v645, 0.0
  %vm662 = vcmp.gt.f32.partialorder %v646, 0.0
  %vm663 = vcmp.gt.f32.partialorder %v647, 0.0
  %vm664 = vcmp.gt.f32.partialorder %v648, 0.0
  %vm665 = vcmp.gt.f32.partialorder %v649, 0.0
  %vm666 = vcmp.gt.f32.partialorder %v650, 0.0
  %vm667 = vcmp.gt.f32.partialorder %v651, 0.0
  %vm668 = vcmp.gt.f32.partialorder %v652, 0.0
  %vm669 = vcmp.gt.f32.partialorder %v653, 0.0
  %vm670 = vcmp.gt.f32.partialorder %v654, 0.0
  %v671 = vmul.f32 %v639, 0.01
  %v672 = vmul.f32 %v640, 0.01
  %v673 = vmul.f32 %v641, 0.01
  %v674 = vmul.f32 %v642, 0.01
  %v675 = vmul.f32 %v643, 0.01
  %v676 = vmul.f32 %v644, 0.01
  %v677 = vmul.f32 %v645, 0.01
  %v678 = vmul.f32 %v646, 0.01
  %v679 = vmul.f32 %v647, 0.01
  %v680 = vmul.f32 %v648, 0.01
  %v681 = vmul.f32 %v649, 0.01
  %v682 = vmul.f32 %v650, 0.01
  %v683 = vmul.f32 %v651, 0.01
  %v684 = vmul.f32 %v652, 0.01
  %v685 = vmul.f32 %v653, 0.01
  %v686 = vmul.f32 %v654, 0.01
  %v687 = vsel %vm655, %v639, %v671
  %v688 = vsel %vm656, %v640, %v672
  %v689 = vsel %vm657, %v641, %v673
  %v690 = vsel %vm658, %v642, %v674
  %v691 = vsel %vm659, %v643, %v675
  %v692 = vsel %vm660, %v644, %v676
  %v693 = vsel %vm661, %v645, %v677
  %v694 = vsel %vm662, %v646, %v678
  %v695 = vsel %vm663, %v647, %v679
  %v696 = vsel %vm664, %v648, %v680
  %v697 = vsel %vm665, %v649, %v681
  %v698 = vsel %vm666, %v650, %v682
  %v699 = vsel %vm667, %v651, %v683
  %v700 = vsel %vm668, %v652, %v684
  %v701 = vsel %vm669, %v653, %v685
  %v702 = vsel %vm670, %v654, %v686
  %v703 = vpack.c.bf16 %v688, %v687
  %v704 = vpack.c.bf16 %v690, %v689
  %v705 = vpack.c.bf16 %v692, %v691
  %v706 = vpack.c.bf16 %v694, %v693
  %v707 = vpack.c.bf16 %v696, %v695
  %v708 = vpack.c.bf16 %v698, %v697
  %v709 = vpack.c.bf16 %v700, %v699
  %v710 = vpack.c.bf16 %v702, %v701
  %v719 = vunpack.c.l.b16 %v703
  %v720 = vunpack.c.h.b16 %v703
  %v721 = vunpack.c.l.b16 %v704
  %v722 = vunpack.c.h.b16 %v704
  %v723 = vunpack.c.l.b16 %v705
  %v724 = vunpack.c.h.b16 %v705
  %v725 = vunpack.c.l.b16 %v706
  %v726 = vunpack.c.h.b16 %v706
  %v727 = vunpack.c.l.b16 %v707
  %v728 = vunpack.c.h.b16 %v707
  %v729 = vunpack.c.l.b16 %v708
  %v730 = vunpack.c.h.b16 %v708
  %v731 = vunpack.c.l.b16 %v709
  %v732 = vunpack.c.h.b16 %v709
  %v733 = vunpack.c.l.b16 %v710
  %v734 = vunpack.c.h.b16 %v710
  %v735 = vpack.c.b16 %v719, %v719
  %v736 = vpack.c.b16 %v720, %v720
  %v737 = vpack.c.b16 %v721, %v721
  %v738 = vpack.c.b16 %v722, %v722
  %v739 = vpack.c.b16 %v723, %v723
  %v740 = vpack.c.b16 %v724, %v724
  %v741 = vpack.c.b16 %v725, %v725
  %v742 = vpack.c.b16 %v726, %v726
  %v743 = vpack.c.b16 %v727, %v727
  %v744 = vpack.c.b16 %v728, %v728
  %v745 = vpack.c.b16 %v729, %v729
  %v746 = vpack.c.b16 %v730, %v730
  %v747 = vpack.c.b16 %v731, %v731
  %v748 = vpack.c.b16 %v732, %v732
  %v749 = vpack.c.b16 %v733, %v733
  %v750 = vpack.c.b16 %v734, %v734
  %767 = vst [vmem:[%s2] sm:$0xf] %v735
  %768 = vst [vmem:[%s2 + $0x4] sm:$0xf] %v736
  %769 = vst [vmem:[%s2 + $0x8] sm:$0xf] %v737
  %770 = vst [vmem:[%s2 + $0xc] sm:$0xf] %v738
  %771 = vst [vmem:[%s2 + $0x10] sm:$0xf] %v739
  %772 = vst [vmem:[%s2 + $0x14] sm:$0xf] %v740
  %773 = vst [vmem:[%s2 + $0x18] sm:$0xf] %v741
  %774 = vst [vmem:[%s2 + $0x1c] sm:$0xf] %v742
  %775 = vst [vmem:[%s2 + $0x20] sm:$0xf] %v743
  %776 = vst [vmem:[%s2 + $0x24] sm:$0xf] %v744
  %777 = vst [vmem:[%s2 + $0x28] sm:$0xf] %v745
  %778 = vst [vmem:[%s2 + $0x2c] sm:$0xf] %v746
  %779 = vst [vmem:[%s2 + $0x30] sm:$0xf] %v747
  %780 = vst [vmem:[%s2 + $0x34] sm:$0xf] %v748
  %781 = vst [vmem:[%s2 + $0x38] sm:$0xf] %v749
  %782 = vst [vmem:[%s2 + $0x3c] sm:$0xf] %v750
  // Predicated region
  $region10: #{_lambda_.39} parent=0 // pred_check
    _
  $region11: #{_lambda_.39} parent=0 // pred_check_branch
    %784 = sbr.rel (0) target = $region13
  $region12: #{_lambda_.39} parent=0 // pred_region
    _
  $region13: #{_lambda_.39} parent=0 // pred_fallthru
    _
  // Predicated region
  $region14: #{_lambda_.39} parent=0 // pred_check
    _
  $region15: #{_lambda_.39} parent=0 // pred_check_branch
    %786 = sbr.rel (0) target = $region17
  $region16: #{_lambda_.39} parent=0 // pred_region
    _
  $region17: #{_lambda_.39} parent=0 // pred_fallthru
    _

// kernel: _lambda_.42
$region0: #{_lambda_.42}
  #allocation0 [shape = 'u32[]', space=smem, size = 0x4, offset = 0x4, fixed_abs, tag = 'smem constant byte address 0x4 - core index']
  #allocation1 [shape = 'u32[144,128]{1,0:T(1,128)}', space=vmem, size = 0x12000, scoped, tag = 'internal scratch']
  %s0 = inlined_call_operand.vmem [shape: bf16[512,256], index: 0, kind: input, shape index: {}]
  %s1 = inlined_call_operand.vmem [shape: bf16[256,128], index: 1, kind: input, shape index: {}]
  %s2 = inlined_call_operand.vmem [shape: bf16[512,128], index: 2, kind: output, shape index: {}]
  %s3 = sld [smem:[#allocation0]]
  $region18: #{_lambda_.42} parent=0
    _
  %s5 = ssub.s32 1, %s3
  %s6 = scalar_select 0, %s5, %s3
  // Predicated region
  $region2: #{_lambda_.42} parent=0 // pred_check
    _
  $region3: #{_lambda_.42} parent=0 // pred_check_branch
    %8 = sbr.rel (0) target = $region5
  $region4: #{_lambda_.42} parent=0 // pred_region
    _
  $region5: #{_lambda_.42} parent=0 // pred_fallthru
    _
  // Predicated region
  $region6: #{_lambda_.42} parent=0 // pred_check
    _
  $region7: #{_lambda_.42} parent=0 // pred_check_branch
    %10 = sbr.rel (0) target = $region9
  $region8: #{_lambda_.42} parent=0 // pred_region
    _
  $region9: #{_lambda_.42} parent=0 // pred_fallthru
    _
  %v12 = vld [vmem:[%s0] sm:$0xff]
  %v13 = vld [vmem:[%s0 + $0x8] sm:$0xff]
  %v14 = vld [vmem:[%s0 + $0x10] sm:$0xff]
  %v15 = vld [vmem:[%s0 + $0x18] sm:$0xff]
  %v16 = vld [vmem:[%s0 + $0x20] sm:$0xff]
  %v17 = vld [vmem:[%s0 + $0x28] sm:$0xff]
  %v18 = vld [vmem:[%s0 + $0x30] sm:$0xff]
  %v19 = vld [vmem:[%s0 + $0x38] sm:$0xff]
  %v20 = vld [vmem:[%s0 + $0x40] sm:$0xff]
  %v21 = vld [vmem:[%s0 + $0x48] sm:$0xff]
  %v22 = vld [vmem:[%s0 + $0x50] sm:$0xff]
  %v23 = vld [vmem:[%s0 + $0x58] sm:$0xff]
  %v24 = vld [vmem:[%s0 + $0x60] sm:$0xff]
  %v25 = vld [vmem:[%s0 + $0x68] sm:$0xff]
  %v26 = vld [vmem:[%s0 + $0x70] sm:$0xff]
  %v27 = vld [vmem:[%s0 + $0x78] sm:$0xff]
  %v28 = vld [vmem:[%s0 + $0x80] sm:$0xff]
  %v29 = vld [vmem:[%s0 + $0x88] sm:$0xff]
  %v30 = vld [vmem:[%s0 + $0x90] sm:$0xff]
  %v31 = vld [vmem:[%s0 + $0x98] sm:$0xff]
  %v32 = vld [vmem:[%s0 + $0xa0] sm:$0xff]
  %v33 = vld [vmem:[%s0 + $0xa8] sm:$0xff]
  %v34 = vld [vmem:[%s0 + $0xb0] sm:$0xff]
  %v35 = vld [vmem:[%s0 + $0xb8] sm:$0xff]
  %v36 = vld [vmem:[%s0 + $0xc0] sm:$0xff]
  %v37 = vld [vmem:[%s0 + $0xc8] sm:$0xff]
  %v38 = vld [vmem:[%s0 + $0xd0] sm:$0xff]
  %v39 = vld [vmem:[%s0 + $0xd8] sm:$0xff]
  %v40 = vld [vmem:[%s0 + $0xe0] sm:$0xff]
  %v41 = vld [vmem:[%s0 + $0xe8] sm:$0xff]
  %v42 = vld [vmem:[%s0 + $0xf0] sm:$0xff]
  %v43 = vld [vmem:[%s0 + $0xf8] sm:$0xff]
  %v44 = vld [vmem:[%s0 + $0x100] sm:$0xff]
  %v45 = vld [vmem:[%s0 + $0x108] sm:$0xff]
  %v46 = vld [vmem:[%s0 + $0x110] sm:$0xff]
  %v47 = vld [vmem:[%s0 + $0x118] sm:$0xff]
  %v48 = vld [vmem:[%s0 + $0x120] sm:$0xff]
  %v49 = vld [vmem:[%s0 + $0x128] sm:$0xff]
  %v50 = vld [vmem:[%s0 + $0x130] sm:$0xff]
  %v51 = vld [vmem:[%s0 + $0x138] sm:$0xff]
  %v52 = vld [vmem:[%s0 + $0x140] sm:$0xff]
  %v53 = vld [vmem:[%s0 + $0x148] sm:$0xff]
  %v54 = vld [vmem:[%s0 + $0x150] sm:$0xff]
  %v55 = vld [vmem:[%s0 + $0x158] sm:$0xff]
  %v56 = vld [vmem:[%s0 + $0x160] sm:$0xff]
  %v57 = vld [vmem:[%s0 + $0x168] sm:$0xff]
  %v58 = vld [vmem:[%s0 + $0x170] sm:$0xff]
  %v59 = vld [vmem:[%s0 + $0x178] sm:$0xff]
  %v60 = vld [vmem:[%s0 + $0x180] sm:$0xff]
  %v61 = vld [vmem:[%s0 + $0x188] sm:$0xff]
  %v62 = vld [vmem:[%s0 + $0x190] sm:$0xff]
  %v63 = vld [vmem:[%s0 + $0x198] sm:$0xff]
  %v64 = vld [vmem:[%s0 + $0x1a0] sm:$0xff]
  %v65 = vld [vmem:[%s0 + $0x1a8] sm:$0xff]
  %v66 = vld [vmem:[%s0 + $0x1b0] sm:$0xff]
  %v67 = vld [vmem:[%s0 + $0x1b8] sm:$0xff]
  %v68 = vld [vmem:[%s0 + $0x1c0] sm:$0xff]
  %v69 = vld [vmem:[%s0 + $0x1c8] sm:$0xff]
  %v70 = vld [vmem:[%s0 + $0x1d0] sm:$0xff]
  %v71 = vld [vmem:[%s0 + $0x1d8] sm:$0xff]
  %v72 = vld [vmem:[%s0 + $0x1e0] sm:$0xff]
  %v73 = vld [vmem:[%s0 + $0x1e8] sm:$0xff]
  %v74 = vld [vmem:[%s0 + $0x1f0] sm:$0xff]
  %v75 = vld [vmem:[%s0 + $0x1f8] sm:$0xff]
  %v76 = vld [vmem:[%s1] sm:$0xf]
  %v77 = vld [vmem:[%s1 + $0x4] sm:$0xf]
  %v78 = vld [vmem:[%s1 + $0x8] sm:$0xf]
  %v79 = vld [vmem:[%s1 + $0xc] sm:$0xf]
  %v80 = vld [vmem:[%s1 + $0x10] sm:$0xf]
  %v81 = vld [vmem:[%s1 + $0x14] sm:$0xf]
  %v82 = vld [vmem:[%s1 + $0x18] sm:$0xf]
  %v83 = vld [vmem:[%s1 + $0x1c] sm:$0xf]
  %v84 = vld [vmem:[%s1 + $0x20] sm:$0xf]
  %v85 = vld [vmem:[%s1 + $0x24] sm:$0xf]
  %v86 = vld [vmem:[%s1 + $0x28] sm:$0xf]
  %v87 = vld [vmem:[%s1 + $0x2c] sm:$0xf]
  %v88 = vld [vmem:[%s1 + $0x30] sm:$0xf]
  %v89 = vld [vmem:[%s1 + $0x34] sm:$0xf]
  %v90 = vld [vmem:[%s1 + $0x38] sm:$0xf]
  %v91 = vld [vmem:[%s1 + $0x3c] sm:$0xf]
  %v92 = vld [vmem:[%s1 + $0x40] sm:$0xf]
  %v93 = vld [vmem:[%s1 + $0x44] sm:$0xf]
  %v94 = vld [vmem:[%s1 + $0x48] sm:$0xf]
  %v95 = vld [vmem:[%s1 + $0x4c] sm:$0xf]
  %v96 = vld [vmem:[%s1 + $0x50] sm:$0xf]
  %v97 = vld [vmem:[%s1 + $0x54] sm:$0xf]
  %v98 = vld [vmem:[%s1 + $0x58] sm:$0xf]
  %v99 = vld [vmem:[%s1 + $0x5c] sm:$0xf]
  %v100 = vld [vmem:[%s1 + $0x60] sm:$0xf]
  %v101 = vld [vmem:[%s1 + $0x64] sm:$0xf]
  %v102 = vld [vmem:[%s1 + $0x68] sm:$0xf]
  %v103 = vld [vmem:[%s1 + $0x6c] sm:$0xf]
  %v104 = vld [vmem:[%s1 + $0x70] sm:$0xf]
  %v105 = vld [vmem:[%s1 + $0x74] sm:$0xf]
  %v106 = vld [vmem:[%s1 + $0x78] sm:$0xf]
  %v107 = vld [vmem:[%s1 + $0x7c] sm:$0xf]
  %v172 = vunpack.c.l.b16 %v12
  %v173 = vunpack.c.h.b16 %v12
  %v174 = vunpack.c.l.b16 %v13
  %v175 = vunpack.c.h.b16 %v13
  %v176 = vunpack.c.l.b16 %v14
  %v177 = vunpack.c.h.b16 %v14
  %v178 = vunpack.c.l.b16 %v15
  %v179 = vunpack.c.h.b16 %v15
  %v180 = vunpack.c.l.b16 %v16
  %v181 = vunpack.c.h.b16 %v16
  %v182 = vunpack.c.l.b16 %v17
  %v183 = vunpack.c.h.b16 %v17
  %v184 = vunpack.c.l.b16 %v18
  %v185 = vunpack.c.h.b16 %v18
  %v186 = vunpack.c.l.b16 %v19
  %v187 = vunpack.c.h.b16 %v19
  %v188 = vunpack.c.l.b16 %v20
  %v189 = vunpack.c.h.b16 %v20
  %v190 = vunpack.c.l.b16 %v21
  %v191 = vunpack.c.h.b16 %v21
  %v192 = vunpack.c.l.b16 %v22
  %v193 = vunpack.c.h.b16 %v22
  %v194 = vunpack.c.l.b16 %v23
  %v195 = vunpack.c.h.b16 %v23
  %v196 = vunpack.c.l.b16 %v24
  %v197 = vunpack.c.h.b16 %v24
  %v198 = vunpack.c.l.b16 %v25
  %v199 = vunpack.c.h.b16 %v25
  %v200 = vunpack.c.l.b16 %v26
  %v201 = vunpack.c.h.b16 %v26
  %v202 = vunpack.c.l.b16 %v27
  %v203 = vunpack.c.h.b16 %v27
  %v204 = vunpack.c.l.b16 %v28
  %v205 = vunpack.c.h.b16 %v28
  %v206 = vunpack.c.l.b16 %v29
  %v207 = vunpack.c.h.b16 %v29
  %v208 = vunpack.c.l.b16 %v30
  %v209 = vunpack.c.h.b16 %v30
  %v210 = vunpack.c.l.b16 %v31
  %v211 = vunpack.c.h.b16 %v31
  %v212 = vunpack.c.l.b16 %v32
  %v213 = vunpack.c.h.b16 %v32
  %v214 = vunpack.c.l.b16 %v33
  %v215 = vunpack.c.h.b16 %v33
  %v216 = vunpack.c.l.b16 %v34
  %v217 = vunpack.c.h.b16 %v34
  %v218 = vunpack.c.l.b16 %v35
  %v219 = vunpack.c.h.b16 %v35
  %v220 = vunpack.c.l.b16 %v36
  %v221 = vunpack.c.h.b16 %v36
  %v222 = vunpack.c.l.b16 %v37
  %v223 = vunpack.c.h.b16 %v37
  %v224 = vunpack.c.l.b16 %v38
  %v225 = vunpack.c.h.b16 %v38
  %v226 = vunpack.c.l.b16 %v39
  %v227 = vunpack.c.h.b16 %v39
  %v228 = vunpack.c.l.b16 %v40
  %v229 = vunpack.c.h.b16 %v40
  %v230 = vunpack.c.l.b16 %v41
  %v231 = vunpack.c.h.b16 %v41
  %v232 = vunpack.c.l.b16 %v42
  %v233 = vunpack.c.h.b16 %v42
  %v234 = vunpack.c.l.b16 %v43
  %v235 = vunpack.c.h.b16 %v43
  %v236 = vunpack.c.l.b16 %v44
  %v237 = vunpack.c.h.b16 %v44
  %v238 = vunpack.c.l.b16 %v45
  %v239 = vunpack.c.h.b16 %v45
  %v240 = vunpack.c.l.b16 %v46
  %v241 = vunpack.c.h.b16 %v46
  %v242 = vunpack.c.l.b16 %v47
  %v243 = vunpack.c.h.b16 %v47
  %v244 = vunpack.c.l.b16 %v48
  %v245 = vunpack.c.h.b16 %v48
  %v246 = vunpack.c.l.b16 %v49
  %v247 = vunpack.c.h.b16 %v49
  %v248 = vunpack.c.l.b16 %v50
  %v249 = vunpack.c.h.b16 %v50
  %v250 = vunpack.c.l.b16 %v51
  %v251 = vunpack.c.h.b16 %v51
  %v252 = vunpack.c.l.b16 %v52
  %v253 = vunpack.c.h.b16 %v52
  %v254 = vunpack.c.l.b16 %v53
  %v255 = vunpack.c.h.b16 %v53
  %v256 = vunpack.c.l.b16 %v54
  %v257 = vunpack.c.h.b16 %v54
  %v258 = vunpack.c.l.b16 %v55
  %v259 = vunpack.c.h.b16 %v55
  %v260 = vunpack.c.l.b16 %v56
  %v261 = vunpack.c.h.b16 %v56
  %v262 = vunpack.c.l.b16 %v57
  %v263 = vunpack.c.h.b16 %v57
  %v264 = vunpack.c.l.b16 %v58
  %v265 = vunpack.c.h.b16 %v58
  %v266 = vunpack.c.l.b16 %v59
  %v267 = vunpack.c.h.b16 %v59
  %v268 = vunpack.c.l.b16 %v60
  %v269 = vunpack.c.h.b16 %v60
  %v270 = vunpack.c.l.b16 %v61
  %v271 = vunpack.c.h.b16 %v61
  %v272 = vunpack.c.l.b16 %v62
  %v273 = vunpack.c.h.b16 %v62
  %v274 = vunpack.c.l.b16 %v63
  %v275 = vunpack.c.h.b16 %v63
  %v276 = vunpack.c.l.b16 %v64
  %v277 = vunpack.c.h.b16 %v64
  %v278 = vunpack.c.l.b16 %v65
  %v279 = vunpack.c.h.b16 %v65
  %v280 = vunpack.c.l.b16 %v66
  %v281 = vunpack.c.h.b16 %v66
  %v282 = vunpack.c.l.b16 %v67
  %v283 = vunpack.c.h.b16 %v67
  %v284 = vunpack.c.l.b16 %v68
  %v285 = vunpack.c.h.b16 %v68
  %v286 = vunpack.c.l.b16 %v69
  %v287 = vunpack.c.h.b16 %v69
  %v288 = vunpack.c.l.b16 %v70
  %v289 = vunpack.c.h.b16 %v70
  %v290 = vunpack.c.l.b16 %v71
  %v291 = vunpack.c.h.b16 %v71
  %v292 = vunpack.c.l.b16 %v72
  %v293 = vunpack.c.h.b16 %v72
  %v294 = vunpack.c.l.b16 %v73
  %v295 = vunpack.c.h.b16 %v73
  %v296 = vunpack.c.l.b16 %v74
  %v297 = vunpack.c.h.b16 %v74
  %v298 = vunpack.c.l.b16 %v75
  %v299 = vunpack.c.h.b16 %v75
  %v300 = vpack.c.b16 %v174, %v172
  %v301 = vpack.c.b16 %v175, %v173
  %v302 = vpack.c.b16 %v178, %v176
  %v303 = vpack.c.b16 %v179, %v177
  %v304 = vpack.c.b16 %v182, %v180
  %v305 = vpack.c.b16 %v183, %v181
  %v306 = vpack.c.b16 %v186, %v184
  %v307 = vpack.c.b16 %v187, %v185
  %v308 = vpack.c.b16 %v190, %v188
  %v309 = vpack.c.b16 %v191, %v189
  %v310 = vpack.c.b16 %v194, %v192
  %v311 = vpack.c.b16 %v195, %v193
  %v312 = vpack.c.b16 %v198, %v196
  %v313 = vpack.c.b16 %v199, %v197
  %v314 = vpack.c.b16 %v202, %v200
  %v315 = vpack.c.b16 %v203, %v201
  %v316 = vpack.c.b16 %v206, %v204
  %v317 = vpack.c.b16 %v207, %v205
  %v318 = vpack.c.b16 %v210, %v208
  %v319 = vpack.c.b16 %v211, %v209
  %v320 = vpack.c.b16 %v214, %v212
  %v321 = vpack.c.b16 %v215, %v213
  %v322 = vpack.c.b16 %v218, %v216
  %v323 = vpack.c.b16 %v219, %v217
  %v324 = vpack.c.b16 %v222, %v220
  %v325 = vpack.c.b16 %v223, %v221
  %v326 = vpack.c.b16 %v226, %v224
  %v327 = vpack.c.b16 %v227, %v225
  %v328 = vpack.c.b16 %v230, %v228
  %v329 = vpack.c.b16 %v231, %v229
  %v330 = vpack.c.b16 %v234, %v232
  %v331 = vpack.c.b16 %v235, %v233
  %v332 = vpack.c.b16 %v238, %v236
  %v333 = vpack.c.b16 %v239, %v237
  %v334 = vpack.c.b16 %v242, %v240
  %v335 = vpack.c.b16 %v243, %v241
  %v336 = vpack.c.b16 %v246, %v244
  %v337 = vpack.c.b16 %v247, %v245
  %v338 = vpack.c.b16 %v250, %v248
  %v339 = vpack.c.b16 %v251, %v249
  %v340 = vpack.c.b16 %v254, %v252
  %v341 = vpack.c.b16 %v255, %v253
  %v342 = vpack.c.b16 %v258, %v256
  %v343 = vpack.c.b16 %v259, %v257
  %v344 = vpack.c.b16 %v262, %v260
  %v345 = vpack.c.b16 %v263, %v261
  %v346 = vpack.c.b16 %v266, %v264
  %v347 = vpack.c.b16 %v267, %v265
  %v348 = vpack.c.b16 %v270, %v268
  %v349 = vpack.c.b16 %v271, %v269
  %v350 = vpack.c.b16 %v274, %v272
  %v351 = vpack.c.b16 %v275, %v273
  %v352 = vpack.c.b16 %v278, %v276
  %v353 = vpack.c.b16 %v279, %v277
  %v354 = vpack.c.b16 %v282, %v280
  %v355 = vpack.c.b16 %v283, %v281
  %v356 = vpack.c.b16 %v286, %v284
  %v357 = vpack.c.b16 %v287, %v285
  %v358 = vpack.c.b16 %v290, %v288
  %v359 = vpack.c.b16 %v291, %v289
  %v360 = vpack.c.b16 %v294, %v292
  %v361 = vpack.c.b16 %v295, %v293
  %v362 = vpack.c.b16 %v298, %v296
  %v363 = vpack.c.b16 %v299, %v297
  %v460 = vunpack.c.l.b16 %v76
  %v461 = vunpack.c.l.b16 %v77
  %v462 = vunpack.c.l.b16 %v78
  %v463 = vunpack.c.l.b16 %v79
  %v464 = vunpack.c.l.b16 %v80
  %v465 = vunpack.c.l.b16 %v81
  %v466 = vunpack.c.l.b16 %v82
  %v467 = vunpack.c.l.b16 %v83
  %v468 = vunpack.c.l.b16 %v84
  %v469 = vunpack.c.l.b16 %v85
  %v470 = vunpack.c.l.b16 %v86
  %v471 = vunpack.c.l.b16 %v87
  %v472 = vunpack.c.l.b16 %v88
  %v473 = vunpack.c.l.b16 %v89
  %v474 = vunpack.c.l.b16 %v90
  %v475 = vunpack.c.l.b16 %v91
  %v476 = vunpack.c.l.b16 %v92
  %v477 = vunpack.c.l.b16 %v93
  %v478 = vunpack.c.l.b16 %v94
  %v479 = vunpack.c.l.b16 %v95
  %v480 = vunpack.c.l.b16 %v96
  %v481 = vunpack.c.l.b16 %v97
  %v482 = vunpack.c.l.b16 %v98
  %v483 = vunpack.c.l.b16 %v99
  %v484 = vunpack.c.l.b16 %v100
  %v485 = vunpack.c.l.b16 %v101
  %v486 = vunpack.c.l.b16 %v102
  %v487 = vunpack.c.l.b16 %v103
  %v488 = vunpack.c.l.b16 %v104
  %v489 = vunpack.c.l.b16 %v105
  %v490 = vunpack.c.l.b16 %v106
  %v491 = vunpack.c.l.b16 %v107
  %v492 = vpack.c.b16 %v461, %v460
  %v493 = vpack.c.b16 %v463, %v462
  %v494 = vpack.c.b16 %v465, %v464
  %v495 = vpack.c.b16 %v467, %v466
  %v496 = vpack.c.b16 %v469, %v468
  %v497 = vpack.c.b16 %v471, %v470
  %v498 = vpack.c.b16 %v473, %v472
  %v499 = vpack.c.b16 %v475, %v474
  %v500 = vpack.c.b16 %v477, %v476
  %v501 = vpack.c.b16 %v479, %v478
  %v502 = vpack.c.b16 %v481, %v480
  %v503 = vpack.c.b16 %v483, %v482
  %v504 = vpack.c.b16 %v485, %v484
  %v505 = vpack.c.b16 %v487, %v486
  %v506 = vpack.c.b16 %v489, %v488
  %v507 = vpack.c.b16 %v491, %v490
  %524 = vmatprep.subr.bf16.mxu0 0
  %525 = vmatpush1.bf16.msra.mxu0 %v492
  %526 = vmatprep.subr.bf16.mxu0 0
  %527 = vmatpush1.bf16.msra.mxu0 %v493
  %528 = vmatprep.subr.bf16.mxu0 0
  %529 = vmatpush1.bf16.msra.mxu0 %v494
  %530 = vmatprep.subr.bf16.mxu0 0
  %531 = vmatpush1.bf16.msra.mxu0 %v495
  %532 = vmatprep.subr.bf16.mxu0 0
  %533 = vmatpush1.bf16.msra.mxu0 %v496
  %534 = vmatprep.subr.bf16.mxu0 0
  %535 = vmatpush1.bf16.msra.mxu0 %v497
  %536 = vmatprep.subr.bf16.mxu0 0
  %537 = vmatpush1.bf16.msra.mxu0 %v498
  %538 = vmatprep.subr.bf16.mxu0 0
  %539 = vmatpush1.bf16.msra.mxu0 %v499
  %540 = vmatprep.subr.bf16.mxu0 0
  %541 = vmatpush1.bf16.msra.mxu0 %v500
  %542 = vmatprep.subr.bf16.mxu0 0
  %543 = vmatpush1.bf16.msra.mxu0 %v501
  %544 = vmatprep.subr.bf16.mxu0 0
  %545 = vmatpush1.bf16.msra.mxu0 %v502
  %546 = vmatprep.subr.bf16.mxu0 0
  %547 = vmatpush1.bf16.msra.mxu0 %v503
  %548 = vmatprep.subr.bf16.mxu0 0
  %549 = vmatpush1.bf16.msra.mxu0 %v504
  %550 = vmatprep.subr.bf16.mxu0 0
  %551 = vmatpush1.bf16.msra.mxu0 %v505
  %552 = vmatprep.subr.bf16.mxu0 0
  %553 = vmatpush1.bf16.msra.mxu0 %v506
  %554 = vmatprep.subr.bf16.mxu0 0
  %555 = vmatpush1.bf16.msra.mxu0 %v507
  %556 = vmatprep.mubr.bf16.mxu0 %v301
  %557 = vmatmul.mubr.bf16.gmra.mrb[0].mxu0 %v300
  %v558 = vpop.f32.mrb[0].mxu0
  %v559 = vadd.f32 0.0, %v558
  %v560 = vpop.f32.mrb[0].mxu0
  %v561 = vpop.f32.mrb[0].mxu0
  %v562 = vadd.f32 0.0, %v561
  %v563 = vpop.f32.mrb[0].mxu0
  %564 = vmatprep.mubr.bf16.mxu0 %v303
  %565 = vmatmul.mubr.bf16.gmra.mrb[0].mxu0 %v302
  %v566 = vpop.f32.mrb[0].mxu0
  %v567 = vadd.f32 0.0, %v566
  %v568 = vpop.f32.mrb[0].mxu0
  %v569 = vpop.f32.mrb[0].mxu0
  %v570 = vadd.f32 0.0, %v569
  %v571 = vpop.f32.mrb[0].mxu0
  %572 = vmatprep.mubr.bf16.mxu0 %v305
  %573 = vmatmul.mubr.bf16.gmra.mrb[0].mxu0 %v304
  %v574 = vpop.f32.mrb[0].mxu0
  %v575 = vadd.f32 0.0, %v574
  %v576 = vpop.f32.mrb[0].mxu0
  %v577 = vpop.f32.mrb[0].mxu0
  %v578 = vadd.f32 0.0, %v577
  %v579 = vpop.f32.mrb[0].mxu0
  %580 = vmatprep.mubr.bf16.mxu0 %v307
  %581 = vmatmul.mubr.bf16.gmra.mrb[0].mxu0 %v306
  %v582 = vpop.f32.mrb[0].mxu0
  %v583 = vadd.f32 0.0, %v582
  %v584 = vpop.f32.mrb[0].mxu0
  %v585 = vpop.f32.mrb[0].mxu0
  %v586 = vadd.f32 0.0, %v585
  %v587 = vpop.f32.mrb[0].mxu0
  %588 = vmatprep.mubr.bf16.mxu0 %v309
  %589 = vmatmul.mubr.bf16.gmra.mrb[0].mxu0 %v308
  %v590 = vpop.f32.mrb[0].mxu0
  %v591 = vadd.f32 0.0, %v590
  %v592 = vpop.f32.mrb[0].mxu0
  %v593 = vpop.f32.mrb[0].mxu0
  %v594 = vadd.f32 0.0, %v593
  %v595 = vpop.f32.mrb[0].mxu0
  %596 = vmatprep.mubr.bf16.mxu0 %v311
  %597 = vmatmul.mubr.bf16.gmra.mrb[0].mxu0 %v310
  %v598 = vpop.f32.mrb[0].mxu0
  %v599 = vadd.f32 0.0, %v598
  %v600 = vpop.f32.mrb[0].mxu0
  %v601 = vpop.f32.mrb[0].mxu0
  %v602 = vadd.f32 0.0, %v601
  %v603 = vpop.f32.mrb[0].mxu0
  %604 = vmatprep.mubr.bf16.mxu0 %v313
  %605 = vmatmul.mubr.bf16.gmra.mrb[0].mxu0 %v312
  %v606 = vpop.f32.mrb[0].mxu0
  %v607 = vadd.f32 0.0, %v606
  %v608 = vpop.f32.mrb[0].mxu0
  %v609 = vpop.f32.mrb[0].mxu0
  %v610 = vadd.f32 0.0, %v609
  %v611 = vpop.f32.mrb[0].mxu0
  %612 = vmatprep.mubr.bf16.mxu0 %v315
  %613 = vmatmul.mubr.bf16.gmra.mrb[0].mxu0 %v314
  %v614 = vpop.f32.mrb[0].mxu0
  %v615 = vadd.f32 0.0, %v614
  %v616 = vpop.f32.mrb[0].mxu0
  %v617 = vpop.f32.mrb[0].mxu0
  %v618 = vadd.f32 0.0, %v617
  %v619 = vpop.f32.mrb[0].mxu0
  %620 = vmatprep.mubr.bf16.mxu0 %v317
  %621 = vmatmul.mubr.bf16.gmra.mrb[0].mxu0 %v316
  %v622 = vpop.f32.mrb[0].mxu0
  %v623 = vadd.f32 0.0, %v622
  %v624 = vpop.f32.mrb[0].mxu0
  %v625 = vpop.f32.mrb[0].mxu0
  %v626 = vadd.f32 0.0, %v625
  %v627 = vpop.f32.mrb[0].mxu0
  %628 = vmatprep.mubr.bf16.mxu0 %v319
  %629 = vmatmul.mubr.bf16.gmra.mrb[0].mxu0 %v318
  %v630 = vpop.f32.mrb[0].mxu0
  %v631 = vadd.f32 0.0, %v630
  %v632 = vpop.f32.mrb[0].mxu0
  %v633 = vpop.f32.mrb[0].mxu0
  %v634 = vadd.f32 0.0, %v633
  %v635 = vpop.f32.mrb[0].mxu0
  %636 = vmatprep.mubr.bf16.mxu0 %v321
  %637 = vmatmul.mubr.bf16.gmra.mrb[0].mxu0 %v320
  %v638 = vpop.f32.mrb[0].mxu0
  %v639 = vadd.f32 0.0, %v638
  %v640 = vpop.f32.mrb[0].mxu0
  %v641 = vpop.f32.mrb[0].mxu0
  %v642 = vadd.f32 0.0, %v641
  %v643 = vpop.f32.mrb[0].mxu0
  %644 = vmatprep.mubr.bf16.mxu0 %v323
  %645 = vmatmul.mubr.bf16.gmra.mrb[0].mxu0 %v322
  %v646 = vpop.f32.mrb[0].mxu0
  %v647 = vadd.f32 0.0, %v646
  %v648 = vpop.f32.mrb[0].mxu0
  %v649 = vpop.f32.mrb[0].mxu0
  %v650 = vadd.f32 0.0, %v649
  %v651 = vpop.f32.mrb[0].mxu0
  %652 = vmatprep.mubr.bf16.mxu0 %v325
  %653 = vmatmul.mubr.bf16.gmra.mrb[0].mxu0 %v324
  %v654 = vpop.f32.mrb[0].mxu0
  %v655 = vadd.f32 0.0, %v654
  %v656 = vpop.f32.mrb[0].mxu0
  %v657 = vpop.f32.mrb[0].mxu0
  %v658 = vadd.f32 0.0, %v657
  %v659 = vpop.f32.mrb[0].mxu0
  %660 = vmatprep.mubr.bf16.mxu0 %v327
  %661 = vmatmul.mubr.bf16.gmra.mrb[0].mxu0 %v326
  %v662 = vpop.f32.mrb[0].mxu0
  %v663 = vadd.f32 0.0, %v662
  %v664 = vpop.f32.mrb[0].mxu0
  %v665 = vpop.f32.mrb[0].mxu0
  %v666 = vadd.f32 0.0, %v665
  %v667 = vpop.f32.mrb[0].mxu0
  %668 = vmatprep.mubr.bf16.mxu0 %v329
  %669 = vmatmul.mubr.bf16.gmra.mrb[0].mxu0 %v328
  %v670 = vpop.f32.mrb[0].mxu0
  %v671 = vadd.f32 0.0, %v670
  %v672 = vpop.f32.mrb[0].mxu0
  %v673 = vpop.f32.mrb[0].mxu0
  %v674 = vadd.f32 0.0, %v673
  %v675 = vpop.f32.mrb[0].mxu0
  %676 = vmatprep.mubr.bf16.mxu0 %v331
  %677 = vmatmul.mubr.bf16.gmra.mrb[0].mxu0 %v330
  %v678 = vpop.f32.mrb[0].mxu0
  %v679 = vadd.f32 0.0, %v678
  %v680 = vpop.f32.mrb[0].mxu0
  %v681 = vpop.f32.mrb[0].mxu0
  %v682 = vadd.f32 0.0, %v681
  %v683 = vpop.f32.mrb[0].mxu0
  %684 = vmatprep.mubr.bf16.mxu0 %v333
  %685 = vmatmul.mubr.bf16.gmra.mrb[0].mxu0 %v332
  %v686 = vpop.f32.mrb[0].mxu0
  %v687 = vadd.f32 0.0, %v686
  %v688 = vpop.f32.mrb[0].mxu0
  %v689 = vpop.f32.mrb[0].mxu0
  %v690 = vadd.f32 0.0, %v689
  %v691 = vpop.f32.mrb[0].mxu0
  %692 = vmatprep.mubr.bf16.mxu0 %v335
  %693 = vmatmul.mubr.bf16.gmra.mrb[0].mxu0 %v334
  %v694 = vpop.f32.mrb[0].mxu0
  %v695 = vadd.f32 0.0, %v694
  %v696 = vpop.f32.mrb[0].mxu0
  %v697 = vpop.f32.mrb[0].mxu0
  %v698 = vadd.f32 0.0, %v697
  %v699 = vpop.f32.mrb[0].mxu0
  %700 = vmatprep.mubr.bf16.mxu0 %v337
  %701 = vmatmul.mubr.bf16.gmra.mrb[0].mxu0 %v336
  %v702 = vpop.f32.mrb[0].mxu0
  %v703 = vadd.f32 0.0, %v702
  %v704 = vpop.f32.mrb[0].mxu0
  %v705 = vpop.f32.mrb[0].mxu0
  %v706 = vadd.f32 0.0, %v705
  %v707 = vpop.f32.mrb[0].mxu0
  %708 = vmatprep.mubr.bf16.mxu0 %v339
  %709 = vmatmul.mubr.bf16.gmra.mrb[0].mxu0 %v338
  %v710 = vpop.f32.mrb[0].mxu0
  %v711 = vadd.f32 0.0, %v710
  %v712 = vpop.f32.mrb[0].mxu0
  %v713 = vpop.f32.mrb[0].mxu0
  %v714 = vadd.f32 0.0, %v713
  %v715 = vpop.f32.mrb[0].mxu0
  %716 = vmatprep.mubr.bf16.mxu0 %v341
  %717 = vmatmul.mubr.bf16.gmra.mrb[0].mxu0 %v340
  %v718 = vpop.f32.mrb[0].mxu0
  %v719 = vadd.f32 0.0, %v718
  %v720 = vpop.f32.mrb[0].mxu0
  %v721 = vpop.f32.mrb[0].mxu0
  %v722 = vadd.f32 0.0, %v721
  %v723 = vpop.f32.mrb[0].mxu0
  %724 = vmatprep.mubr.bf16.mxu0 %v343
  %725 = vmatmul.mubr.bf16.gmra.mrb[0].mxu0 %v342
  %v726 = vpop.f32.mrb[0].mxu0
  %v727 = vadd.f32 0.0, %v726
  %v728 = vpop.f32.mrb[0].mxu0
  %v729 = vpop.f32.mrb[0].mxu0
  %v730 = vadd.f32 0.0, %v729
  %v731 = vpop.f32.mrb[0].mxu0
  %732 = vmatprep.mubr.bf16.mxu0 %v345
  %733 = vmatmul.mubr.bf16.gmra.mrb[0].mxu0 %v344
  %v734 = vpop.f32.mrb[0].mxu0
  %v735 = vadd.f32 0.0, %v734
  %v736 = vpop.f32.mrb[0].mxu0
  %v737 = vpop.f32.mrb[0].mxu0
  %v738 = vadd.f32 0.0, %v737
  %v739 = vpop.f32.mrb[0].mxu0
  %740 = vmatprep.mubr.bf16.mxu0 %v347
  %741 = vmatmul.mubr.bf16.gmra.mrb[0].mxu0 %v346
  %v742 = vpop.f32.mrb[0].mxu0
  %v743 = vadd.f32 0.0, %v742
  %v744 = vpop.f32.mrb[0].mxu0
  %v745 = vpop.f32.mrb[0].mxu0
  %v746 = vadd.f32 0.0, %v745
  %v747 = vpop.f32.mrb[0].mxu0
  %748 = vmatprep.mubr.bf16.mxu0 %v349
  %749 = vmatmul.mubr.bf16.gmra.mrb[0].mxu0 %v348
  %v750 = vpop.f32.mrb[0].mxu0
  %v751 = vadd.f32 0.0, %v750
  %v752 = vpop.f32.mrb[0].mxu0
  %v753 = vpop.f32.mrb[0].mxu0
  %v754 = vadd.f32 0.0, %v753
  %v755 = vpop.f32.mrb[0].mxu0
  %756 = vmatprep.mubr.bf16.mxu0 %v351
  %757 = vmatmul.mubr.bf16.gmra.mrb[0].mxu0 %v350
  %v758 = vpop.f32.mrb[0].mxu0
  %v759 = vadd.f32 0.0, %v758
  %v760 = vpop.f32.mrb[0].mxu0
  %v761 = vpop.f32.mrb[0].mxu0
  %v762 = vadd.f32 0.0, %v761
  %v763 = vpop.f32.mrb[0].mxu0
  %764 = vmatprep.mubr.bf16.mxu0 %v353
  %765 = vmatmul.mubr.bf16.gmra.mrb[0].mxu0 %v352
  %v766 = vpop.f32.mrb[0].mxu0
  %v767 = vadd.f32 0.0, %v766
  %v768 = vpop.f32.mrb[0].mxu0
  %v769 = vpop.f32.mrb[0].mxu0
  %v770 = vadd.f32 0.0, %v769
  %v771 = vpop.f32.mrb[0].mxu0
  %772 = vmatprep.mubr.bf16.mxu0 %v355
  %773 = vmatmul.mubr.bf16.gmra.mrb[0].mxu0 %v354
  %v774 = vpop.f32.mrb[0].mxu0
  %v775 = vadd.f32 0.0, %v774
  %v776 = vpop.f32.mrb[0].mxu0
  %v777 = vpop.f32.mrb[0].mxu0
  %v778 = vadd.f32 0.0, %v777
  %v779 = vpop.f32.mrb[0].mxu0
  %780 = vmatprep.mubr.bf16.mxu0 %v357
  %781 = vmatmul.mubr.bf16.gmra.mrb[0].mxu0 %v356
  %v782 = vpop.f32.mrb[0].mxu0
  %v783 = vadd.f32 0.0, %v782
  %v784 = vpop.f32.mrb[0].mxu0
  %v785 = vpop.f32.mrb[0].mxu0
  %v786 = vadd.f32 0.0, %v785
  %v787 = vpop.f32.mrb[0].mxu0
  %788 = vmatprep.mubr.bf16.mxu0 %v359
  %789 = vmatmul.mubr.bf16.gmra.mrb[0].mxu0 %v358
  %v790 = vpop.f32.mrb[0].mxu0
  %v791 = vadd.f32 0.0, %v790
  %v792 = vpop.f32.mrb[0].mxu0
  %v793 = vpop.f32.mrb[0].mxu0
  %v794 = vadd.f32 0.0, %v793
  %v795 = vpop.f32.mrb[0].mxu0
  %796 = vmatprep.mubr.bf16.mxu0 %v361
  %797 = vmatmul.mubr.bf16.gmra.mrb[0].mxu0 %v360
  %v798 = vpop.f32.mrb[0].mxu0
  %v799 = vadd.f32 0.0, %v798
  %v800 = vpop.f32.mrb[0].mxu0
  %v801 = vpop.f32.mrb[0].mxu0
  %v802 = vadd.f32 0.0, %v801
  %v803 = vpop.f32.mrb[0].mxu0
  %804 = vmatprep.mubr.bf16.mxu0 %v363
  %805 = vmatmul.mubr.bf16.gmra.mrb[0].mxu0 %v362
  %v806 = vpop.f32.mrb[0].mxu0
  %v807 = vadd.f32 0.0, %v806
  %v808 = vpop.f32.mrb[0].mxu0
  %v809 = vpop.f32.mrb[0].mxu0
  %v810 = vadd.f32 0.0, %v809
  %v811 = vpop.f32.mrb[0].mxu0
  %812 = vdwg.mxu0
  %v813 = vadd.f32 %v559, %v562
  %v814 = vadd.f32 %v813, %v567
  %v815 = vadd.f32 %v814, %v570
  %v816 = vadd.f32 %v815, %v575
  %v817 = vadd.f32 %v816, %v578
  %v818 = vadd.f32 %v817, %v583
  %v819 = vadd.f32 %v818, %v586
  %v820 = vadd.f32 %v819, %v591
  %v821 = vadd.f32 %v820, %v594
  %v822 = vadd.f32 %v821, %v599
  %v823 = vadd.f32 %v822, %v602
  %v824 = vadd.f32 %v823, %v607
  %v825 = vadd.f32 %v824, %v610
  %v826 = vadd.f32 %v825, %v615
  %v827 = vadd.f32 %v826, %v618
  %v828 = vadd.f32 %v827, %v623
  %v829 = vadd.f32 %v828, %v626
  %v830 = vadd.f32 %v829, %v631
  %v831 = vadd.f32 %v830, %v634
  %v832 = vadd.f32 %v831, %v639
  %v833 = vadd.f32 %v832, %v642
  %v834 = vadd.f32 %v833, %v647
  %v835 = vadd.f32 %v834, %v650
  %v836 = vadd.f32 %v835, %v655
  %v837 = vadd.f32 %v836, %v658
  %v838 = vadd.f32 %v837, %v663
  %v839 = vadd.f32 %v838, %v666
  %v840 = vadd.f32 %v839, %v671
  %v841 = vadd.f32 %v840, %v674
  %v842 = vadd.f32 %v841, %v679
  %v843 = vadd.f32 %v842, %v682
  %v844 = vadd.f32 %v843, %v687
  %v845 = vadd.f32 %v844, %v690
  %v846 = vadd.f32 %v845, %v695
  %v847 = vadd.f32 %v846, %v698
  %v848 = vadd.f32 %v847, %v703
  %v849 = vadd.f32 %v848, %v706
  %v850 = vadd.f32 %v849, %v711
  %v851 = vadd.f32 %v850, %v714
  %v852 = vadd.f32 %v851, %v719
  %v853 = vadd.f32 %v852, %v722
  %v854 = vadd.f32 %v853, %v727
  %v855 = vadd.f32 %v854, %v730
  %v856 = vadd.f32 %v855, %v735
  %v857 = vadd.f32 %v856, %v738
  %v858 = vadd.f32 %v857, %v743
  %v859 = vadd.f32 %v858, %v746
  %v860 = vadd.f32 %v859, %v751
  %v861 = vadd.f32 %v860, %v754
  %v862 = vadd.f32 %v861, %v759
  %v863 = vadd.f32 %v862, %v762
  %v864 = vadd.f32 %v863, %v767
  %v865 = vadd.f32 %v864, %v770
  %v866 = vadd.f32 %v865, %v775
  %v867 = vadd.f32 %v866, %v778
  %v868 = vadd.f32 %v867, %v783
  %v869 = vadd.f32 %v868, %v786
  %v870 = vadd.f32 %v869, %v791
  %v871 = vadd.f32 %v870, %v794
  %v872 = vadd.f32 %v871, %v799
  %v873 = vadd.f32 %v872, %v802
  %v874 = vadd.f32 %v873, %v807
  %v875 = vadd.f32 %v874, %v810
  %v876 = vrot.slane %v875, 4
  %v877 = vadd.f32 %v875, %v876
  %v878 = vrot.slane %v877, 2
  %v879 = vadd.f32 %v877, %v878
  %v880 = vrot.slane %v879, 1
  %v881 = vadd.f32 %v879, %v880
  %v882 = vmul.f32 %v559, %v559
  %v883 = vmul.f32 %v562, %v562
  %v884 = vmul.f32 %v567, %v567
  %v885 = vmul.f32 %v570, %v570
  %v886 = vmul.f32 %v575, %v575
  %v887 = vmul.f32 %v578, %v578
  %v888 = vmul.f32 %v583, %v583
  %v889 = vmul.f32 %v586, %v586
  %v890 = vmul.f32 %v591, %v591
  %v891 = vmul.f32 %v594, %v594
  %v892 = vmul.f32 %v599, %v599
  %v893 = vmul.f32 %v602, %v602
  %v894 = vmul.f32 %v607, %v607
  %v895 = vmul.f32 %v610, %v610
  %v896 = vmul.f32 %v615, %v615
  %v897 = vmul.f32 %v618, %v618
  %v898 = vmul.f32 %v623, %v623
  %v899 = vmul.f32 %v626, %v626
  %v900 = vmul.f32 %v631, %v631
  %v901 = vmul.f32 %v634, %v634
  %v902 = vmul.f32 %v639, %v639
  %v903 = vmul.f32 %v642, %v642
  %v904 = vmul.f32 %v647, %v647
  %v905 = vmul.f32 %v650, %v650
  %v906 = vmul.f32 %v655, %v655
  %v907 = vmul.f32 %v658, %v658
  %v908 = vmul.f32 %v663, %v663
  %v909 = vmul.f32 %v666, %v666
  %v910 = vmul.f32 %v671, %v671
  %v911 = vmul.f32 %v674, %v674
  %v912 = vmul.f32 %v679, %v679
  %v913 = vmul.f32 %v682, %v682
  %v914 = vmul.f32 %v687, %v687
  %v915 = vmul.f32 %v690, %v690
  %v916 = vmul.f32 %v695, %v695
  %v917 = vmul.f32 %v698, %v698
  %v918 = vmul.f32 %v703, %v703
  %v919 = vmul.f32 %v706, %v706
  %v920 = vmul.f32 %v711, %v711
  %v921 = vmul.f32 %v714, %v714
  %v922 = vmul.f32 %v719, %v719
  %v923 = vmul.f32 %v722, %v722
  %v924 = vmul.f32 %v727, %v727
  %v925 = vmul.f32 %v730, %v730
  %v926 = vmul.f32 %v735, %v735
  %v927 = vmul.f32 %v738, %v738
  %v928 = vmul.f32 %v743, %v743
  %v929 = vmul.f32 %v746, %v746
  %v930 = vmul.f32 %v751, %v751
  %v931 = vmul.f32 %v754, %v754
  %v932 = vmul.f32 %v759, %v759
  %v933 = vmul.f32 %v762, %v762
  %v934 = vmul.f32 %v767, %v767
  %v935 = vmul.f32 %v770, %v770
  %v936 = vmul.f32 %v775, %v775
  %v937 = vmul.f32 %v778, %v778
  %v938 = vmul.f32 %v783, %v783
  %v939 = vmul.f32 %v786, %v786
  %v940 = vmul.f32 %v791, %v791
  %v941 = vmul.f32 %v794, %v794
  %v942 = vmul.f32 %v799, %v799
  %v943 = vmul.f32 %v802, %v802
  %v944 = vmul.f32 %v807, %v807
  %v945 = vmul.f32 %v810, %v810
  %v946 = vadd.f32 %v882, %v883
  %v947 = vadd.f32 %v946, %v884
  %v948 = vadd.f32 %v947, %v885
  %v949 = vadd.f32 %v948, %v886
  %v950 = vadd.f32 %v949, %v887
  %v951 = vadd.f32 %v950, %v888
  %v952 = vadd.f32 %v951, %v889
  %v953 = vadd.f32 %v952, %v890
  %v954 = vadd.f32 %v953, %v891
  %v955 = vadd.f32 %v954, %v892
  %v956 = vadd.f32 %v955, %v893
  %v957 = vadd.f32 %v956, %v894
  %v958 = vadd.f32 %v957, %v895
  %v959 = vadd.f32 %v958, %v896
  %v960 = vadd.f32 %v959, %v897
  %v961 = vadd.f32 %v960, %v898
  %v962 = vadd.f32 %v961, %v899
  %v963 = vadd.f32 %v962, %v900
  %v964 = vadd.f32 %v963, %v901
  %v965 = vadd.f32 %v964, %v902
  %v966 = vadd.f32 %v965, %v903
  %v967 = vadd.f32 %v966, %v904
  %v968 = vadd.f32 %v967, %v905
  %v969 = vadd.f32 %v968, %v906
  %v970 = vadd.f32 %v969, %v907
  %v971 = vadd.f32 %v970, %v908
  %v972 = vadd.f32 %v971, %v909
  %v973 = vadd.f32 %v972, %v910
  %v974 = vadd.f32 %v973, %v911
  %v975 = vadd.f32 %v974, %v912
  %v976 = vadd.f32 %v975, %v913
  %v977 = vadd.f32 %v976, %v914
  %v978 = vadd.f32 %v977, %v915
  %v979 = vadd.f32 %v978, %v916
  %v980 = vadd.f32 %v979, %v917
  %v981 = vadd.f32 %v980, %v918
  %v982 = vadd.f32 %v981, %v919
  %v983 = vadd.f32 %v982, %v920
  %v984 = vadd.f32 %v983, %v921
  %v985 = vadd.f32 %v984, %v922
  %v986 = vadd.f32 %v985, %v923
  %v987 = vadd.f32 %v986, %v924
  %v988 = vadd.f32 %v987, %v925
  %v989 = vadd.f32 %v988, %v926
  %v990 = vadd.f32 %v989, %v927
  %v991 = vadd.f32 %v990, %v928
  %v992 = vadd.f32 %v991, %v929
  %v993 = vadd.f32 %v992, %v930
  %v994 = vadd.f32 %v993, %v931
  %v995 = vadd.f32 %v994, %v932
  %v996 = vadd.f32 %v995, %v933
  %v997 = vadd.f32 %v996, %v934
  %v998 = vadd.f32 %v997, %v935
  %v999 = vadd.f32 %v998, %v936
  %v1000 = vadd.f32 %v999, %v937
  %v1001 = vadd.f32 %v1000, %v938
  %v1002 = vadd.f32 %v1001, %v939
  %v1003 = vadd.f32 %v1002, %v940
  %v1004 = vadd.f32 %v1003, %v941
  %v1005 = vadd.f32 %v1004, %v942
  %v1006 = vadd.f32 %v1005, %v943
  %v1007 = vadd.f32 %v1006, %v944
  %v1008 = vadd.f32 %v1007, %v945
  %v1009 = vrot.slane %v1008, 4
  %v1010 = vadd.f32 %v1008, %v1009
  %v1011 = vrot.slane %v1010, 2
  %v1012 = vadd.f32 %v1010, %v1011
  %v1013 = vrot.slane %v1012, 1
  %v1014 = vadd.f32 %v1012, %v1013
  %v1015 = vmul.f32 %v881, 0.001953125
  %v1016 = vmul.f32 %v1014, 0.001953125
  %v1017 = vmul.f32 %v1015, %v1015
  %v1018 = vsub.f32 %v1016, %v1017
  %v1019 = vmax.f32 %v1018, 0.0
  %v1020 = vsub.f32 %v559, %v1015
  %v1021 = vsub.f32 %v562, %v1015
  %v1022 = vsub.f32 %v567, %v1015
  %v1023 = vsub.f32 %v570, %v1015
  %v1024 = vsub.f32 %v575, %v1015
  %v1025 = vsub.f32 %v578, %v1015
  %v1026 = vsub.f32 %v583, %v1015
  %v1027 = vsub.f32 %v586, %v1015
  %v1028 = vsub.f32 %v591, %v1015
  %v1029 = vsub.f32 %v594, %v1015
  %v1030 = vsub.f32 %v599, %v1015
  %v1031 = vsub.f32 %v602, %v1015
  %v1032 = vsub.f32 %v607, %v1015
  %v1033 = vsub.f32 %v610, %v1015
  %v1034 = vsub.f32 %v615, %v1015
  %v1035 = vsub.f32 %v618, %v1015
  %v1036 = vsub.f32 %v623, %v1015
  %v1037 = vsub.f32 %v626, %v1015
  %v1038 = vsub.f32 %v631, %v1015
  %v1039 = vsub.f32 %v634, %v1015
  %v1040 = vsub.f32 %v639, %v1015
  %v1041 = vsub.f32 %v642, %v1015
  %v1042 = vsub.f32 %v647, %v1015
  %v1043 = vsub.f32 %v650, %v1015
  %v1044 = vsub.f32 %v655, %v1015
  %v1045 = vsub.f32 %v658, %v1015
  %v1046 = vsub.f32 %v663, %v1015
  %v1047 = vsub.f32 %v666, %v1015
  %v1048 = vsub.f32 %v671, %v1015
  %v1049 = vsub.f32 %v674, %v1015
  %v1050 = vsub.f32 %v679, %v1015
  %v1051 = vsub.f32 %v682, %v1015
  %v1052 = vsub.f32 %v687, %v1015
  %v1053 = vsub.f32 %v690, %v1015
  %v1054 = vsub.f32 %v695, %v1015
  %v1055 = vsub.f32 %v698, %v1015
  %v1056 = vsub.f32 %v703, %v1015
  %v1057 = vsub.f32 %v706, %v1015
  %v1058 = vsub.f32 %v711, %v1015
  %v1059 = vsub.f32 %v714, %v1015
  %v1060 = vsub.f32 %v719, %v1015
  %v1061 = vsub.f32 %v722, %v1015
  %v1062 = vsub.f32 %v727, %v1015
  %v1063 = vsub.f32 %v730, %v1015
  %v1064 = vsub.f32 %v735, %v1015
  %v1065 = vsub.f32 %v738, %v1015
  %v1066 = vsub.f32 %v743, %v1015
  %v1067 = vsub.f32 %v746, %v1015
  %v1068 = vsub.f32 %v751, %v1015
  %v1069 = vsub.f32 %v754, %v1015
  %v1070 = vsub.f32 %v759, %v1015
  %v1071 = vsub.f32 %v762, %v1015
  %v1072 = vsub.f32 %v767, %v1015
  %v1073 = vsub.f32 %v770, %v1015
  %v1074 = vsub.f32 %v775, %v1015
  %v1075 = vsub.f32 %v778, %v1015
  %v1076 = vsub.f32 %v783, %v1015
  %v1077 = vsub.f32 %v786, %v1015
  %v1078 = vsub.f32 %v791, %v1015
  %v1079 = vsub.f32 %v794, %v1015
  %v1080 = vsub.f32 %v799, %v1015
  %v1081 = vsub.f32 %v802, %v1015
  %v1082 = vsub.f32 %v807, %v1015
  %v1083 = vsub.f32 %v810, %v1015
  %v1084 = vadd.f32 %v1019, 1e-05
  %v1085 = vrsqrt.pop %v1084
  %v1086 = vmul.f32 %v1020, %v1085
  %v1087 = vmul.f32 %v1021, %v1085
  %v1088 = vmul.f32 %v1022, %v1085
  %v1089 = vmul.f32 %v1023, %v1085
  %v1090 = vmul.f32 %v1024, %v1085
  %v1091 = vmul.f32 %v1025, %v1085
  %v1092 = vmul.f32 %v1026, %v1085
  %v1093 = vmul.f32 %v1027, %v1085
  %v1094 = vmul.f32 %v1028, %v1085
  %v1095 = vmul.f32 %v1029, %v1085
  %v1096 = vmul.f32 %v1030, %v1085
  %v1097 = vmul.f32 %v1031, %v1085
  %v1098 = vmul.f32 %v1032, %v1085
  %v1099 = vmul.f32 %v1033, %v1085
  %v1100 = vmul.f32 %v1034, %v1085
  %v1101 = vmul.f32 %v1035, %v1085
  %v1102 = vmul.f32 %v1036, %v1085
  %v1103 = vmul.f32 %v1037, %v1085
  %v1104 = vmul.f32 %v1038, %v1085
  %v1105 = vmul.f32 %v1039, %v1085
  %v1106 = vmul.f32 %v1040, %v1085
  %v1107 = vmul.f32 %v1041, %v1085
  %v1108 = vmul.f32 %v1042, %v1085
  %v1109 = vmul.f32 %v1043, %v1085
  %v1110 = vmul.f32 %v1044, %v1085
  %v1111 = vmul.f32 %v1045, %v1085
  %v1112 = vmul.f32 %v1046, %v1085
  %v1113 = vmul.f32 %v1047, %v1085
  %v1114 = vmul.f32 %v1048, %v1085
  %v1115 = vmul.f32 %v1049, %v1085
  %v1116 = vmul.f32 %v1050, %v1085
  %v1117 = vmul.f32 %v1051, %v1085
  %v1118 = vmul.f32 %v1052, %v1085
  %v1119 = vmul.f32 %v1053, %v1085
  %v1120 = vmul.f32 %v1054, %v1085
  %v1121 = vmul.f32 %v1055, %v1085
  %v1122 = vmul.f32 %v1056, %v1085
  %v1123 = vmul.f32 %v1057, %v1085
  %v1124 = vmul.f32 %v1058, %v1085
  %v1125 = vmul.f32 %v1059, %v1085
  %v1126 = vmul.f32 %v1060, %v1085
  %v1127 = vmul.f32 %v1061, %v1085
  %v1128 = vmul.f32 %v1062, %v1085
  %v1129 = vmul.f32 %v1063, %v1085
  %v1130 = vmul.f32 %v1064, %v1085
  %v1131 = vmul.f32 %v1065, %v1085
  %v1132 = vmul.f32 %v1066, %v1085
  %v1133 = vmul.f32 %v1067, %v1085
  %v1134 = vmul.f32 %v1068, %v1085
  %v1135 = vmul.f32 %v1069, %v1085
  %v1136 = vmul.f32 %v1070, %v1085
  %v1137 = vmul.f32 %v1071, %v1085
  %v1138 = vmul.f32 %v1072, %v1085
  %v1139 = vmul.f32 %v1073, %v1085
  %v1140 = vmul.f32 %v1074, %v1085
  %v1141 = vmul.f32 %v1075, %v1085
  %v1142 = vmul.f32 %v1076, %v1085
  %v1143 = vmul.f32 %v1077, %v1085
  %v1144 = vmul.f32 %v1078, %v1085
  %v1145 = vmul.f32 %v1079, %v1085
  %v1146 = vmul.f32 %v1080, %v1085
  %v1147 = vmul.f32 %v1081, %v1085
  %v1148 = vmul.f32 %v1082, %v1085
  %v1149 = vmul.f32 %v1083, %v1085
  %vm1150 = vcmp.gt.f32.partialorder %v1086, 0.0
  %vm1151 = vcmp.gt.f32.partialorder %v1087, 0.0
  %vm1152 = vcmp.gt.f32.partialorder %v1088, 0.0
  %vm1153 = vcmp.gt.f32.partialorder %v1089, 0.0
  %vm1154 = vcmp.gt.f32.partialorder %v1090, 0.0
  %vm1155 = vcmp.gt.f32.partialorder %v1091, 0.0
  %vm1156 = vcmp.gt.f32.partialorder %v1092, 0.0
  %vm1157 = vcmp.gt.f32.partialorder %v1093, 0.0
  %vm1158 = vcmp.gt.f32.partialorder %v1094, 0.0
  %vm1159 = vcmp.gt.f32.partialorder %v1095, 0.0
  %vm1160 = vcmp.gt.f32.partialorder %v1096, 0.0
  %vm1161 = vcmp.gt.f32.partialorder %v1097, 0.0
  %vm1162 = vcmp.gt.f32.partialorder %v1098, 0.0
  %vm1163 = vcmp.gt.f32.partialorder %v1099, 0.0
  %vm1164 = vcmp.gt.f32.partialorder %v1100, 0.0
  %vm1165 = vcmp.gt.f32.partialorder %v1101, 0.0
  %vm1166 = vcmp.gt.f32.partialorder %v1102, 0.0
  %vm1167 = vcmp.gt.f32.partialorder %v1103, 0.0
  %vm1168 = vcmp.gt.f32.partialorder %v1104, 0.0
  %vm1169 = vcmp.gt.f32.partialorder %v1105, 0.0
  %vm1170 = vcmp.gt.f32.partialorder %v1106, 0.0
  %vm1171 = vcmp.gt.f32.partialorder %v1107, 0.0
  %vm1172 = vcmp.gt.f32.partialorder %v1108, 0.0
  %vm1173 = vcmp.gt.f32.partialorder %v1109, 0.0
  %vm1174 = vcmp.gt.f32.partialorder %v1110, 0.0
  %vm1175 = vcmp.gt.f32.partialorder %v1111, 0.0
  %vm1176 = vcmp.gt.f32.partialorder %v1112, 0.0
  %vm1177 = vcmp.gt.f32.partialorder %v1113, 0.0
  %vm1178 = vcmp.gt.f32.partialorder %v1114, 0.0
  %vm1179 = vcmp.gt.f32.partialorder %v1115, 0.0
  %vm1180 = vcmp.gt.f32.partialorder %v1116, 0.0
  %vm1181 = vcmp.gt.f32.partialorder %v1117, 0.0
  %vm1182 = vcmp.gt.f32.partialorder %v1118, 0.0
  %vm1183 = vcmp.gt.f32.partialorder %v1119, 0.0
  %vm1184 = vcmp.gt.f32.partialorder %v1120, 0.0
  %vm1185 = vcmp.gt.f32.partialorder %v1121, 0.0
  %vm1186 = vcmp.gt.f32.partialorder %v1122, 0.0
  %vm1187 = vcmp.gt.f32.partialorder %v1123, 0.0
  %vm1188 = vcmp.gt.f32.partialorder %v1124, 0.0
  %vm1189 = vcmp.gt.f32.partialorder %v1125, 0.0
  %vm1190 = vcmp.gt.f32.partialorder %v1126, 0.0
  %vm1191 = vcmp.gt.f32.partialorder %v1127, 0.0
  %vm1192 = vcmp.gt.f32.partialorder %v1128, 0.0
  %vm1193 = vcmp.gt.f32.partialorder %v1129, 0.0
  %vm1194 = vcmp.gt.f32.partialorder %v1130, 0.0
  %vm1195 = vcmp.gt.f32.partialorder %v1131, 0.0
  %vm1196 = vcmp.gt.f32.partialorder %v1132, 0.0
  %vm1197 = vcmp.gt.f32.partialorder %v1133, 0.0
  %vm1198 = vcmp.gt.f32.partialorder %v1134, 0.0
  %vm1199 = vcmp.gt.f32.partialorder %v1135, 0.0
  %vm1200 = vcmp.gt.f32.partialorder %v1136, 0.0
  %vm1201 = vcmp.gt.f32.partialorder %v1137, 0.0
  %vm1202 = vcmp.gt.f32.partialorder %v1138, 0.0
  %vm1203 = vcmp.gt.f32.partialorder %v1139, 0.0
  %vm1204 = vcmp.gt.f32.partialorder %v1140, 0.0
  %vm1205 = vcmp.gt.f32.partialorder %v1141, 0.0
  %vm1206 = vcmp.gt.f32.partialorder %v1142, 0.0
  %vm1207 = vcmp.gt.f32.partialorder %v1143, 0.0
  %vm1208 = vcmp.gt.f32.partialorder %v1144, 0.0
  %vm1209 = vcmp.gt.f32.partialorder %v1145, 0.0
  %vm1210 = vcmp.gt.f32.partialorder %v1146, 0.0
  %vm1211 = vcmp.gt.f32.partialorder %v1147, 0.0
  %vm1212 = vcmp.gt.f32.partialorder %v1148, 0.0
  %vm1213 = vcmp.gt.f32.partialorder %v1149, 0.0
  %v1214 = vmul.f32 %v1086, 0.01
  %v1215 = vmul.f32 %v1087, 0.01
  %v1216 = vmul.f32 %v1088, 0.01
  %v1217 = vmul.f32 %v1089, 0.01
  %v1218 = vmul.f32 %v1090, 0.01
  %v1219 = vmul.f32 %v1091, 0.01
  %v1220 = vmul.f32 %v1092, 0.01
  %v1221 = vmul.f32 %v1093, 0.01
  %v1222 = vmul.f32 %v1094, 0.01
  %v1223 = vmul.f32 %v1095, 0.01
  %v1224 = vmul.f32 %v1096, 0.01
  %v1225 = vmul.f32 %v1097, 0.01
  %v1226 = vmul.f32 %v1098, 0.01
  %v1227 = vmul.f32 %v1099, 0.01
  %v1228 = vmul.f32 %v1100, 0.01
  %v1229 = vmul.f32 %v1101, 0.01
  %v1230 = vmul.f32 %v1102, 0.01
  %v1231 = vmul.f32 %v1103, 0.01
  %v1232 = vmul.f32 %v1104, 0.01
  %v1233 = vmul.f32 %v1105, 0.01
  %v1234 = vmul.f32 %v1106, 0.01
  %v1235 = vmul.f32 %v1107, 0.01
  %v1236 = vmul.f32 %v1108, 0.01
  %v1237 = vmul.f32 %v1109, 0.01
  %v1238 = vmul.f32 %v1110, 0.01
  %v1239 = vmul.f32 %v1111, 0.01
  %v1240 = vmul.f32 %v1112, 0.01
  %v1241 = vmul.f32 %v1113, 0.01
  %v1242 = vmul.f32 %v1114, 0.01
  %v1243 = vmul.f32 %v1115, 0.01
  %v1244 = vmul.f32 %v1116, 0.01
  %v1245 = vmul.f32 %v1117, 0.01
  %v1246 = vmul.f32 %v1118, 0.01
  %v1247 = vmul.f32 %v1119, 0.01
  %v1248 = vmul.f32 %v1120, 0.01
  %v1249 = vmul.f32 %v1121, 0.01
  %v1250 = vmul.f32 %v1122, 0.01
  %v1251 = vmul.f32 %v1123, 0.01
  %v1252 = vmul.f32 %v1124, 0.01
  %v1253 = vmul.f32 %v1125, 0.01
  %v1254 = vmul.f32 %v1126, 0.01
  %v1255 = vmul.f32 %v1127, 0.01
  %v1256 = vmul.f32 %v1128, 0.01
  %v1257 = vmul.f32 %v1129, 0.01
  %v1258 = vmul.f32 %v1130, 0.01
  %v1259 = vmul.f32 %v1131, 0.01
  %v1260 = vmul.f32 %v1132, 0.01
  %v1261 = vmul.f32 %v1133, 0.01
  %v1262 = vmul.f32 %v1134, 0.01
  %v1263 = vmul.f32 %v1135, 0.01
  %v1264 = vmul.f32 %v1136, 0.01
  %v1265 = vmul.f32 %v1137, 0.01
  %v1266 = vmul.f32 %v1138, 0.01
  %v1267 = vmul.f32 %v1139, 0.01
  %v1268 = vmul.f32 %v1140, 0.01
  %v1269 = vmul.f32 %v1141, 0.01
  %v1270 = vmul.f32 %v1142, 0.01
  %v1271 = vmul.f32 %v1143, 0.01
  %v1272 = vmul.f32 %v1144, 0.01
  %v1273 = vmul.f32 %v1145, 0.01
  %v1274 = vmul.f32 %v1146, 0.01
  %v1275 = vmul.f32 %v1147, 0.01
  %v1276 = vmul.f32 %v1148, 0.01
  %v1277 = vmul.f32 %v1149, 0.01
  %v1278 = vsel %vm1150, %v1086, %v1214
  %v1279 = vsel %vm1151, %v1087, %v1215
  %v1280 = vsel %vm1152, %v1088, %v1216
  %v1281 = vsel %vm1153, %v1089, %v1217
  %v1282 = vsel %vm1154, %v1090, %v1218
  %v1283 = vsel %vm1155, %v1091, %v1219
  %v1284 = vsel %vm1156, %v1092, %v1220
  %v1285 = vsel %vm1157, %v1093, %v1221
  %v1286 = vsel %vm1158, %v1094, %v1222
  %v1287 = vsel %vm1159, %v1095, %v1223
  %v1288 = vsel %vm1160, %v1096, %v1224
  %v1289 = vsel %vm1161, %v1097, %v1225
  %v1290 = vsel %vm1162, %v1098, %v1226
  %v1291 = vsel %vm1163, %v1099, %v1227
  %v1292 = vsel %vm1164, %v1100, %v1228
  %v1293 = vsel %vm1165, %v1101, %v1229
  %v1294 = vsel %vm1166, %v1102, %v1230
  %v1295 = vsel %vm1167, %v1103, %v1231
  %v1296 = vsel %vm1168, %v1104, %v1232
  %v1297 = vsel %vm1169, %v1105, %v1233
  %v1298 = vsel %vm1170, %v1106, %v1234
  %v1299 = vsel %vm1171, %v1107, %v1235
  %v1300 = vsel %vm1172, %v1108, %v1236
  %v1301 = vsel %vm1173, %v1109, %v1237
  %v1302 = vsel %vm1174, %v1110, %v1238
  %v1303 = vsel %vm1175, %v1111, %v1239
  %v1304 = vsel %vm1176, %v1112, %v1240
  %v1305 = vsel %vm1177, %v1113, %v1241
  %v1306 = vsel %vm1178, %v1114, %v1242
  %v1307 = vsel %vm1179, %v1115, %v1243
  %v1308 = vsel %vm1180, %v1116, %v1244
  %v1309 = vsel %vm1181, %v1117, %v1245
  %v1310 = vsel %vm1182, %v1118, %v1246
  %v1311 = vsel %vm1183, %v1119, %v1247
  %v1312 = vsel %vm1184, %v1120, %v1248
  %v1313 = vsel %vm1185, %v1121, %v1249
  %v1314 = vsel %vm1186, %v1122, %v1250
  %v1315 = vsel %vm1187, %v1123, %v1251
  %v1316 = vsel %vm1188, %v1124, %v1252
  %v1317 = vsel %vm1189, %v1125, %v1253
  %v1318 = vsel %vm1190, %v1126, %v1254
  %v1319 = vsel %vm1191, %v1127, %v1255
  %v1320 = vsel %vm1192, %v1128, %v1256
  %v1321 = vsel %vm1193, %v1129, %v1257
  %v1322 = vsel %vm1194, %v1130, %v1258
  %v1323 = vsel %vm1195, %v1131, %v1259
  %v1324 = vsel %vm1196, %v1132, %v1260
  %v1325 = vsel %vm1197, %v1133, %v1261
  %v1326 = vsel %vm1198, %v1134, %v1262
  %v1327 = vsel %vm1199, %v1135, %v1263
  %v1328 = vsel %vm1200, %v1136, %v1264
  %v1329 = vsel %vm1201, %v1137, %v1265
  %v1330 = vsel %vm1202, %v1138, %v1266
  %v1331 = vsel %vm1203, %v1139, %v1267
  %v1332 = vsel %vm1204, %v1140, %v1268
  %v1333 = vsel %vm1205, %v1141, %v1269
  %v1334 = vsel %vm1206, %v1142, %v1270
  %v1335 = vsel %vm1207, %v1143, %v1271
  %v1336 = vsel %vm1208, %v1144, %v1272
  %v1337 = vsel %vm1209, %v1145, %v1273
  %v1338 = vsel %vm1210, %v1146, %v1274
  %v1339 = vsel %vm1211, %v1147, %v1275
  %v1340 = vsel %vm1212, %v1148, %v1276
  %v1341 = vsel %vm1213, %v1149, %v1277
  %v1342 = vpack.c.bf16 %v1279, %v1278
  %v1343 = vpack.c.bf16 %v1281, %v1280
  %v1344 = vpack.c.bf16 %v1283, %v1282
  %v1345 = vpack.c.bf16 %v1285, %v1284
  %v1346 = vpack.c.bf16 %v1287, %v1286
  %v1347 = vpack.c.bf16 %v1289, %v1288
  %v1348 = vpack.c.bf16 %v1291, %v1290
  %v1349 = vpack.c.bf16 %v1293, %v1292
  %v1350 = vpack.c.bf16 %v1295, %v1294
  %v1351 = vpack.c.bf16 %v1297, %v1296
  %v1352 = vpack.c.bf16 %v1299, %v1298
  %v1353 = vpack.c.bf16 %v1301, %v1300
  %v1354 = vpack.c.bf16 %v1303, %v1302
  %v1355 = vpack.c.bf16 %v1305, %v1304
  %v1356 = vpack.c.bf16 %v1307, %v1306
  %v1357 = vpack.c.bf16 %v1309, %v1308
  %v1358 = vpack.c.bf16 %v1311, %v1310
  %v1359 = vpack.c.bf16 %v1313, %v1312
  %v1360 = vpack.c.bf16 %v1315, %v1314
  %v1361 = vpack.c.bf16 %v1317, %v1316
  %v1362 = vpack.c.bf16 %v1319, %v1318
  %v1363 = vpack.c.bf16 %v1321, %v1320
  %v1364 = vpack.c.bf16 %v1323, %v1322
  %v1365 = vpack.c.bf16 %v1325, %v1324
  %v1366 = vpack.c.bf16 %v1327, %v1326
  %v1367 = vpack.c.bf16 %v1329, %v1328
  %v1368 = vpack.c.bf16 %v1331, %v1330
  %v1369 = vpack.c.bf16 %v1333, %v1332
  %v1370 = vpack.c.bf16 %v1335, %v1334
  %v1371 = vpack.c.bf16 %v1337, %v1336
  %v1372 = vpack.c.bf16 %v1339, %v1338
  %v1373 = vpack.c.bf16 %v1341, %v1340
  %v1406 = vunpack.c.l.b16 %v1342
  %v1407 = vunpack.c.h.b16 %v1342
  %v1408 = vunpack.c.l.b16 %v1343
  %v1409 = vunpack.c.h.b16 %v1343
  %v1410 = vunpack.c.l.b16 %v1344
  %v1411 = vunpack.c.h.b16 %v1344
  %v1412 = vunpack.c.l.b16 %v1345
  %v1413 = vunpack.c.h.b16 %v1345
  %v1414 = vunpack.c.l.b16 %v1346
  %v1415 = vunpack.c.h.b16 %v1346
  %v1416 = vunpack.c.l.b16 %v1347
  %v1417 = vunpack.c.h.b16 %v1347
  %v1418 = vunpack.c.l.b16 %v1348
  %v1419 = vunpack.c.h.b16 %v1348
  %v1420 = vunpack.c.l.b16 %v1349
  %v1421 = vunpack.c.h.b16 %v1349
  %v1422 = vunpack.c.l.b16 %v1350
  %v1423 = vunpack.c.h.b16 %v1350
  %v1424 = vunpack.c.l.b16 %v1351
  %v1425 = vunpack.c.h.b16 %v1351
  %v1426 = vunpack.c.l.b16 %v1352
  %v1427 = vunpack.c.h.b16 %v1352
  %v1428 = vunpack.c.l.b16 %v1353
  %v1429 = vunpack.c.h.b16 %v1353
  %v1430 = vunpack.c.l.b16 %v1354
  %v1431 = vunpack.c.h.b16 %v1354
  %v1432 = vunpack.c.l.b16 %v1355
  %v1433 = vunpack.c.h.b16 %v1355
  %v1434 = vunpack.c.l.b16 %v1356
  %v1435 = vunpack.c.h.b16 %v1356
  %v1436 = vunpack.c.l.b16 %v1357
  %v1437 = vunpack.c.h.b16 %v1357
  %v1438 = vunpack.c.l.b16 %v1358
  %v1439 = vunpack.c.h.b16 %v1358
  %v1440 = vunpack.c.l.b16 %v1359
  %v1441 = vunpack.c.h.b16 %v1359
  %v1442 = vunpack.c.l.b16 %v1360
  %v1443 = vunpack.c.h.b16 %v1360
  %v1444 = vunpack.c.l.b16 %v1361
  %v1445 = vunpack.c.h.b16 %v1361
  %v1446 = vunpack.c.l.b16 %v1362
  %v1447 = vunpack.c.h.b16 %v1362
  %v1448 = vunpack.c.l.b16 %v1363
  %v1449 = vunpack.c.h.b16 %v1363
  %v1450 = vunpack.c.l.b16 %v1364
  %v1451 = vunpack.c.h.b16 %v1364
  %v1452 = vunpack.c.l.b16 %v1365
  %v1453 = vunpack.c.h.b16 %v1365
  %v1454 = vunpack.c.l.b16 %v1366
  %v1455 = vunpack.c.h.b16 %v1366
  %v1456 = vunpack.c.l.b16 %v1367
  %v1457 = vunpack.c.h.b16 %v1367
  %v1458 = vunpack.c.l.b16 %v1368
  %v1459 = vunpack.c.h.b16 %v1368
  %v1460 = vunpack.c.l.b16 %v1369
  %v1461 = vunpack.c.h.b16 %v1369
  %v1462 = vunpack.c.l.b16 %v1370
  %v1463 = vunpack.c.h.b16 %v1370
  %v1464 = vunpack.c.l.b16 %v1371
  %v1465 = vunpack.c.h.b16 %v1371
  %v1466 = vunpack.c.l.b16 %v1372
  %v1467 = vunpack.c.h.b16 %v1372
  %v1468 = vunpack.c.l.b16 %v1373
  %v1469 = vunpack.c.h.b16 %v1373
  %v1470 = vpack.c.b16 %v1406, %v1406
  %v1471 = vpack.c.b16 %v1407, %v1407
  %v1472 = vpack.c.b16 %v1408, %v1408
  %v1473 = vpack.c.b16 %v1409, %v1409
  %v1474 = vpack.c.b16 %v1410, %v1410
  %v1475 = vpack.c.b16 %v1411, %v1411
  %v1476 = vpack.c.b16 %v1412, %v1412
  %v1477 = vpack.c.b16 %v1413, %v1413
  %v1478 = vpack.c.b16 %v1414, %v1414
  %v1479 = vpack.c.b16 %v1415, %v1415
  %v1480 = vpack.c.b16 %v1416, %v1416
  %v1481 = vpack.c.b16 %v1417, %v1417
  %v1482 = vpack.c.b16 %v1418, %v1418
  %v1483 = vpack.c.b16 %v1419, %v1419
  %v1484 = vpack.c.b16 %v1420, %v1420
  %v1485 = vpack.c.b16 %v1421, %v1421
  %v1486 = vpack.c.b16 %v1422, %v1422
  %v1487 = vpack.c.b16 %v1423, %v1423
  %v1488 = vpack.c.b16 %v1424, %v1424
  %v1489 = vpack.c.b16 %v1425, %v1425
  %v1490 = vpack.c.b16 %v1426, %v1426
  %v1491 = vpack.c.b16 %v1427, %v1427
  %v1492 = vpack.c.b16 %v1428, %v1428
  %v1493 = vpack.c.b16 %v1429, %v1429
  %v1494 = vpack.c.b16 %v1430, %v1430
  %v1495 = vpack.c.b16 %v1431, %v1431
  %v1496 = vpack.c.b16 %v1432, %v1432
  %v1497 = vpack.c.b16 %v1433, %v1433
  %v1498 = vpack.c.b16 %v1434, %v1434
  %v1499 = vpack.c.b16 %v1435, %v1435
  %v1500 = vpack.c.b16 %v1436, %v1436
  %v1501 = vpack.c.b16 %v1437, %v1437
  %v1502 = vpack.c.b16 %v1438, %v1438
  %v1503 = vpack.c.b16 %v1439, %v1439
  %v1504 = vpack.c.b16 %v1440, %v1440
  %v1505 = vpack.c.b16 %v1441, %v1441
  %v1506 = vpack.c.b16 %v1442, %v1442
  %v1507 = vpack.c.b16 %v1443, %v1443
  %v1508 = vpack.c.b16 %v1444, %v1444
  %v1509 = vpack.c.b16 %v1445, %v1445
  %v1510 = vpack.c.b16 %v1446, %v1446
  %v1511 = vpack.c.b16 %v1447, %v1447
  %v1512 = vpack.c.b16 %v1448, %v1448
  %v1513 = vpack.c.b16 %v1449, %v1449
  %v1514 = vpack.c.b16 %v1450, %v1450
  %v1515 = vpack.c.b16 %v1451, %v1451
  %v1516 = vpack.c.b16 %v1452, %v1452
  %v1517 = vpack.c.b16 %v1453, %v1453
  %v1518 = vpack.c.b16 %v1454, %v1454
  %v1519 = vpack.c.b16 %v1455, %v1455
  %v1520 = vpack.c.b16 %v1456, %v1456
  %v1521 = vpack.c.b16 %v1457, %v1457
  %v1522 = vpack.c.b16 %v1458, %v1458
  %v1523 = vpack.c.b16 %v1459, %v1459
  %v1524 = vpack.c.b16 %v1460, %v1460
  %v1525 = vpack.c.b16 %v1461, %v1461
  %v1526 = vpack.c.b16 %v1462, %v1462
  %v1527 = vpack.c.b16 %v1463, %v1463
  %v1528 = vpack.c.b16 %v1464, %v1464
  %v1529 = vpack.c.b16 %v1465, %v1465
  %v1530 = vpack.c.b16 %v1466, %v1466
  %v1531 = vpack.c.b16 %v1467, %v1467
  %v1532 = vpack.c.b16 %v1468, %v1468
  %v1533 = vpack.c.b16 %v1469, %v1469
  %1598 = vst [vmem:[%s2] sm:$0xf] %v1470
  %1599 = vst [vmem:[%s2 + $0x4] sm:$0xf] %v1471
  %1600 = vst [vmem:[%s2 + $0x8] sm:$0xf] %v1472
  %1601 = vst [vmem:[%s2 + $0xc] sm:$0xf] %v1473
  %1602 = vst [vmem:[%s2 + $0x10] sm:$0xf] %v1474
  %1603 = vst [vmem:[%s2 + $0x14] sm:$0xf] %v1475
  %1604 = vst [vmem:[%s2 + $0x18] sm:$0xf] %v1476
  %1605 = vst [vmem:[%s2 + $0x1c] sm:$0xf] %v1477
  %1606 = vst [vmem:[%s2 + $0x20] sm:$0xf] %v1478
  %1607 = vst [vmem:[%s2 + $0x24] sm:$0xf] %v1479
  %1608 = vst [vmem:[%s2 + $0x28] sm:$0xf] %v1480
  %1609 = vst [vmem:[%s2 + $0x2c] sm:$0xf] %v1481
  %1610 = vst [vmem:[%s2 + $0x30] sm:$0xf] %v1482
  %1611 = vst [vmem:[%s2 + $0x34] sm:$0xf] %v1483
  %1612 = vst [vmem:[%s2 + $0x38] sm:$0xf] %v1484
  %1613 = vst [vmem:[%s2 + $0x3c] sm:$0xf] %v1485
  %1614 = vst [vmem:[%s2 + $0x40] sm:$0xf] %v1486
  %1615 = vst [vmem:[%s2 + $0x44] sm:$0xf] %v1487
  %1616 = vst [vmem:[%s2 + $0x48] sm:$0xf] %v1488
  %1617 = vst [vmem:[%s2 + $0x4c] sm:$0xf] %v1489
  %1618 = vst [vmem:[%s2 + $0x50] sm:$0xf] %v1490
  %1619 = vst [vmem:[%s2 + $0x54] sm:$0xf] %v1491
  %1620 = vst [vmem:[%s2 + $0x58] sm:$0xf] %v1492
  %1621 = vst [vmem:[%s2 + $0x5c] sm:$0xf] %v1493
  %1622 = vst [vmem:[%s2 + $0x60] sm:$0xf] %v1494
  %1623 = vst [vmem:[%s2 + $0x64] sm:$0xf] %v1495
  %1624 = vst [vmem:[%s2 + $0x68] sm:$0xf] %v1496
  %1625 = vst [vmem:[%s2 + $0x6c] sm:$0xf] %v1497
  %1626 = vst [vmem:[%s2 + $0x70] sm:$0xf] %v1498
  %1627 = vst [vmem:[%s2 + $0x74] sm:$0xf] %v1499
  %1628 = vst [vmem:[%s2 + $0x78] sm:$0xf] %v1500
  %1629 = vst [vmem:[%s2 + $0x7c] sm:$0xf] %v1501
  %1630 = vst [vmem:[%s2 + $0x80] sm:$0xf] %v1502
  %1631 = vst [vmem:[%s2 + $0x84] sm:$0xf] %v1503
  %1632 = vst [vmem:[%s2 + $0x88] sm:$0xf] %v1504
  %1633 = vst [vmem:[%s2 + $0x8c] sm:$0xf] %v1505
  %1634 = vst [vmem:[%s2 + $0x90] sm:$0xf] %v1506
  %1635 = vst [vmem:[%s2 + $0x94] sm:$0xf] %v1507
  %1636 = vst [vmem:[%s2 + $0x98] sm:$0xf] %v1508
  %1637 = vst [vmem:[%s2 + $0x9c] sm:$0xf] %v1509
  %1638 = vst [vmem:[%s2 + $0xa0] sm:$0xf] %v1510
  %1639 = vst [vmem:[%s2 + $0xa4] sm:$0xf] %v1511
  %1640 = vst [vmem:[%s2 + $0xa8] sm:$0xf] %v1512
  %1641 = vst [vmem:[%s2 + $0xac] sm:$0xf] %v1513
  %1642 = vst [vmem:[%s2 + $0xb0] sm:$0xf] %v1514
  %1643 = vst [vmem:[%s2 + $0xb4] sm:$0xf] %v1515
  %1644 = vst [vmem:[%s2 + $0xb8] sm:$0xf] %v1516
  %1645 = vst [vmem:[%s2 + $0xbc] sm:$0xf] %v1517
  %1646 = vst [vmem:[%s2 + $0xc0] sm:$0xf] %v1518
  %1647 = vst [vmem:[%s2 + $0xc4] sm:$0xf] %v1519
  %1648 = vst [vmem:[%s2 + $0xc8] sm:$0xf] %v1520
  %1649 = vst [vmem:[%s2 + $0xcc] sm:$0xf] %v1521
  %1650 = vst [vmem:[%s2 + $0xd0] sm:$0xf] %v1522
  %1651 = vst [vmem:[%s2 + $0xd4] sm:$0xf] %v1523
  %1652 = vst [vmem:[%s2 + $0xd8] sm:$0xf] %v1524
  %1653 = vst [vmem:[%s2 + $0xdc] sm:$0xf] %v1525
  %1654 = vst [vmem:[%s2 + $0xe0] sm:$0xf] %v1526
  %1655 = vst [vmem:[%s2 + $0xe4] sm:$0xf] %v1527
  %1656 = vst [vmem:[%s2 + $0xe8] sm:$0xf] %v1528
  %1657 = vst [vmem:[%s2 + $0xec] sm:$0xf] %v1529
  %1658 = vst [vmem:[%s2 + $0xf0] sm:$0xf] %v1530
  %1659 = vst [vmem:[%s2 + $0xf4] sm:$0xf] %v1531
  %1660 = vst [vmem:[%s2 + $0xf8] sm:$0xf] %v1532
  %1661 = vst [vmem:[%s2 + $0xfc] sm:$0xf] %v1533
  // Predicated region
  $region10: #{_lambda_.42} parent=0 // pred_check
    _
  $region11: #{_lambda_.42} parent=0 // pred_check_branch
    %1663 = sbr.rel (0) target = $region13
  $region12: #{_lambda_.42} parent=0 // pred_region
    _
  $region13: #{_lambda_.42} parent=0 // pred_fallthru
    _
  // Predicated region
  $region14: #{_lambda_.42} parent=0 // pred_check
    _
  $region15: #{_lambda_.42} parent=0 // pred_check_branch
    %1665 = sbr.rel (0) target = $region17
  $region16: #{_lambda_.42} parent=0 // pred_region
    _
  $region17: #{_lambda_.42} parent=0 // pred_fallthru
    _

// kernel: _lambda_.45
$region0: #{_lambda_.45}
  #allocation0 [shape = 'u32[]', space=smem, size = 0x4, offset = 0x4, fixed_abs, tag = 'smem constant byte address 0x4 - core index']
  #allocation1 [shape = 'u32[144,128]{1,0:T(1,128)}', space=vmem, size = 0x12000, scoped, tag = 'internal scratch']
  %s0 = inlined_call_operand.vmem [shape: bf16[512,128], index: 0, kind: input, shape index: {}]
  %s1 = inlined_call_operand.vmem [shape: bf16[128,128], index: 1, kind: input, shape index: {}]
  %s2 = inlined_call_operand.vmem [shape: f32[1,128], index: 2, kind: input, shape index: {}]
  %s3 = inlined_call_operand.vmem [shape: f32[512,128], index: 3, kind: output, shape index: {}]
  %s4 = sld [smem:[#allocation0]]
  $region22: #{_lambda_.45} parent=0
    _
  %s6 = ssub.s32 1, %s4
  %s7 = scalar_select 0, %s6, %s4
  // Predicated region
  $region2: #{_lambda_.45} parent=0 // pred_check
    _
  $region3: #{_lambda_.45} parent=0 // pred_check_branch
    %9 = sbr.rel (0) target = $region5
  $region4: #{_lambda_.45} parent=0 // pred_region
    _
  $region5: #{_lambda_.45} parent=0 // pred_fallthru
    _
  // Predicated region
  $region6: #{_lambda_.45} parent=0 // pred_check
    _
  $region7: #{_lambda_.45} parent=0 // pred_check_branch
    %11 = sbr.rel (0) target = $region9
  $region8: #{_lambda_.45} parent=0 // pred_region
    _
  $region9: #{_lambda_.45} parent=0 // pred_fallthru
    _
  // Predicated region
  $region10: #{_lambda_.45} parent=0 // pred_check
    _
  $region11: #{_lambda_.45} parent=0 // pred_check_branch
    %13 = sbr.rel (0) target = $region13
  $region12: #{_lambda_.45} parent=0 // pred_region
    _
  $region13: #{_lambda_.45} parent=0 // pred_fallthru
    _
  %v15 = vld [vmem:[%s0] sm:$0xf]
  %v16 = vld [vmem:[%s0 + $0x4] sm:$0xf]
  %v17 = vld [vmem:[%s0 + $0x8] sm:$0xf]
  %v18 = vld [vmem:[%s0 + $0xc] sm:$0xf]
  %v19 = vld [vmem:[%s0 + $0x10] sm:$0xf]
  %v20 = vld [vmem:[%s0 + $0x14] sm:$0xf]
  %v21 = vld [vmem:[%s0 + $0x18] sm:$0xf]
  %v22 = vld [vmem:[%s0 + $0x1c] sm:$0xf]
  %v23 = vld [vmem:[%s0 + $0x20] sm:$0xf]
  %v24 = vld [vmem:[%s0 + $0x24] sm:$0xf]
  %v25 = vld [vmem:[%s0 + $0x28] sm:$0xf]
  %v26 = vld [vmem:[%s0 + $0x2c] sm:$0xf]
  %v27 = vld [vmem:[%s0 + $0x30] sm:$0xf]
  %v28 = vld [vmem:[%s0 + $0x34] sm:$0xf]
  %v29 = vld [vmem:[%s0 + $0x38] sm:$0xf]
  %v30 = vld [vmem:[%s0 + $0x3c] sm:$0xf]
  %v31 = vld [vmem:[%s0 + $0x40] sm:$0xf]
  %v32 = vld [vmem:[%s0 + $0x44] sm:$0xf]
  %v33 = vld [vmem:[%s0 + $0x48] sm:$0xf]
  %v34 = vld [vmem:[%s0 + $0x4c] sm:$0xf]
  %v35 = vld [vmem:[%s0 + $0x50] sm:$0xf]
  %v36 = vld [vmem:[%s0 + $0x54] sm:$0xf]
  %v37 = vld [vmem:[%s0 + $0x58] sm:$0xf]
  %v38 = vld [vmem:[%s0 + $0x5c] sm:$0xf]
  %v39 = vld [vmem:[%s0 + $0x60] sm:$0xf]
  %v40 = vld [vmem:[%s0 + $0x64] sm:$0xf]
  %v41 = vld [vmem:[%s0 + $0x68] sm:$0xf]
  %v42 = vld [vmem:[%s0 + $0x6c] sm:$0xf]
  %v43 = vld [vmem:[%s0 + $0x70] sm:$0xf]
  %v44 = vld [vmem:[%s0 + $0x74] sm:$0xf]
  %v45 = vld [vmem:[%s0 + $0x78] sm:$0xf]
  %v46 = vld [vmem:[%s0 + $0x7c] sm:$0xf]
  %v47 = vld [vmem:[%s0 + $0x80] sm:$0xf]
  %v48 = vld [vmem:[%s0 + $0x84] sm:$0xf]
  %v49 = vld [vmem:[%s0 + $0x88] sm:$0xf]
  %v50 = vld [vmem:[%s0 + $0x8c] sm:$0xf]
  %v51 = vld [vmem:[%s0 + $0x90] sm:$0xf]
  %v52 = vld [vmem:[%s0 + $0x94] sm:$0xf]
  %v53 = vld [vmem:[%s0 + $0x98] sm:$0xf]
  %v54 = vld [vmem:[%s0 + $0x9c] sm:$0xf]
  %v55 = vld [vmem:[%s0 + $0xa0] sm:$0xf]
  %v56 = vld [vmem:[%s0 + $0xa4] sm:$0xf]
  %v57 = vld [vmem:[%s0 + $0xa8] sm:$0xf]
  %v58 = vld [vmem:[%s0 + $0xac] sm:$0xf]
  %v59 = vld [vmem:[%s0 + $0xb0] sm:$0xf]
  %v60 = vld [vmem:[%s0 + $0xb4] sm:$0xf]
  %v61 = vld [vmem:[%s0 + $0xb8] sm:$0xf]
  %v62 = vld [vmem:[%s0 + $0xbc] sm:$0xf]
  %v63 = vld [vmem:[%s0 + $0xc0] sm:$0xf]
  %v64 = vld [vmem:[%s0 + $0xc4] sm:$0xf]
  %v65 = vld [vmem:[%s0 + $0xc8] sm:$0xf]
  %v66 = vld [vmem:[%s0 + $0xcc] sm:$0xf]
  %v67 = vld [vmem:[%s0 + $0xd0] sm:$0xf]
  %v68 = vld [vmem:[%s0 + $0xd4] sm:$0xf]
  %v69 = vld [vmem:[%s0 + $0xd8] sm:$0xf]
  %v70 = vld [vmem:[%s0 + $0xdc] sm:$0xf]
  %v71 = vld [vmem:[%s0 + $0xe0] sm:$0xf]
  %v72 = vld [vmem:[%s0 + $0xe4] sm:$0xf]
  %v73 = vld [vmem:[%s0 + $0xe8] sm:$0xf]
  %v74 = vld [vmem:[%s0 + $0xec] sm:$0xf]
  %v75 = vld [vmem:[%s0 + $0xf0] sm:$0xf]
  %v76 = vld [vmem:[%s0 + $0xf4] sm:$0xf]
  %v77 = vld [vmem:[%s0 + $0xf8] sm:$0xf]
  %v78 = vld [vmem:[%s0 + $0xfc] sm:$0xf]
  %v79 = vld [vmem:[%s1] sm:$0xf]
  %v80 = vld [vmem:[%s1 + $0x4] sm:$0xf]
  %v81 = vld [vmem:[%s1 + $0x8] sm:$0xf]
  %v82 = vld [vmem:[%s1 + $0xc] sm:$0xf]
  %v83 = vld [vmem:[%s1 + $0x10] sm:$0xf]
  %v84 = vld [vmem:[%s1 + $0x14] sm:$0xf]
  %v85 = vld [vmem:[%s1 + $0x18] sm:$0xf]
  %v86 = vld [vmem:[%s1 + $0x1c] sm:$0xf]
  %v87 = vld [vmem:[%s1 + $0x20] sm:$0xf]
  %v88 = vld [vmem:[%s1 + $0x24] sm:$0xf]
  %v89 = vld [vmem:[%s1 + $0x28] sm:$0xf]
  %v90 = vld [vmem:[%s1 + $0x2c] sm:$0xf]
  %v91 = vld [vmem:[%s1 + $0x30] sm:$0xf]
  %v92 = vld [vmem:[%s1 + $0x34] sm:$0xf]
  %v93 = vld [vmem:[%s1 + $0x38] sm:$0xf]
  %v94 = vld [vmem:[%s1 + $0x3c] sm:$0xf]
  %v95 = vld [vmem:[%s2] sm:$0x1]
  %v97 = vlaneseq
  %v98 = vshrl.u32 %v97, 7
  %v99 = vsub.s32 0, %v98
  %v100 = vrot.slane %v95, %v99
  %v166 = vunpack.c.l.b16 %v15
  %v167 = vunpack.c.l.b16 %v16
  %v168 = vunpack.c.l.b16 %v17
  %v169 = vunpack.c.l.b16 %v18
  %v170 = vunpack.c.l.b16 %v19
  %v171 = vunpack.c.l.b16 %v20
  %v172 = vunpack.c.l.b16 %v21
  %v173 = vunpack.c.l.b16 %v22
  %v174 = vunpack.c.l.b16 %v23
  %v175 = vunpack.c.l.b16 %v24
  %v176 = vunpack.c.l.b16 %v25
  %v177 = vunpack.c.l.b16 %v26
  %v178 = vunpack.c.l.b16 %v27
  %v179 = vunpack.c.l.b16 %v28
  %v180 = vunpack.c.l.b16 %v29
  %v181 = vunpack.c.l.b16 %v30
  %v182 = vunpack.c.l.b16 %v31
  %v183 = vunpack.c.l.b16 %v32
  %v184 = vunpack.c.l.b16 %v33
  %v185 = vunpack.c.l.b16 %v34
  %v186 = vunpack.c.l.b16 %v35
  %v187 = vunpack.c.l.b16 %v36
  %v188 = vunpack.c.l.b16 %v37
  %v189 = vunpack.c.l.b16 %v38
  %v190 = vunpack.c.l.b16 %v39
  %v191 = vunpack.c.l.b16 %v40
  %v192 = vunpack.c.l.b16 %v41
  %v193 = vunpack.c.l.b16 %v42
  %v194 = vunpack.c.l.b16 %v43
  %v195 = vunpack.c.l.b16 %v44
  %v196 = vunpack.c.l.b16 %v45
  %v197 = vunpack.c.l.b16 %v46
  %v198 = vunpack.c.l.b16 %v47
  %v199 = vunpack.c.l.b16 %v48
  %v200 = vunpack.c.l.b16 %v49
  %v201 = vunpack.c.l.b16 %v50
  %v202 = vunpack.c.l.b16 %v51
  %v203 = vunpack.c.l.b16 %v52
  %v204 = vunpack.c.l.b16 %v53
  %v205 = vunpack.c.l.b16 %v54
  %v206 = vunpack.c.l.b16 %v55
  %v207 = vunpack.c.l.b16 %v56
  %v208 = vunpack.c.l.b16 %v57
  %v209 = vunpack.c.l.b16 %v58
  %v210 = vunpack.c.l.b16 %v59
  %v211 = vunpack.c.l.b16 %v60
  %v212 = vunpack.c.l.b16 %v61
  %v213 = vunpack.c.l.b16 %v62
  %v214 = vunpack.c.l.b16 %v63
  %v215 = vunpack.c.l.b16 %v64
  %v216 = vunpack.c.l.b16 %v65
  %v217 = vunpack.c.l.b16 %v66
  %v218 = vunpack.c.l.b16 %v67
  %v219 = vunpack.c.l.b16 %v68
  %v220 = vunpack.c.l.b16 %v69
  %v221 = vunpack.c.l.b16 %v70
  %v222 = vunpack.c.l.b16 %v71
  %v223 = vunpack.c.l.b16 %v72
  %v224 = vunpack.c.l.b16 %v73
  %v225 = vunpack.c.l.b16 %v74
  %v226 = vunpack.c.l.b16 %v75
  %v227 = vunpack.c.l.b16 %v76
  %v228 = vunpack.c.l.b16 %v77
  %v229 = vunpack.c.l.b16 %v78
  %v230 = vpack.c.b16 %v167, %v166
  %v231 = vpack.c.b16 %v169, %v168
  %v232 = vpack.c.b16 %v171, %v170
  %v233 = vpack.c.b16 %v173, %v172
  %v234 = vpack.c.b16 %v175, %v174
  %v235 = vpack.c.b16 %v177, %v176
  %v236 = vpack.c.b16 %v179, %v178
  %v237 = vpack.c.b16 %v181, %v180
  %v238 = vpack.c.b16 %v183, %v182
  %v239 = vpack.c.b16 %v185, %v184
  %v240 = vpack.c.b16 %v187, %v186
  %v241 = vpack.c.b16 %v189, %v188
  %v242 = vpack.c.b16 %v191, %v190
  %v243 = vpack.c.b16 %v193, %v192
  %v244 = vpack.c.b16 %v195, %v194
  %v245 = vpack.c.b16 %v197, %v196
  %v246 = vpack.c.b16 %v199, %v198
  %v247 = vpack.c.b16 %v201, %v200
  %v248 = vpack.c.b16 %v203, %v202
  %v249 = vpack.c.b16 %v205, %v204
  %v250 = vpack.c.b16 %v207, %v206
  %v251 = vpack.c.b16 %v209, %v208
  %v252 = vpack.c.b16 %v211, %v210
  %v253 = vpack.c.b16 %v213, %v212
  %v254 = vpack.c.b16 %v215, %v214
  %v255 = vpack.c.b16 %v217, %v216
  %v256 = vpack.c.b16 %v219, %v218
  %v257 = vpack.c.b16 %v221, %v220
  %v258 = vpack.c.b16 %v223, %v222
  %v259 = vpack.c.b16 %v225, %v224
  %v260 = vpack.c.b16 %v227, %v226
  %v261 = vpack.c.b16 %v229, %v228
  %v310 = vunpack.c.l.b16 %v79
  %v311 = vunpack.c.l.b16 %v80
  %v312 = vunpack.c.l.b16 %v81
  %v313 = vunpack.c.l.b16 %v82
  %v314 = vunpack.c.l.b16 %v83
  %v315 = vunpack.c.l.b16 %v84
  %v316 = vunpack.c.l.b16 %v85
  %v317 = vunpack.c.l.b16 %v86
  %v318 = vunpack.c.l.b16 %v87
  %v319 = vunpack.c.l.b16 %v88
  %v320 = vunpack.c.l.b16 %v89
  %v321 = vunpack.c.l.b16 %v90
  %v322 = vunpack.c.l.b16 %v91
  %v323 = vunpack.c.l.b16 %v92
  %v324 = vunpack.c.l.b16 %v93
  %v325 = vunpack.c.l.b16 %v94
  %v326 = vpack.c.b16 %v311, %v310
  %v327 = vpack.c.b16 %v313, %v312
  %v328 = vpack.c.b16 %v315, %v314
  %v329 = vpack.c.b16 %v317, %v316
  %v330 = vpack.c.b16 %v319, %v318
  %v331 = vpack.c.b16 %v321, %v320
  %v332 = vpack.c.b16 %v323, %v322
  %v333 = vpack.c.b16 %v325, %v324
  %342 = vmatprep.subr.bf16.mxu0 0
  %343 = vmatpush1.bf16.msra.mxu0 %v326
  %344 = vmatprep.subr.bf16.mxu0 0
  %345 = vmatpush1.bf16.msra.mxu0 %v327
  %346 = vmatprep.subr.bf16.mxu0 0
  %347 = vmatpush1.bf16.msra.mxu0 %v328
  %348 = vmatprep.subr.bf16.mxu0 0
  %349 = vmatpush1.bf16.msra.mxu0 %v329
  %350 = vmatprep.subr.bf16.mxu0 0
  %351 = vmatpush1.bf16.msra.mxu0 %v330
  %352 = vmatprep.subr.bf16.mxu0 0
  %353 = vmatpush1.bf16.msra.mxu0 %v331
  %354 = vmatprep.subr.bf16.mxu0 0
  %355 = vmatpush1.bf16.msra.mxu0 %v332
  %356 = vmatprep.subr.bf16.mxu0 0
  %357 = vmatpush1.bf16.msra.mxu0 %v333
  %358 = vmatprep.subr.bf16.mxu0 0
  %359 = vmatpush1.bf16.msra.mxu0 0
  %360 = vmatprep.subr.bf16.mxu0 0
  %361 = vmatpush1.bf16.msra.mxu0 0
  %362 = vmatprep.subr.bf16.mxu0 0
  %363 = vmatpush1.bf16.msra.mxu0 0
  %364 = vmatprep.subr.bf16.mxu0 0
  %365 = vmatpush1.bf16.msra.mxu0 0
  %366 = vmatprep.subr.bf16.mxu0 0
  %367 = vmatpush1.bf16.msra.mxu0 0
  %368 = vmatprep.subr.bf16.mxu0 0
  %369 = vmatpush1.bf16.msra.mxu0 0
  %370 = vmatprep.subr.bf16.mxu0 0
  %371 = vmatpush1.bf16.msra.mxu0 0
  %372 = vmatprep.subr.bf16.mxu0 0
  %373 = vmatpush1.bf16.msra.mxu0 0
  %374 = vmatprep.mubr.bf16.mxu0 0
  %375 = vmatmul.mubr.bf16.gmra.mrb[0].mxu0 %v230
  %v376 = vpop.f32.mrb[0].mxu0
  %v377 = vadd.f32 %v100, %v376
  %v378 = vpop.f32.mrb[0].mxu0
  %v379 = vpop.f32.mrb[0].mxu0
  %v380 = vadd.f32 %v100, %v379
  %v381 = vpop.f32.mrb[0].mxu0
  %382 = vmatprep.mubr.bf16.mxu0 0
  %383 = vmatmul.mubr.bf16.gmra.mrb[0].mxu0 %v231
  %v384 = vpop.f32.mrb[0].mxu0
  %v385 = vadd.f32 %v100, %v384
  %v386 = vpop.f32.mrb[0].mxu0
  %v387 = vpop.f32.mrb[0].mxu0
  %v388 = vadd.f32 %v100, %v387
  %v389 = vpop.f32.mrb[0].mxu0
  %390 = vmatprep.mubr.bf16.mxu0 0
  %391 = vmatmul.mubr.bf16.gmra.mrb[0].mxu0 %v232
  %v392 = vpop.f32.mrb[0].mxu0
  %v393 = vadd.f32 %v100, %v392
  %v394 = vpop.f32.mrb[0].mxu0
  %v395 = vpop.f32.mrb[0].mxu0
  %v396 = vadd.f32 %v100, %v395
  %v397 = vpop.f32.mrb[0].mxu0
  %398 = vmatprep.mubr.bf16.mxu0 0
  %399 = vmatmul.mubr.bf16.gmra.mrb[0].mxu0 %v233
  %v400 = vpop.f32.mrb[0].mxu0
  %v401 = vadd.f32 %v100, %v400
  %v402 = vpop.f32.mrb[0].mxu0
  %v403 = vpop.f32.mrb[0].mxu0
  %v404 = vadd.f32 %v100, %v403
  %v405 = vpop.f32.mrb[0].mxu0
  %406 = vmatprep.mubr.bf16.mxu0 0
  %407 = vmatmul.mubr.bf16.gmra.mrb[0].mxu0 %v234
  %v408 = vpop.f32.mrb[0].mxu0
  %v409 = vadd.f32 %v100, %v408
  %v410 = vpop.f32.mrb[0].mxu0
  %v411 = vpop.f32.mrb[0].mxu0
  %v412 = vadd.f32 %v100, %v411
  %v413 = vpop.f32.mrb[0].mxu0
  %414 = vmatprep.mubr.bf16.mxu0 0
  %415 = vmatmul.mubr.bf16.gmra.mrb[0].mxu0 %v235
  %v416 = vpop.f32.mrb[0].mxu0
  %v417 = vadd.f32 %v100, %v416
  %v418 = vpop.f32.mrb[0].mxu0
  %v419 = vpop.f32.mrb[0].mxu0
  %v420 = vadd.f32 %v100, %v419
  %v421 = vpop.f32.mrb[0].mxu0
  %422 = vmatprep.mubr.bf16.mxu0 0
  %423 = vmatmul.mubr.bf16.gmra.mrb[0].mxu0 %v236
  %v424 = vpop.f32.mrb[0].mxu0
  %v425 = vadd.f32 %v100, %v424
  %v426 = vpop.f32.mrb[0].mxu0
  %v427 = vpop.f32.mrb[0].mxu0
  %v428 = vadd.f32 %v100, %v427
  %v429 = vpop.f32.mrb[0].mxu0
  %430 = vmatprep.mubr.bf16.mxu0 0
  %431 = vmatmul.mubr.bf16.gmra.mrb[0].mxu0 %v237
  %v432 = vpop.f32.mrb[0].mxu0
  %v433 = vadd.f32 %v100, %v432
  %v434 = vpop.f32.mrb[0].mxu0
  %v435 = vpop.f32.mrb[0].mxu0
  %v436 = vadd.f32 %v100, %v435
  %v437 = vpop.f32.mrb[0].mxu0
  %438 = vmatprep.mubr.bf16.mxu0 0
  %439 = vmatmul.mubr.bf16.gmra.mrb[0].mxu0 %v238
  %v440 = vpop.f32.mrb[0].mxu0
  %v441 = vadd.f32 %v100, %v440
  %v442 = vpop.f32.mrb[0].mxu0
  %v443 = vpop.f32.mrb[0].mxu0
  %v444 = vadd.f32 %v100, %v443
  %v445 = vpop.f32.mrb[0].mxu0
  %446 = vmatprep.mubr.bf16.mxu0 0
  %447 = vmatmul.mubr.bf16.gmra.mrb[0].mxu0 %v239
  %v448 = vpop.f32.mrb[0].mxu0
  %v449 = vadd.f32 %v100, %v448
  %v450 = vpop.f32.mrb[0].mxu0
  %v451 = vpop.f32.mrb[0].mxu0
  %v452 = vadd.f32 %v100, %v451
  %v453 = vpop.f32.mrb[0].mxu0
  %454 = vmatprep.mubr.bf16.mxu0 0
  %455 = vmatmul.mubr.bf16.gmra.mrb[0].mxu0 %v240
  %v456 = vpop.f32.mrb[0].mxu0
  %v457 = vadd.f32 %v100, %v456
  %v458 = vpop.f32.mrb[0].mxu0
  %v459 = vpop.f32.mrb[0].mxu0
  %v460 = vadd.f32 %v100, %v459
  %v461 = vpop.f32.mrb[0].mxu0
  %462 = vmatprep.mubr.bf16.mxu0 0
  %463 = vmatmul.mubr.bf16.gmra.mrb[0].mxu0 %v241
  %v464 = vpop.f32.mrb[0].mxu0
  %v465 = vadd.f32 %v100, %v464
  %v466 = vpop.f32.mrb[0].mxu0
  %v467 = vpop.f32.mrb[0].mxu0
  %v468 = vadd.f32 %v100, %v467
  %v469 = vpop.f32.mrb[0].mxu0
  %470 = vmatprep.mubr.bf16.mxu0 0
  %471 = vmatmul.mubr.bf16.gmra.mrb[0].mxu0 %v242
  %v472 = vpop.f32.mrb[0].mxu0
  %v473 = vadd.f32 %v100, %v472
  %v474 = vpop.f32.mrb[0].mxu0
  %v475 = vpop.f32.mrb[0].mxu0
  %v476 = vadd.f32 %v100, %v475
  %v477 = vpop.f32.mrb[0].mxu0
  %478 = vmatprep.mubr.bf16.mxu0 0
  %479 = vmatmul.mubr.bf16.gmra.mrb[0].mxu0 %v243
  %v480 = vpop.f32.mrb[0].mxu0
  %v481 = vadd.f32 %v100, %v480
  %v482 = vpop.f32.mrb[0].mxu0
  %v483 = vpop.f32.mrb[0].mxu0
  %v484 = vadd.f32 %v100, %v483
  %v485 = vpop.f32.mrb[0].mxu0
  %486 = vmatprep.mubr.bf16.mxu0 0
  %487 = vmatmul.mubr.bf16.gmra.mrb[0].mxu0 %v244
  %v488 = vpop.f32.mrb[0].mxu0
  %v489 = vadd.f32 %v100, %v488
  %v490 = vpop.f32.mrb[0].mxu0
  %v491 = vpop.f32.mrb[0].mxu0
  %v492 = vadd.f32 %v100, %v491
  %v493 = vpop.f32.mrb[0].mxu0
  %494 = vmatprep.mubr.bf16.mxu0 0
  %495 = vmatmul.mubr.bf16.gmra.mrb[0].mxu0 %v245
  %v496 = vpop.f32.mrb[0].mxu0
  %v497 = vadd.f32 %v100, %v496
  %v498 = vpop.f32.mrb[0].mxu0
  %v499 = vpop.f32.mrb[0].mxu0
  %v500 = vadd.f32 %v100, %v499
  %v501 = vpop.f32.mrb[0].mxu0
  %502 = vmatprep.mubr.bf16.mxu0 0
  %503 = vmatmul.mubr.bf16.gmra.mrb[0].mxu0 %v246
  %v504 = vpop.f32.mrb[0].mxu0
  %v505 = vadd.f32 %v100, %v504
  %v506 = vpop.f32.mrb[0].mxu0
  %v507 = vpop.f32.mrb[0].mxu0
  %v508 = vadd.f32 %v100, %v507
  %v509 = vpop.f32.mrb[0].mxu0
  %510 = vmatprep.mubr.bf16.mxu0 0
  %511 = vmatmul.mubr.bf16.gmra.mrb[0].mxu0 %v247
  %v512 = vpop.f32.mrb[0].mxu0
  %v513 = vadd.f32 %v100, %v512
  %v514 = vpop.f32.mrb[0].mxu0
  %v515 = vpop.f32.mrb[0].mxu0
  %v516 = vadd.f32 %v100, %v515
  %v517 = vpop.f32.mrb[0].mxu0
  %518 = vmatprep.mubr.bf16.mxu0 0
  %519 = vmatmul.mubr.bf16.gmra.mrb[0].mxu0 %v248
  %v520 = vpop.f32.mrb[0].mxu0
  %v521 = vadd.f32 %v100, %v520
  %v522 = vpop.f32.mrb[0].mxu0
  %v523 = vpop.f32.mrb[0].mxu0
  %v524 = vadd.f32 %v100, %v523
  %v525 = vpop.f32.mrb[0].mxu0
  %526 = vmatprep.mubr.bf16.mxu0 0
  %527 = vmatmul.mubr.bf16.gmra.mrb[0].mxu0 %v249
  %v528 = vpop.f32.mrb[0].mxu0
  %v529 = vadd.f32 %v100, %v528
  %v530 = vpop.f32.mrb[0].mxu0
  %v531 = vpop.f32.mrb[0].mxu0
  %v532 = vadd.f32 %v100, %v531
  %v533 = vpop.f32.mrb[0].mxu0
  %534 = vmatprep.mubr.bf16.mxu0 0
  %535 = vmatmul.mubr.bf16.gmra.mrb[0].mxu0 %v250
  %v536 = vpop.f32.mrb[0].mxu0
  %v537 = vadd.f32 %v100, %v536
  %v538 = vpop.f32.mrb[0].mxu0
  %v539 = vpop.f32.mrb[0].mxu0
  %v540 = vadd.f32 %v100, %v539
  %v541 = vpop.f32.mrb[0].mxu0
  %542 = vmatprep.mubr.bf16.mxu0 0
  %543 = vmatmul.mubr.bf16.gmra.mrb[0].mxu0 %v251
  %v544 = vpop.f32.mrb[0].mxu0
  %v545 = vadd.f32 %v100, %v544
  %v546 = vpop.f32.mrb[0].mxu0
  %v547 = vpop.f32.mrb[0].mxu0
  %v548 = vadd.f32 %v100, %v547
  %v549 = vpop.f32.mrb[0].mxu0
  %550 = vmatprep.mubr.bf16.mxu0 0
  %551 = vmatmul.mubr.bf16.gmra.mrb[0].mxu0 %v252
  %v552 = vpop.f32.mrb[0].mxu0
  %v553 = vadd.f32 %v100, %v552
  %v554 = vpop.f32.mrb[0].mxu0
  %v555 = vpop.f32.mrb[0].mxu0
  %v556 = vadd.f32 %v100, %v555
  %v557 = vpop.f32.mrb[0].mxu0
  %558 = vmatprep.mubr.bf16.mxu0 0
  %559 = vmatmul.mubr.bf16.gmra.mrb[0].mxu0 %v253
  %v560 = vpop.f32.mrb[0].mxu0
  %v561 = vadd.f32 %v100, %v560
  %v562 = vpop.f32.mrb[0].mxu0
  %v563 = vpop.f32.mrb[0].mxu0
  %v564 = vadd.f32 %v100, %v563
  %v565 = vpop.f32.mrb[0].mxu0
  %566 = vmatprep.mubr.bf16.mxu0 0
  %567 = vmatmul.mubr.bf16.gmra.mrb[0].mxu0 %v254
  %v568 = vpop.f32.mrb[0].mxu0
  %v569 = vadd.f32 %v100, %v568
  %v570 = vpop.f32.mrb[0].mxu0
  %v571 = vpop.f32.mrb[0].mxu0
  %v572 = vadd.f32 %v100, %v571
  %v573 = vpop.f32.mrb[0].mxu0
  %574 = vmatprep.mubr.bf16.mxu0 0
  %575 = vmatmul.mubr.bf16.gmra.mrb[0].mxu0 %v255
  %v576 = vpop.f32.mrb[0].mxu0
  %v577 = vadd.f32 %v100, %v576
  %v578 = vpop.f32.mrb[0].mxu0
  %v579 = vpop.f32.mrb[0].mxu0
  %v580 = vadd.f32 %v100, %v579
  %v581 = vpop.f32.mrb[0].mxu0
  %582 = vmatprep.mubr.bf16.mxu0 0
  %583 = vmatmul.mubr.bf16.gmra.mrb[0].mxu0 %v256
  %v584 = vpop.f32.mrb[0].mxu0
  %v585 = vadd.f32 %v100, %v584
  %v586 = vpop.f32.mrb[0].mxu0
  %v587 = vpop.f32.mrb[0].mxu0
  %v588 = vadd.f32 %v100, %v587
  %v589 = vpop.f32.mrb[0].mxu0
  %590 = vmatprep.mubr.bf16.mxu0 0
  %591 = vmatmul.mubr.bf16.gmra.mrb[0].mxu0 %v257
  %v592 = vpop.f32.mrb[0].mxu0
  %v593 = vadd.f32 %v100, %v592
  %v594 = vpop.f32.mrb[0].mxu0
  %v595 = vpop.f32.mrb[0].mxu0
  %v596 = vadd.f32 %v100, %v595
  %v597 = vpop.f32.mrb[0].mxu0
  %598 = vmatprep.mubr.bf16.mxu0 0
  %599 = vmatmul.mubr.bf16.gmra.mrb[0].mxu0 %v258
  %v600 = vpop.f32.mrb[0].mxu0
  %v601 = vadd.f32 %v100, %v600
  %v602 = vpop.f32.mrb[0].mxu0
  %v603 = vpop.f32.mrb[0].mxu0
  %v604 = vadd.f32 %v100, %v603
  %v605 = vpop.f32.mrb[0].mxu0
  %606 = vmatprep.mubr.bf16.mxu0 0
  %607 = vmatmul.mubr.bf16.gmra.mrb[0].mxu0 %v259
  %v608 = vpop.f32.mrb[0].mxu0
  %v609 = vadd.f32 %v100, %v608
  %v610 = vpop.f32.mrb[0].mxu0
  %v611 = vpop.f32.mrb[0].mxu0
  %v612 = vadd.f32 %v100, %v611
  %v613 = vpop.f32.mrb[0].mxu0
  %614 = vmatprep.mubr.bf16.mxu0 0
  %615 = vmatmul.mubr.bf16.gmra.mrb[0].mxu0 %v260
  %v616 = vpop.f32.mrb[0].mxu0
  %v617 = vadd.f32 %v100, %v616
  %v618 = vpop.f32.mrb[0].mxu0
  %v619 = vpop.f32.mrb[0].mxu0
  %v620 = vadd.f32 %v100, %v619
  %v621 = vpop.f32.mrb[0].mxu0
  %622 = vmatprep.mubr.bf16.mxu0 0
  %623 = vmatmul.mubr.bf16.gmra.mrb[0].mxu0 %v261
  %v624 = vpop.f32.mrb[0].mxu0
  %v625 = vadd.f32 %v100, %v624
  %v626 = vpop.f32.mrb[0].mxu0
  %v627 = vpop.f32.mrb[0].mxu0
  %v628 = vadd.f32 %v100, %v627
  %v629 = vpop.f32.mrb[0].mxu0
  %630 = vdwg.mxu0
  %631 = vst [vmem:[%s3] sm:$0xff] %v377
  %632 = vst [vmem:[%s3 + $0x8] sm:$0xff] %v380
  %633 = vst [vmem:[%s3 + $0x10] sm:$0xff] %v385
  %634 = vst [vmem:[%s3 + $0x18] sm:$0xff] %v388
  %635 = vst [vmem:[%s3 + $0x20] sm:$0xff] %v393
  %636 = vst [vmem:[%s3 + $0x28] sm:$0xff] %v396
  %637 = vst [vmem:[%s3 + $0x30] sm:$0xff] %v401
  %638 = vst [vmem:[%s3 + $0x38] sm:$0xff] %v404
  %639 = vst [vmem:[%s3 + $0x40] sm:$0xff] %v409
  %640 = vst [vmem:[%s3 + $0x48] sm:$0xff] %v412
  %641 = vst [vmem:[%s3 + $0x50] sm:$0xff] %v417
  %642 = vst [vmem:[%s3 + $0x58] sm:$0xff] %v420
  %643 = vst [vmem:[%s3 + $0x60] sm:$0xff] %v425
  %644 = vst [vmem:[%s3 + $0x68] sm:$0xff] %v428
  %645 = vst [vmem:[%s3 + $0x70] sm:$0xff] %v433
  %646 = vst [vmem:[%s3 + $0x78] sm:$0xff] %v436
  %647 = vst [vmem:[%s3 + $0x80] sm:$0xff] %v441
  %648 = vst [vmem:[%s3 + $0x88] sm:$0xff] %v444
  %649 = vst [vmem:[%s3 + $0x90] sm:$0xff] %v449
  %650 = vst [vmem:[%s3 + $0x98] sm:$0xff] %v452
  %651 = vst [vmem:[%s3 + $0xa0] sm:$0xff] %v457
  %652 = vst [vmem:[%s3 + $0xa8] sm:$0xff] %v460
  %653 = vst [vmem:[%s3 + $0xb0] sm:$0xff] %v465
  %654 = vst [vmem:[%s3 + $0xb8] sm:$0xff] %v468
  %655 = vst [vmem:[%s3 + $0xc0] sm:$0xff] %v473
  %656 = vst [vmem:[%s3 + $0xc8] sm:$0xff] %v476
  %657 = vst [vmem:[%s3 + $0xd0] sm:$0xff] %v481
  %658 = vst [vmem:[%s3 + $0xd8] sm:$0xff] %v484
  %659 = vst [vmem:[%s3 + $0xe0] sm:$0xff] %v489
  %660 = vst [vmem:[%s3 + $0xe8] sm:$0xff] %v492
  %661 = vst [vmem:[%s3 + $0xf0] sm:$0xff] %v497
  %662 = vst [vmem:[%s3 + $0xf8] sm:$0xff] %v500
  %663 = vst [vmem:[%s3 + $0x100] sm:$0xff] %v505
  %664 = vst [vmem:[%s3 + $0x108] sm:$0xff] %v508
  %665 = vst [vmem:[%s3 + $0x110] sm:$0xff] %v513
  %666 = vst [vmem:[%s3 + $0x118] sm:$0xff] %v516
  %667 = vst [vmem:[%s3 + $0x120] sm:$0xff] %v521
  %668 = vst [vmem:[%s3 + $0x128] sm:$0xff] %v524
  %669 = vst [vmem:[%s3 + $0x130] sm:$0xff] %v529
  %670 = vst [vmem:[%s3 + $0x138] sm:$0xff] %v532
  %671 = vst [vmem:[%s3 + $0x140] sm:$0xff] %v537
  %672 = vst [vmem:[%s3 + $0x148] sm:$0xff] %v540
  %673 = vst [vmem:[%s3 + $0x150] sm:$0xff] %v545
  %674 = vst [vmem:[%s3 + $0x158] sm:$0xff] %v548
  %675 = vst [vmem:[%s3 + $0x160] sm:$0xff] %v553
  %676 = vst [vmem:[%s3 + $0x168] sm:$0xff] %v556
  %677 = vst [vmem:[%s3 + $0x170] sm:$0xff] %v561
  %678 = vst [vmem:[%s3 + $0x178] sm:$0xff] %v564
  %679 = vst [vmem:[%s3 + $0x180] sm:$0xff] %v569
  %680 = vst [vmem:[%s3 + $0x188] sm:$0xff] %v572
  %681 = vst [vmem:[%s3 + $0x190] sm:$0xff] %v577
  %682 = vst [vmem:[%s3 + $0x198] sm:$0xff] %v580
  %683 = vst [vmem:[%s3 + $0x1a0] sm:$0xff] %v585
  %684 = vst [vmem:[%s3 + $0x1a8] sm:$0xff] %v588
  %685 = vst [vmem:[%s3 + $0x1b0] sm:$0xff] %v593
  %686 = vst [vmem:[%s3 + $0x1b8] sm:$0xff] %v596
  %687 = vst [vmem:[%s3 + $0x1c0] sm:$0xff] %v601
  %688 = vst [vmem:[%s3 + $0x1c8] sm:$0xff] %v604
  %689 = vst [vmem:[%s3 + $0x1d0] sm:$0xff] %v609
  %690 = vst [vmem:[%s3 + $0x1d8] sm:$0xff] %v612
  %691 = vst [vmem:[%s3 + $0x1e0] sm:$0xff] %v617
  %692 = vst [vmem:[%s3 + $0x1e8] sm:$0xff] %v620
  %693 = vst [vmem:[%s3 + $0x1f0] sm:$0xff] %v625
  %694 = vst [vmem:[%s3 + $0x1f8] sm:$0xff] %v628
  // Predicated region
  $region14: #{_lambda_.45} parent=0 // pred_check
    _
  $region15: #{_lambda_.45} parent=0 // pred_check_branch
    %696 = sbr.rel (0) target = $region17
  $region16: #{_lambda_.45} parent=0 // pred_region
    _
  $region17: #{_lambda_.45} parent=0 // pred_fallthru
    _
  // Predicated region
  $region18: #{_lambda_.45} parent=0 // pred_check
    _
  $region19: #{_lambda_.45} parent=0 // pred_check_branch
    %698 = sbr.rel (0) target = $region21
  $region20: #{_lambda_.45} parent=0 // pred_region
    _
  $region21: #{_lambda_.45} parent=0 // pred_fallthru
    _

</llo_original>
